<compile_context>
chip_gen: v6e
topology: v6e:2x2x1
jax: 0.10.0
libtpu: 0.0.40
codegen_flags: <defaults>
</compile_context>

<pallas_src>
import functools

import jax
import jax.numpy as jnp
from jax import lax
from jax.experimental import pallas as pl
from jax.experimental.pallas import tpu as pltpu

LANE = 128


# ----------------------------------------------------------------------------
# Small helpers
# ----------------------------------------------------------------------------
def _round_up(n, m):
    return ((n + m - 1) // m) * m


def _pad_axis(x, axis, target):
    pad = target - x.shape[axis]
    if pad == 0:
        return x
    cfg = [(0, 0)] * x.ndim
    cfg[axis] = (0, pad)
    return jnp.pad(x, cfg)


@functools.lru_cache(maxsize=1)
def _vmem_limit_bytes():
    """Per-generation scoped-VMEM limit: ~48 MiB on v7x (64 MiB physical),
    ~112 MiB on v5e/v6e (128 MiB physical)."""
    try:
        cap = int(pltpu.get_tpu_info().vmem_capacity_bytes)
    except Exception:  # pragma: no cover - interpret / unknown backend
        cap = 128 * 1024 * 1024
    return int(min(cap - 16 * 1024 * 1024, 112 * 1024 * 1024))


def _pick_tiles(H, W, n_p, n_acc, acc_budget_bytes=64 * 1024):
    """Pick (TN, TH): the largest Cout tile (<=512, multiple of 128) and the
    largest row tile keeping the f32 accumulator(s) vreg-resident.  Prefer
    TH*W a multiple of 256 (full MXU M passes on v6e/v7x)."""
    for tn in (512, 384, 256, 128):
        if n_p % tn != 0:
            continue
        feas = [th for th in range(1, H + 1)
                if H % th == 0 and n_acc * th * W * tn * 4 <= acc_budget_bytes]
        if feas:
            pref = [th for th in feas if (th * W) % 256 == 0]
            return tn, (max(pref) if pref else max(feas))
    # TODO(synk): fall back to a VMEM f32 scratch accumulator when even
    # TN=128 / TH=1 exceeds the vreg budget (very large W).
    return (128 if n_p % 128 == 0 else n_p), 1


def _block_spec(shape, index_map, single_buffered=False):
    """BlockSpec helper; single_buffered=True requests Buffered(1) for blocks
    whose index only changes on the slowest grid axis (no DMA to hide)."""
    if single_buffered:
        try:
            return pl.BlockSpec(shape, index_map, pipeline_mode=pl.Buffered(1))
        except TypeError:  # older jax without pipeline_mode
            return pl.BlockSpec(shape, index_map)
    return pl.BlockSpec(shape, index_map)


# ----------------------------------------------------------------------------
# Kernels: fused 3x3 SAME conv(s) on a per-batch resident padded image
# ----------------------------------------------------------------------------
# TODO(synk): fold the 3 kx taps into K (K=3*Cin slabs) on v6e/v7x to raise
# MXU K utilization; kept per-tap here (exact fit for v5e's 128-deep MXU).
def _stage1_kernel(x_ref, wu_ref, wb_ref, bu_ref, bb_ref, up_ref, bot_ref, *,
                   TH, W):
    """x_ref:  (1, H+2, Wp, Cin)  padded image (bf16), resident per batch
       wu/wb:  (3, 3, Cin, TN)    bf16 polyphase weights (BN folded)
       bu/bb:  (1, TN)            f32 biases
       up/bot: (1, TH, W, TN)     bf16 outputs; upper branch gets the ReLU."""
    row0 = pl.multiple_of(pl.program_id(2) * TH, TH)
    tn = up_ref.shape[-1]
    acc_u = jnp.zeros((TH * W, tn), jnp.float32)
    acc_b = jnp.zeros((TH * W, tn), jnp.float32)
    for ky in range(3):
        for kx in range(3):
            patch = x_ref[0, pl.ds(row0 + ky, TH), kx:kx + W, :]
            patch = patch.reshape(TH * W, patch.shape[-1])
            acc_u = acc_u + jnp.dot(patch, wu_ref[ky, kx],
                                    preferred_element_type=jnp.float32)
            acc_b = acc_b + jnp.dot(patch, wb_ref[ky, kx],
                                    preferred_element_type=jnp.float32)
    y_u = jnp.maximum(acc_u + bu_ref[...], 0.0)
    y_b = acc_b + bb_ref[...]
    up_ref[0] = y_u.reshape(TH, W, tn).astype(up_ref.dtype)
    bot_ref[0] = y_b.reshape(TH, W, tn).astype(bot_ref.dtype)


def _stage2_kernel(x_ref, w_ref, b_ref, res_ref, o_ref, *, TH, W):
    """Polyphase stage 2: 3x3 conv on phase-major data + bias + residual + ReLU."""
    row0 = pl.multiple_of(pl.program_id(2) * TH, TH)
    tn = o_ref.shape[-1]
    acc = jnp.zeros((TH * W, tn), jnp.float32)
    for ky in range(3):
        for kx in range(3):
            patch = x_ref[0, pl.ds(row0 + ky, TH), kx:kx + W, :]
            patch = patch.reshape(TH * W, patch.shape[-1])
            acc = acc + jnp.dot(patch, w_ref[ky, kx],
                                preferred_element_type=jnp.float32)
    y = acc + b_ref[...] + res_ref[0].reshape(TH * W, tn).astype(jnp.float32)
    o_ref[0] = jnp.maximum(y, 0.0).reshape(TH, W, tn).astype(o_ref.dtype)


# ----------------------------------------------------------------------------
# pallas_call wrappers
# ----------------------------------------------------------------------------
def _conv_specs(Hp, Wpp, Cin_p, TN, TH, W):
    x_spec = _block_spec((1, Hp, Wpp, Cin_p), lambda b, n, r: (b, 0, 0, 0),
                         single_buffered=True)
    w_spec = pl.BlockSpec((3, 3, Cin_p, TN), lambda b, n, r: (0, 0, 0, n))
    bias_spec = pl.BlockSpec((1, TN), lambda b, n, r: (0, n))
    y_spec = pl.BlockSpec((1, TH, W, TN), lambda b, n, r: (b, r, 0, n))
    return x_spec, w_spec, bias_spec, y_spec


def stage1_conv(xp, wu, wb, bu, bb, H, W):
    B, Hp, Wpp, Cin_p = xp.shape
    Np = wu.shape[-1]
    TN, TH = _pick_tiles(H, W, Np, n_acc=2)
    grid = (B, Np // TN, H // TH)
    x_spec, w_spec, bias_spec, y_spec = _conv_specs(Hp, Wpp, Cin_p, TN, TH, W)

    flops = 2 * B * H * W * 9 * Cin_p * (2 * Np)
    bytes_accessed = (xp.size * 2 + (wu.size + wb.size) * 2
                      + (bu.size + bb.size) * 4 + 2 * B * H * W * Np * 2)

    return pl.pallas_call(
        functools.partial(_stage1_kernel, TH=TH, W=W),
        out_shape=(jax.ShapeDtypeStruct((B, H, W, Np), jnp.bfloat16),
                   jax.ShapeDtypeStruct((B, H, W, Np), jnp.bfloat16)),
        grid_spec=pltpu.PrefetchScalarGridSpec(
            num_scalar_prefetch=0,
            grid=grid,
            in_specs=[x_spec, w_spec, w_spec, bias_spec, bias_spec],
            out_specs=(y_spec, y_spec)),
        compiler_params=pltpu.CompilerParams(
            dimension_semantics=("parallel", "parallel", "parallel"),
            vmem_limit_bytes=_vmem_limit_bytes()),
        cost_estimate=pl.CostEstimate(flops=int(flops), transcendentals=0,
                                      bytes_accessed=int(bytes_accessed)),
    )(xp, wu, wb, bu, bb)


def stage2_conv(up_padded, w, bias, residual, H, W):
    B, Hp, Wpp, Cin_p = up_padded.shape
    Np = w.shape[-1]
    TN, TH = _pick_tiles(H, W, Np, n_acc=1)
    grid = (B, Np // TN, H // TH)
    x_spec, w_spec, bias_spec, y_spec = _conv_specs(Hp, Wpp, Cin_p, TN, TH, W)
    res_spec = pl.BlockSpec((1, TH, W, TN), lambda b, n, r: (b, r, 0, n))

    flops = 2 * B * H * W * 9 * Cin_p * Np
    bytes_accessed = (up_padded.size * 2 + w.size * 2 + bias.size * 4
                      + residual.size * 2 + B * H * W * Np * 4)

    return pl.pallas_call(
        functools.partial(_stage2_kernel, TH=TH, W=W),
        out_shape=jax.ShapeDtypeStruct((B, H, W, Np), jnp.float32),
        grid_spec=pltpu.PrefetchScalarGridSpec(
            num_scalar_prefetch=0,
            grid=grid,
            in_specs=[x_spec, w_spec, bias_spec, res_spec],
            out_specs=y_spec),
        compiler_params=pltpu.CompilerParams(
            dimension_semantics=("parallel", "parallel", "parallel"),
            vmem_limit_bytes=_vmem_limit_bytes()),
        cost_estimate=pl.CostEstimate(flops=int(flops), transcendentals=0,
                                      bytes_accessed=int(bytes_accessed)),
    )(up_padded, w, bias, residual)


# ----------------------------------------------------------------------------
# Weight preparation (polyphase rewrites, BN folding)
# ----------------------------------------------------------------------------
def fold_bn(gamma, beta, mean, var, eps=1e-5):
    scale = gamma / jnp.sqrt(var + eps)
    bias = beta - mean * scale
    return scale, bias


def _polyphase_unpool_conv5(w5, scale):
    """(5,5,Cin,Co)*scale -> (3,3,Cin,4*Co) so that, with phase p = 2*a + b:
       conv5x5(SAME, zero_stuff_x2(x))[2r+a, 2c+b, c] ==
       conv3x3(SAME, x, out[..., p*Co+c])[r, c]."""
    w5 = w5 * scale
    cin, co = w5.shape[2], w5.shape[3]
    out = jnp.zeros((3, 3, cin, 4, co), w5.dtype)
    for a in range(2):
        for b in range(2):
            for dy in range(3):
                for dx in range(3):
                    ky, kx = 2 * dy - a, 2 * dx - b
                    if 0 <= ky < 5 and 0 <= kx < 5:
                        out = out.at[dy, dx, :, 2 * a + b, :].set(w5[ky, kx])
    return out.reshape(3, 3, cin, 4 * co)


def _polyphase_conv3(w3, scale, co):
    """(3,3,Co,Co)*scale -> (3,3,4*Co,4*Co): the fine-resolution 3x3 SAME conv
    expressed directly on phase-major coarse data (channel = phase*Co + c).
    TODO(synk): exploit this weight's 75% block sparsity (contiguous per-row-
    phase sub-matmuls) to cut stage-2 MXU work ~2x for large Co."""
    w3 = w3 * scale
    out = jnp.zeros((3, 3, 4 * co, 4 * co), w3.dtype)
    for a in range(2):                  # output row phase
        for b in range(2):              # output col phase
            for ap in range(2):         # input row phase
                for bp in range(2):     # input col phase
                    for dr in range(3):
                        for dc in range(3):
                            ty = 2 * (dr - 1) + ap - a + 1
                            tx = 2 * (dc - 1) + bp - b + 1
                            if 0 <= ty < 3 and 0 <= tx < 3:
                                pi, po = 2 * ap + bp, 2 * a + b
                                out = out.at[dr, dc,
                                             pi * co:(pi + 1) * co,
                                             po * co:(po + 1) * co
                                             ].set(w3[ty, tx])
    return out


def _pad_halo_nhwc(x, cin_p):
    """bf16 cast + channel pad + 1-px conv halo, with the padded row length
    rounded up to a multiple of 8 sublanes (one fused jnp.pad)."""
    W = x.shape[2]
    wpp = _round_up(W + 2, 8)
    x = _pad_axis(x.astype(jnp.bfloat16), 3, cin_p)
    return jnp.pad(x, ((0, 0), (1, 1), (1, wpp - W - 1), (0, 0)))


def init_params(key, in_channels):
    out_channels = in_channels // 2
    ks = jax.random.split(key, 6)

    def conv_w(k, kh, cin, cout):
        return 0.1 * jax.random.normal(k, (kh, kh, cin, cout), jnp.float32)

    def bn_params(k, c):
        k1, k2, k3, k4 = jax.random.split(k, 4)
        gamma = 1.0 + 0.1 * jax.random.normal(k1, (c,), jnp.float32)
        beta = 0.1 * jax.random.normal(k2, (c,), jnp.float32)
        mean = 0.05 * jax.random.normal(k3, (c,), jnp.float32)
        var = jnp.abs(1.0 + 0.1 * jax.random.normal(k4, (c,), jnp.float32))
        return fold_bn(gamma, beta, mean, var)

    return {
        "up_conv1_w": conv_w(ks[0], 5, in_channels, out_channels),
        "up_bn1": bn_params(ks[1], out_channels),
        "up_conv2_w": conv_w(ks[2], 3, out_channels, out_channels),
        "up_bn2": bn_params(ks[3], out_channels),
        "bot_conv_w": conv_w(ks[4], 5, in_channels, out_channels),
        "bot_bn": bn_params(ks[5], out_channels),
    }


# ----------------------------------------------------------------------------
# Module forward
# ----------------------------------------------------------------------------
def up_proj_module(params, x_nchw):
    """UpProjModule forward (inference-mode BN). Input NCHW, output NCHW."""
    x = jnp.transpose(x_nchw, (0, 2, 3, 1))                     # NHWC
    B, H, W, Cin = x.shape
    Co = params["up_conv1_w"].shape[-1]

    s1, b1 = params["up_bn1"]
    sb, bb = params["bot_bn"]
    s2, b2 = params["up_bn2"]

    Cin_p = _round_up(Cin, LANE)
    Nh = 4 * Co                        # phase-major channels per branch
    Nh_p = _round_up(Nh, LANE)

    # ---- stage 1: unpool + both 5x5 convs (polyphase, BN folded) ----
    wu1 = _pad_axis(_pad_axis(_polyphase_unpool_conv5(params["up_conv1_w"], s1),
                              2, Cin_p), 3, Nh_p).astype(jnp.bfloat16)
    wb1 = _pad_axis(_pad_axis(_polyphase_unpool_conv5(params["bot_conv_w"], sb),
                              2, Cin_p), 3, Nh_p).astype(jnp.bfloat16)
    bu1 = _pad_axis(jnp.tile(b1, 4), 0, Nh_p).reshape(1, Nh_p).astype(jnp.float32)
    bb1 = _pad_axis(jnp.tile(bb, 4), 0, Nh_p).reshape(1, Nh_p).astype(jnp.float32)

    # TODO(synk): replace the HBM-side halo pad with row-tiled manual DMA
    # (memory_space=pl.ANY + make_async_copy) to drop one extra HBM pass.
    xp = _pad_halo_nhwc(x, Cin_p)
    u_ph, bot_ph = stage1_conv(xp, wu1, wb1, bu1, bb1, H, W)     # bf16, bf16

    # ---- stage 2: upper 3x3 conv (polyphase, consumes u_ph directly) + BN2
    #      + bottom residual + final ReLU ----
    w2 = _pad_axis(_pad_axis(_polyphase_conv3(params["up_conv2_w"], s2, Co),
                             2, Nh_p), 3, Nh_p).astype(jnp.bfloat16)
    b2p = _pad_axis(jnp.tile(b2, 4), 0, Nh_p).reshape(1, Nh_p).astype(jnp.float32)

    up_pad = _pad_halo_nhwc(u_ph, Nh_p)          # only inter-stage glue op
    o_ph = stage2_conv(up_pad, w2, b2p, bot_ph, H, W)            # f32

    # ---- single final de-interleave: phase-major -> (B,2H,2W,Co) -> NCHW ----
    o = o_ph[..., :Nh].reshape(B, H, W, 2, 2, Co)
    o = jnp.transpose(o, (0, 1, 3, 2, 4, 5)).reshape(B, 2 * H, 2 * W, Co)
    return jnp.transpose(o, (0, 3, 1, 2))


# ----------------------------------------------------------------------------
# Reference (mirrors the kernel's bf16 quantization points exactly)
# ----------------------------------------------------------------------------
def unpool_zero_stuff(x_nhwc, stride=2):
    B, H, W, C = x_nhwc.shape
    y = x_nhwc.reshape(B, H, 1, W, 1, C)
    y = jnp.pad(y, ((0, 0), (0, 0), (0, stride - 1),
                    (0, 0), (0, stride - 1), (0, 0)))
    return y.reshape(B, H * stride, W * stride, C)


def _ref_forward(params, x_nchw):
    def q(v):
        return v.astype(jnp.bfloat16)

    def conv(inp, w):
        return lax.conv_general_dilated(
            inp, w, (1, 1), "SAME",
            dimension_numbers=("NHWC", "HWIO", "NHWC"),
            preferred_element_type=jnp.float32)

    x = jnp.transpose(x_nchw, (0, 2, 3, 1))
    s1, b1 = params["up_bn1"]
    sb, bb = params["bot_bn"]
    s2, b2 = params["up_bn2"]

    xs = unpool_zero_stuff(q(x))
    u = q(jnp.maximum(conv(xs, q(params["up_conv1_w"] * s1)) + b1, 0.0))
    bottom = q(conv(xs, q(params["bot_conv_w"] * sb)) + bb)
    out = jnp.maximum(conv(u, q(params["up_conv2_w"] * s2)) + b2
                      + bottom.astype(jnp.float32), 0.0)
    return jnp.transpose(out, (0, 3, 1, 2))


if __name__ == "__main__":
    key = jax.random.PRNGKey(0)
    k_x, k_p = jax.random.split(key)

    B, C, H, W = 2, 4, 16, 16              # output: (2, 2, 32, 32)
    x = jax.random.normal(k_x, (B, C, H, W), jnp.float32)
    params = init_params(k_p, C)

    out = jax.block_until_ready(jax.jit(up_proj_module)(params, x))
    ref = jax.block_until_ready(jax.jit(_ref_forward)(params, x))

    assert out.shape == (B, C // 2, 2 * H, 2 * W), out.shape
    err = float(jnp.max(jnp.abs(out - ref)))
    assert err < 2e-2, f"max abs err {err}"
    print("KERNEL_OK")
</pallas_src>

<mosaic_0001>
module attributes {stable_mosaic.version = 11 : i64} {
  func.func @_stage1_kernel(%arg0: i32, %arg1: i32, %arg2: i32, %arg3: memref<1x18x24x128xbf16, #tpu.memory_space<vmem>>, %arg4: memref<3x3x128x128xbf16, #tpu.memory_space<vmem>>, %arg5: memref<3x3x128x128xbf16, #tpu.memory_space<vmem>>, %arg6: memref<1x128xf32, #tpu.memory_space<vmem>>, %arg7: memref<1x128xf32, #tpu.memory_space<vmem>>, %arg8: memref<1x4x16x128xbf16, #tpu.memory_space<vmem>>, %arg9: memref<1x4x16x128xbf16, #tpu.memory_space<vmem>>) attributes {dimension_semantics = [#tpu.dimension_semantics<parallel>, #tpu.dimension_semantics<parallel>, #tpu.dimension_semantics<parallel>], iteration_bounds = array<i64: 2, 1, 4>, scalar_prefetch = 0 : i64, scratch_operands = 0 : i64, tpu.core_type = #tpu.core_type<tc>, window_params = [{pipeline_mode = #tpu.pipeline_mode<synchronous>, transform_indices = @transform_0, window_bounds = array<i64: 1, 18, 24, 128>}, {transform_indices = @transform_1, window_bounds = array<i64: 3, 3, 128, 128>}, {transform_indices = @transform_2, window_bounds = array<i64: 3, 3, 128, 128>}, {transform_indices = @transform_3, window_bounds = array<i64: 1, 128>}, {transform_indices = @transform_4, window_bounds = array<i64: 1, 128>}, {transform_indices = @transform_5, window_bounds = array<i64: 1, 4, 16, 128>}, {transform_indices = @transform_6, window_bounds = array<i64: 1, 4, 16, 128>}]} {
    %c4_i32 = arith.constant 4 : i32
    %0 = arith.muli %arg2, %c4_i32 : i32
    %1 = tpu.assume_multiple %0, 4 : i32
    %cst = arith.constant 0.000000e+00 : f32
    %2 = vector.broadcast %cst : f32 to vector<64x128xf32>
    %cst_0 = arith.constant 0.000000e+00 : f32
    %3 = vector.broadcast %cst_0 : f32 to vector<64x128xf32>
    %c0_i32 = arith.constant 0 : i32
    %4 = arith.addi %1, %c0_i32 : i32
    %c0 = arith.constant 0 : index
    %5 = arith.index_cast %4 : i32 to index
    %c0_1 = arith.constant 0 : index
    %c0_2 = arith.constant 0 : index
    %6 = vector.load %arg3[%c0, %5, %c0_1, %c0_2] : memref<1x18x24x128xbf16, #tpu.memory_space<vmem>>, vector<1x4x16x128xbf16>
    %7 = vector.shape_cast %6 : vector<1x4x16x128xbf16> to vector<4x16x128xbf16>
    %8 = vector.shape_cast %7 : vector<4x16x128xbf16> to vector<64x128xbf16>
    %c0_3 = arith.constant 0 : index
    %c0_4 = arith.constant 0 : index
    %c0_5 = arith.constant 0 : index
    %c0_6 = arith.constant 0 : index
    %9 = vector.load %arg4[%c0_3, %c0_4, %c0_5, %c0_6] : memref<3x3x128x128xbf16, #tpu.memory_space<vmem>>, vector<1x1x128x128xbf16>
    %10 = vector.shape_cast %9 : vector<1x1x128x128xbf16> to vector<128x128xbf16>
    %cst_7 = arith.constant dense<0.000000e+00> : vector<64x128xf32>
    %11 = tpu.matmul %8, %10, %cst_7 {dimension_numbers = #tpu.dot_dimension_numbers<[1], [0], [0], [1], [0, 0, 1, 1], [], []>} : vector<64x128xbf16>, vector<128x128xbf16>, vector<64x128xf32> -> vector<64x128xf32>
    %12 = arith.addf %2, %11 : vector<64x128xf32>
    %c0_8 = arith.constant 0 : index
    %c0_9 = arith.constant 0 : index
    %c0_10 = arith.constant 0 : index
    %c0_11 = arith.constant 0 : index
    %13 = vector.load %arg5[%c0_8, %c0_9, %c0_10, %c0_11] : memref<3x3x128x128xbf16, #tpu.memory_space<vmem>>, vector<1x1x128x128xbf16>
    %14 = vector.shape_cast %13 : vector<1x1x128x128xbf16> to vector<128x128xbf16>
    %cst_12 = arith.constant dense<0.000000e+00> : vector<64x128xf32>
    %15 = tpu.matmul %8, %14, %cst_12 {dimension_numbers = #tpu.dot_dimension_numbers<[1], [0], [0], [1], [0, 0, 1, 1], [], []>} : vector<64x128xbf16>, vector<128x128xbf16>, vector<64x128xf32> -> vector<64x128xf32>
    %16 = arith.addf %3, %15 : vector<64x128xf32>
    %c0_i32_13 = arith.constant 0 : i32
    %17 = arith.addi %1, %c0_i32_13 : i32
    %c0_14 = arith.constant 0 : index
    %18 = arith.index_cast %17 : i32 to index
    %c1 = arith.constant 1 : index
    %c0_15 = arith.constant 0 : index
    %19 = vector.load %arg3[%c0_14, %18, %c1, %c0_15] : memref<1x18x24x128xbf16, #tpu.memory_space<vmem>>, vector<1x4x16x128xbf16>
    %20 = vector.shape_cast %19 : vector<1x4x16x128xbf16> to vector<4x16x128xbf16>
    %21 = vector.shape_cast %20 : vector<4x16x128xbf16> to vector<64x128xbf16>
    %c0_16 = arith.constant 0 : index
    %c1_17 = arith.constant 1 : index
    %c0_18 = arith.constant 0 : index
    %c0_19 = arith.constant 0 : index
    %22 = vector.load %arg4[%c0_16, %c1_17, %c0_18, %c0_19] : memref<3x3x128x128xbf16, #tpu.memory_space<vmem>>, vector<1x1x128x128xbf16>
    %23 = vector.shape_cast %22 : vector<1x1x128x128xbf16> to vector<128x128xbf16>
    %cst_20 = arith.constant dense<0.000000e+00> : vector<64x128xf32>
    %24 = tpu.matmul %21, %23, %cst_20 {dimension_numbers = #tpu.dot_dimension_numbers<[1], [0], [0], [1], [0, 0, 1, 1], [], []>} : vector<64x128xbf16>, vector<128x128xbf16>, vector<64x128xf32> -> vector<64x128xf32>
    %25 = arith.addf %12, %24 : vector<64x128xf32>
    %c0_21 = arith.constant 0 : index
    %c1_22 = arith.constant 1 : index
    %c0_23 = arith.constant 0 : index
    %c0_24 = arith.constant 0 : index
    %26 = vector.load %arg5[%c0_21, %c1_22, %c0_23, %c0_24] : memref<3x3x128x128xbf16, #tpu.memory_space<vmem>>, vector<1x1x128x128xbf16>
    %27 = vector.shape_cast %26 : vector<1x1x128x128xbf16> to vector<128x128xbf16>
    %cst_25 = arith.constant dense<0.000000e+00> : vector<64x128xf32>
    %28 = tpu.matmul %21, %27, %cst_25 {dimension_numbers = #tpu.dot_dimension_numbers<[1], [0], [0], [1], [0, 0, 1, 1], [], []>} : vector<64x128xbf16>, vector<128x128xbf16>, vector<64x128xf32> -> vector<64x128xf32>
    %29 = arith.addf %16, %28 : vector<64x128xf32>
    %c0_i32_26 = arith.constant 0 : i32
    %30 = arith.addi %1, %c0_i32_26 : i32
    %c0_27 = arith.constant 0 : index
    %31 = arith.index_cast %30 : i32 to index
    %c2 = arith.constant 2 : index
    %c0_28 = arith.constant 0 : index
    %32 = vector.load %arg3[%c0_27, %31, %c2, %c0_28] : memref<1x18x24x128xbf16, #tpu.memory_space<vmem>>, vector<1x4x16x128xbf16>
    %33 = vector.shape_cast %32 : vector<1x4x16x128xbf16> to vector<4x16x128xbf16>
    %34 = vector.shape_cast %33 : vector<4x16x128xbf16> to vector<64x128xbf16>
    %c0_29 = arith.constant 0 : index
    %c2_30 = arith.constant 2 : index
    %c0_31 = arith.constant 0 : index
    %c0_32 = arith.constant 0 : index
    %35 = vector.load %arg4[%c0_29, %c2_30, %c0_31, %c0_32] : memref<3x3x128x128xbf16, #tpu.memory_space<vmem>>, vector<1x1x128x128xbf16>
    %36 = vector.shape_cast %35 : vector<1x1x128x128xbf16> to vector<128x128xbf16>
    %cst_33 = arith.constant dense<0.000000e+00> : vector<64x128xf32>
    %37 = tpu.matmul %34, %36, %cst_33 {dimension_numbers = #tpu.dot_dimension_numbers<[1], [0], [0], [1], [0, 0, 1, 1], [], []>} : vector<64x128xbf16>, vector<128x128xbf16>, vector<64x128xf32> -> vector<64x128xf32>
    %38 = arith.addf %25, %37 : vector<64x128xf32>
    %c0_34 = arith.constant 0 : index
    %c2_35 = arith.constant 2 : index
    %c0_36 = arith.constant 0 : index
    %c0_37 = arith.constant 0 : index
    %39 = vector.load %arg5[%c0_34, %c2_35, %c0_36, %c0_37] : memref<3x3x128x128xbf16, #tpu.memory_space<vmem>>, vector<1x1x128x128xbf16>
    %40 = vector.shape_cast %39 : vector<1x1x128x128xbf16> to vector<128x128xbf16>
    %cst_38 = arith.constant dense<0.000000e+00> : vector<64x128xf32>
    %41 = tpu.matmul %34, %40, %cst_38 {dimension_numbers = #tpu.dot_dimension_numbers<[1], [0], [0], [1], [0, 0, 1, 1], [], []>} : vector<64x128xbf16>, vector<128x128xbf16>, vector<64x128xf32> -> vector<64x128xf32>
    %42 = arith.addf %29, %41 : vector<64x128xf32>
    %c1_i32 = arith.constant 1 : i32
    %43 = arith.addi %1, %c1_i32 : i32
    %c0_39 = arith.constant 0 : index
    %44 = arith.index_cast %43 : i32 to index
    %c0_40 = arith.constant 0 : index
    %c0_41 = arith.constant 0 : index
    %45 = vector.load %arg3[%c0_39, %44, %c0_40, %c0_41] : memref<1x18x24x128xbf16, #tpu.memory_space<vmem>>, vector<1x4x16x128xbf16>
    %46 = vector.shape_cast %45 : vector<1x4x16x128xbf16> to vector<4x16x128xbf16>
    %47 = vector.shape_cast %46 : vector<4x16x128xbf16> to vector<64x128xbf16>
    %c1_42 = arith.constant 1 : index
    %c0_43 = arith.constant 0 : index
    %c0_44 = arith.constant 0 : index
    %c0_45 = arith.constant 0 : index
    %48 = vector.load %arg4[%c1_42, %c0_43, %c0_44, %c0_45] : memref<3x3x128x128xbf16, #tpu.memory_space<vmem>>, vector<1x1x128x128xbf16>
    %49 = vector.shape_cast %48 : vector<1x1x128x128xbf16> to vector<128x128xbf16>
    %cst_46 = arith.constant dense<0.000000e+00> : vector<64x128xf32>
    %50 = tpu.matmul %47, %49, %cst_46 {dimension_numbers = #tpu.dot_dimension_numbers<[1], [0], [0], [1], [0, 0, 1, 1], [], []>} : vector<64x128xbf16>, vector<128x128xbf16>, vector<64x128xf32> -> vector<64x128xf32>
    %51 = arith.addf %38, %50 : vector<64x128xf32>
    %c1_47 = arith.constant 1 : index
    %c0_48 = arith.constant 0 : index
    %c0_49 = arith.constant 0 : index
    %c0_50 = arith.constant 0 : index
    %52 = vector.load %arg5[%c1_47, %c0_48, %c0_49, %c0_50] : memref<3x3x128x128xbf16, #tpu.memory_space<vmem>>, vector<1x1x128x128xbf16>
    %53 = vector.shape_cast %52 : vector<1x1x128x128xbf16> to vector<128x128xbf16>
    %cst_51 = arith.constant dense<0.000000e+00> : vector<64x128xf32>
    %54 = tpu.matmul %47, %53, %cst_51 {dimension_numbers = #tpu.dot_dimension_numbers<[1], [0], [0], [1], [0, 0, 1, 1], [], []>} : vector<64x128xbf16>, vector<128x128xbf16>, vector<64x128xf32> -> vector<64x128xf32>
    %55 = arith.addf %42, %54 : vector<64x128xf32>
    %c1_i32_52 = arith.constant 1 : i32
    %56 = arith.addi %1, %c1_i32_52 : i32
    %c0_53 = arith.constant 0 : index
    %57 = arith.index_cast %56 : i32 to index
    %c1_54 = arith.constant 1 : index
    %c0_55 = arith.constant 0 : index
    %58 = vector.load %arg3[%c0_53, %57, %c1_54, %c0_55] : memref<1x18x24x128xbf16, #tpu.memory_space<vmem>>, vector<1x4x16x128xbf16>
    %59 = vector.shape_cast %58 : vector<1x4x16x128xbf16> to vector<4x16x128xbf16>
    %60 = vector.shape_cast %59 : vector<4x16x128xbf16> to vector<64x128xbf16>
    %c1_56 = arith.constant 1 : index
    %c1_57 = arith.constant 1 : index
    %c0_58 = arith.constant 0 : index
    %c0_59 = arith.constant 0 : index
    %61 = vector.load %arg4[%c1_56, %c1_57, %c0_58, %c0_59] : memref<3x3x128x128xbf16, #tpu.memory_space<vmem>>, vector<1x1x128x128xbf16>
    %62 = vector.shape_cast %61 : vector<1x1x128x128xbf16> to vector<128x128xbf16>
    %cst_60 = arith.constant dense<0.000000e+00> : vector<64x128xf32>
    %63 = tpu.matmul %60, %62, %cst_60 {dimension_numbers = #tpu.dot_dimension_numbers<[1], [0], [0], [1], [0, 0, 1, 1], [], []>} : vector<64x128xbf16>, vector<128x128xbf16>, vector<64x128xf32> -> vector<64x128xf32>
    %64 = arith.addf %51, %63 : vector<64x128xf32>
    %c1_61 = arith.constant 1 : index
    %c1_62 = arith.constant 1 : index
    %c0_63 = arith.constant 0 : index
    %c0_64 = arith.constant 0 : index
    %65 = vector.load %arg5[%c1_61, %c1_62, %c0_63, %c0_64] : memref<3x3x128x128xbf16, #tpu.memory_space<vmem>>, vector<1x1x128x128xbf16>
    %66 = vector.shape_cast %65 : vector<1x1x128x128xbf16> to vector<128x128xbf16>
    %cst_65 = arith.constant dense<0.000000e+00> : vector<64x128xf32>
    %67 = tpu.matmul %60, %66, %cst_65 {dimension_numbers = #tpu.dot_dimension_numbers<[1], [0], [0], [1], [0, 0, 1, 1], [], []>} : vector<64x128xbf16>, vector<128x128xbf16>, vector<64x128xf32> -> vector<64x128xf32>
    %68 = arith.addf %55, %67 : vector<64x128xf32>
    %c1_i32_66 = arith.constant 1 : i32
    %69 = arith.addi %1, %c1_i32_66 : i32
    %c0_67 = arith.constant 0 : index
    %70 = arith.index_cast %69 : i32 to index
    %c2_68 = arith.constant 2 : index
    %c0_69 = arith.constant 0 : index
    %71 = vector.load %arg3[%c0_67, %70, %c2_68, %c0_69] : memref<1x18x24x128xbf16, #tpu.memory_space<vmem>>, vector<1x4x16x128xbf16>
    %72 = vector.shape_cast %71 : vector<1x4x16x128xbf16> to vector<4x16x128xbf16>
    %73 = vector.shape_cast %72 : vector<4x16x128xbf16> to vector<64x128xbf16>
    %c1_70 = arith.constant 1 : index
    %c2_71 = arith.constant 2 : index
    %c0_72 = arith.constant 0 : index
    %c0_73 = arith.constant 0 : index
    %74 = vector.load %arg4[%c1_70, %c2_71, %c0_72, %c0_73] : memref<3x3x128x128xbf16, #tpu.memory_space<vmem>>, vector<1x1x128x128xbf16>
    %75 = vector.shape_cast %74 : vector<1x1x128x128xbf16> to vector<128x128xbf16>
    %cst_74 = arith.constant dense<0.000000e+00> : vector<64x128xf32>
    %76 = tpu.matmul %73, %75, %cst_74 {dimension_numbers = #tpu.dot_dimension_numbers<[1], [0], [0], [1], [0, 0, 1, 1], [], []>} : vector<64x128xbf16>, vector<128x128xbf16>, vector<64x128xf32> -> vector<64x128xf32>
    %77 = arith.addf %64, %76 : vector<64x128xf32>
    %c1_75 = arith.constant 1 : index
    %c2_76 = arith.constant 2 : index
    %c0_77 = arith.constant 0 : index
    %c0_78 = arith.constant 0 : index
    %78 = vector.load %arg5[%c1_75, %c2_76, %c0_77, %c0_78] : memref<3x3x128x128xbf16, #tpu.memory_space<vmem>>, vector<1x1x128x128xbf16>
    %79 = vector.shape_cast %78 : vector<1x1x128x128xbf16> to vector<128x128xbf16>
    %cst_79 = arith.constant dense<0.000000e+00> : vector<64x128xf32>
    %80 = tpu.matmul %73, %79, %cst_79 {dimension_numbers = #tpu.dot_dimension_numbers<[1], [0], [0], [1], [0, 0, 1, 1], [], []>} : vector<64x128xbf16>, vector<128x128xbf16>, vector<64x128xf32> -> vector<64x128xf32>
    %81 = arith.addf %68, %80 : vector<64x128xf32>
    %c2_i32 = arith.constant 2 : i32
    %82 = arith.addi %1, %c2_i32 : i32
    %c0_80 = arith.constant 0 : index
    %83 = arith.index_cast %82 : i32 to index
    %c0_81 = arith.constant 0 : index
    %c0_82 = arith.constant 0 : index
    %84 = vector.load %arg3[%c0_80, %83, %c0_81, %c0_82] : memref<1x18x24x128xbf16, #tpu.memory_space<vmem>>, vector<1x4x16x128xbf16>
    %85 = vector.shape_cast %84 : vector<1x4x16x128xbf16> to vector<4x16x128xbf16>
    %86 = vector.shape_cast %85 : vector<4x16x128xbf16> to vector<64x128xbf16>
    %c2_83 = arith.constant 2 : index
    %c0_84 = arith.constant 0 : index
    %c0_85 = arith.constant 0 : index
    %c0_86 = arith.constant 0 : index
    %87 = vector.load %arg4[%c2_83, %c0_84, %c0_85, %c0_86] : memref<3x3x128x128xbf16, #tpu.memory_space<vmem>>, vector<1x1x128x128xbf16>
    %88 = vector.shape_cast %87 : vector<1x1x128x128xbf16> to vector<128x128xbf16>
    %cst_87 = arith.constant dense<0.000000e+00> : vector<64x128xf32>
    %89 = tpu.matmul %86, %88, %cst_87 {dimension_numbers = #tpu.dot_dimension_numbers<[1], [0], [0], [1], [0, 0, 1, 1], [], []>} : vector<64x128xbf16>, vector<128x128xbf16>, vector<64x128xf32> -> vector<64x128xf32>
    %90 = arith.addf %77, %89 : vector<64x128xf32>
    %c2_88 = arith.constant 2 : index
    %c0_89 = arith.constant 0 : index
    %c0_90 = arith.constant 0 : index
    %c0_91 = arith.constant 0 : index
    %91 = vector.load %arg5[%c2_88, %c0_89, %c0_90, %c0_91] : memref<3x3x128x128xbf16, #tpu.memory_space<vmem>>, vector<1x1x128x128xbf16>
    %92 = vector.shape_cast %91 : vector<1x1x128x128xbf16> to vector<128x128xbf16>
    %cst_92 = arith.constant dense<0.000000e+00> : vector<64x128xf32>
    %93 = tpu.matmul %86, %92, %cst_92 {dimension_numbers = #tpu.dot_dimension_numbers<[1], [0], [0], [1], [0, 0, 1, 1], [], []>} : vector<64x128xbf16>, vector<128x128xbf16>, vector<64x128xf32> -> vector<64x128xf32>
    %94 = arith.addf %81, %93 : vector<64x128xf32>
    %c2_i32_93 = arith.constant 2 : i32
    %95 = arith.addi %1, %c2_i32_93 : i32
    %c0_94 = arith.constant 0 : index
    %96 = arith.index_cast %95 : i32 to index
    %c1_95 = arith.constant 1 : index
    %c0_96 = arith.constant 0 : index
    %97 = vector.load %arg3[%c0_94, %96, %c1_95, %c0_96] : memref<1x18x24x128xbf16, #tpu.memory_space<vmem>>, vector<1x4x16x128xbf16>
    %98 = vector.shape_cast %97 : vector<1x4x16x128xbf16> to vector<4x16x128xbf16>
    %99 = vector.shape_cast %98 : vector<4x16x128xbf16> to vector<64x128xbf16>
    %c2_97 = arith.constant 2 : index
    %c1_98 = arith.constant 1 : index
    %c0_99 = arith.constant 0 : index
    %c0_100 = arith.constant 0 : index
    %100 = vector.load %arg4[%c2_97, %c1_98, %c0_99, %c0_100] : memref<3x3x128x128xbf16, #tpu.memory_space<vmem>>, vector<1x1x128x128xbf16>
    %101 = vector.shape_cast %100 : vector<1x1x128x128xbf16> to vector<128x128xbf16>
    %cst_101 = arith.constant dense<0.000000e+00> : vector<64x128xf32>
    %102 = tpu.matmul %99, %101, %cst_101 {dimension_numbers = #tpu.dot_dimension_numbers<[1], [0], [0], [1], [0, 0, 1, 1], [], []>} : vector<64x128xbf16>, vector<128x128xbf16>, vector<64x128xf32> -> vector<64x128xf32>
    %103 = arith.addf %90, %102 : vector<64x128xf32>
    %c2_102 = arith.constant 2 : index
    %c1_103 = arith.constant 1 : index
    %c0_104 = arith.constant 0 : index
    %c0_105 = arith.constant 0 : index
    %104 = vector.load %arg5[%c2_102, %c1_103, %c0_104, %c0_105] : memref<3x3x128x128xbf16, #tpu.memory_space<vmem>>, vector<1x1x128x128xbf16>
    %105 = vector.shape_cast %104 : vector<1x1x128x128xbf16> to vector<128x128xbf16>
    %cst_106 = arith.constant dense<0.000000e+00> : vector<64x128xf32>
    %106 = tpu.matmul %99, %105, %cst_106 {dimension_numbers = #tpu.dot_dimension_numbers<[1], [0], [0], [1], [0, 0, 1, 1], [], []>} : vector<64x128xbf16>, vector<128x128xbf16>, vector<64x128xf32> -> vector<64x128xf32>
    %107 = arith.addf %94, %106 : vector<64x128xf32>
    %c2_i32_107 = arith.constant 2 : i32
    %108 = arith.addi %1, %c2_i32_107 : i32
    %c0_108 = arith.constant 0 : index
    %109 = arith.index_cast %108 : i32 to index
    %c2_109 = arith.constant 2 : index
    %c0_110 = arith.constant 0 : index
    %110 = vector.load %arg3[%c0_108, %109, %c2_109, %c0_110] : memref<1x18x24x128xbf16, #tpu.memory_space<vmem>>, vector<1x4x16x128xbf16>
    %111 = vector.shape_cast %110 : vector<1x4x16x128xbf16> to vector<4x16x128xbf16>
    %112 = vector.shape_cast %111 : vector<4x16x128xbf16> to vector<64x128xbf16>
    %c2_111 = arith.constant 2 : index
    %c2_112 = arith.constant 2 : index
    %c0_113 = arith.constant 0 : index
    %c0_114 = arith.constant 0 : index
    %113 = vector.load %arg4[%c2_111, %c2_112, %c0_113, %c0_114] : memref<3x3x128x128xbf16, #tpu.memory_space<vmem>>, vector<1x1x128x128xbf16>
    %114 = vector.shape_cast %113 : vector<1x1x128x128xbf16> to vector<128x128xbf16>
    %cst_115 = arith.constant dense<0.000000e+00> : vector<64x128xf32>
    %115 = tpu.matmul %112, %114, %cst_115 {dimension_numbers = #tpu.dot_dimension_numbers<[1], [0], [0], [1], [0, 0, 1, 1], [], []>} : vector<64x128xbf16>, vector<128x128xbf16>, vector<64x128xf32> -> vector<64x128xf32>
    %116 = arith.addf %103, %115 : vector<64x128xf32>
    %c2_116 = arith.constant 2 : index
    %c2_117 = arith.constant 2 : index
    %c0_118 = arith.constant 0 : index
    %c0_119 = arith.constant 0 : index
    %117 = vector.load %arg5[%c2_116, %c2_117, %c0_118, %c0_119] : memref<3x3x128x128xbf16, #tpu.memory_space<vmem>>, vector<1x1x128x128xbf16>
    %118 = vector.shape_cast %117 : vector<1x1x128x128xbf16> to vector<128x128xbf16>
    %cst_120 = arith.constant dense<0.000000e+00> : vector<64x128xf32>
    %119 = tpu.matmul %112, %118, %cst_120 {dimension_numbers = #tpu.dot_dimension_numbers<[1], [0], [0], [1], [0, 0, 1, 1], [], []>} : vector<64x128xbf16>, vector<128x128xbf16>, vector<64x128xf32> -> vector<64x128xf32>
    %120 = arith.addf %107, %119 : vector<64x128xf32>
    %c0_121 = arith.constant 0 : index
    %c0_122 = arith.constant 0 : index
    %121 = vector.load %arg6[%c0_121, %c0_122] : memref<1x128xf32, #tpu.memory_space<vmem>>, vector<1x128xf32>
    %122 = vector.broadcast %121 : vector<1x128xf32> to vector<64x128xf32>
    %123 = arith.addf %116, %122 : vector<64x128xf32>
    %cst_123 = arith.constant 0.000000e+00 : f32
    %124 = vector.broadcast %cst_123 : f32 to vector<64x128xf32>
    %125 = arith.maximumf %123, %124 : vector<64x128xf32>
    %c0_124 = arith.constant 0 : index
    %c0_125 = arith.constant 0 : index
    %126 = vector.load %arg7[%c0_124, %c0_125] : memref<1x128xf32, #tpu.memory_space<vmem>>, vector<1x128xf32>
    %127 = vector.broadcast %126 : vector<1x128xf32> to vector<64x128xf32>
    %128 = arith.addf %120, %127 : vector<64x128xf32>
    %129 = vector.shape_cast %125 : vector<64x128xf32> to vector<4x16x128xf32>
    %130 = arith.truncf %129 : vector<4x16x128xf32> to vector<4x16x128xbf16>
    %c0_126 = arith.constant 0 : index
    %c0_127 = arith.constant 0 : index
    %c0_128 = arith.constant 0 : index
    %c0_129 = arith.constant 0 : index
    %131 = vector.load %arg8[%c0_126, %c0_127, %c0_128, %c0_129] : memref<1x4x16x128xbf16, #tpu.memory_space<vmem>>, vector<1x4x16x128xbf16>
    %132 = vector.shape_cast %131 : vector<1x4x16x128xbf16> to vector<4x16x128xbf16>
    %133 = vector.shape_cast %130 : vector<4x16x128xbf16> to vector<1x4x16x128xbf16>
    tpu.vector_store %arg8[%c0_126, %c0_127, %c0_128, %c0_129], %133 {strides = array<i32>} : memref<1x4x16x128xbf16, #tpu.memory_space<vmem>>, vector<1x4x16x128xbf16>,
    %134 = vector.shape_cast %128 : vector<64x128xf32> to vector<4x16x128xf32>
    %135 = arith.truncf %134 : vector<4x16x128xf32> to vector<4x16x128xbf16>
    %c0_130 = arith.constant 0 : index
    %c0_131 = arith.constant 0 : index
    %c0_132 = arith.constant 0 : index
    %c0_133 = arith.constant 0 : index
    %136 = vector.load %arg9[%c0_130, %c0_131, %c0_132, %c0_133] : memref<1x4x16x128xbf16, #tpu.memory_space<vmem>>, vector<1x4x16x128xbf16>
    %137 = vector.shape_cast %136 : vector<1x4x16x128xbf16> to vector<4x16x128xbf16>
    %138 = vector.shape_cast %135 : vector<4x16x128xbf16> to vector<1x4x16x128xbf16>
    tpu.vector_store %arg9[%c0_130, %c0_131, %c0_132, %c0_133], %138 {strides = array<i32>} : memref<1x4x16x128xbf16, #tpu.memory_space<vmem>>, vector<1x4x16x128xbf16>,
    return
  }
  func.func @transform_0(%arg0: i32, %arg1: i32, %arg2: i32) -> (i32, i32, i32, i32) {
    %c0_i32 = arith.constant 0 : i32
    %c0_i32_0 = arith.constant 0 : i32
    %c0_i32_1 = arith.constant 0 : i32
    %c0_i32_2 = arith.constant 0 : i32
    return %arg0, %c0_i32, %c0_i32_0, %c0_i32_1 : i32, i32, i32, i32
  }
  func.func @transform_1(%arg0: i32, %arg1: i32, %arg2: i32) -> (i32, i32, i32, i32) {
    %c0_i32 = arith.constant 0 : i32
    %c0_i32_0 = arith.constant 0 : i32
    %c0_i32_1 = arith.constant 0 : i32
    %c0_i32_2 = arith.constant 0 : i32
    return %c0_i32, %c0_i32_0, %c0_i32_1, %arg1 : i32, i32, i32, i32
  }
  func.func @transform_2(%arg0: i32, %arg1: i32, %arg2: i32) -> (i32, i32, i32, i32) {
    %c0_i32 = arith.constant 0 : i32
    %c0_i32_0 = arith.constant 0 : i32
    %c0_i32_1 = arith.constant 0 : i32
    %c0_i32_2 = arith.constant 0 : i32
    return %c0_i32, %c0_i32_0, %c0_i32_1, %arg1 : i32, i32, i32, i32
  }
  func.func @transform_3(%arg0: i32, %arg1: i32, %arg2: i32) -> (i32, i32) {
    %c0_i32 = arith.constant 0 : i32
    %c0_i32_0 = arith.constant 0 : i32
    return %c0_i32, %arg1 : i32, i32
  }
  func.func @transform_4(%arg0: i32, %arg1: i32, %arg2: i32) -> (i32, i32) {
    %c0_i32 = arith.constant 0 : i32
    %c0_i32_0 = arith.constant 0 : i32
    return %c0_i32, %arg1 : i32, i32
  }
  func.func @transform_5(%arg0: i32, %arg1: i32, %arg2: i32) -> (i32, i32, i32, i32) {
    %c0_i32 = arith.constant 0 : i32
    %c0_i32_0 = arith.constant 0 : i32
    return %arg0, %arg2, %c0_i32, %arg1 : i32, i32, i32, i32
  }
  func.func @transform_6(%arg0: i32, %arg1: i32, %arg2: i32) -> (i32, i32, i32, i32) {
    %c0_i32 = arith.constant 0 : i32
    %c0_i32_0 = arith.constant 0 : i32
    return %arg0, %arg2, %c0_i32, %arg1 : i32, i32, i32, i32
  }
}

module attributes {stable_mosaic.version = 11 : i64} {
  func.func @_stage2_kernel(%arg0: i32, %arg1: i32, %arg2: i32, %arg3: memref<1x18x24x128xbf16, #tpu.memory_space<vmem>>, %arg4: memref<3x3x128x128xbf16, #tpu.memory_space<vmem>>, %arg5: memref<1x128xf32, #tpu.memory_space<vmem>>, %arg6: memref<1x8x16x128xbf16, #tpu.memory_space<vmem>>, %arg7: memref<1x8x16x128xf32, #tpu.memory_space<vmem>>) attributes {dimension_semantics = [#tpu.dimension_semantics<parallel>, #tpu.dimension_semantics<parallel>, #tpu.dimension_semantics<parallel>], iteration_bounds = array<i64: 2, 1, 2>, scalar_prefetch = 0 : i64, scratch_operands = 0 : i64, tpu.core_type = #tpu.core_type<tc>, window_params = [{pipeline_mode = #tpu.pipeline_mode<synchronous>, transform_indices = @transform_0, window_bounds = array<i64: 1, 18, 24, 128>}, {transform_indices = @transform_1, window_bounds = array<i64: 3, 3, 128, 128>}, {transform_indices = @transform_2, window_bounds = array<i64: 1, 128>}, {transform_indices = @transform_3, window_bounds = array<i64: 1, 8, 16, 128>}, {transform_indices = @transform_4, window_bounds = array<i64: 1, 8, 16, 128>}]} {
    %c8_i32 = arith.constant 8 : i32
    %0 = arith.muli %arg2, %c8_i32 : i32
    %1 = tpu.assume_multiple %0, 8 : i32
    %cst = arith.constant 0.000000e+00 : f32
    %2 = vector.broadcast %cst : f32 to vector<128x128xf32>
    %c0_i32 = arith.constant 0 : i32
    %3 = arith.addi %1, %c0_i32 : i32
    %c0 = arith.constant 0 : index
    %4 = arith.index_cast %3 : i32 to index
    %c0_0 = arith.constant 0 : index
    %c0_1 = arith.constant 0 : index
    %5 = vector.load %arg3[%c0, %4, %c0_0, %c0_1] : memref<1x18x24x128xbf16, #tpu.memory_space<vmem>>, vector<1x8x16x128xbf16>
    %6 = vector.shape_cast %5 : vector<1x8x16x128xbf16> to vector<8x16x128xbf16>
    %7 = vector.shape_cast %6 : vector<8x16x128xbf16> to vector<128x128xbf16>
    %c0_2 = arith.constant 0 : index
    %c0_3 = arith.constant 0 : index
    %c0_4 = arith.constant 0 : index
    %c0_5 = arith.constant 0 : index
    %8 = vector.load %arg4[%c0_2, %c0_3, %c0_4, %c0_5] : memref<3x3x128x128xbf16, #tpu.memory_space<vmem>>, vector<1x1x128x128xbf16>
    %9 = vector.shape_cast %8 : vector<1x1x128x128xbf16> to vector<128x128xbf16>
    %cst_6 = arith.constant dense<0.000000e+00> : vector<128x128xf32>
    %10 = tpu.matmul %7, %9, %cst_6 {dimension_numbers = #tpu.dot_dimension_numbers<[1], [0], [0], [1], [0, 0, 1, 1], [], []>} : vector<128x128xbf16>, vector<128x128xbf16>, vector<128x128xf32> -> vector<128x128xf32>
    %11 = arith.addf %2, %10 : vector<128x128xf32>
    %c0_i32_7 = arith.constant 0 : i32
    %12 = arith.addi %1, %c0_i32_7 : i32
    %c0_8 = arith.constant 0 : index
    %13 = arith.index_cast %12 : i32 to index
    %c1 = arith.constant 1 : index
    %c0_9 = arith.constant 0 : index
    %14 = vector.load %arg3[%c0_8, %13, %c1, %c0_9] : memref<1x18x24x128xbf16, #tpu.memory_space<vmem>>, vector<1x8x16x128xbf16>
    %15 = vector.shape_cast %14 : vector<1x8x16x128xbf16> to vector<8x16x128xbf16>
    %16 = vector.shape_cast %15 : vector<8x16x128xbf16> to vector<128x128xbf16>
    %c0_10 = arith.constant 0 : index
    %c1_11 = arith.constant 1 : index
    %c0_12 = arith.constant 0 : index
    %c0_13 = arith.constant 0 : index
    %17 = vector.load %arg4[%c0_10, %c1_11, %c0_12, %c0_13] : memref<3x3x128x128xbf16, #tpu.memory_space<vmem>>, vector<1x1x128x128xbf16>
    %18 = vector.shape_cast %17 : vector<1x1x128x128xbf16> to vector<128x128xbf16>
    %cst_14 = arith.constant dense<0.000000e+00> : vector<128x128xf32>
    %19 = tpu.matmul %16, %18, %cst_14 {dimension_numbers = #tpu.dot_dimension_numbers<[1], [0], [0], [1], [0, 0, 1, 1], [], []>} : vector<128x128xbf16>, vector<128x128xbf16>, vector<128x128xf32> -> vector<128x128xf32>
    %20 = arith.addf %11, %19 : vector<128x128xf32>
    %c0_i32_15 = arith.constant 0 : i32
    %21 = arith.addi %1, %c0_i32_15 : i32
    %c0_16 = arith.constant 0 : index
    %22 = arith.index_cast %21 : i32 to index
    %c2 = arith.constant 2 : index
    %c0_17 = arith.constant 0 : index
    %23 = vector.load %arg3[%c0_16, %22, %c2, %c0_17] : memref<1x18x24x128xbf16, #tpu.memory_space<vmem>>, vector<1x8x16x128xbf16>
    %24 = vector.shape_cast %23 : vector<1x8x16x128xbf16> to vector<8x16x128xbf16>
    %25 = vector.shape_cast %24 : vector<8x16x128xbf16> to vector<128x128xbf16>
    %c0_18 = arith.constant 0 : index
    %c2_19 = arith.constant 2 : index
    %c0_20 = arith.constant 0 : index
    %c0_21 = arith.constant 0 : index
    %26 = vector.load %arg4[%c0_18, %c2_19, %c0_20, %c0_21] : memref<3x3x128x128xbf16, #tpu.memory_space<vmem>>, vector<1x1x128x128xbf16>
    %27 = vector.shape_cast %26 : vector<1x1x128x128xbf16> to vector<128x128xbf16>
    %cst_22 = arith.constant dense<0.000000e+00> : vector<128x128xf32>
    %28 = tpu.matmul %25, %27, %cst_22 {dimension_numbers = #tpu.dot_dimension_numbers<[1], [0], [0], [1], [0, 0, 1, 1], [], []>} : vector<128x128xbf16>, vector<128x128xbf16>, vector<128x128xf32> -> vector<128x128xf32>
    %29 = arith.addf %20, %28 : vector<128x128xf32>
    %c1_i32 = arith.constant 1 : i32
    %30 = arith.addi %1, %c1_i32 : i32
    %c0_23 = arith.constant 0 : index
    %31 = arith.index_cast %30 : i32 to index
    %c0_24 = arith.constant 0 : index
    %c0_25 = arith.constant 0 : index
    %32 = vector.load %arg3[%c0_23, %31, %c0_24, %c0_25] : memref<1x18x24x128xbf16, #tpu.memory_space<vmem>>, vector<1x8x16x128xbf16>
    %33 = vector.shape_cast %32 : vector<1x8x16x128xbf16> to vector<8x16x128xbf16>
    %34 = vector.shape_cast %33 : vector<8x16x128xbf16> to vector<128x128xbf16>
    %c1_26 = arith.constant 1 : index
    %c0_27 = arith.constant 0 : index
    %c0_28 = arith.constant 0 : index
    %c0_29 = arith.constant 0 : index
    %35 = vector.load %arg4[%c1_26, %c0_27, %c0_28, %c0_29] : memref<3x3x128x128xbf16, #tpu.memory_space<vmem>>, vector<1x1x128x128xbf16>
    %36 = vector.shape_cast %35 : vector<1x1x128x128xbf16> to vector<128x128xbf16>
    %cst_30 = arith.constant dense<0.000000e+00> : vector<128x128xf32>
    %37 = tpu.matmul %34, %36, %cst_30 {dimension_numbers = #tpu.dot_dimension_numbers<[1], [0], [0], [1], [0, 0, 1, 1], [], []>} : vector<128x128xbf16>, vector<128x128xbf16>, vector<128x128xf32> -> vector<128x128xf32>
    %38 = arith.addf %29, %37 : vector<128x128xf32>
    %c1_i32_31 = arith.constant 1 : i32
    %39 = arith.addi %1, %c1_i32_31 : i32
    %c0_32 = arith.constant 0 : index
    %40 = arith.index_cast %39 : i32 to index
    %c1_33 = arith.constant 1 : index
    %c0_34 = arith.constant 0 : index
    %41 = vector.load %arg3[%c0_32, %40, %c1_33, %c0_34] : memref<1x18x24x128xbf16, #tpu.memory_space<vmem>>, vector<1x8x16x128xbf16>
    %42 = vector.shape_cast %41 : vector<1x8x16x128xbf16> to vector<8x16x128xbf16>
    %43 = vector.shape_cast %42 : vector<8x16x128xbf16> to vector<128x128xbf16>
    %c1_35 = arith.constant 1 : index
    %c1_36 = arith.constant 1 : index
    %c0_37 = arith.constant 0 : index
    %c0_38 = arith.constant 0 : index
    %44 = vector.load %arg4[%c1_35, %c1_36, %c0_37, %c0_38] : memref<3x3x128x128xbf16, #tpu.memory_space<vmem>>, vector<1x1x128x128xbf16>
    %45 = vector.shape_cast %44 : vector<1x1x128x128xbf16> to vector<128x128xbf16>
    %cst_39 = arith.constant dense<0.000000e+00> : vector<128x128xf32>
    %46 = tpu.matmul %43, %45, %cst_39 {dimension_numbers = #tpu.dot_dimension_numbers<[1], [0], [0], [1], [0, 0, 1, 1], [], []>} : vector<128x128xbf16>, vector<128x128xbf16>, vector<128x128xf32> -> vector<128x128xf32>
    %47 = arith.addf %38, %46 : vector<128x128xf32>
    %c1_i32_40 = arith.constant 1 : i32
    %48 = arith.addi %1, %c1_i32_40 : i32
    %c0_41 = arith.constant 0 : index
    %49 = arith.index_cast %48 : i32 to index
    %c2_42 = arith.constant 2 : index
    %c0_43 = arith.constant 0 : index
    %50 = vector.load %arg3[%c0_41, %49, %c2_42, %c0_43] : memref<1x18x24x128xbf16, #tpu.memory_space<vmem>>, vector<1x8x16x128xbf16>
    %51 = vector.shape_cast %50 : vector<1x8x16x128xbf16> to vector<8x16x128xbf16>
    %52 = vector.shape_cast %51 : vector<8x16x128xbf16> to vector<128x128xbf16>
    %c1_44 = arith.constant 1 : index
    %c2_45 = arith.constant 2 : index
    %c0_46 = arith.constant 0 : index
    %c0_47 = arith.constant 0 : index
    %53 = vector.load %arg4[%c1_44, %c2_45, %c0_46, %c0_47] : memref<3x3x128x128xbf16, #tpu.memory_space<vmem>>, vector<1x1x128x128xbf16>
    %54 = vector.shape_cast %53 : vector<1x1x128x128xbf16> to vector<128x128xbf16>
    %cst_48 = arith.constant dense<0.000000e+00> : vector<128x128xf32>
    %55 = tpu.matmul %52, %54, %cst_48 {dimension_numbers = #tpu.dot_dimension_numbers<[1], [0], [0], [1], [0, 0, 1, 1], [], []>} : vector<128x128xbf16>, vector<128x128xbf16>, vector<128x128xf32> -> vector<128x128xf32>
    %56 = arith.addf %47, %55 : vector<128x128xf32>
    %c2_i32 = arith.constant 2 : i32
    %57 = arith.addi %1, %c2_i32 : i32
    %c0_49 = arith.constant 0 : index
    %58 = arith.index_cast %57 : i32 to index
    %c0_50 = arith.constant 0 : index
    %c0_51 = arith.constant 0 : index
    %59 = vector.load %arg3[%c0_49, %58, %c0_50, %c0_51] : memref<1x18x24x128xbf16, #tpu.memory_space<vmem>>, vector<1x8x16x128xbf16>
    %60 = vector.shape_cast %59 : vector<1x8x16x128xbf16> to vector<8x16x128xbf16>
    %61 = vector.shape_cast %60 : vector<8x16x128xbf16> to vector<128x128xbf16>
    %c2_52 = arith.constant 2 : index
    %c0_53 = arith.constant 0 : index
    %c0_54 = arith.constant 0 : index
    %c0_55 = arith.constant 0 : index
    %62 = vector.load %arg4[%c2_52, %c0_53, %c0_54, %c0_55] : memref<3x3x128x128xbf16, #tpu.memory_space<vmem>>, vector<1x1x128x128xbf16>
    %63 = vector.shape_cast %62 : vector<1x1x128x128xbf16> to vector<128x128xbf16>
    %cst_56 = arith.constant dense<0.000000e+00> : vector<128x128xf32>
    %64 = tpu.matmul %61, %63, %cst_56 {dimension_numbers = #tpu.dot_dimension_numbers<[1], [0], [0], [1], [0, 0, 1, 1], [], []>} : vector<128x128xbf16>, vector<128x128xbf16>, vector<128x128xf32> -> vector<128x128xf32>
    %65 = arith.addf %56, %64 : vector<128x128xf32>
    %c2_i32_57 = arith.constant 2 : i32
    %66 = arith.addi %1, %c2_i32_57 : i32
    %c0_58 = arith.constant 0 : index
    %67 = arith.index_cast %66 : i32 to index
    %c1_59 = arith.constant 1 : index
    %c0_60 = arith.constant 0 : index
    %68 = vector.load %arg3[%c0_58, %67, %c1_59, %c0_60] : memref<1x18x24x128xbf16, #tpu.memory_space<vmem>>, vector<1x8x16x128xbf16>
    %69 = vector.shape_cast %68 : vector<1x8x16x128xbf16> to vector<8x16x128xbf16>
    %70 = vector.shape_cast %69 : vector<8x16x128xbf16> to vector<128x128xbf16>
    %c2_61 = arith.constant 2 : index
    %c1_62 = arith.constant 1 : index
    %c0_63 = arith.constant 0 : index
    %c0_64 = arith.constant 0 : index
    %71 = vector.load %arg4[%c2_61, %c1_62, %c0_63, %c0_64] : memref<3x3x128x128xbf16, #tpu.memory_space<vmem>>, vector<1x1x128x128xbf16>
    %72 = vector.shape_cast %71 : vector<1x1x128x128xbf16> to vector<128x128xbf16>
    %cst_65 = arith.constant dense<0.000000e+00> : vector<128x128xf32>
    %73 = tpu.matmul %70, %72, %cst_65 {dimension_numbers = #tpu.dot_dimension_numbers<[1], [0], [0], [1], [0, 0, 1, 1], [], []>} : vector<128x128xbf16>, vector<128x128xbf16>, vector<128x128xf32> -> vector<128x128xf32>
    %74 = arith.addf %65, %73 : vector<128x128xf32>
    %c2_i32_66 = arith.constant 2 : i32
    %75 = arith.addi %1, %c2_i32_66 : i32
    %c0_67 = arith.constant 0 : index
    %76 = arith.index_cast %75 : i32 to index
    %c2_68 = arith.constant 2 : index
    %c0_69 = arith.constant 0 : index
    %77 = vector.load %arg3[%c0_67, %76, %c2_68, %c0_69] : memref<1x18x24x128xbf16, #tpu.memory_space<vmem>>, vector<1x8x16x128xbf16>
    %78 = vector.shape_cast %77 : vector<1x8x16x128xbf16> to vector<8x16x128xbf16>
    %79 = vector.shape_cast %78 : vector<8x16x128xbf16> to vector<128x128xbf16>
    %c2_70 = arith.constant 2 : index
    %c2_71 = arith.constant 2 : index
    %c0_72 = arith.constant 0 : index
    %c0_73 = arith.constant 0 : index
    %80 = vector.load %arg4[%c2_70, %c2_71, %c0_72, %c0_73] : memref<3x3x128x128xbf16, #tpu.memory_space<vmem>>, vector<1x1x128x128xbf16>
    %81 = vector.shape_cast %80 : vector<1x1x128x128xbf16> to vector<128x128xbf16>
    %cst_74 = arith.constant dense<0.000000e+00> : vector<128x128xf32>
    %82 = tpu.matmul %79, %81, %cst_74 {dimension_numbers = #tpu.dot_dimension_numbers<[1], [0], [0], [1], [0, 0, 1, 1], [], []>} : vector<128x128xbf16>, vector<128x128xbf16>, vector<128x128xf32> -> vector<128x128xf32>
    %83 = arith.addf %74, %82 : vector<128x128xf32>
    %c0_75 = arith.constant 0 : index
    %c0_76 = arith.constant 0 : index
    %84 = vector.load %arg5[%c0_75, %c0_76] : memref<1x128xf32, #tpu.memory_space<vmem>>, vector<1x128xf32>
    %85 = vector.broadcast %84 : vector<1x128xf32> to vector<128x128xf32>
    %86 = arith.addf %83, %85 : vector<128x128xf32>
    %c0_77 = arith.constant 0 : index
    %c0_78 = arith.constant 0 : index
    %c0_79 = arith.constant 0 : index
    %c0_80 = arith.constant 0 : index
    %87 = vector.load %arg6[%c0_77, %c0_78, %c0_79, %c0_80] : memref<1x8x16x128xbf16, #tpu.memory_space<vmem>>, vector<1x8x16x128xbf16>
    %88 = vector.shape_cast %87 : vector<1x8x16x128xbf16> to vector<8x16x128xbf16>
    %89 = vector.shape_cast %88 : vector<8x16x128xbf16> to vector<128x128xbf16>
    %90 = arith.extf %89 : vector<128x128xbf16> to vector<128x128xf32>
    %91 = arith.addf %86, %90 : vector<128x128xf32>
    %cst_81 = arith.constant 0.000000e+00 : f32
    %92 = vector.broadcast %cst_81 : f32 to vector<128x128xf32>
    %93 = arith.maximumf %91, %92 : vector<128x128xf32>
    %94 = vector.shape_cast %93 : vector<128x128xf32> to vector<8x16x128xf32>
    %c0_82 = arith.constant 0 : index
    %c0_83 = arith.constant 0 : index
    %c0_84 = arith.constant 0 : index
    %c0_85 = arith.constant 0 : index
    %95 = vector.load %arg7[%c0_82, %c0_83, %c0_84, %c0_85] : memref<1x8x16x128xf32, #tpu.memory_space<vmem>>, vector<1x8x16x128xf32>
    %96 = vector.shape_cast %95 : vector<1x8x16x128xf32> to vector<8x16x128xf32>
    %97 = vector.shape_cast %94 : vector<8x16x128xf32> to vector<1x8x16x128xf32>
    tpu.vector_store %arg7[%c0_82, %c0_83, %c0_84, %c0_85], %97 {strides = array<i32>} : memref<1x8x16x128xf32, #tpu.memory_space<vmem>>, vector<1x8x16x128xf32>,
    return
  }
  func.func @transform_0(%arg0: i32, %arg1: i32, %arg2: i32) -> (i32, i32, i32, i32) {
    %c0_i32 = arith.constant 0 : i32
    %c0_i32_0 = arith.constant 0 : i32
    %c0_i32_1 = arith.constant 0 : i32
    %c0_i32_2 = arith.constant 0 : i32
    return %arg0, %c0_i32, %c0_i32_0, %c0_i32_1 : i32, i32, i32, i32
  }
  func.func @transform_1(%arg0: i32, %arg1: i32, %arg2: i32) -> (i32, i32, i32, i32) {
    %c0_i32 = arith.constant 0 : i32
    %c0_i32_0 = arith.constant 0 : i32
    %c0_i32_1 = arith.constant 0 : i32
    %c0_i32_2 = arith.constant 0 : i32
    return %c0_i32, %c0_i32_0, %c0_i32_1, %arg1 : i32, i32, i32, i32
  }
  func.func @transform_2(%arg0: i32, %arg1: i32, %arg2: i32) -> (i32, i32) {
    %c0_i32 = arith.constant 0 : i32
    %c0_i32_0 = arith.constant 0 : i32
    return %c0_i32, %arg1 : i32, i32
  }
  func.func @transform_3(%arg0: i32, %arg1: i32, %arg2: i32) -> (i32, i32, i32, i32) {
    %c0_i32 = arith.constant 0 : i32
    %c0_i32_0 = arith.constant 0 : i32
    return %arg0, %arg2, %c0_i32, %arg1 : i32, i32, i32, i32
  }
  func.func @transform_4(%arg0: i32, %arg1: i32, %arg2: i32) -> (i32, i32, i32, i32) {
    %c0_i32 = arith.constant 0 : i32
    %c0_i32_0 = arith.constant 0 : i32
    return %arg0, %arg2, %c0_i32, %arg1 : i32, i32, i32, i32
  }
}

</mosaic_0001>

<llo_original>
// kernel: tile.18
$region0: #{tile.18}
  #allocation0 [shape = 's32[1]{0}', space=sflag, size = 0x4, scoped, tag = 'scoped memory for tile.18']
  %s0 = inlined_call_operand.vmem [shape: f32[2], index: 0, kind: input, shape index: {}]
  %s1 = inlined_call_operand.vmem [shape: f32[4,2], index: 1, kind: output, shape index: {}]
  // Predicated region
  $region2: #{tile.18} parent=0 // pred_check
    _
  $region3: #{tile.18} parent=0 // pred_check_branch
    %3 = sbr.rel (0) target = $region5
  $region4: #{tile.18} parent=0 // pred_region
    _
  $region5: #{tile.18} parent=0 // pred_fallthru
    _
  %v4 = vld [vmem:[%s0] ss:$0 sm:$0xff]
  %5 = vst [vmem:[%s1] sm:$0xf] %v4

// kernel: tile.19
$region0: #{tile.19}
  %s0 = inlined_call_operand.vmem [shape: f32[4,2], index: 0, kind: input, shape index: {}]
  %s1 = inlined_call_operand.vmem [shape: f32[8], index: 1, kind: output, shape index: {}]
  $region1: #{tile.19} parent=0
    #allocation0 [shape = 'u8[4096]{0}', space=vmem, size = 0x1000, scoped, tag = 'scoped mem for output reshape']
    #allocation1 [shape = 'u8[4096]{0}', space=vmem, size = 0x1000, scoped, tag = 'scoped mem for input reshape']
    %s3 = sshll.u32 1, 4
    %s4 = ssub.s32 %s3, 1
    %v5 = vld [vmem:[%s0] sm:%s4]
    %6 = vst [vmem:[#allocation1] sm:%s4] %v5
    %v7 = vld [vmem:[#allocation1] sm:$0x1]
    %vm8 = vcmask 15360
    %9 = vst.msk [vmem:[#allocation0] sm:$0x1] %vm8, %v7
    %s10 = scalar_lea.vmem [#allocation1], 3
    %v11 = vld [vmem:[%s10] sm:$0x1]
    %12 = vrot.lane.b32.xlu0 %v11, 6
    %v13 = vpop.permute.xlu0 %12
    %vm14 = vcmask 64560
    %15 = vst.msk [vmem:[#allocation0] sm:$0x1] %vm14, %v13
    %s16 = scalar_lea.vmem [#allocation1], 2
    %v17 = vld [vmem:[%s16] sm:$0x1]
    %18 = vrot.lane.b32.xlu0 %v17, 4
    %v19 = vpop.permute.xlu0 %18
    %vm20 = vcmask 48160
    %21 = vst.msk [vmem:[#allocation0] sm:$0x1] %vm20, %v19
    %s22 = scalar_lea.vmem [#allocation1], 1
    %v23 = vld [vmem:[%s22] sm:$0x1]
    %24 = vrot.lane.b32.xlu0 %v23, 2
    %v25 = vpop.permute.xlu0 %24
    %vm26 = vcmask 31760
    %27 = vst.msk [vmem:[#allocation0] sm:$0x1] %vm26, %v25
    %s29 = sshll.u32 1, 1
    %s30 = ssub.s32 %s29, 1
    %v32 = vld [vmem:[#allocation0] sm:%s30]
    %s33 = sshll.u32 1, 1
    %s34 = ssub.s32 %s33, 1
    %35 = vst [vmem:[%s1] sm:%s34] %v32

// kernel: up_proj_module.2
$region0: #{up_proj_module.2}
  #allocation0 [shape = 'u32[]', space=smem, size = 0x4, offset = 0x4, fixed_abs, tag = 'smem constant byte address 0x4 - core index']
  #allocation1 [shape = 'u32[144,128]{1,0:T(1,128)}', space=vmem, size = 0x12000, scoped, tag = 'internal scratch']
  %s0 = inlined_call_operand.vmem [shape: bf16[2,18,24,128], index: 0, kind: input, shape index: {}]
  %s1 = inlined_call_operand.vmem [shape: bf16[3,3,128,128], index: 1, kind: input, shape index: {}]
  %s2 = inlined_call_operand.vmem [shape: bf16[3,3,128,128], index: 2, kind: input, shape index: {}]
  %s3 = inlined_call_operand.vmem [shape: f32[1,128], index: 3, kind: input, shape index: {}]
  %s4 = inlined_call_operand.vmem [shape: f32[1,128], index: 4, kind: input, shape index: {}]
  %s5 = inlined_call_operand.vmem [shape: bf16[2,16,16,128], index: 5, kind: output, shape index: {0}]
  %s6 = inlined_call_operand.vmem [shape: bf16[2,16,16,128], index: 6, kind: output, shape index: {1}]
  %7 = xla_tuple %s5, %s6
  %s8 = sld [smem:[#allocation0]]
  $region61: #{up_proj_module.2} parent=0
    _
  %s10 = ssub.s32 1, %s8
  %s11 = scalar_select 0, %s10, %s8
  loop: start=0, step=1, limit=10
  $region2: #{up_proj_module.2} parent=0 // loop_pre_header
    _
  $region3: #{up_proj_module.2} parent=0 // loop_header
    %s13 = sphi 0, %s17
    %p14 = scmp.ge.s32.totalorder %s13, 10
    %s20 = sphi 0, %s39
    %s21 = sphi 0, %s35
    %s22 = sphi 0, %s31
    %s23 = sphi 0, %s20
    %s24 = sphi 0, %s21
    %s25 = sphi 0, %s22
    %s26 = sphi 0, %s23
    %s27 = sphi 0, %s24
    %s28 = sphi 0, %s25
    %s42 = sphi 0, %s44
    %s45 = sphi 0, %s42
    %s46 = sphi 0, %s45
    %s62 = sphi 0, %s46
    %s68 = sphi 0, %s70
    %s71 = sphi 0, %s68
    %s72 = sphi 0, %s71
    %s88 = sphi 0, %s72
    %s94 = sphi 0, %s96
    %s97 = sphi 0, %s94
    %s98 = sphi 0, %s97
    %s114 = sphi 0, %s98
    %s120 = sphi 0, %s122
    %s123 = sphi 0, %s120
    %s124 = sphi 0, %s123
    %s140 = sphi 0, %s124
    %s146 = sphi 0, %s148
    %s149 = sphi 0, %s146
    %s150 = sphi 0, %s149
    %s166 = sphi 0, %s150
    %s176 = sphi 0, %s178
    %s179 = sphi 0, %s176
    %s180 = sphi 0, %s179
    %s196 = sphi 0, %s180
    %s206 = sphi 0, %s208
    %s209 = sphi 0, %s206
    %s210 = sphi 0, %s209
    %s226 = sphi 0, %s210
  $region4: #{up_proj_module.2} parent=0 // loop_header_branch
    %16 = sbr.rel (%p14) target = $region8
  $region5: #{up_proj_module.2} parent=0 // loop_body
    %s18 = ssub.s32 %s13, 1
    %s19 = ssub.s32 %s13, 2
    %s29 = sadd.s32 1, %s22
    %p30 = scmp.ge.s32.totalorder %s29, 4
    %s31 = scalar_select %p30, 0, %s29
    %s32 = sadd.s32 1, %s21
    %s33 = scalar_select %p30, %s32, %s21
    %p34 = scmp.ge.s32.totalorder %s33, 1
    %s35 = scalar_select %p34, 0, %s33
    %s36 = sadd.s32 1, %s20
    %s37 = scalar_select %p34, %s36, %s20
    %p38 = scmp.ge.s32.totalorder %s37, 2
    %s39 = scalar_select %p38, 0, %s37
    %s40 = ssub.s32 %s20, %s39
    %p41 = scmp.eq.s32.totalorder %s40, 0
    %s43 = sadd.s32 %s42, 1
    %s44 = scalar_select %p41, %s42, %s43
    %p47 = pneg %p41
    %p48 = scmp.eq.s32.totalorder %s13, 7
    %p49 = por %p47, %p48
    %p50 = scmp.ne.s32.totalorder %s42, %s45
    %p51 = scmp.eq.s32.totalorder %s13, 0
    %p52 = por %p50, %p51
    %p53 = scmp.ne.s32.totalorder %s42, %s45
    %p54 = scmp.eq.s32.totalorder %s18, 7
    %p55 = por %p53, %p54
    %p56 = scmp.ne.s32.totalorder %s45, %s46
    %p57 = scmp.eq.s32.totalorder %s18, 0
    %p58 = por %p56, %p57
    %p59 = scmp.ne.s32.totalorder %s45, %s46
    %p60 = scmp.eq.s32.totalorder %s19, 7
    %p61 = por %p59, %p60
    %p63 = scmp.ne.s32.totalorder %s46, %s62
    %p64 = scmp.eq.s32.totalorder %s19, 0
    %p65 = por %p63, %p64
    %s66 = ssub.s32 %s21, %s35
    %p67 = scmp.eq.s32.totalorder %s66, 0
    %s69 = sadd.s32 %s68, 1
    %s70 = scalar_select %p67, %s68, %s69
    %p73 = pneg %p67
    %p74 = scmp.eq.s32.totalorder %s13, 7
    %p75 = por %p73, %p74
    %p76 = scmp.ne.s32.totalorder %s68, %s71
    %p77 = scmp.eq.s32.totalorder %s13, 0
    %p78 = por %p76, %p77
    %p79 = scmp.ne.s32.totalorder %s68, %s71
    %p80 = scmp.eq.s32.totalorder %s18, 7
    %p81 = por %p79, %p80
    %p82 = scmp.ne.s32.totalorder %s71, %s72
    %p83 = scmp.eq.s32.totalorder %s18, 0
    %p84 = por %p82, %p83
    %p85 = scmp.ne.s32.totalorder %s71, %s72
    %p86 = scmp.eq.s32.totalorder %s19, 7
    %p87 = por %p85, %p86
    %p89 = scmp.ne.s32.totalorder %s72, %s88
    %p90 = scmp.eq.s32.totalorder %s19, 0
    %p91 = por %p89, %p90
    %s92 = ssub.s32 %s21, %s35
    %p93 = scmp.eq.s32.totalorder %s92, 0
    %s95 = sadd.s32 %s94, 1
    %s96 = scalar_select %p93, %s94, %s95
    %p99 = pneg %p93
    %p100 = scmp.eq.s32.totalorder %s13, 7
    %p101 = por %p99, %p100
    %p102 = scmp.ne.s32.totalorder %s94, %s97
    %p103 = scmp.eq.s32.totalorder %s13, 0
    %p104 = por %p102, %p103
    %p105 = scmp.ne.s32.totalorder %s94, %s97
    %p106 = scmp.eq.s32.totalorder %s18, 7
    %p107 = por %p105, %p106
    %p108 = scmp.ne.s32.totalorder %s97, %s98
    %p109 = scmp.eq.s32.totalorder %s18, 0
    %p110 = por %p108, %p109
    %p111 = scmp.ne.s32.totalorder %s97, %s98
    %p112 = scmp.eq.s32.totalorder %s19, 7
    %p113 = por %p111, %p112
    %p115 = scmp.ne.s32.totalorder %s98, %s114
    %p116 = scmp.eq.s32.totalorder %s19, 0
    %p117 = por %p115, %p116
    %s118 = ssub.s32 %s21, %s35
    %p119 = scmp.eq.s32.totalorder %s118, 0
    %s121 = sadd.s32 %s120, 1
    %s122 = scalar_select %p119, %s120, %s121
    %p125 = pneg %p119
    %p126 = scmp.eq.s32.totalorder %s13, 7
    %p127 = por %p125, %p126
    %p128 = scmp.ne.s32.totalorder %s120, %s123
    %p129 = scmp.eq.s32.totalorder %s13, 0
    %p130 = por %p128, %p129
    %p131 = scmp.ne.s32.totalorder %s120, %s123
    %p132 = scmp.eq.s32.totalorder %s18, 7
    %p133 = por %p131, %p132
    %p134 = scmp.ne.s32.totalorder %s123, %s124
    %p135 = scmp.eq.s32.totalorder %s18, 0
    %p136 = por %p134, %p135
    %p137 = scmp.ne.s32.totalorder %s123, %s124
    %p138 = scmp.eq.s32.totalorder %s19, 7
    %p139 = por %p137, %p138
    %p141 = scmp.ne.s32.totalorder %s124, %s140
    %p142 = scmp.eq.s32.totalorder %s19, 0
    %p143 = por %p141, %p142
    %s144 = ssub.s32 %s21, %s35
    %p145 = scmp.eq.s32.totalorder %s144, 0
    %s147 = sadd.s32 %s146, 1
    %s148 = scalar_select %p145, %s146, %s147
    %p151 = pneg %p145
    %p152 = scmp.eq.s32.totalorder %s13, 7
    %p153 = por %p151, %p152
    %p154 = scmp.ne.s32.totalorder %s146, %s149
    %p155 = scmp.eq.s32.totalorder %s13, 0
    %p156 = por %p154, %p155
    %p157 = scmp.ne.s32.totalorder %s146, %s149
    %p158 = scmp.eq.s32.totalorder %s18, 7
    %p159 = por %p157, %p158
    %p160 = scmp.ne.s32.totalorder %s149, %s150
    %p161 = scmp.eq.s32.totalorder %s18, 0
    %p162 = por %p160, %p161
    %p163 = scmp.ne.s32.totalorder %s149, %s150
    %p164 = scmp.eq.s32.totalorder %s19, 7
    %p165 = por %p163, %p164
    %p167 = scmp.ne.s32.totalorder %s150, %s166
    %p168 = scmp.eq.s32.totalorder %s19, 0
    %p169 = por %p167, %p168
    %s170 = ssub.s32 %s20, %s39
    %s171 = ssub.s32 %s22, %s31
    %s172 = sor.u32 %s170, %s171
    %s173 = ssub.s32 %s21, %s35
    %s174 = sor.u32 %s172, %s173
    %p175 = scmp.eq.s32.totalorder %s174, 0
    %s177 = sadd.s32 %s176, 1
    %s178 = scalar_select %p175, %s176, %s177
    %p181 = pneg %p175
    %p182 = scmp.eq.s32.totalorder %s13, 7
    %p183 = por %p181, %p182
    %p184 = scmp.ne.s32.totalorder %s176, %s179
    %p185 = scmp.eq.s32.totalorder %s13, 0
    %p186 = por %p184, %p185
    %p187 = scmp.ne.s32.totalorder %s176, %s179
    %p188 = scmp.eq.s32.totalorder %s18, 7
    %p189 = por %p187, %p188
    %p190 = scmp.ne.s32.totalorder %s179, %s180
    %p191 = scmp.eq.s32.totalorder %s18, 0
    %p192 = por %p190, %p191
    %p193 = scmp.ne.s32.totalorder %s179, %s180
    %p194 = scmp.eq.s32.totalorder %s19, 7
    %p195 = por %p193, %p194
    %p197 = scmp.ne.s32.totalorder %s180, %s196
    %p198 = scmp.eq.s32.totalorder %s19, 0
    %p199 = por %p197, %p198
    %s200 = ssub.s32 %s20, %s39
    %s201 = ssub.s32 %s22, %s31
    %s202 = sor.u32 %s200, %s201
    %s203 = ssub.s32 %s21, %s35
    %s204 = sor.u32 %s202, %s203
    %p205 = scmp.eq.s32.totalorder %s204, 0
    %s207 = sadd.s32 %s206, 1
    %s208 = scalar_select %p205, %s206, %s207
    %p211 = pneg %p205
    %p212 = scmp.eq.s32.totalorder %s13, 7
    %p213 = por %p211, %p212
    %p214 = scmp.ne.s32.totalorder %s206, %s209
    %p215 = scmp.eq.s32.totalorder %s13, 0
    %p216 = por %p214, %p215
    %p217 = scmp.ne.s32.totalorder %s206, %s209
    %p218 = scmp.eq.s32.totalorder %s18, 7
    %p219 = por %p217, %p218
    %p220 = scmp.ne.s32.totalorder %s209, %s210
    %p221 = scmp.eq.s32.totalorder %s18, 0
    %p222 = por %p220, %p221
    %p223 = scmp.ne.s32.totalorder %s209, %s210
    %p224 = scmp.eq.s32.totalorder %s19, 7
    %p225 = por %p223, %p224
    %p227 = scmp.ne.s32.totalorder %s210, %s226
    %p228 = scmp.eq.s32.totalorder %s19, 0
    %p229 = por %p227, %p228
    %p230 = scmp.le.s32.totalorder 1, %s13
    %p231 = scmp.lt.s32.totalorder %s13, 9
    %p232 = pnand %p230, %p231
    %p233 = pneg %p232
    // Predicated region
    $region9: #{up_proj_module.2} parent=5 // pred_check
      _
    $region10: #{up_proj_module.2} parent=5 // pred_check_branch
      %235 = sbr.rel (%p232) target = $region12
    $region11: #{up_proj_module.2} parent=5 // pred_region
      %s236 = ssub.s32 %s13, 1
      // Predicated region
      $region13: #{up_proj_module.2} parent=11 // pred_check
        %p237 = pneg %p58
      $region14: #{up_proj_module.2} parent=11 // pred_check_branch
        %239 = sbr.rel (%p237) target = $region16
      $region15: #{up_proj_module.2} parent=11 // pred_region
        %p240 = scmp.lt.s32.totalorder %s23, 1
        %s241 = scalar_select %p240, %s23, 1
        %s242 = smul.addr %s241, 54
        %s243 = smul.addr %s242, 4
        %s244 = scalar_lea.vmem %s0, %s243
      $region16: #{up_proj_module.2} parent=11 // pred_fallthru
        _
      // Predicated region
      $region17: #{up_proj_module.2} parent=11 // pred_check
        %p245 = pneg %p84
      $region18: #{up_proj_module.2} parent=11 // pred_check_branch
        %247 = sbr.rel (%p245) target = $region20
      $region19: #{up_proj_module.2} parent=11 // pred_region
        %p248 = scmp.lt.s32.totalorder %s24, 0
        %s249 = scalar_select %p248, %s24, 0
        %s250 = smul.addr %s249, 4
        %s251 = scalar_lea.vmem %s1, %s250
      $region20: #{up_proj_module.2} parent=11 // pred_fallthru
        _
      // Predicated region
      $region21: #{up_proj_module.2} parent=11 // pred_check
        %p252 = pneg %p110
      $region22: #{up_proj_module.2} parent=11 // pred_check_branch
        %254 = sbr.rel (%p252) target = $region24
      $region23: #{up_proj_module.2} parent=11 // pred_region
        %p255 = scmp.lt.s32.totalorder %s24, 0
        %s256 = scalar_select %p255, %s24, 0
        %s257 = smul.addr %s256, 4
        %s258 = scalar_lea.vmem %s2, %s257
      $region24: #{up_proj_module.2} parent=11 // pred_fallthru
        _
      // Predicated region
      $region25: #{up_proj_module.2} parent=11 // pred_check
        %p259 = pneg %p136
      $region26: #{up_proj_module.2} parent=11 // pred_check_branch
        %261 = sbr.rel (%p259) target = $region28
      $region27: #{up_proj_module.2} parent=11 // pred_region
        %p262 = scmp.lt.s32.totalorder %s24, 0
        %s263 = scalar_select %p262, %s24, 0
        %s264 = scalar_lea.vmem %s3, %s263
      $region28: #{up_proj_module.2} parent=11 // pred_fallthru
        _
      // Predicated region
      $region29: #{up_proj_module.2} parent=11 // pred_check
        %p265 = pneg %p162
      $region30: #{up_proj_module.2} parent=11 // pred_check_branch
        %267 = sbr.rel (%p265) target = $region32
      $region31: #{up_proj_module.2} parent=11 // pred_region
        %p268 = scmp.lt.s32.totalorder %s24, 0
        %s269 = scalar_select %p268, %s24, 0
        %s270 = scalar_lea.vmem %s4, %s269
      $region32: #{up_proj_module.2} parent=11 // pred_fallthru
        _
    $region12: #{up_proj_module.2} parent=5 // pred_fallthru
      _
    %p271 = scmp.lt.s32.totalorder %s13, 8
    // Predicated region
    $region33: #{up_proj_module.2} parent=5 // pred_check
      %p272 = pneg %p271
    $region34: #{up_proj_module.2} parent=5 // pred_check_branch
      %274 = sbr.rel (%p272) target = $region36
    $region35: #{up_proj_module.2} parent=5 // pred_region
      _
    $region36: #{up_proj_module.2} parent=5 // pred_fallthru
      _
    %p275 = scmp.le.s32.totalorder 1, %s13
    %p276 = scmp.lt.s32.totalorder %s13, 9
    %p277 = pnand %p275, %p276
    %p278 = pneg %p277
    // Predicated region
    $region37: #{up_proj_module.2} parent=5 // pred_check
      _
    $region38: #{up_proj_module.2} parent=5 // pred_check_branch
      %280 = sbr.rel (%p277) target = $region40
    $region39: #{up_proj_module.2} parent=5 // pred_region
      %s281 = ssub.s32 %s13, 1
      %p282 = scmp.lt.s32.totalorder %s23, 1
      %s283 = scalar_select %p282, %s23, 1
      %s284 = smul.addr %s283, 54
      %s285 = smul.addr %s284, 4
      %s286 = scalar_lea.vmem %s0, %s285
      %p287 = pneg %p58
      %p288 = pneg %p55
      %p289 = scmp.lt.s32.totalorder %s24, 0
      %s290 = scalar_select %p289, %s24, 0
      %s291 = smul.addr %s290, 4
      %s292 = scalar_lea.vmem %s1, %s291
      %p293 = pneg %p84
      %p294 = pneg %p81
      %p295 = scmp.lt.s32.totalorder %s24, 0
      %s296 = scalar_select %p295, %s24, 0
      %s297 = smul.addr %s296, 4
      %s298 = scalar_lea.vmem %s2, %s297
      %p299 = pneg %p110
      %p300 = pneg %p107
      %p301 = scmp.lt.s32.totalorder %s24, 0
      %s302 = scalar_select %p301, %s24, 0
      %s303 = scalar_lea.vmem %s3, %s302
      %p304 = pneg %p136
      %p305 = pneg %p133
      %p306 = scmp.lt.s32.totalorder %s24, 0
      %s307 = scalar_select %p306, %s24, 0
      %s308 = scalar_lea.vmem %s4, %s307
      %p309 = pneg %p162
      %p310 = pneg %p159
      %p311 = pneg %p192
      %p312 = pneg %p189
      %s313 = smul.u32 4, %s25
      %p314 = scmp.lt.s32.totalorder %s23, 1
      %s315 = scalar_select %p314, %s23, 1
      %p316 = scmp.lt.s32.totalorder %s313, 15
      %s317 = scalar_select %p316, %s313, 15
      %p318 = scmp.lt.s32.totalorder %s24, 0
      %s319 = scalar_select %p318, %s24, 0
      %s320 = smul.addr %s317, 2
      %s321 = sadd.s32 %s319, %s320
      %s322 = smul.addr %s315, 32
      %s323 = sadd.s32 %s321, %s322
      %s324 = smul.addr %s323, 4
      %s325 = scalar_lea.vmem %s5, %s324
      %p326 = pneg %p222
      %p327 = pneg %p219
      %s328 = smul.u32 4, %s25
      %p329 = scmp.lt.s32.totalorder %s23, 1
      %s330 = scalar_select %p329, %s23, 1
      %p331 = scmp.lt.s32.totalorder %s328, 15
      %s332 = scalar_select %p331, %s328, 15
      %p333 = scmp.lt.s32.totalorder %s24, 0
      %s334 = scalar_select %p333, %s24, 0
      %s335 = smul.addr %s332, 2
      %s336 = sadd.s32 %s334, %s335
      %s337 = smul.addr %s330, 32
      %s338 = sadd.s32 %s336, %s337
      %s339 = smul.addr %s338, 4
      %s340 = scalar_lea.vmem %s6, %s339
      %p341 = scmp.lt.s32.totalorder %s23, 1
      %s342 = scalar_select %p341, %s23, 1
      %s343 = smul.addr %s342, 54
      %s344 = smul.addr %s343, 4
      %s345 = scalar_lea.vmem %s0, %s344
      %p346 = scmp.lt.s32.totalorder %s24, 0
      %s347 = scalar_select %p346, %s24, 0
      %s348 = smul.addr %s347, 4
      %s349 = scalar_lea.vmem %s1, %s348
      %p350 = scmp.lt.s32.totalorder %s24, 0
      %s351 = scalar_select %p350, %s24, 0
      %s352 = smul.addr %s351, 4
      %s353 = scalar_lea.vmem %s2, %s352
      %p354 = scmp.lt.s32.totalorder %s24, 0
      %s355 = scalar_select %p354, %s24, 0
      %s356 = scalar_lea.vmem %s3, %s355
      %p357 = scmp.lt.s32.totalorder %s24, 0
      %s358 = scalar_select %p357, %s24, 0
      %s359 = scalar_lea.vmem %s4, %s358
      %s360 = smul.u32 4, %s25
      %p361 = scmp.lt.s32.totalorder %s23, 1
      %s362 = scalar_select %p361, %s23, 1
      %p363 = scmp.lt.s32.totalorder %s360, 15
      %s364 = scalar_select %p363, %s360, 15
      %p365 = scmp.lt.s32.totalorder %s24, 0
      %s366 = scalar_select %p365, %s24, 0
      %s367 = smul.addr %s364, 2
      %s368 = sadd.s32 %s366, %s367
      %s369 = smul.addr %s362, 32
      %s370 = sadd.s32 %s368, %s369
      %s371 = smul.addr %s370, 4
      %s372 = scalar_lea.vmem %s5, %s371
      %s373 = smul.u32 4, %s25
      %s374 = smul.u32 4, %s25
      %p375 = scmp.lt.s32.totalorder %s23, 1
      %s376 = scalar_select %p375, %s23, 1
      %p377 = scmp.lt.s32.totalorder %s374, 15
      %s378 = scalar_select %p377, %s374, 15
      %p379 = scmp.lt.s32.totalorder %s24, 0
      %s380 = scalar_select %p379, %s24, 0
      %s381 = smul.addr %s378, 2
      %s382 = sadd.s32 %s380, %s381
      %s383 = smul.addr %s376, 32
      %s384 = sadd.s32 %s382, %s383
      %s385 = smul.addr %s384, 4
      %s386 = scalar_lea.vmem %s6, %s385
      %s387 = smul.u32 4, %s25
      %s389 = smul.u32 %s25, 4
      %s390 = smul.u32 %s389, 3
      %s391 = smul.addr %s390, 4
      %s392 = scalar_lea.vmem %s345, %s391
      %v393 = vld [vmem:[%s392] sm:$0xf]
      %v394 = vld [vmem:[%s392 + $0x4] sm:$0xf]
      %v395 = vld [vmem:[%s392 + $0xc] sm:$0xf]
      %v396 = vld [vmem:[%s392 + $0x10] sm:$0xf]
      %v397 = vld [vmem:[%s392 + $0x18] sm:$0xf]
      %v398 = vld [vmem:[%s392 + $0x1c] sm:$0xf]
      %v399 = vld [vmem:[%s392 + $0x24] sm:$0xf]
      %v400 = vld [vmem:[%s392 + $0x28] sm:$0xf]
      %v401 = vld [vmem:[%s349] sm:$0xf]
      %v402 = vld [vmem:[%s349 + $0x4] sm:$0xf]
      %v403 = vld [vmem:[%s349 + $0x8] sm:$0xf]
      %v404 = vld [vmem:[%s349 + $0xc] sm:$0xf]
      %v405 = vld [vmem:[%s349 + $0x10] sm:$0xf]
      %v406 = vld [vmem:[%s349 + $0x14] sm:$0xf]
      %v407 = vld [vmem:[%s349 + $0x18] sm:$0xf]
      %v408 = vld [vmem:[%s349 + $0x1c] sm:$0xf]
      %v409 = vld [vmem:[%s349 + $0x20] sm:$0xf]
      %v410 = vld [vmem:[%s349 + $0x24] sm:$0xf]
      %v411 = vld [vmem:[%s349 + $0x28] sm:$0xf]
      %v412 = vld [vmem:[%s349 + $0x2c] sm:$0xf]
      %v413 = vld [vmem:[%s349 + $0x30] sm:$0xf]
      %v414 = vld [vmem:[%s349 + $0x34] sm:$0xf]
      %v415 = vld [vmem:[%s349 + $0x38] sm:$0xf]
      %v416 = vld [vmem:[%s349 + $0x3c] sm:$0xf]
      %v417 = vld [vmem:[%s353] sm:$0xf]
      %v418 = vld [vmem:[%s353 + $0x4] sm:$0xf]
      %v419 = vld [vmem:[%s353 + $0x8] sm:$0xf]
      %v420 = vld [vmem:[%s353 + $0xc] sm:$0xf]
      %v421 = vld [vmem:[%s353 + $0x10] sm:$0xf]
      %v422 = vld [vmem:[%s353 + $0x14] sm:$0xf]
      %v423 = vld [vmem:[%s353 + $0x18] sm:$0xf]
      %v424 = vld [vmem:[%s353 + $0x1c] sm:$0xf]
      %v425 = vld [vmem:[%s353 + $0x20] sm:$0xf]
      %v426 = vld [vmem:[%s353 + $0x24] sm:$0xf]
      %v427 = vld [vmem:[%s353 + $0x28] sm:$0xf]
      %v428 = vld [vmem:[%s353 + $0x2c] sm:$0xf]
      %v429 = vld [vmem:[%s353 + $0x30] sm:$0xf]
      %v430 = vld [vmem:[%s353 + $0x34] sm:$0xf]
      %v431 = vld [vmem:[%s353 + $0x38] sm:$0xf]
      %v432 = vld [vmem:[%s353 + $0x3c] sm:$0xf]
      %v433 = vld [vmem:[%s392 + $0x8] sm:$0x1]
      %v434 = vld [vmem:[%s392 + $0x14] sm:$0x1]
      %v435 = vld [vmem:[%s392 + $0x20] sm:$0x1]
      %v436 = vld [vmem:[%s392 + $0x2c] sm:$0x1]
      %vm437 = vsmask.f32 3328
      %vm438 = vsmask.f32 7440
      %vm439 = vmor %vm437, %vm438
      %v441 = vshrl.u32 %v393, 16
      %v443 = vrot.slane %v441, 4
      %v444 = vshll.u32 %v393, 16
      %v446 = vrot.slane %v444, 5
      %v447 = vor.u32 %v443, %v446
      %v448 = vrot.slane %v447, 4
      %v450 = vshll.u32 %v394, 16
      %v452 = vrot.slane %v450, 5
      %v453 = vsel %vm439, %v448, %v452
      %v454 = vshrl.u32 %v394, 16
      %v456 = vrot.slane %v454, 4
      %v457 = vor.u32 %v456, %v452
      %v458 = vrot.slane %v457, 4
      %v460 = vshll.u32 %v433, 16
      %v462 = vrot.slane %v460, 5
      %v463 = vsel %vm439, %v458, %v462
      %v465 = vshrl.u32 %v395, 16
      %v467 = vrot.slane %v465, 4
      %v468 = vshll.u32 %v395, 16
      %v470 = vrot.slane %v468, 5
      %v471 = vor.u32 %v467, %v470
      %v472 = vrot.slane %v471, 4
      %v474 = vshll.u32 %v396, 16
      %v476 = vrot.slane %v474, 5
      %v477 = vsel %vm439, %v472, %v476
      %v478 = vshrl.u32 %v396, 16
      %v480 = vrot.slane %v478, 4
      %v481 = vor.u32 %v480, %v476
      %v482 = vrot.slane %v481, 4
      %v484 = vshll.u32 %v434, 16
      %v486 = vrot.slane %v484, 5
      %v487 = vsel %vm439, %v482, %v486
      %v489 = vshrl.u32 %v397, 16
      %v491 = vrot.slane %v489, 4
      %v492 = vshll.u32 %v397, 16
      %v494 = vrot.slane %v492, 5
      %v495 = vor.u32 %v491, %v494
      %v496 = vrot.slane %v495, 4
      %v498 = vshll.u32 %v398, 16
      %v500 = vrot.slane %v498, 5
      %v501 = vsel %vm439, %v496, %v500
      %v502 = vshrl.u32 %v398, 16
      %v504 = vrot.slane %v502, 4
      %v505 = vor.u32 %v504, %v500
      %v506 = vrot.slane %v505, 4
      %v508 = vshll.u32 %v435, 16
      %v510 = vrot.slane %v508, 5
      %v511 = vsel %vm439, %v506, %v510
      %v513 = vshrl.u32 %v399, 16
      %v515 = vrot.slane %v513, 4
      %v516 = vshll.u32 %v399, 16
      %v518 = vrot.slane %v516, 5
      %v519 = vor.u32 %v515, %v518
      %v520 = vrot.slane %v519, 4
      %v522 = vshll.u32 %v400, 16
      %v524 = vrot.slane %v522, 5
      %v525 = vsel %vm439, %v520, %v524
      %v526 = vshrl.u32 %v400, 16
      %v528 = vrot.slane %v526, 4
      %v529 = vor.u32 %v528, %v524
      %v530 = vrot.slane %v529, 4
      %v532 = vshll.u32 %v436, 16
      %v534 = vrot.slane %v532, 5
      %v535 = vsel %vm439, %v530, %v534
      %s536 = scalar_lea.vmem %s349, 64
      %v537 = vld [vmem:[%s536] sm:$0xf]
      %v538 = vld [vmem:[%s536 + $0x4] sm:$0xf]
      %v539 = vld [vmem:[%s536 + $0x8] sm:$0xf]
      %v540 = vld [vmem:[%s536 + $0xc] sm:$0xf]
      %v541 = vld [vmem:[%s536 + $0x10] sm:$0xf]
      %v542 = vld [vmem:[%s536 + $0x14] sm:$0xf]
      %v543 = vld [vmem:[%s536 + $0x18] sm:$0xf]
      %v544 = vld [vmem:[%s536 + $0x1c] sm:$0xf]
      %v545 = vld [vmem:[%s536 + $0x20] sm:$0xf]
      %v546 = vld [vmem:[%s536 + $0x24] sm:$0xf]
      %v547 = vld [vmem:[%s536 + $0x28] sm:$0xf]
      %v548 = vld [vmem:[%s536 + $0x2c] sm:$0xf]
      %v549 = vld [vmem:[%s536 + $0x30] sm:$0xf]
      %v550 = vld [vmem:[%s536 + $0x34] sm:$0xf]
      %v551 = vld [vmem:[%s536 + $0x38] sm:$0xf]
      %v552 = vld [vmem:[%s536 + $0x3c] sm:$0xf]
      %v553 = vunpack.c.l.b16 %v453
      %v554 = vunpack.c.l.b16 %v463
      %v555 = vunpack.c.l.b16 %v477
      %v556 = vunpack.c.l.b16 %v487
      %v557 = vunpack.c.l.b16 %v501
      %v558 = vunpack.c.l.b16 %v511
      %v559 = vunpack.c.l.b16 %v525
      %v560 = vunpack.c.l.b16 %v535
      %v561 = vpack.c.b16 %v554, %v553
      %v562 = vpack.c.b16 %v556, %v555
      %v563 = vpack.c.b16 %v558, %v557
      %v564 = vpack.c.b16 %v560, %v559
      %v585 = vunpack.c.l.b16 %v537
      %v586 = vunpack.c.l.b16 %v538
      %v587 = vunpack.c.l.b16 %v539
      %v588 = vunpack.c.l.b16 %v540
      %v589 = vunpack.c.l.b16 %v541
      %v590 = vunpack.c.l.b16 %v542
      %v591 = vunpack.c.l.b16 %v543
      %v592 = vunpack.c.l.b16 %v544
      %v593 = vunpack.c.l.b16 %v545
      %v594 = vunpack.c.l.b16 %v546
      %v595 = vunpack.c.l.b16 %v547
      %v596 = vunpack.c.l.b16 %v548
      %v597 = vunpack.c.l.b16 %v549
      %v598 = vunpack.c.l.b16 %v550
      %v599 = vunpack.c.l.b16 %v551
      %v600 = vunpack.c.l.b16 %v552
      %v601 = vpack.c.b16 %v586, %v585
      %v602 = vpack.c.b16 %v588, %v587
      %v603 = vpack.c.b16 %v590, %v589
      %v604 = vpack.c.b16 %v592, %v591
      %v605 = vpack.c.b16 %v594, %v593
      %v606 = vpack.c.b16 %v596, %v595
      %v607 = vpack.c.b16 %v598, %v597
      %v608 = vpack.c.b16 %v600, %v599
      %617 = vmatprep.subr.bf16.mxu0 0
      %618 = vmatpush1.bf16.msra.mxu0 %v608
      %619 = vmatprep.subr.bf16.mxu0 0
      %620 = vmatpush1.bf16.msra.mxu0 %v607
      %621 = vmatprep.subr.bf16.mxu0 0
      %622 = vmatpush1.bf16.msra.mxu0 %v606
      %623 = vmatprep.subr.bf16.mxu0 0
      %624 = vmatpush1.bf16.msra.mxu0 %v605
      %625 = vmatprep.subr.bf16.mxu0 0
      %626 = vmatpush1.bf16.msra.mxu0 %v604
      %627 = vmatprep.subr.bf16.mxu0 0
      %628 = vmatpush1.bf16.msra.mxu0 %v603
      %629 = vmatprep.subr.bf16.mxu0 0
      %630 = vmatpush1.bf16.msra.mxu0 %v602
      %631 = vmatprep.subr.bf16.mxu0 0
      %632 = vmatpush1.bf16.msra.mxu0 %v601
      %633 = vmatprep.subr.bf16.mxu0 0
      %634 = vmatpush2.bf16.msra.mxu0 0
      %635 = vmatprep.subr.bf16.mxu0 0
      %636 = vmatpush2.bf16.msra.mxu0 0
      %637 = vmatprep.subr.bf16.mxu0 0
      %638 = vmatpush2.bf16.msra.mxu0 0
      %639 = vmatprep.subr.bf16.mxu0 0
      %640 = vmatpush2.bf16.msra.mxu0 0
      %641 = vmatprep.subr.bf16.mxu0 0
      %642 = vmatpush2.bf16.msra.mxu0 0
      %643 = vmatprep.subr.bf16.mxu0 0
      %644 = vmatpush2.bf16.msra.mxu0 0
      %645 = vmatprep.subr.bf16.mxu0 0
      %646 = vmatpush2.bf16.msra.mxu0 0
      %647 = vmatprep.subr.bf16.mxu0 0
      %648 = vmatpush2.bf16.msra.mxu0 0
      %649 = vmatprep.mubr.bf16.mxu0 0
      %650 = vmatmul.mubr.bf16.gmra.mxu0 %v561
      %v651 = vpop.f32.mrf.mxu0
      %v652 = vadd.f32 0.0, %v651
      %v653 = vpop.f32.mrf.mxu0
      %v654 = vpop.f32.mrf.mxu0
      %v655 = vadd.f32 0.0, %v654
      %v656 = vpop.f32.mrf.mxu0
      %657 = vmatprep.mubr.bf16.mxu0 0
      %658 = vmatmul.mubr.bf16.gmra.mxu0 %v562
      %v659 = vpop.f32.mrf.mxu0
      %v660 = vadd.f32 0.0, %v659
      %v661 = vpop.f32.mrf.mxu0
      %v662 = vpop.f32.mrf.mxu0
      %v663 = vadd.f32 0.0, %v662
      %v664 = vpop.f32.mrf.mxu0
      %665 = vmatprep.mubr.bf16.mxu0 0
      %666 = vmatmul.mubr.bf16.gmra.mxu0 %v563
      %v667 = vpop.f32.mrf.mxu0
      %v668 = vadd.f32 0.0, %v667
      %v669 = vpop.f32.mrf.mxu0
      %v670 = vpop.f32.mrf.mxu0
      %v671 = vadd.f32 0.0, %v670
      %v672 = vpop.f32.mrf.mxu0
      %673 = vmatprep.mubr.bf16.mxu0 0
      %674 = vmatmul.mubr.bf16.gmra.mxu0 %v564
      %v675 = vpop.f32.mrf.mxu0
      %v676 = vadd.f32 0.0, %v675
      %v677 = vpop.f32.mrf.mxu0
      %v678 = vpop.f32.mrf.mxu0
      %v679 = vadd.f32 0.0, %v678
      %v680 = vpop.f32.mrf.mxu0
      %681 = vdwg.mxu0
      %v690 = vunpack.c.l.b16 %v393
      %v691 = vunpack.c.l.b16 %v394
      %v692 = vunpack.c.l.b16 %v395
      %v693 = vunpack.c.l.b16 %v396
      %v694 = vunpack.c.l.b16 %v397
      %v695 = vunpack.c.l.b16 %v398
      %v696 = vunpack.c.l.b16 %v399
      %v697 = vunpack.c.l.b16 %v400
      %v698 = vpack.c.b16 %v691, %v690
      %v699 = vpack.c.b16 %v693, %v692
      %v700 = vpack.c.b16 %v695, %v694
      %v701 = vpack.c.b16 %v697, %v696
      %v722 = vunpack.c.l.b16 %v401
      %v723 = vunpack.c.l.b16 %v402
      %v724 = vunpack.c.l.b16 %v403
      %v725 = vunpack.c.l.b16 %v404
      %v726 = vunpack.c.l.b16 %v405
      %v727 = vunpack.c.l.b16 %v406
      %v728 = vunpack.c.l.b16 %v407
      %v729 = vunpack.c.l.b16 %v408
      %v730 = vunpack.c.l.b16 %v409
      %v731 = vunpack.c.l.b16 %v410
      %v732 = vunpack.c.l.b16 %v411
      %v733 = vunpack.c.l.b16 %v412
      %v734 = vunpack.c.l.b16 %v413
      %v735 = vunpack.c.l.b16 %v414
      %v736 = vunpack.c.l.b16 %v415
      %v737 = vunpack.c.l.b16 %v416
      %v738 = vpack.c.b16 %v723, %v722
      %v739 = vpack.c.b16 %v725, %v724
      %v740 = vpack.c.b16 %v727, %v726
      %v741 = vpack.c.b16 %v729, %v728
      %v742 = vpack.c.b16 %v731, %v730
      %v743 = vpack.c.b16 %v733, %v732
      %v744 = vpack.c.b16 %v735, %v734
      %v745 = vpack.c.b16 %v737, %v736
      %754 = vmatprep.subr.bf16.mxu0 0
      %755 = vmatpush1.bf16.msra.mxu0 %v745
      %756 = vmatprep.subr.bf16.mxu0 0
      %757 = vmatpush1.bf16.msra.mxu0 %v744
      %758 = vmatprep.subr.bf16.mxu0 0
      %759 = vmatpush1.bf16.msra.mxu0 %v743
      %760 = vmatprep.subr.bf16.mxu0 0
      %761 = vmatpush1.bf16.msra.mxu0 %v742
      %762 = vmatprep.subr.bf16.mxu0 0
      %763 = vmatpush1.bf16.msra.mxu0 %v741
      %764 = vmatprep.subr.bf16.mxu0 0
      %765 = vmatpush1.bf16.msra.mxu0 %v740
      %766 = vmatprep.subr.bf16.mxu0 0
      %767 = vmatpush1.bf16.msra.mxu0 %v739
      %768 = vmatprep.subr.bf16.mxu0 0
      %769 = vmatpush1.bf16.msra.mxu0 %v738
      %770 = vmatprep.subr.bf16.mxu0 0
      %771 = vmatpush2.bf16.msra.mxu0 0
      %772 = vmatprep.subr.bf16.mxu0 0
      %773 = vmatpush2.bf16.msra.mxu0 0
      %774 = vmatprep.subr.bf16.mxu0 0
      %775 = vmatpush2.bf16.msra.mxu0 0
      %776 = vmatprep.subr.bf16.mxu0 0
      %777 = vmatpush2.bf16.msra.mxu0 0
      %778 = vmatprep.subr.bf16.mxu0 0
      %779 = vmatpush2.bf16.msra.mxu0 0
      %780 = vmatprep.subr.bf16.mxu0 0
      %781 = vmatpush2.bf16.msra.mxu0 0
      %782 = vmatprep.subr.bf16.mxu0 0
      %783 = vmatpush2.bf16.msra.mxu0 0
      %784 = vmatprep.subr.bf16.mxu0 0
      %785 = vmatpush2.bf16.msra.mxu0 0
      %786 = vmatprep.mubr.bf16.mxu0 0
      %787 = vmatmul.mubr.bf16.gmra.mxu0 %v698
      %v788 = vpop.f32.mrf.mxu0
      %v789 = vadd.f32 %v652, %v788
      %v790 = vpop.f32.mrf.mxu0
      %v791 = vpop.f32.mrf.mxu0
      %v792 = vadd.f32 %v655, %v791
      %v793 = vpop.f32.mrf.mxu0
      %794 = vmatprep.mubr.bf16.mxu0 0
      %795 = vmatmul.mubr.bf16.gmra.mxu0 %v699
      %v796 = vpop.f32.mrf.mxu0
      %v797 = vadd.f32 %v660, %v796
      %v798 = vpop.f32.mrf.mxu0
      %v799 = vpop.f32.mrf.mxu0
      %v800 = vadd.f32 %v663, %v799
      %v801 = vpop.f32.mrf.mxu0
      %802 = vmatprep.mubr.bf16.mxu0 0
      %803 = vmatmul.mubr.bf16.gmra.mxu0 %v700
      %v804 = vpop.f32.mrf.mxu0
      %v805 = vadd.f32 %v668, %v804
      %v806 = vpop.f32.mrf.mxu0
      %v807 = vpop.f32.mrf.mxu0
      %v808 = vadd.f32 %v671, %v807
      %v809 = vpop.f32.mrf.mxu0
      %810 = vmatprep.mubr.bf16.mxu0 0
      %811 = vmatmul.mubr.bf16.gmra.mxu0 %v701
      %v812 = vpop.f32.mrf.mxu0
      %v813 = vadd.f32 %v676, %v812
      %v814 = vpop.f32.mrf.mxu0
      %v815 = vpop.f32.mrf.mxu0
      %v816 = vadd.f32 %v679, %v815
      %v817 = vpop.f32.mrf.mxu0
      %818 = vdwg.mxu0
      %s819 = scalar_lea.vmem %s353, 64
      %v820 = vld [vmem:[%s819] sm:$0xf]
      %v821 = vld [vmem:[%s819 + $0x4] sm:$0xf]
      %v822 = vld [vmem:[%s819 + $0x8] sm:$0xf]
      %v823 = vld [vmem:[%s819 + $0xc] sm:$0xf]
      %v824 = vld [vmem:[%s819 + $0x10] sm:$0xf]
      %v825 = vld [vmem:[%s819 + $0x14] sm:$0xf]
      %v826 = vld [vmem:[%s819 + $0x18] sm:$0xf]
      %v827 = vld [vmem:[%s819 + $0x1c] sm:$0xf]
      %v828 = vld [vmem:[%s819 + $0x20] sm:$0xf]
      %v829 = vld [vmem:[%s819 + $0x24] sm:$0xf]
      %v830 = vld [vmem:[%s819 + $0x28] sm:$0xf]
      %v831 = vld [vmem:[%s819 + $0x2c] sm:$0xf]
      %v832 = vld [vmem:[%s819 + $0x30] sm:$0xf]
      %v833 = vld [vmem:[%s819 + $0x34] sm:$0xf]
      %v834 = vld [vmem:[%s819 + $0x38] sm:$0xf]
      %v835 = vld [vmem:[%s819 + $0x3c] sm:$0xf]
      %v852 = vunpack.c.l.b16 %v820
      %v853 = vunpack.c.l.b16 %v821
      %v854 = vunpack.c.l.b16 %v822
      %v855 = vunpack.c.l.b16 %v823
      %v856 = vunpack.c.l.b16 %v824
      %v857 = vunpack.c.l.b16 %v825
      %v858 = vunpack.c.l.b16 %v826
      %v859 = vunpack.c.l.b16 %v827
      %v860 = vunpack.c.l.b16 %v828
      %v861 = vunpack.c.l.b16 %v829
      %v862 = vunpack.c.l.b16 %v830
      %v863 = vunpack.c.l.b16 %v831
      %v864 = vunpack.c.l.b16 %v832
      %v865 = vunpack.c.l.b16 %v833
      %v866 = vunpack.c.l.b16 %v834
      %v867 = vunpack.c.l.b16 %v835
      %v868 = vpack.c.b16 %v853, %v852
      %v869 = vpack.c.b16 %v855, %v854
      %v870 = vpack.c.b16 %v857, %v856
      %v871 = vpack.c.b16 %v859, %v858
      %v872 = vpack.c.b16 %v861, %v860
      %v873 = vpack.c.b16 %v863, %v862
      %v874 = vpack.c.b16 %v865, %v864
      %v875 = vpack.c.b16 %v867, %v866
      %884 = vmatprep.subr.bf16.mxu0 0
      %885 = vmatpush1.bf16.msra.mxu0 %v875
      %886 = vmatprep.subr.bf16.mxu0 0
      %887 = vmatpush1.bf16.msra.mxu0 %v874
      %888 = vmatprep.subr.bf16.mxu0 0
      %889 = vmatpush1.bf16.msra.mxu0 %v873
      %890 = vmatprep.subr.bf16.mxu0 0
      %891 = vmatpush1.bf16.msra.mxu0 %v872
      %892 = vmatprep.subr.bf16.mxu0 0
      %893 = vmatpush1.bf16.msra.mxu0 %v871
      %894 = vmatprep.subr.bf16.mxu0 0
      %895 = vmatpush1.bf16.msra.mxu0 %v870
      %896 = vmatprep.subr.bf16.mxu0 0
      %897 = vmatpush1.bf16.msra.mxu0 %v869
      %898 = vmatprep.subr.bf16.mxu0 0
      %899 = vmatpush1.bf16.msra.mxu0 %v868
      %900 = vmatprep.subr.bf16.mxu0 0
      %901 = vmatpush2.bf16.msra.mxu0 0
      %902 = vmatprep.subr.bf16.mxu0 0
      %903 = vmatpush2.bf16.msra.mxu0 0
      %904 = vmatprep.subr.bf16.mxu0 0
      %905 = vmatpush2.bf16.msra.mxu0 0
      %906 = vmatprep.subr.bf16.mxu0 0
      %907 = vmatpush2.bf16.msra.mxu0 0
      %908 = vmatprep.subr.bf16.mxu0 0
      %909 = vmatpush2.bf16.msra.mxu0 0
      %910 = vmatprep.subr.bf16.mxu0 0
      %911 = vmatpush2.bf16.msra.mxu0 0
      %912 = vmatprep.subr.bf16.mxu0 0
      %913 = vmatpush2.bf16.msra.mxu0 0
      %914 = vmatprep.subr.bf16.mxu0 0
      %915 = vmatpush2.bf16.msra.mxu0 0
      %916 = vmatprep.mubr.bf16.mxu0 0
      %917 = vmatmul.mubr.bf16.gmra.mxu0 %v561
      %v918 = vpop.f32.mrf.mxu0
      %v919 = vadd.f32 0.0, %v918
      %v920 = vpop.f32.mrf.mxu0
      %v921 = vpop.f32.mrf.mxu0
      %v922 = vadd.f32 0.0, %v921
      %v923 = vpop.f32.mrf.mxu0
      %924 = vmatprep.mubr.bf16.mxu0 0
      %925 = vmatmul.mubr.bf16.gmra.mxu0 %v562
      %v926 = vpop.f32.mrf.mxu0
      %v927 = vadd.f32 0.0, %v926
      %v928 = vpop.f32.mrf.mxu0
      %v929 = vpop.f32.mrf.mxu0
      %v930 = vadd.f32 0.0, %v929
      %v931 = vpop.f32.mrf.mxu0
      %932 = vmatprep.mubr.bf16.mxu0 0
      %933 = vmatmul.mubr.bf16.gmra.mxu0 %v563
      %v934 = vpop.f32.mrf.mxu0
      %v935 = vadd.f32 0.0, %v934
      %v936 = vpop.f32.mrf.mxu0
      %v937 = vpop.f32.mrf.mxu0
      %v938 = vadd.f32 0.0, %v937
      %v939 = vpop.f32.mrf.mxu0
      %940 = vmatprep.mubr.bf16.mxu0 0
      %941 = vmatmul.mubr.bf16.gmra.mxu0 %v564
      %v942 = vpop.f32.mrf.mxu0
      %v943 = vadd.f32 0.0, %v942
      %v944 = vpop.f32.mrf.mxu0
      %v945 = vpop.f32.mrf.mxu0
      %v946 = vadd.f32 0.0, %v945
      %v947 = vpop.f32.mrf.mxu0
      %948 = vdwg.mxu0
      %v965 = vunpack.c.l.b16 %v417
      %v966 = vunpack.c.l.b16 %v418
      %v967 = vunpack.c.l.b16 %v419
      %v968 = vunpack.c.l.b16 %v420
      %v969 = vunpack.c.l.b16 %v421
      %v970 = vunpack.c.l.b16 %v422
      %v971 = vunpack.c.l.b16 %v423
      %v972 = vunpack.c.l.b16 %v424
      %v973 = vunpack.c.l.b16 %v425
      %v974 = vunpack.c.l.b16 %v426
      %v975 = vunpack.c.l.b16 %v427
      %v976 = vunpack.c.l.b16 %v428
      %v977 = vunpack.c.l.b16 %v429
      %v978 = vunpack.c.l.b16 %v430
      %v979 = vunpack.c.l.b16 %v431
      %v980 = vunpack.c.l.b16 %v432
      %v981 = vpack.c.b16 %v966, %v965
      %v982 = vpack.c.b16 %v968, %v967
      %v983 = vpack.c.b16 %v970, %v969
      %v984 = vpack.c.b16 %v972, %v971
      %v985 = vpack.c.b16 %v974, %v973
      %v986 = vpack.c.b16 %v976, %v975
      %v987 = vpack.c.b16 %v978, %v977
      %v988 = vpack.c.b16 %v980, %v979
      %997 = vmatprep.subr.bf16.mxu0 0
      %998 = vmatpush1.bf16.msra.mxu0 %v988
      %999 = vmatprep.subr.bf16.mxu0 0
      %1000 = vmatpush1.bf16.msra.mxu0 %v987
      %1001 = vmatprep.subr.bf16.mxu0 0
      %1002 = vmatpush1.bf16.msra.mxu0 %v986
      %1003 = vmatprep.subr.bf16.mxu0 0
      %1004 = vmatpush1.bf16.msra.mxu0 %v985
      %1005 = vmatprep.subr.bf16.mxu0 0
      %1006 = vmatpush1.bf16.msra.mxu0 %v984
      %1007 = vmatprep.subr.bf16.mxu0 0
      %1008 = vmatpush1.bf16.msra.mxu0 %v983
      %1009 = vmatprep.subr.bf16.mxu0 0
      %1010 = vmatpush1.bf16.msra.mxu0 %v982
      %1011 = vmatprep.subr.bf16.mxu0 0
      %1012 = vmatpush1.bf16.msra.mxu0 %v981
      %1013 = vmatprep.subr.bf16.mxu0 0
      %1014 = vmatpush2.bf16.msra.mxu0 0
      %1015 = vmatprep.subr.bf16.mxu0 0
      %1016 = vmatpush2.bf16.msra.mxu0 0
      %1017 = vmatprep.subr.bf16.mxu0 0
      %1018 = vmatpush2.bf16.msra.mxu0 0
      %1019 = vmatprep.subr.bf16.mxu0 0
      %1020 = vmatpush2.bf16.msra.mxu0 0
      %1021 = vmatprep.subr.bf16.mxu0 0
      %1022 = vmatpush2.bf16.msra.mxu0 0
      %1023 = vmatprep.subr.bf16.mxu0 0
      %1024 = vmatpush2.bf16.msra.mxu0 0
      %1025 = vmatprep.subr.bf16.mxu0 0
      %1026 = vmatpush2.bf16.msra.mxu0 0
      %1027 = vmatprep.subr.bf16.mxu0 0
      %1028 = vmatpush2.bf16.msra.mxu0 0
      %1029 = vmatprep.mubr.bf16.mxu0 0
      %1030 = vmatmul.mubr.bf16.gmra.mxu0 %v698
      %v1031 = vpop.f32.mrf.mxu0
      %v1032 = vadd.f32 %v919, %v1031
      %v1033 = vpop.f32.mrf.mxu0
      %v1034 = vpop.f32.mrf.mxu0
      %v1035 = vadd.f32 %v922, %v1034
      %v1036 = vpop.f32.mrf.mxu0
      %1037 = vmatprep.mubr.bf16.mxu0 0
      %1038 = vmatmul.mubr.bf16.gmra.mxu0 %v699
      %v1039 = vpop.f32.mrf.mxu0
      %v1040 = vadd.f32 %v927, %v1039
      %v1041 = vpop.f32.mrf.mxu0
      %v1042 = vpop.f32.mrf.mxu0
      %v1043 = vadd.f32 %v930, %v1042
      %v1044 = vpop.f32.mrf.mxu0
      %1045 = vmatprep.mubr.bf16.mxu0 0
      %1046 = vmatmul.mubr.bf16.gmra.mxu0 %v700
      %v1047 = vpop.f32.mrf.mxu0
      %v1048 = vadd.f32 %v935, %v1047
      %v1049 = vpop.f32.mrf.mxu0
      %v1050 = vpop.f32.mrf.mxu0
      %v1051 = vadd.f32 %v938, %v1050
      %v1052 = vpop.f32.mrf.mxu0
      %1053 = vmatprep.mubr.bf16.mxu0 0
      %1054 = vmatmul.mubr.bf16.gmra.mxu0 %v701
      %v1055 = vpop.f32.mrf.mxu0
      %v1056 = vadd.f32 %v943, %v1055
      %v1057 = vpop.f32.mrf.mxu0
      %v1058 = vpop.f32.mrf.mxu0
      %v1059 = vadd.f32 %v946, %v1058
      %v1060 = vpop.f32.mrf.mxu0
      %1061 = vdwg.mxu0
      %v1062 = vld [vmem:[%s392] sm:$0xe]
      %v1063 = vld [vmem:[%s392 + $0xc] sm:$0xe]
      %v1064 = vld [vmem:[%s392 + $0x18] sm:$0xe]
      %v1065 = vld [vmem:[%s392 + $0x24] sm:$0xe]
      %vm1074 = vcmask 1042432
      %vm1075 = vcmask 1046532
      %vm1076 = vmor %vm1074, %vm1075
      %v1077 = vrot.slane %v1062, 5
      %v1078 = vrot.slane %v1077, 4
      %v1079 = vrot.slane %v394, 5
      %v1080 = vsel %vm1076, %v1078, %v1079
      %v1081 = vrot.slane %v1079, 4
      %v1082 = vrot.slane %v433, 5
      %v1083 = vsel %vm1076, %v1081, %v1082
      %v1084 = vrot.slane %v1063, 5
      %v1085 = vrot.slane %v1084, 4
      %v1086 = vrot.slane %v396, 5
      %v1087 = vsel %vm1076, %v1085, %v1086
      %v1088 = vrot.slane %v1086, 4
      %v1089 = vrot.slane %v434, 5
      %v1090 = vsel %vm1076, %v1088, %v1089
      %v1091 = vrot.slane %v1064, 5
      %v1092 = vrot.slane %v1091, 4
      %v1093 = vrot.slane %v398, 5
      %v1094 = vsel %vm1076, %v1092, %v1093
      %v1095 = vrot.slane %v1093, 4
      %v1096 = vrot.slane %v435, 5
      %v1097 = vsel %vm1076, %v1095, %v1096
      %v1098 = vrot.slane %v1065, 5
      %v1099 = vrot.slane %v1098, 4
      %v1100 = vrot.slane %v400, 5
      %v1101 = vsel %vm1076, %v1099, %v1100
      %v1102 = vrot.slane %v1100, 4
      %v1103 = vrot.slane %v436, 5
      %v1104 = vsel %vm1076, %v1102, %v1103
      %s1105 = scalar_lea.vmem %s349, 128
      %v1106 = vld [vmem:[%s1105] sm:$0xf]
      %v1107 = vld [vmem:[%s1105 + $0x4] sm:$0xf]
      %v1108 = vld [vmem:[%s1105 + $0x8] sm:$0xf]
      %v1109 = vld [vmem:[%s1105 + $0xc] sm:$0xf]
      %v1110 = vld [vmem:[%s1105 + $0x10] sm:$0xf]
      %v1111 = vld [vmem:[%s1105 + $0x14] sm:$0xf]
      %v1112 = vld [vmem:[%s1105 + $0x18] sm:$0xf]
      %v1113 = vld [vmem:[%s1105 + $0x1c] sm:$0xf]
      %v1114 = vld [vmem:[%s1105 + $0x20] sm:$0xf]
      %v1115 = vld [vmem:[%s1105 + $0x24] sm:$0xf]
      %v1116 = vld [vmem:[%s1105 + $0x28] sm:$0xf]
      %v1117 = vld [vmem:[%s1105 + $0x2c] sm:$0xf]
      %v1118 = vld [vmem:[%s1105 + $0x30] sm:$0xf]
      %v1119 = vld [vmem:[%s1105 + $0x34] sm:$0xf]
      %v1120 = vld [vmem:[%s1105 + $0x38] sm:$0xf]
      %v1121 = vld [vmem:[%s1105 + $0x3c] sm:$0xf]
      %v1122 = vunpack.c.l.b16 %v1080
      %v1123 = vunpack.c.l.b16 %v1083
      %v1124 = vunpack.c.l.b16 %v1087
      %v1125 = vunpack.c.l.b16 %v1090
      %v1126 = vunpack.c.l.b16 %v1094
      %v1127 = vunpack.c.l.b16 %v1097
      %v1128 = vunpack.c.l.b16 %v1101
      %v1129 = vunpack.c.l.b16 %v1104
      %v1130 = vpack.c.b16 %v1123, %v1122
      %v1131 = vpack.c.b16 %v1125, %v1124
      %v1132 = vpack.c.b16 %v1127, %v1126
      %v1133 = vpack.c.b16 %v1129, %v1128
      %v1154 = vunpack.c.l.b16 %v1106
      %v1155 = vunpack.c.l.b16 %v1107
      %v1156 = vunpack.c.l.b16 %v1108
      %v1157 = vunpack.c.l.b16 %v1109
      %v1158 = vunpack.c.l.b16 %v1110
      %v1159 = vunpack.c.l.b16 %v1111
      %v1160 = vunpack.c.l.b16 %v1112
      %v1161 = vunpack.c.l.b16 %v1113
      %v1162 = vunpack.c.l.b16 %v1114
      %v1163 = vunpack.c.l.b16 %v1115
      %v1164 = vunpack.c.l.b16 %v1116
      %v1165 = vunpack.c.l.b16 %v1117
      %v1166 = vunpack.c.l.b16 %v1118
      %v1167 = vunpack.c.l.b16 %v1119
      %v1168 = vunpack.c.l.b16 %v1120
      %v1169 = vunpack.c.l.b16 %v1121
      %v1170 = vpack.c.b16 %v1155, %v1154
      %v1171 = vpack.c.b16 %v1157, %v1156
      %v1172 = vpack.c.b16 %v1159, %v1158
      %v1173 = vpack.c.b16 %v1161, %v1160
      %v1174 = vpack.c.b16 %v1163, %v1162
      %v1175 = vpack.c.b16 %v1165, %v1164
      %v1176 = vpack.c.b16 %v1167, %v1166
      %v1177 = vpack.c.b16 %v1169, %v1168
      %1186 = vmatprep.subr.bf16.mxu0 0
      %1187 = vmatpush1.bf16.msra.mxu0 %v1177
      %1188 = vmatprep.subr.bf16.mxu0 0
      %1189 = vmatpush1.bf16.msra.mxu0 %v1176
      %1190 = vmatprep.subr.bf16.mxu0 0
      %1191 = vmatpush1.bf16.msra.mxu0 %v1175
      %1192 = vmatprep.subr.bf16.mxu0 0
      %1193 = vmatpush1.bf16.msra.mxu0 %v1174
      %1194 = vmatprep.subr.bf16.mxu0 0
      %1195 = vmatpush1.bf16.msra.mxu0 %v1173
      %1196 = vmatprep.subr.bf16.mxu0 0
      %1197 = vmatpush1.bf16.msra.mxu0 %v1172
      %1198 = vmatprep.subr.bf16.mxu0 0
      %1199 = vmatpush1.bf16.msra.mxu0 %v1171
      %1200 = vmatprep.subr.bf16.mxu0 0
      %1201 = vmatpush1.bf16.msra.mxu0 %v1170
      %1202 = vmatprep.subr.bf16.mxu0 0
      %1203 = vmatpush2.bf16.msra.mxu0 0
      %1204 = vmatprep.subr.bf16.mxu0 0
      %1205 = vmatpush2.bf16.msra.mxu0 0
      %1206 = vmatprep.subr.bf16.mxu0 0
      %1207 = vmatpush2.bf16.msra.mxu0 0
      %1208 = vmatprep.subr.bf16.mxu0 0
      %1209 = vmatpush2.bf16.msra.mxu0 0
      %1210 = vmatprep.subr.bf16.mxu0 0
      %1211 = vmatpush2.bf16.msra.mxu0 0
      %1212 = vmatprep.subr.bf16.mxu0 0
      %1213 = vmatpush2.bf16.msra.mxu0 0
      %1214 = vmatprep.subr.bf16.mxu0 0
      %1215 = vmatpush2.bf16.msra.mxu0 0
      %1216 = vmatprep.subr.bf16.mxu0 0
      %1217 = vmatpush2.bf16.msra.mxu0 0
      %1218 = vmatprep.mubr.bf16.mxu0 0
      %1219 = vmatmul.mubr.bf16.gmra.mxu0 %v1130
      %v1220 = vpop.f32.mrf.mxu0
      %v1221 = vadd.f32 0.0, %v1220
      %v1222 = vpop.f32.mrf.mxu0
      %v1223 = vpop.f32.mrf.mxu0
      %v1224 = vadd.f32 0.0, %v1223
      %v1225 = vpop.f32.mrf.mxu0
      %1226 = vmatprep.mubr.bf16.mxu0 0
      %1227 = vmatmul.mubr.bf16.gmra.mxu0 %v1131
      %v1228 = vpop.f32.mrf.mxu0
      %v1229 = vadd.f32 0.0, %v1228
      %v1230 = vpop.f32.mrf.mxu0
      %v1231 = vpop.f32.mrf.mxu0
      %v1232 = vadd.f32 0.0, %v1231
      %v1233 = vpop.f32.mrf.mxu0
      %1234 = vmatprep.mubr.bf16.mxu0 0
      %1235 = vmatmul.mubr.bf16.gmra.mxu0 %v1132
      %v1236 = vpop.f32.mrf.mxu0
      %v1237 = vadd.f32 0.0, %v1236
      %v1238 = vpop.f32.mrf.mxu0
      %v1239 = vpop.f32.mrf.mxu0
      %v1240 = vadd.f32 0.0, %v1239
      %v1241 = vpop.f32.mrf.mxu0
      %1242 = vmatprep.mubr.bf16.mxu0 0
      %1243 = vmatmul.mubr.bf16.gmra.mxu0 %v1133
      %v1244 = vpop.f32.mrf.mxu0
      %v1245 = vadd.f32 0.0, %v1244
      %v1246 = vpop.f32.mrf.mxu0
      %v1247 = vpop.f32.mrf.mxu0
      %v1248 = vadd.f32 0.0, %v1247
      %v1249 = vpop.f32.mrf.mxu0
      %1250 = vdwg.mxu0
      %v1251 = vadd.f32 %v789, %v1221
      %v1252 = vadd.f32 %v792, %v1224
      %v1253 = vadd.f32 %v797, %v1229
      %v1254 = vadd.f32 %v800, %v1232
      %v1255 = vadd.f32 %v805, %v1237
      %v1256 = vadd.f32 %v808, %v1240
      %v1257 = vadd.f32 %v813, %v1245
      %v1258 = vadd.f32 %v816, %v1248
      %s1259 = scalar_lea.vmem %s353, 128
      %v1260 = vld [vmem:[%s1259] sm:$0xf]
      %v1261 = vld [vmem:[%s1259 + $0x4] sm:$0xf]
      %v1262 = vld [vmem:[%s1259 + $0x8] sm:$0xf]
      %v1263 = vld [vmem:[%s1259 + $0xc] sm:$0xf]
      %v1264 = vld [vmem:[%s1259 + $0x10] sm:$0xf]
      %v1265 = vld [vmem:[%s1259 + $0x14] sm:$0xf]
      %v1266 = vld [vmem:[%s1259 + $0x18] sm:$0xf]
      %v1267 = vld [vmem:[%s1259 + $0x1c] sm:$0xf]
      %v1268 = vld [vmem:[%s1259 + $0x20] sm:$0xf]
      %v1269 = vld [vmem:[%s1259 + $0x24] sm:$0xf]
      %v1270 = vld [vmem:[%s1259 + $0x28] sm:$0xf]
      %v1271 = vld [vmem:[%s1259 + $0x2c] sm:$0xf]
      %v1272 = vld [vmem:[%s1259 + $0x30] sm:$0xf]
      %v1273 = vld [vmem:[%s1259 + $0x34] sm:$0xf]
      %v1274 = vld [vmem:[%s1259 + $0x38] sm:$0xf]
      %v1275 = vld [vmem:[%s1259 + $0x3c] sm:$0xf]
      %v1292 = vunpack.c.l.b16 %v1260
      %v1293 = vunpack.c.l.b16 %v1261
      %v1294 = vunpack.c.l.b16 %v1262
      %v1295 = vunpack.c.l.b16 %v1263
      %v1296 = vunpack.c.l.b16 %v1264
      %v1297 = vunpack.c.l.b16 %v1265
      %v1298 = vunpack.c.l.b16 %v1266
      %v1299 = vunpack.c.l.b16 %v1267
      %v1300 = vunpack.c.l.b16 %v1268
      %v1301 = vunpack.c.l.b16 %v1269
      %v1302 = vunpack.c.l.b16 %v1270
      %v1303 = vunpack.c.l.b16 %v1271
      %v1304 = vunpack.c.l.b16 %v1272
      %v1305 = vunpack.c.l.b16 %v1273
      %v1306 = vunpack.c.l.b16 %v1274
      %v1307 = vunpack.c.l.b16 %v1275
      %v1308 = vpack.c.b16 %v1293, %v1292
      %v1309 = vpack.c.b16 %v1295, %v1294
      %v1310 = vpack.c.b16 %v1297, %v1296
      %v1311 = vpack.c.b16 %v1299, %v1298
      %v1312 = vpack.c.b16 %v1301, %v1300
      %v1313 = vpack.c.b16 %v1303, %v1302
      %v1314 = vpack.c.b16 %v1305, %v1304
      %v1315 = vpack.c.b16 %v1307, %v1306
      %1324 = vmatprep.subr.bf16.mxu0 0
      %1325 = vmatpush1.bf16.msra.mxu0 %v1315
      %1326 = vmatprep.subr.bf16.mxu0 0
      %1327 = vmatpush1.bf16.msra.mxu0 %v1314
      %1328 = vmatprep.subr.bf16.mxu0 0
      %1329 = vmatpush1.bf16.msra.mxu0 %v1313
      %1330 = vmatprep.subr.bf16.mxu0 0
      %1331 = vmatpush1.bf16.msra.mxu0 %v1312
      %1332 = vmatprep.subr.bf16.mxu0 0
      %1333 = vmatpush1.bf16.msra.mxu0 %v1311
      %1334 = vmatprep.subr.bf16.mxu0 0
      %1335 = vmatpush1.bf16.msra.mxu0 %v1310
      %1336 = vmatprep.subr.bf16.mxu0 0
      %1337 = vmatpush1.bf16.msra.mxu0 %v1309
      %1338 = vmatprep.subr.bf16.mxu0 0
      %1339 = vmatpush1.bf16.msra.mxu0 %v1308
      %1340 = vmatprep.subr.bf16.mxu0 0
      %1341 = vmatpush2.bf16.msra.mxu0 0
      %1342 = vmatprep.subr.bf16.mxu0 0
      %1343 = vmatpush2.bf16.msra.mxu0 0
      %1344 = vmatprep.subr.bf16.mxu0 0
      %1345 = vmatpush2.bf16.msra.mxu0 0
      %1346 = vmatprep.subr.bf16.mxu0 0
      %1347 = vmatpush2.bf16.msra.mxu0 0
      %1348 = vmatprep.subr.bf16.mxu0 0
      %1349 = vmatpush2.bf16.msra.mxu0 0
      %1350 = vmatprep.subr.bf16.mxu0 0
      %1351 = vmatpush2.bf16.msra.mxu0 0
      %1352 = vmatprep.subr.bf16.mxu0 0
      %1353 = vmatpush2.bf16.msra.mxu0 0
      %1354 = vmatprep.subr.bf16.mxu0 0
      %1355 = vmatpush2.bf16.msra.mxu0 0
      %1356 = vmatprep.mubr.bf16.mxu0 0
      %1357 = vmatmul.mubr.bf16.gmra.mxu0 %v1130
      %v1358 = vpop.f32.mrf.mxu0
      %v1359 = vadd.f32 0.0, %v1358
      %v1360 = vpop.f32.mrf.mxu0
      %v1361 = vpop.f32.mrf.mxu0
      %v1362 = vadd.f32 0.0, %v1361
      %v1363 = vpop.f32.mrf.mxu0
      %1364 = vmatprep.mubr.bf16.mxu0 0
      %1365 = vmatmul.mubr.bf16.gmra.mxu0 %v1131
      %v1366 = vpop.f32.mrf.mxu0
      %v1367 = vadd.f32 0.0, %v1366
      %v1368 = vpop.f32.mrf.mxu0
      %v1369 = vpop.f32.mrf.mxu0
      %v1370 = vadd.f32 0.0, %v1369
      %v1371 = vpop.f32.mrf.mxu0
      %1372 = vmatprep.mubr.bf16.mxu0 0
      %1373 = vmatmul.mubr.bf16.gmra.mxu0 %v1132
      %v1374 = vpop.f32.mrf.mxu0
      %v1375 = vadd.f32 0.0, %v1374
      %v1376 = vpop.f32.mrf.mxu0
      %v1377 = vpop.f32.mrf.mxu0
      %v1378 = vadd.f32 0.0, %v1377
      %v1379 = vpop.f32.mrf.mxu0
      %1380 = vmatprep.mubr.bf16.mxu0 0
      %1381 = vmatmul.mubr.bf16.gmra.mxu0 %v1133
      %v1382 = vpop.f32.mrf.mxu0
      %v1383 = vadd.f32 0.0, %v1382
      %v1384 = vpop.f32.mrf.mxu0
      %v1385 = vpop.f32.mrf.mxu0
      %v1386 = vadd.f32 0.0, %v1385
      %v1387 = vpop.f32.mrf.mxu0
      %1388 = vdwg.mxu0
      %v1389 = vadd.f32 %v1032, %v1359
      %v1390 = vadd.f32 %v1035, %v1362
      %v1391 = vadd.f32 %v1040, %v1367
      %v1392 = vadd.f32 %v1043, %v1370
      %v1393 = vadd.f32 %v1048, %v1375
      %v1394 = vadd.f32 %v1051, %v1378
      %v1395 = vadd.f32 %v1056, %v1383
      %v1396 = vadd.f32 %v1059, %v1386
      %s1397 = sadd.s32 %s389, 1
      %s1398 = smul.u32 %s1397, 3
      %s1399 = smul.addr %s1398, 4
      %s1400 = scalar_lea.vmem %s345, %s1399
      %v1401 = vld [vmem:[%s1400] sm:$0xf]
      %v1402 = vld [vmem:[%s1400 + $0x4] sm:$0xf]
      %v1403 = vld [vmem:[%s1400 + $0xc] sm:$0xf]
      %v1404 = vld [vmem:[%s1400 + $0x10] sm:$0xf]
      %v1405 = vld [vmem:[%s1400 + $0x18] sm:$0xf]
      %v1406 = vld [vmem:[%s1400 + $0x1c] sm:$0xf]
      %v1407 = vld [vmem:[%s1400 + $0x24] sm:$0xf]
      %v1408 = vld [vmem:[%s1400 + $0x28] sm:$0xf]
      %s1409 = scalar_lea.vmem %s349, 192
      %v1410 = vld [vmem:[%s1409] sm:$0xf]
      %v1411 = vld [vmem:[%s1409 + $0x4] sm:$0xf]
      %v1412 = vld [vmem:[%s1409 + $0x8] sm:$0xf]
      %v1413 = vld [vmem:[%s1409 + $0xc] sm:$0xf]
      %v1414 = vld [vmem:[%s1409 + $0x10] sm:$0xf]
      %v1415 = vld [vmem:[%s1409 + $0x14] sm:$0xf]
      %v1416 = vld [vmem:[%s1409 + $0x18] sm:$0xf]
      %v1417 = vld [vmem:[%s1409 + $0x1c] sm:$0xf]
      %v1418 = vld [vmem:[%s1409 + $0x20] sm:$0xf]
      %v1419 = vld [vmem:[%s1409 + $0x24] sm:$0xf]
      %v1420 = vld [vmem:[%s1409 + $0x28] sm:$0xf]
      %v1421 = vld [vmem:[%s1409 + $0x2c] sm:$0xf]
      %v1422 = vld [vmem:[%s1409 + $0x30] sm:$0xf]
      %v1423 = vld [vmem:[%s1409 + $0x34] sm:$0xf]
      %v1424 = vld [vmem:[%s1409 + $0x38] sm:$0xf]
      %v1425 = vld [vmem:[%s1409 + $0x3c] sm:$0xf]
      %v1434 = vunpack.c.l.b16 %v1401
      %v1435 = vunpack.c.l.b16 %v1402
      %v1436 = vunpack.c.l.b16 %v1403
      %v1437 = vunpack.c.l.b16 %v1404
      %v1438 = vunpack.c.l.b16 %v1405
      %v1439 = vunpack.c.l.b16 %v1406
      %v1440 = vunpack.c.l.b16 %v1407
      %v1441 = vunpack.c.l.b16 %v1408
      %v1442 = vpack.c.b16 %v1435, %v1434
      %v1443 = vpack.c.b16 %v1437, %v1436
      %v1444 = vpack.c.b16 %v1439, %v1438
      %v1445 = vpack.c.b16 %v1441, %v1440
      %v1466 = vunpack.c.l.b16 %v1410
      %v1467 = vunpack.c.l.b16 %v1411
      %v1468 = vunpack.c.l.b16 %v1412
      %v1469 = vunpack.c.l.b16 %v1413
      %v1470 = vunpack.c.l.b16 %v1414
      %v1471 = vunpack.c.l.b16 %v1415
      %v1472 = vunpack.c.l.b16 %v1416
      %v1473 = vunpack.c.l.b16 %v1417
      %v1474 = vunpack.c.l.b16 %v1418
      %v1475 = vunpack.c.l.b16 %v1419
      %v1476 = vunpack.c.l.b16 %v1420
      %v1477 = vunpack.c.l.b16 %v1421
      %v1478 = vunpack.c.l.b16 %v1422
      %v1479 = vunpack.c.l.b16 %v1423
      %v1480 = vunpack.c.l.b16 %v1424
      %v1481 = vunpack.c.l.b16 %v1425
      %v1482 = vpack.c.b16 %v1467, %v1466
      %v1483 = vpack.c.b16 %v1469, %v1468
      %v1484 = vpack.c.b16 %v1471, %v1470
      %v1485 = vpack.c.b16 %v1473, %v1472
      %v1486 = vpack.c.b16 %v1475, %v1474
      %v1487 = vpack.c.b16 %v1477, %v1476
      %v1488 = vpack.c.b16 %v1479, %v1478
      %v1489 = vpack.c.b16 %v1481, %v1480
      %1498 = vmatprep.subr.bf16.mxu0 0
      %1499 = vmatpush1.bf16.msra.mxu0 %v1489
      %1500 = vmatprep.subr.bf16.mxu0 0
      %1501 = vmatpush1.bf16.msra.mxu0 %v1488
      %1502 = vmatprep.subr.bf16.mxu0 0
      %1503 = vmatpush1.bf16.msra.mxu0 %v1487
      %1504 = vmatprep.subr.bf16.mxu0 0
      %1505 = vmatpush1.bf16.msra.mxu0 %v1486
      %1506 = vmatprep.subr.bf16.mxu0 0
      %1507 = vmatpush1.bf16.msra.mxu0 %v1485
      %1508 = vmatprep.subr.bf16.mxu0 0
      %1509 = vmatpush1.bf16.msra.mxu0 %v1484
      %1510 = vmatprep.subr.bf16.mxu0 0
      %1511 = vmatpush1.bf16.msra.mxu0 %v1483
      %1512 = vmatprep.subr.bf16.mxu0 0
      %1513 = vmatpush1.bf16.msra.mxu0 %v1482
      %1514 = vmatprep.subr.bf16.mxu0 0
      %1515 = vmatpush2.bf16.msra.mxu0 0
      %1516 = vmatprep.subr.bf16.mxu0 0
      %1517 = vmatpush2.bf16.msra.mxu0 0
      %1518 = vmatprep.subr.bf16.mxu0 0
      %1519 = vmatpush2.bf16.msra.mxu0 0
      %1520 = vmatprep.subr.bf16.mxu0 0
      %1521 = vmatpush2.bf16.msra.mxu0 0
      %1522 = vmatprep.subr.bf16.mxu0 0
      %1523 = vmatpush2.bf16.msra.mxu0 0
      %1524 = vmatprep.subr.bf16.mxu0 0
      %1525 = vmatpush2.bf16.msra.mxu0 0
      %1526 = vmatprep.subr.bf16.mxu0 0
      %1527 = vmatpush2.bf16.msra.mxu0 0
      %1528 = vmatprep.subr.bf16.mxu0 0
      %1529 = vmatpush2.bf16.msra.mxu0 0
      %1530 = vmatprep.mubr.bf16.mxu0 0
      %1531 = vmatmul.mubr.bf16.gmra.mxu0 %v1442
      %v1532 = vpop.f32.mrf.mxu0
      %v1533 = vadd.f32 0.0, %v1532
      %v1534 = vpop.f32.mrf.mxu0
      %v1535 = vpop.f32.mrf.mxu0
      %v1536 = vadd.f32 0.0, %v1535
      %v1537 = vpop.f32.mrf.mxu0
      %1538 = vmatprep.mubr.bf16.mxu0 0
      %1539 = vmatmul.mubr.bf16.gmra.mxu0 %v1443
      %v1540 = vpop.f32.mrf.mxu0
      %v1541 = vadd.f32 0.0, %v1540
      %v1542 = vpop.f32.mrf.mxu0
      %v1543 = vpop.f32.mrf.mxu0
      %v1544 = vadd.f32 0.0, %v1543
      %v1545 = vpop.f32.mrf.mxu0
      %1546 = vmatprep.mubr.bf16.mxu0 0
      %1547 = vmatmul.mubr.bf16.gmra.mxu0 %v1444
      %v1548 = vpop.f32.mrf.mxu0
      %v1549 = vadd.f32 0.0, %v1548
      %v1550 = vpop.f32.mrf.mxu0
      %v1551 = vpop.f32.mrf.mxu0
      %v1552 = vadd.f32 0.0, %v1551
      %v1553 = vpop.f32.mrf.mxu0
      %1554 = vmatprep.mubr.bf16.mxu0 0
      %1555 = vmatmul.mubr.bf16.gmra.mxu0 %v1445
      %v1556 = vpop.f32.mrf.mxu0
      %v1557 = vadd.f32 0.0, %v1556
      %v1558 = vpop.f32.mrf.mxu0
      %v1559 = vpop.f32.mrf.mxu0
      %v1560 = vadd.f32 0.0, %v1559
      %v1561 = vpop.f32.mrf.mxu0
      %1562 = vdwg.mxu0
      %v1563 = vadd.f32 %v1251, %v1533
      %v1564 = vadd.f32 %v1252, %v1536
      %v1565 = vadd.f32 %v1253, %v1541
      %v1566 = vadd.f32 %v1254, %v1544
      %v1567 = vadd.f32 %v1255, %v1549
      %v1568 = vadd.f32 %v1256, %v1552
      %v1569 = vadd.f32 %v1257, %v1557
      %v1570 = vadd.f32 %v1258, %v1560
      %s1571 = scalar_lea.vmem %s353, 192
      %v1572 = vld [vmem:[%s1571] sm:$0xf]
      %v1573 = vld [vmem:[%s1571 + $0x4] sm:$0xf]
      %v1574 = vld [vmem:[%s1571 + $0x8] sm:$0xf]
      %v1575 = vld [vmem:[%s1571 + $0xc] sm:$0xf]
      %v1576 = vld [vmem:[%s1571 + $0x10] sm:$0xf]
      %v1577 = vld [vmem:[%s1571 + $0x14] sm:$0xf]
      %v1578 = vld [vmem:[%s1571 + $0x18] sm:$0xf]
      %v1579 = vld [vmem:[%s1571 + $0x1c] sm:$0xf]
      %v1580 = vld [vmem:[%s1571 + $0x20] sm:$0xf]
      %v1581 = vld [vmem:[%s1571 + $0x24] sm:$0xf]
      %v1582 = vld [vmem:[%s1571 + $0x28] sm:$0xf]
      %v1583 = vld [vmem:[%s1571 + $0x2c] sm:$0xf]
      %v1584 = vld [vmem:[%s1571 + $0x30] sm:$0xf]
      %v1585 = vld [vmem:[%s1571 + $0x34] sm:$0xf]
      %v1586 = vld [vmem:[%s1571 + $0x38] sm:$0xf]
      %v1587 = vld [vmem:[%s1571 + $0x3c] sm:$0xf]
      %v1604 = vunpack.c.l.b16 %v1572
      %v1605 = vunpack.c.l.b16 %v1573
      %v1606 = vunpack.c.l.b16 %v1574
      %v1607 = vunpack.c.l.b16 %v1575
      %v1608 = vunpack.c.l.b16 %v1576
      %v1609 = vunpack.c.l.b16 %v1577
      %v1610 = vunpack.c.l.b16 %v1578
      %v1611 = vunpack.c.l.b16 %v1579
      %v1612 = vunpack.c.l.b16 %v1580
      %v1613 = vunpack.c.l.b16 %v1581
      %v1614 = vunpack.c.l.b16 %v1582
      %v1615 = vunpack.c.l.b16 %v1583
      %v1616 = vunpack.c.l.b16 %v1584
      %v1617 = vunpack.c.l.b16 %v1585
      %v1618 = vunpack.c.l.b16 %v1586
      %v1619 = vunpack.c.l.b16 %v1587
      %v1620 = vpack.c.b16 %v1605, %v1604
      %v1621 = vpack.c.b16 %v1607, %v1606
      %v1622 = vpack.c.b16 %v1609, %v1608
      %v1623 = vpack.c.b16 %v1611, %v1610
      %v1624 = vpack.c.b16 %v1613, %v1612
      %v1625 = vpack.c.b16 %v1615, %v1614
      %v1626 = vpack.c.b16 %v1617, %v1616
      %v1627 = vpack.c.b16 %v1619, %v1618
      %1636 = vmatprep.subr.bf16.mxu0 0
      %1637 = vmatpush1.bf16.msra.mxu0 %v1627
      %1638 = vmatprep.subr.bf16.mxu0 0
      %1639 = vmatpush1.bf16.msra.mxu0 %v1626
      %1640 = vmatprep.subr.bf16.mxu0 0
      %1641 = vmatpush1.bf16.msra.mxu0 %v1625
      %1642 = vmatprep.subr.bf16.mxu0 0
      %1643 = vmatpush1.bf16.msra.mxu0 %v1624
      %1644 = vmatprep.subr.bf16.mxu0 0
      %1645 = vmatpush1.bf16.msra.mxu0 %v1623
      %1646 = vmatprep.subr.bf16.mxu0 0
      %1647 = vmatpush1.bf16.msra.mxu0 %v1622
      %1648 = vmatprep.subr.bf16.mxu0 0
      %1649 = vmatpush1.bf16.msra.mxu0 %v1621
      %1650 = vmatprep.subr.bf16.mxu0 0
      %1651 = vmatpush1.bf16.msra.mxu0 %v1620
      %1652 = vmatprep.subr.bf16.mxu0 0
      %1653 = vmatpush2.bf16.msra.mxu0 0
      %1654 = vmatprep.subr.bf16.mxu0 0
      %1655 = vmatpush2.bf16.msra.mxu0 0
      %1656 = vmatprep.subr.bf16.mxu0 0
      %1657 = vmatpush2.bf16.msra.mxu0 0
      %1658 = vmatprep.subr.bf16.mxu0 0
      %1659 = vmatpush2.bf16.msra.mxu0 0
      %1660 = vmatprep.subr.bf16.mxu0 0
      %1661 = vmatpush2.bf16.msra.mxu0 0
      %1662 = vmatprep.subr.bf16.mxu0 0
      %1663 = vmatpush2.bf16.msra.mxu0 0
      %1664 = vmatprep.subr.bf16.mxu0 0
      %1665 = vmatpush2.bf16.msra.mxu0 0
      %1666 = vmatprep.subr.bf16.mxu0 0
      %1667 = vmatpush2.bf16.msra.mxu0 0
      %1668 = vmatprep.mubr.bf16.mxu0 0
      %1669 = vmatmul.mubr.bf16.gmra.mxu0 %v1442
      %v1670 = vpop.f32.mrf.mxu0
      %v1671 = vadd.f32 0.0, %v1670
      %v1672 = vpop.f32.mrf.mxu0
      %v1673 = vpop.f32.mrf.mxu0
      %v1674 = vadd.f32 0.0, %v1673
      %v1675 = vpop.f32.mrf.mxu0
      %1676 = vmatprep.mubr.bf16.mxu0 0
      %1677 = vmatmul.mubr.bf16.gmra.mxu0 %v1443
      %v1678 = vpop.f32.mrf.mxu0
      %v1679 = vadd.f32 0.0, %v1678
      %v1680 = vpop.f32.mrf.mxu0
      %v1681 = vpop.f32.mrf.mxu0
      %v1682 = vadd.f32 0.0, %v1681
      %v1683 = vpop.f32.mrf.mxu0
      %1684 = vmatprep.mubr.bf16.mxu0 0
      %1685 = vmatmul.mubr.bf16.gmra.mxu0 %v1444
      %v1686 = vpop.f32.mrf.mxu0
      %v1687 = vadd.f32 0.0, %v1686
      %v1688 = vpop.f32.mrf.mxu0
      %v1689 = vpop.f32.mrf.mxu0
      %v1690 = vadd.f32 0.0, %v1689
      %v1691 = vpop.f32.mrf.mxu0
      %1692 = vmatprep.mubr.bf16.mxu0 0
      %1693 = vmatmul.mubr.bf16.gmra.mxu0 %v1445
      %v1694 = vpop.f32.mrf.mxu0
      %v1695 = vadd.f32 0.0, %v1694
      %v1696 = vpop.f32.mrf.mxu0
      %v1697 = vpop.f32.mrf.mxu0
      %v1698 = vadd.f32 0.0, %v1697
      %v1699 = vpop.f32.mrf.mxu0
      %1700 = vdwg.mxu0
      %v1701 = vadd.f32 %v1389, %v1671
      %v1702 = vadd.f32 %v1390, %v1674
      %v1703 = vadd.f32 %v1391, %v1679
      %v1704 = vadd.f32 %v1392, %v1682
      %v1705 = vadd.f32 %v1393, %v1687
      %v1706 = vadd.f32 %v1394, %v1690
      %v1707 = vadd.f32 %v1395, %v1695
      %v1708 = vadd.f32 %v1396, %v1698
      %v1709 = vld [vmem:[%s1400] sm:$0xf]
      %v1710 = vld [vmem:[%s1400 + $0x4] sm:$0xf]
      %v1711 = vld [vmem:[%s1400 + $0x8] sm:$0x1]
      %v1712 = vld [vmem:[%s1400 + $0xc] sm:$0xf]
      %v1713 = vld [vmem:[%s1400 + $0x10] sm:$0xf]
      %v1714 = vld [vmem:[%s1400 + $0x14] sm:$0x1]
      %v1715 = vld [vmem:[%s1400 + $0x18] sm:$0xf]
      %v1716 = vld [vmem:[%s1400 + $0x1c] sm:$0xf]
      %v1717 = vld [vmem:[%s1400 + $0x20] sm:$0x1]
      %v1718 = vld [vmem:[%s1400 + $0x24] sm:$0xf]
      %v1719 = vld [vmem:[%s1400 + $0x28] sm:$0xf]
      %v1720 = vld [vmem:[%s1400 + $0x2c] sm:$0x1]
      %v1722 = vshrl.u32 %v1709, 16
      %v1724 = vrot.slane %v1722, 4
      %v1725 = vshll.u32 %v1709, 16
      %v1727 = vrot.slane %v1725, 5
      %v1728 = vor.u32 %v1724, %v1727
      %v1729 = vrot.slane %v1728, 4
      %v1731 = vshll.u32 %v1710, 16
      %v1733 = vrot.slane %v1731, 5
      %v1734 = vsel %vm439, %v1729, %v1733
      %v1735 = vshrl.u32 %v1710, 16
      %v1737 = vrot.slane %v1735, 4
      %v1738 = vor.u32 %v1737, %v1733
      %v1739 = vrot.slane %v1738, 4
      %v1741 = vshll.u32 %v1711, 16
      %v1743 = vrot.slane %v1741, 5
      %v1744 = vsel %vm439, %v1739, %v1743
      %v1746 = vshrl.u32 %v1712, 16
      %v1748 = vrot.slane %v1746, 4
      %v1749 = vshll.u32 %v1712, 16
      %v1751 = vrot.slane %v1749, 5
      %v1752 = vor.u32 %v1748, %v1751
      %v1753 = vrot.slane %v1752, 4
      %v1755 = vshll.u32 %v1713, 16
      %v1757 = vrot.slane %v1755, 5
      %v1758 = vsel %vm439, %v1753, %v1757
      %v1759 = vshrl.u32 %v1713, 16
      %v1761 = vrot.slane %v1759, 4
      %v1762 = vor.u32 %v1761, %v1757
      %v1763 = vrot.slane %v1762, 4
      %v1765 = vshll.u32 %v1714, 16
      %v1767 = vrot.slane %v1765, 5
      %v1768 = vsel %vm439, %v1763, %v1767
      %v1770 = vshrl.u32 %v1715, 16
      %v1772 = vrot.slane %v1770, 4
      %v1773 = vshll.u32 %v1715, 16
      %v1775 = vrot.slane %v1773, 5
      %v1776 = vor.u32 %v1772, %v1775
      %v1777 = vrot.slane %v1776, 4
      %v1779 = vshll.u32 %v1716, 16
      %v1781 = vrot.slane %v1779, 5
      %v1782 = vsel %vm439, %v1777, %v1781
      %v1783 = vshrl.u32 %v1716, 16
      %v1785 = vrot.slane %v1783, 4
      %v1786 = vor.u32 %v1785, %v1781
      %v1787 = vrot.slane %v1786, 4
      %v1789 = vshll.u32 %v1717, 16
      %v1791 = vrot.slane %v1789, 5
      %v1792 = vsel %vm439, %v1787, %v1791
      %v1794 = vshrl.u32 %v1718, 16
      %v1796 = vrot.slane %v1794, 4
      %v1797 = vshll.u32 %v1718, 16
      %v1799 = vrot.slane %v1797, 5
      %v1800 = vor.u32 %v1796, %v1799
      %v1801 = vrot.slane %v1800, 4
      %v1803 = vshll.u32 %v1719, 16
      %v1805 = vrot.slane %v1803, 5
      %v1806 = vsel %vm439, %v1801, %v1805
      %v1807 = vshrl.u32 %v1719, 16
      %v1809 = vrot.slane %v1807, 4
      %v1810 = vor.u32 %v1809, %v1805
      %v1811 = vrot.slane %v1810, 4
      %v1813 = vshll.u32 %v1720, 16
      %v1815 = vrot.slane %v1813, 5
      %v1816 = vsel %vm439, %v1811, %v1815
      %s1817 = scalar_lea.vmem %s349, 256
      %v1818 = vld [vmem:[%s1817] sm:$0xf]
      %v1819 = vld [vmem:[%s1817 + $0x4] sm:$0xf]
      %v1820 = vld [vmem:[%s1817 + $0x8] sm:$0xf]
      %v1821 = vld [vmem:[%s1817 + $0xc] sm:$0xf]
      %v1822 = vld [vmem:[%s1817 + $0x10] sm:$0xf]
      %v1823 = vld [vmem:[%s1817 + $0x14] sm:$0xf]
      %v1824 = vld [vmem:[%s1817 + $0x18] sm:$0xf]
      %v1825 = vld [vmem:[%s1817 + $0x1c] sm:$0xf]
      %v1826 = vld [vmem:[%s1817 + $0x20] sm:$0xf]
      %v1827 = vld [vmem:[%s1817 + $0x24] sm:$0xf]
      %v1828 = vld [vmem:[%s1817 + $0x28] sm:$0xf]
      %v1829 = vld [vmem:[%s1817 + $0x2c] sm:$0xf]
      %v1830 = vld [vmem:[%s1817 + $0x30] sm:$0xf]
      %v1831 = vld [vmem:[%s1817 + $0x34] sm:$0xf]
      %v1832 = vld [vmem:[%s1817 + $0x38] sm:$0xf]
      %v1833 = vld [vmem:[%s1817 + $0x3c] sm:$0xf]
      %v1834 = vunpack.c.l.b16 %v1734
      %v1835 = vunpack.c.l.b16 %v1744
      %v1836 = vunpack.c.l.b16 %v1758
      %v1837 = vunpack.c.l.b16 %v1768
      %v1838 = vunpack.c.l.b16 %v1782
      %v1839 = vunpack.c.l.b16 %v1792
      %v1840 = vunpack.c.l.b16 %v1806
      %v1841 = vunpack.c.l.b16 %v1816
      %v1842 = vpack.c.b16 %v1835, %v1834
      %v1843 = vpack.c.b16 %v1837, %v1836
      %v1844 = vpack.c.b16 %v1839, %v1838
      %v1845 = vpack.c.b16 %v1841, %v1840
      %v1866 = vunpack.c.l.b16 %v1818
      %v1867 = vunpack.c.l.b16 %v1819
      %v1868 = vunpack.c.l.b16 %v1820
      %v1869 = vunpack.c.l.b16 %v1821
      %v1870 = vunpack.c.l.b16 %v1822
      %v1871 = vunpack.c.l.b16 %v1823
      %v1872 = vunpack.c.l.b16 %v1824
      %v1873 = vunpack.c.l.b16 %v1825
      %v1874 = vunpack.c.l.b16 %v1826
      %v1875 = vunpack.c.l.b16 %v1827
      %v1876 = vunpack.c.l.b16 %v1828
      %v1877 = vunpack.c.l.b16 %v1829
      %v1878 = vunpack.c.l.b16 %v1830
      %v1879 = vunpack.c.l.b16 %v1831
      %v1880 = vunpack.c.l.b16 %v1832
      %v1881 = vunpack.c.l.b16 %v1833
      %v1882 = vpack.c.b16 %v1867, %v1866
      %v1883 = vpack.c.b16 %v1869, %v1868
      %v1884 = vpack.c.b16 %v1871, %v1870
      %v1885 = vpack.c.b16 %v1873, %v1872
      %v1886 = vpack.c.b16 %v1875, %v1874
      %v1887 = vpack.c.b16 %v1877, %v1876
      %v1888 = vpack.c.b16 %v1879, %v1878
      %v1889 = vpack.c.b16 %v1881, %v1880
      %1898 = vmatprep.subr.bf16.mxu0 0
      %1899 = vmatpush1.bf16.msra.mxu0 %v1889
      %1900 = vmatprep.subr.bf16.mxu0 0
      %1901 = vmatpush1.bf16.msra.mxu0 %v1888
      %1902 = vmatprep.subr.bf16.mxu0 0
      %1903 = vmatpush1.bf16.msra.mxu0 %v1887
      %1904 = vmatprep.subr.bf16.mxu0 0
      %1905 = vmatpush1.bf16.msra.mxu0 %v1886
      %1906 = vmatprep.subr.bf16.mxu0 0
      %1907 = vmatpush1.bf16.msra.mxu0 %v1885
      %1908 = vmatprep.subr.bf16.mxu0 0
      %1909 = vmatpush1.bf16.msra.mxu0 %v1884
      %1910 = vmatprep.subr.bf16.mxu0 0
      %1911 = vmatpush1.bf16.msra.mxu0 %v1883
      %1912 = vmatprep.subr.bf16.mxu0 0
      %1913 = vmatpush1.bf16.msra.mxu0 %v1882
      %1914 = vmatprep.subr.bf16.mxu0 0
      %1915 = vmatpush2.bf16.msra.mxu0 0
      %1916 = vmatprep.subr.bf16.mxu0 0
      %1917 = vmatpush2.bf16.msra.mxu0 0
      %1918 = vmatprep.subr.bf16.mxu0 0
      %1919 = vmatpush2.bf16.msra.mxu0 0
      %1920 = vmatprep.subr.bf16.mxu0 0
      %1921 = vmatpush2.bf16.msra.mxu0 0
      %1922 = vmatprep.subr.bf16.mxu0 0
      %1923 = vmatpush2.bf16.msra.mxu0 0
      %1924 = vmatprep.subr.bf16.mxu0 0
      %1925 = vmatpush2.bf16.msra.mxu0 0
      %1926 = vmatprep.subr.bf16.mxu0 0
      %1927 = vmatpush2.bf16.msra.mxu0 0
      %1928 = vmatprep.subr.bf16.mxu0 0
      %1929 = vmatpush2.bf16.msra.mxu0 0
      %1930 = vmatprep.mubr.bf16.mxu0 0
      %1931 = vmatmul.mubr.bf16.gmra.mxu0 %v1842
      %v1932 = vpop.f32.mrf.mxu0
      %v1933 = vadd.f32 0.0, %v1932
      %v1934 = vpop.f32.mrf.mxu0
      %v1935 = vpop.f32.mrf.mxu0
      %v1936 = vadd.f32 0.0, %v1935
      %v1937 = vpop.f32.mrf.mxu0
      %1938 = vmatprep.mubr.bf16.mxu0 0
      %1939 = vmatmul.mubr.bf16.gmra.mxu0 %v1843
      %v1940 = vpop.f32.mrf.mxu0
      %v1941 = vadd.f32 0.0, %v1940
      %v1942 = vpop.f32.mrf.mxu0
      %v1943 = vpop.f32.mrf.mxu0
      %v1944 = vadd.f32 0.0, %v1943
      %v1945 = vpop.f32.mrf.mxu0
      %1946 = vmatprep.mubr.bf16.mxu0 0
      %1947 = vmatmul.mubr.bf16.gmra.mxu0 %v1844
      %v1948 = vpop.f32.mrf.mxu0
      %v1949 = vadd.f32 0.0, %v1948
      %v1950 = vpop.f32.mrf.mxu0
      %v1951 = vpop.f32.mrf.mxu0
      %v1952 = vadd.f32 0.0, %v1951
      %v1953 = vpop.f32.mrf.mxu0
      %1954 = vmatprep.mubr.bf16.mxu0 0
      %1955 = vmatmul.mubr.bf16.gmra.mxu0 %v1845
      %v1956 = vpop.f32.mrf.mxu0
      %v1957 = vadd.f32 0.0, %v1956
      %v1958 = vpop.f32.mrf.mxu0
      %v1959 = vpop.f32.mrf.mxu0
      %v1960 = vadd.f32 0.0, %v1959
      %v1961 = vpop.f32.mrf.mxu0
      %1962 = vdwg.mxu0
      %v1963 = vadd.f32 %v1563, %v1933
      %v1964 = vadd.f32 %v1564, %v1936
      %v1965 = vadd.f32 %v1565, %v1941
      %v1966 = vadd.f32 %v1566, %v1944
      %v1967 = vadd.f32 %v1567, %v1949
      %v1968 = vadd.f32 %v1568, %v1952
      %v1969 = vadd.f32 %v1569, %v1957
      %v1970 = vadd.f32 %v1570, %v1960
      %s1971 = scalar_lea.vmem %s353, 256
      %v1972 = vld [vmem:[%s1971] sm:$0xf]
      %v1973 = vld [vmem:[%s1971 + $0x4] sm:$0xf]
      %v1974 = vld [vmem:[%s1971 + $0x8] sm:$0xf]
      %v1975 = vld [vmem:[%s1971 + $0xc] sm:$0xf]
      %v1976 = vld [vmem:[%s1971 + $0x10] sm:$0xf]
      %v1977 = vld [vmem:[%s1971 + $0x14] sm:$0xf]
      %v1978 = vld [vmem:[%s1971 + $0x18] sm:$0xf]
      %v1979 = vld [vmem:[%s1971 + $0x1c] sm:$0xf]
      %v1980 = vld [vmem:[%s1971 + $0x20] sm:$0xf]
      %v1981 = vld [vmem:[%s1971 + $0x24] sm:$0xf]
      %v1982 = vld [vmem:[%s1971 + $0x28] sm:$0xf]
      %v1983 = vld [vmem:[%s1971 + $0x2c] sm:$0xf]
      %v1984 = vld [vmem:[%s1971 + $0x30] sm:$0xf]
      %v1985 = vld [vmem:[%s1971 + $0x34] sm:$0xf]
      %v1986 = vld [vmem:[%s1971 + $0x38] sm:$0xf]
      %v1987 = vld [vmem:[%s1971 + $0x3c] sm:$0xf]
      %v2004 = vunpack.c.l.b16 %v1972
      %v2005 = vunpack.c.l.b16 %v1973
      %v2006 = vunpack.c.l.b16 %v1974
      %v2007 = vunpack.c.l.b16 %v1975
      %v2008 = vunpack.c.l.b16 %v1976
      %v2009 = vunpack.c.l.b16 %v1977
      %v2010 = vunpack.c.l.b16 %v1978
      %v2011 = vunpack.c.l.b16 %v1979
      %v2012 = vunpack.c.l.b16 %v1980
      %v2013 = vunpack.c.l.b16 %v1981
      %v2014 = vunpack.c.l.b16 %v1982
      %v2015 = vunpack.c.l.b16 %v1983
      %v2016 = vunpack.c.l.b16 %v1984
      %v2017 = vunpack.c.l.b16 %v1985
      %v2018 = vunpack.c.l.b16 %v1986
      %v2019 = vunpack.c.l.b16 %v1987
      %v2020 = vpack.c.b16 %v2005, %v2004
      %v2021 = vpack.c.b16 %v2007, %v2006
      %v2022 = vpack.c.b16 %v2009, %v2008
      %v2023 = vpack.c.b16 %v2011, %v2010
      %v2024 = vpack.c.b16 %v2013, %v2012
      %v2025 = vpack.c.b16 %v2015, %v2014
      %v2026 = vpack.c.b16 %v2017, %v2016
      %v2027 = vpack.c.b16 %v2019, %v2018
      %2036 = vmatprep.subr.bf16.mxu0 0
      %2037 = vmatpush1.bf16.msra.mxu0 %v2027
      %2038 = vmatprep.subr.bf16.mxu0 0
      %2039 = vmatpush1.bf16.msra.mxu0 %v2026
      %2040 = vmatprep.subr.bf16.mxu0 0
      %2041 = vmatpush1.bf16.msra.mxu0 %v2025
      %2042 = vmatprep.subr.bf16.mxu0 0
      %2043 = vmatpush1.bf16.msra.mxu0 %v2024
      %2044 = vmatprep.subr.bf16.mxu0 0
      %2045 = vmatpush1.bf16.msra.mxu0 %v2023
      %2046 = vmatprep.subr.bf16.mxu0 0
      %2047 = vmatpush1.bf16.msra.mxu0 %v2022
      %2048 = vmatprep.subr.bf16.mxu0 0
      %2049 = vmatpush1.bf16.msra.mxu0 %v2021
      %2050 = vmatprep.subr.bf16.mxu0 0
      %2051 = vmatpush1.bf16.msra.mxu0 %v2020
      %2052 = vmatprep.subr.bf16.mxu0 0
      %2053 = vmatpush2.bf16.msra.mxu0 0
      %2054 = vmatprep.subr.bf16.mxu0 0
      %2055 = vmatpush2.bf16.msra.mxu0 0
      %2056 = vmatprep.subr.bf16.mxu0 0
      %2057 = vmatpush2.bf16.msra.mxu0 0
      %2058 = vmatprep.subr.bf16.mxu0 0
      %2059 = vmatpush2.bf16.msra.mxu0 0
      %2060 = vmatprep.subr.bf16.mxu0 0
      %2061 = vmatpush2.bf16.msra.mxu0 0
      %2062 = vmatprep.subr.bf16.mxu0 0
      %2063 = vmatpush2.bf16.msra.mxu0 0
      %2064 = vmatprep.subr.bf16.mxu0 0
      %2065 = vmatpush2.bf16.msra.mxu0 0
      %2066 = vmatprep.subr.bf16.mxu0 0
      %2067 = vmatpush2.bf16.msra.mxu0 0
      %2068 = vmatprep.mubr.bf16.mxu0 0
      %2069 = vmatmul.mubr.bf16.gmra.mxu0 %v1842
      %v2070 = vpop.f32.mrf.mxu0
      %v2071 = vadd.f32 0.0, %v2070
      %v2072 = vpop.f32.mrf.mxu0
      %v2073 = vpop.f32.mrf.mxu0
      %v2074 = vadd.f32 0.0, %v2073
      %v2075 = vpop.f32.mrf.mxu0
      %2076 = vmatprep.mubr.bf16.mxu0 0
      %2077 = vmatmul.mubr.bf16.gmra.mxu0 %v1843
      %v2078 = vpop.f32.mrf.mxu0
      %v2079 = vadd.f32 0.0, %v2078
      %v2080 = vpop.f32.mrf.mxu0
      %v2081 = vpop.f32.mrf.mxu0
      %v2082 = vadd.f32 0.0, %v2081
      %v2083 = vpop.f32.mrf.mxu0
      %2084 = vmatprep.mubr.bf16.mxu0 0
      %2085 = vmatmul.mubr.bf16.gmra.mxu0 %v1844
      %v2086 = vpop.f32.mrf.mxu0
      %v2087 = vadd.f32 0.0, %v2086
      %v2088 = vpop.f32.mrf.mxu0
      %v2089 = vpop.f32.mrf.mxu0
      %v2090 = vadd.f32 0.0, %v2089
      %v2091 = vpop.f32.mrf.mxu0
      %2092 = vmatprep.mubr.bf16.mxu0 0
      %2093 = vmatmul.mubr.bf16.gmra.mxu0 %v1845
      %v2094 = vpop.f32.mrf.mxu0
      %v2095 = vadd.f32 0.0, %v2094
      %v2096 = vpop.f32.mrf.mxu0
      %v2097 = vpop.f32.mrf.mxu0
      %v2098 = vadd.f32 0.0, %v2097
      %v2099 = vpop.f32.mrf.mxu0
      %2100 = vdwg.mxu0
      %v2101 = vadd.f32 %v1701, %v2071
      %v2102 = vadd.f32 %v1702, %v2074
      %v2103 = vadd.f32 %v1703, %v2079
      %v2104 = vadd.f32 %v1704, %v2082
      %v2105 = vadd.f32 %v1705, %v2087
      %v2106 = vadd.f32 %v1706, %v2090
      %v2107 = vadd.f32 %v1707, %v2095
      %v2108 = vadd.f32 %v1708, %v2098
      %v2109 = vld [vmem:[%s1400] sm:$0xe]
      %v2110 = vld [vmem:[%s1400 + $0xc] sm:$0xe]
      %v2111 = vld [vmem:[%s1400 + $0x18] sm:$0xe]
      %v2112 = vld [vmem:[%s1400 + $0x24] sm:$0xe]
      %v2125 = vrot.slane %v2109, 5
      %v2126 = vrot.slane %v2125, 4
      %v2127 = vrot.slane %v1710, 5
      %v2128 = vsel %vm1076, %v2126, %v2127
      %v2129 = vrot.slane %v2127, 4
      %v2130 = vrot.slane %v1711, 5
      %v2131 = vsel %vm1076, %v2129, %v2130
      %v2132 = vrot.slane %v2110, 5
      %v2133 = vrot.slane %v2132, 4
      %v2134 = vrot.slane %v1713, 5
      %v2135 = vsel %vm1076, %v2133, %v2134
      %v2136 = vrot.slane %v2134, 4
      %v2137 = vrot.slane %v1714, 5
      %v2138 = vsel %vm1076, %v2136, %v2137
      %v2139 = vrot.slane %v2111, 5
      %v2140 = vrot.slane %v2139, 4
      %v2141 = vrot.slane %v1716, 5
      %v2142 = vsel %vm1076, %v2140, %v2141
      %v2143 = vrot.slane %v2141, 4
      %v2144 = vrot.slane %v1717, 5
      %v2145 = vsel %vm1076, %v2143, %v2144
      %v2146 = vrot.slane %v2112, 5
      %v2147 = vrot.slane %v2146, 4
      %v2148 = vrot.slane %v1719, 5
      %v2149 = vsel %vm1076, %v2147, %v2148
      %v2150 = vrot.slane %v2148, 4
      %v2151 = vrot.slane %v1720, 5
      %v2152 = vsel %vm1076, %v2150, %v2151
      %s2153 = scalar_lea.vmem %s349, 320
      %v2154 = vld [vmem:[%s2153] sm:$0xf]
      %v2155 = vld [vmem:[%s2153 + $0x4] sm:$0xf]
      %v2156 = vld [vmem:[%s2153 + $0x8] sm:$0xf]
      %v2157 = vld [vmem:[%s2153 + $0xc] sm:$0xf]
      %v2158 = vld [vmem:[%s2153 + $0x10] sm:$0xf]
      %v2159 = vld [vmem:[%s2153 + $0x14] sm:$0xf]
      %v2160 = vld [vmem:[%s2153 + $0x18] sm:$0xf]
      %v2161 = vld [vmem:[%s2153 + $0x1c] sm:$0xf]
      %v2162 = vld [vmem:[%s2153 + $0x20] sm:$0xf]
      %v2163 = vld [vmem:[%s2153 + $0x24] sm:$0xf]
      %v2164 = vld [vmem:[%s2153 + $0x28] sm:$0xf]
      %v2165 = vld [vmem:[%s2153 + $0x2c] sm:$0xf]
      %v2166 = vld [vmem:[%s2153 + $0x30] sm:$0xf]
      %v2167 = vld [vmem:[%s2153 + $0x34] sm:$0xf]
      %v2168 = vld [vmem:[%s2153 + $0x38] sm:$0xf]
      %v2169 = vld [vmem:[%s2153 + $0x3c] sm:$0xf]
      %v2170 = vunpack.c.l.b16 %v2128
      %v2171 = vunpack.c.l.b16 %v2131
      %v2172 = vunpack.c.l.b16 %v2135
      %v2173 = vunpack.c.l.b16 %v2138
      %v2174 = vunpack.c.l.b16 %v2142
      %v2175 = vunpack.c.l.b16 %v2145
      %v2176 = vunpack.c.l.b16 %v2149
      %v2177 = vunpack.c.l.b16 %v2152
      %v2178 = vpack.c.b16 %v2171, %v2170
      %v2179 = vpack.c.b16 %v2173, %v2172
      %v2180 = vpack.c.b16 %v2175, %v2174
      %v2181 = vpack.c.b16 %v2177, %v2176
      %v2202 = vunpack.c.l.b16 %v2154
      %v2203 = vunpack.c.l.b16 %v2155
      %v2204 = vunpack.c.l.b16 %v2156
      %v2205 = vunpack.c.l.b16 %v2157
      %v2206 = vunpack.c.l.b16 %v2158
      %v2207 = vunpack.c.l.b16 %v2159
      %v2208 = vunpack.c.l.b16 %v2160
      %v2209 = vunpack.c.l.b16 %v2161
      %v2210 = vunpack.c.l.b16 %v2162
      %v2211 = vunpack.c.l.b16 %v2163
      %v2212 = vunpack.c.l.b16 %v2164
      %v2213 = vunpack.c.l.b16 %v2165
      %v2214 = vunpack.c.l.b16 %v2166
      %v2215 = vunpack.c.l.b16 %v2167
      %v2216 = vunpack.c.l.b16 %v2168
      %v2217 = vunpack.c.l.b16 %v2169
      %v2218 = vpack.c.b16 %v2203, %v2202
      %v2219 = vpack.c.b16 %v2205, %v2204
      %v2220 = vpack.c.b16 %v2207, %v2206
      %v2221 = vpack.c.b16 %v2209, %v2208
      %v2222 = vpack.c.b16 %v2211, %v2210
      %v2223 = vpack.c.b16 %v2213, %v2212
      %v2224 = vpack.c.b16 %v2215, %v2214
      %v2225 = vpack.c.b16 %v2217, %v2216
      %2234 = vmatprep.subr.bf16.mxu0 0
      %2235 = vmatpush1.bf16.msra.mxu0 %v2225
      %2236 = vmatprep.subr.bf16.mxu0 0
      %2237 = vmatpush1.bf16.msra.mxu0 %v2224
      %2238 = vmatprep.subr.bf16.mxu0 0
      %2239 = vmatpush1.bf16.msra.mxu0 %v2223
      %2240 = vmatprep.subr.bf16.mxu0 0
      %2241 = vmatpush1.bf16.msra.mxu0 %v2222
      %2242 = vmatprep.subr.bf16.mxu0 0
      %2243 = vmatpush1.bf16.msra.mxu0 %v2221
      %2244 = vmatprep.subr.bf16.mxu0 0
      %2245 = vmatpush1.bf16.msra.mxu0 %v2220
      %2246 = vmatprep.subr.bf16.mxu0 0
      %2247 = vmatpush1.bf16.msra.mxu0 %v2219
      %2248 = vmatprep.subr.bf16.mxu0 0
      %2249 = vmatpush1.bf16.msra.mxu0 %v2218
      %2250 = vmatprep.subr.bf16.mxu0 0
      %2251 = vmatpush2.bf16.msra.mxu0 0
      %2252 = vmatprep.subr.bf16.mxu0 0
      %2253 = vmatpush2.bf16.msra.mxu0 0
      %2254 = vmatprep.subr.bf16.mxu0 0
      %2255 = vmatpush2.bf16.msra.mxu0 0
      %2256 = vmatprep.subr.bf16.mxu0 0
      %2257 = vmatpush2.bf16.msra.mxu0 0
      %2258 = vmatprep.subr.bf16.mxu0 0
      %2259 = vmatpush2.bf16.msra.mxu0 0
      %2260 = vmatprep.subr.bf16.mxu0 0
      %2261 = vmatpush2.bf16.msra.mxu0 0
      %2262 = vmatprep.subr.bf16.mxu0 0
      %2263 = vmatpush2.bf16.msra.mxu0 0
      %2264 = vmatprep.subr.bf16.mxu0 0
      %2265 = vmatpush2.bf16.msra.mxu0 0
      %2266 = vmatprep.mubr.bf16.mxu0 0
      %2267 = vmatmul.mubr.bf16.gmra.mxu0 %v2178
      %v2268 = vpop.f32.mrf.mxu0
      %v2269 = vadd.f32 0.0, %v2268
      %v2270 = vpop.f32.mrf.mxu0
      %v2271 = vpop.f32.mrf.mxu0
      %v2272 = vadd.f32 0.0, %v2271
      %v2273 = vpop.f32.mrf.mxu0
      %2274 = vmatprep.mubr.bf16.mxu0 0
      %2275 = vmatmul.mubr.bf16.gmra.mxu0 %v2179
      %v2276 = vpop.f32.mrf.mxu0
      %v2277 = vadd.f32 0.0, %v2276
      %v2278 = vpop.f32.mrf.mxu0
      %v2279 = vpop.f32.mrf.mxu0
      %v2280 = vadd.f32 0.0, %v2279
      %v2281 = vpop.f32.mrf.mxu0
      %2282 = vmatprep.mubr.bf16.mxu0 0
      %2283 = vmatmul.mubr.bf16.gmra.mxu0 %v2180
      %v2284 = vpop.f32.mrf.mxu0
      %v2285 = vadd.f32 0.0, %v2284
      %v2286 = vpop.f32.mrf.mxu0
      %v2287 = vpop.f32.mrf.mxu0
      %v2288 = vadd.f32 0.0, %v2287
      %v2289 = vpop.f32.mrf.mxu0
      %2290 = vmatprep.mubr.bf16.mxu0 0
      %2291 = vmatmul.mubr.bf16.gmra.mxu0 %v2181
      %v2292 = vpop.f32.mrf.mxu0
      %v2293 = vadd.f32 0.0, %v2292
      %v2294 = vpop.f32.mrf.mxu0
      %v2295 = vpop.f32.mrf.mxu0
      %v2296 = vadd.f32 0.0, %v2295
      %v2297 = vpop.f32.mrf.mxu0
      %2298 = vdwg.mxu0
      %v2299 = vadd.f32 %v1963, %v2269
      %v2300 = vadd.f32 %v1964, %v2272
      %v2301 = vadd.f32 %v1965, %v2277
      %v2302 = vadd.f32 %v1966, %v2280
      %v2303 = vadd.f32 %v1967, %v2285
      %v2304 = vadd.f32 %v1968, %v2288
      %v2305 = vadd.f32 %v1969, %v2293
      %v2306 = vadd.f32 %v1970, %v2296
      %s2307 = scalar_lea.vmem %s353, 320
      %v2308 = vld [vmem:[%s2307] sm:$0xf]
      %v2309 = vld [vmem:[%s2307 + $0x4] sm:$0xf]
      %v2310 = vld [vmem:[%s2307 + $0x8] sm:$0xf]
      %v2311 = vld [vmem:[%s2307 + $0xc] sm:$0xf]
      %v2312 = vld [vmem:[%s2307 + $0x10] sm:$0xf]
      %v2313 = vld [vmem:[%s2307 + $0x14] sm:$0xf]
      %v2314 = vld [vmem:[%s2307 + $0x18] sm:$0xf]
      %v2315 = vld [vmem:[%s2307 + $0x1c] sm:$0xf]
      %v2316 = vld [vmem:[%s2307 + $0x20] sm:$0xf]
      %v2317 = vld [vmem:[%s2307 + $0x24] sm:$0xf]
      %v2318 = vld [vmem:[%s2307 + $0x28] sm:$0xf]
      %v2319 = vld [vmem:[%s2307 + $0x2c] sm:$0xf]
      %v2320 = vld [vmem:[%s2307 + $0x30] sm:$0xf]
      %v2321 = vld [vmem:[%s2307 + $0x34] sm:$0xf]
      %v2322 = vld [vmem:[%s2307 + $0x38] sm:$0xf]
      %v2323 = vld [vmem:[%s2307 + $0x3c] sm:$0xf]
      %v2340 = vunpack.c.l.b16 %v2308
      %v2341 = vunpack.c.l.b16 %v2309
      %v2342 = vunpack.c.l.b16 %v2310
      %v2343 = vunpack.c.l.b16 %v2311
      %v2344 = vunpack.c.l.b16 %v2312
      %v2345 = vunpack.c.l.b16 %v2313
      %v2346 = vunpack.c.l.b16 %v2314
      %v2347 = vunpack.c.l.b16 %v2315
      %v2348 = vunpack.c.l.b16 %v2316
      %v2349 = vunpack.c.l.b16 %v2317
      %v2350 = vunpack.c.l.b16 %v2318
      %v2351 = vunpack.c.l.b16 %v2319
      %v2352 = vunpack.c.l.b16 %v2320
      %v2353 = vunpack.c.l.b16 %v2321
      %v2354 = vunpack.c.l.b16 %v2322
      %v2355 = vunpack.c.l.b16 %v2323
      %v2356 = vpack.c.b16 %v2341, %v2340
      %v2357 = vpack.c.b16 %v2343, %v2342
      %v2358 = vpack.c.b16 %v2345, %v2344
      %v2359 = vpack.c.b16 %v2347, %v2346
      %v2360 = vpack.c.b16 %v2349, %v2348
      %v2361 = vpack.c.b16 %v2351, %v2350
      %v2362 = vpack.c.b16 %v2353, %v2352
      %v2363 = vpack.c.b16 %v2355, %v2354
      %2372 = vmatprep.subr.bf16.mxu0 0
      %2373 = vmatpush1.bf16.msra.mxu0 %v2363
      %2374 = vmatprep.subr.bf16.mxu0 0
      %2375 = vmatpush1.bf16.msra.mxu0 %v2362
      %2376 = vmatprep.subr.bf16.mxu0 0
      %2377 = vmatpush1.bf16.msra.mxu0 %v2361
      %2378 = vmatprep.subr.bf16.mxu0 0
      %2379 = vmatpush1.bf16.msra.mxu0 %v2360
      %2380 = vmatprep.subr.bf16.mxu0 0
      %2381 = vmatpush1.bf16.msra.mxu0 %v2359
      %2382 = vmatprep.subr.bf16.mxu0 0
      %2383 = vmatpush1.bf16.msra.mxu0 %v2358
      %2384 = vmatprep.subr.bf16.mxu0 0
      %2385 = vmatpush1.bf16.msra.mxu0 %v2357
      %2386 = vmatprep.subr.bf16.mxu0 0
      %2387 = vmatpush1.bf16.msra.mxu0 %v2356
      %2388 = vmatprep.subr.bf16.mxu0 0
      %2389 = vmatpush2.bf16.msra.mxu0 0
      %2390 = vmatprep.subr.bf16.mxu0 0
      %2391 = vmatpush2.bf16.msra.mxu0 0
      %2392 = vmatprep.subr.bf16.mxu0 0
      %2393 = vmatpush2.bf16.msra.mxu0 0
      %2394 = vmatprep.subr.bf16.mxu0 0
      %2395 = vmatpush2.bf16.msra.mxu0 0
      %2396 = vmatprep.subr.bf16.mxu0 0
      %2397 = vmatpush2.bf16.msra.mxu0 0
      %2398 = vmatprep.subr.bf16.mxu0 0
      %2399 = vmatpush2.bf16.msra.mxu0 0
      %2400 = vmatprep.subr.bf16.mxu0 0
      %2401 = vmatpush2.bf16.msra.mxu0 0
      %2402 = vmatprep.subr.bf16.mxu0 0
      %2403 = vmatpush2.bf16.msra.mxu0 0
      %2404 = vmatprep.mubr.bf16.mxu0 0
      %2405 = vmatmul.mubr.bf16.gmra.mxu0 %v2178
      %v2406 = vpop.f32.mrf.mxu0
      %v2407 = vadd.f32 0.0, %v2406
      %v2408 = vpop.f32.mrf.mxu0
      %v2409 = vpop.f32.mrf.mxu0
      %v2410 = vadd.f32 0.0, %v2409
      %v2411 = vpop.f32.mrf.mxu0
      %2412 = vmatprep.mubr.bf16.mxu0 0
      %2413 = vmatmul.mubr.bf16.gmra.mxu0 %v2179
      %v2414 = vpop.f32.mrf.mxu0
      %v2415 = vadd.f32 0.0, %v2414
      %v2416 = vpop.f32.mrf.mxu0
      %v2417 = vpop.f32.mrf.mxu0
      %v2418 = vadd.f32 0.0, %v2417
      %v2419 = vpop.f32.mrf.mxu0
      %2420 = vmatprep.mubr.bf16.mxu0 0
      %2421 = vmatmul.mubr.bf16.gmra.mxu0 %v2180
      %v2422 = vpop.f32.mrf.mxu0
      %v2423 = vadd.f32 0.0, %v2422
      %v2424 = vpop.f32.mrf.mxu0
      %v2425 = vpop.f32.mrf.mxu0
      %v2426 = vadd.f32 0.0, %v2425
      %v2427 = vpop.f32.mrf.mxu0
      %2428 = vmatprep.mubr.bf16.mxu0 0
      %2429 = vmatmul.mubr.bf16.gmra.mxu0 %v2181
      %v2430 = vpop.f32.mrf.mxu0
      %v2431 = vadd.f32 0.0, %v2430
      %v2432 = vpop.f32.mrf.mxu0
      %v2433 = vpop.f32.mrf.mxu0
      %v2434 = vadd.f32 0.0, %v2433
      %v2435 = vpop.f32.mrf.mxu0
      %2436 = vdwg.mxu0
      %v2437 = vadd.f32 %v2101, %v2407
      %v2438 = vadd.f32 %v2102, %v2410
      %v2439 = vadd.f32 %v2103, %v2415
      %v2440 = vadd.f32 %v2104, %v2418
      %v2441 = vadd.f32 %v2105, %v2423
      %v2442 = vadd.f32 %v2106, %v2426
      %v2443 = vadd.f32 %v2107, %v2431
      %v2444 = vadd.f32 %v2108, %v2434
      %s2445 = sadd.s32 %s389, 2
      %s2446 = smul.u32 %s2445, 3
      %s2447 = smul.addr %s2446, 4
      %s2448 = scalar_lea.vmem %s345, %s2447
      %v2449 = vld [vmem:[%s2448] sm:$0xf]
      %v2450 = vld [vmem:[%s2448 + $0x4] sm:$0xf]
      %v2451 = vld [vmem:[%s2448 + $0xc] sm:$0xf]
      %v2452 = vld [vmem:[%s2448 + $0x10] sm:$0xf]
      %v2453 = vld [vmem:[%s2448 + $0x18] sm:$0xf]
      %v2454 = vld [vmem:[%s2448 + $0x1c] sm:$0xf]
      %v2455 = vld [vmem:[%s2448 + $0x24] sm:$0xf]
      %v2456 = vld [vmem:[%s2448 + $0x28] sm:$0xf]
      %s2457 = scalar_lea.vmem %s349, 384
      %v2458 = vld [vmem:[%s2457] sm:$0xf]
      %v2459 = vld [vmem:[%s2457 + $0x4] sm:$0xf]
      %v2460 = vld [vmem:[%s2457 + $0x8] sm:$0xf]
      %v2461 = vld [vmem:[%s2457 + $0xc] sm:$0xf]
      %v2462 = vld [vmem:[%s2457 + $0x10] sm:$0xf]
      %v2463 = vld [vmem:[%s2457 + $0x14] sm:$0xf]
      %v2464 = vld [vmem:[%s2457 + $0x18] sm:$0xf]
      %v2465 = vld [vmem:[%s2457 + $0x1c] sm:$0xf]
      %v2466 = vld [vmem:[%s2457 + $0x20] sm:$0xf]
      %v2467 = vld [vmem:[%s2457 + $0x24] sm:$0xf]
      %v2468 = vld [vmem:[%s2457 + $0x28] sm:$0xf]
      %v2469 = vld [vmem:[%s2457 + $0x2c] sm:$0xf]
      %v2470 = vld [vmem:[%s2457 + $0x30] sm:$0xf]
      %v2471 = vld [vmem:[%s2457 + $0x34] sm:$0xf]
      %v2472 = vld [vmem:[%s2457 + $0x38] sm:$0xf]
      %v2473 = vld [vmem:[%s2457 + $0x3c] sm:$0xf]
      %v2482 = vunpack.c.l.b16 %v2449
      %v2483 = vunpack.c.l.b16 %v2450
      %v2484 = vunpack.c.l.b16 %v2451
      %v2485 = vunpack.c.l.b16 %v2452
      %v2486 = vunpack.c.l.b16 %v2453
      %v2487 = vunpack.c.l.b16 %v2454
      %v2488 = vunpack.c.l.b16 %v2455
      %v2489 = vunpack.c.l.b16 %v2456
      %v2490 = vpack.c.b16 %v2483, %v2482
      %v2491 = vpack.c.b16 %v2485, %v2484
      %v2492 = vpack.c.b16 %v2487, %v2486
      %v2493 = vpack.c.b16 %v2489, %v2488
      %v2514 = vunpack.c.l.b16 %v2458
      %v2515 = vunpack.c.l.b16 %v2459
      %v2516 = vunpack.c.l.b16 %v2460
      %v2517 = vunpack.c.l.b16 %v2461
      %v2518 = vunpack.c.l.b16 %v2462
      %v2519 = vunpack.c.l.b16 %v2463
      %v2520 = vunpack.c.l.b16 %v2464
      %v2521 = vunpack.c.l.b16 %v2465
      %v2522 = vunpack.c.l.b16 %v2466
      %v2523 = vunpack.c.l.b16 %v2467
      %v2524 = vunpack.c.l.b16 %v2468
      %v2525 = vunpack.c.l.b16 %v2469
      %v2526 = vunpack.c.l.b16 %v2470
      %v2527 = vunpack.c.l.b16 %v2471
      %v2528 = vunpack.c.l.b16 %v2472
      %v2529 = vunpack.c.l.b16 %v2473
      %v2530 = vpack.c.b16 %v2515, %v2514
      %v2531 = vpack.c.b16 %v2517, %v2516
      %v2532 = vpack.c.b16 %v2519, %v2518
      %v2533 = vpack.c.b16 %v2521, %v2520
      %v2534 = vpack.c.b16 %v2523, %v2522
      %v2535 = vpack.c.b16 %v2525, %v2524
      %v2536 = vpack.c.b16 %v2527, %v2526
      %v2537 = vpack.c.b16 %v2529, %v2528
      %2546 = vmatprep.subr.bf16.mxu0 0
      %2547 = vmatpush1.bf16.msra.mxu0 %v2537
      %2548 = vmatprep.subr.bf16.mxu0 0
      %2549 = vmatpush1.bf16.msra.mxu0 %v2536
      %2550 = vmatprep.subr.bf16.mxu0 0
      %2551 = vmatpush1.bf16.msra.mxu0 %v2535
      %2552 = vmatprep.subr.bf16.mxu0 0
      %2553 = vmatpush1.bf16.msra.mxu0 %v2534
      %2554 = vmatprep.subr.bf16.mxu0 0
      %2555 = vmatpush1.bf16.msra.mxu0 %v2533
      %2556 = vmatprep.subr.bf16.mxu0 0
      %2557 = vmatpush1.bf16.msra.mxu0 %v2532
      %2558 = vmatprep.subr.bf16.mxu0 0
      %2559 = vmatpush1.bf16.msra.mxu0 %v2531
      %2560 = vmatprep.subr.bf16.mxu0 0
      %2561 = vmatpush1.bf16.msra.mxu0 %v2530
      %2562 = vmatprep.subr.bf16.mxu0 0
      %2563 = vmatpush2.bf16.msra.mxu0 0
      %2564 = vmatprep.subr.bf16.mxu0 0
      %2565 = vmatpush2.bf16.msra.mxu0 0
      %2566 = vmatprep.subr.bf16.mxu0 0
      %2567 = vmatpush2.bf16.msra.mxu0 0
      %2568 = vmatprep.subr.bf16.mxu0 0
      %2569 = vmatpush2.bf16.msra.mxu0 0
      %2570 = vmatprep.subr.bf16.mxu0 0
      %2571 = vmatpush2.bf16.msra.mxu0 0
      %2572 = vmatprep.subr.bf16.mxu0 0
      %2573 = vmatpush2.bf16.msra.mxu0 0
      %2574 = vmatprep.subr.bf16.mxu0 0
      %2575 = vmatpush2.bf16.msra.mxu0 0
      %2576 = vmatprep.subr.bf16.mxu0 0
      %2577 = vmatpush2.bf16.msra.mxu0 0
      %2578 = vmatprep.mubr.bf16.mxu0 0
      %2579 = vmatmul.mubr.bf16.gmra.mxu0 %v2490
      %v2580 = vpop.f32.mrf.mxu0
      %v2581 = vadd.f32 0.0, %v2580
      %v2582 = vpop.f32.mrf.mxu0
      %v2583 = vpop.f32.mrf.mxu0
      %v2584 = vadd.f32 0.0, %v2583
      %v2585 = vpop.f32.mrf.mxu0
      %2586 = vmatprep.mubr.bf16.mxu0 0
      %2587 = vmatmul.mubr.bf16.gmra.mxu0 %v2491
      %v2588 = vpop.f32.mrf.mxu0
      %v2589 = vadd.f32 0.0, %v2588
      %v2590 = vpop.f32.mrf.mxu0
      %v2591 = vpop.f32.mrf.mxu0
      %v2592 = vadd.f32 0.0, %v2591
      %v2593 = vpop.f32.mrf.mxu0
      %2594 = vmatprep.mubr.bf16.mxu0 0
      %2595 = vmatmul.mubr.bf16.gmra.mxu0 %v2492
      %v2596 = vpop.f32.mrf.mxu0
      %v2597 = vadd.f32 0.0, %v2596
      %v2598 = vpop.f32.mrf.mxu0
      %v2599 = vpop.f32.mrf.mxu0
      %v2600 = vadd.f32 0.0, %v2599
      %v2601 = vpop.f32.mrf.mxu0
      %2602 = vmatprep.mubr.bf16.mxu0 0
      %2603 = vmatmul.mubr.bf16.gmra.mxu0 %v2493
      %v2604 = vpop.f32.mrf.mxu0
      %v2605 = vadd.f32 0.0, %v2604
      %v2606 = vpop.f32.mrf.mxu0
      %v2607 = vpop.f32.mrf.mxu0
      %v2608 = vadd.f32 0.0, %v2607
      %v2609 = vpop.f32.mrf.mxu0
      %2610 = vdwg.mxu0
      %v2611 = vadd.f32 %v2299, %v2581
      %v2612 = vadd.f32 %v2300, %v2584
      %v2613 = vadd.f32 %v2301, %v2589
      %v2614 = vadd.f32 %v2302, %v2592
      %v2615 = vadd.f32 %v2303, %v2597
      %v2616 = vadd.f32 %v2304, %v2600
      %v2617 = vadd.f32 %v2305, %v2605
      %v2618 = vadd.f32 %v2306, %v2608
      %s2619 = scalar_lea.vmem %s353, 384
      %v2620 = vld [vmem:[%s2619] sm:$0xf]
      %v2621 = vld [vmem:[%s2619 + $0x4] sm:$0xf]
      %v2622 = vld [vmem:[%s2619 + $0x8] sm:$0xf]
      %v2623 = vld [vmem:[%s2619 + $0xc] sm:$0xf]
      %v2624 = vld [vmem:[%s2619 + $0x10] sm:$0xf]
      %v2625 = vld [vmem:[%s2619 + $0x14] sm:$0xf]
      %v2626 = vld [vmem:[%s2619 + $0x18] sm:$0xf]
      %v2627 = vld [vmem:[%s2619 + $0x1c] sm:$0xf]
      %v2628 = vld [vmem:[%s2619 + $0x20] sm:$0xf]
      %v2629 = vld [vmem:[%s2619 + $0x24] sm:$0xf]
      %v2630 = vld [vmem:[%s2619 + $0x28] sm:$0xf]
      %v2631 = vld [vmem:[%s2619 + $0x2c] sm:$0xf]
      %v2632 = vld [vmem:[%s2619 + $0x30] sm:$0xf]
      %v2633 = vld [vmem:[%s2619 + $0x34] sm:$0xf]
      %v2634 = vld [vmem:[%s2619 + $0x38] sm:$0xf]
      %v2635 = vld [vmem:[%s2619 + $0x3c] sm:$0xf]
      %v2652 = vunpack.c.l.b16 %v2620
      %v2653 = vunpack.c.l.b16 %v2621
      %v2654 = vunpack.c.l.b16 %v2622
      %v2655 = vunpack.c.l.b16 %v2623
      %v2656 = vunpack.c.l.b16 %v2624
      %v2657 = vunpack.c.l.b16 %v2625
      %v2658 = vunpack.c.l.b16 %v2626
      %v2659 = vunpack.c.l.b16 %v2627
      %v2660 = vunpack.c.l.b16 %v2628
      %v2661 = vunpack.c.l.b16 %v2629
      %v2662 = vunpack.c.l.b16 %v2630
      %v2663 = vunpack.c.l.b16 %v2631
      %v2664 = vunpack.c.l.b16 %v2632
      %v2665 = vunpack.c.l.b16 %v2633
      %v2666 = vunpack.c.l.b16 %v2634
      %v2667 = vunpack.c.l.b16 %v2635
      %v2668 = vpack.c.b16 %v2653, %v2652
      %v2669 = vpack.c.b16 %v2655, %v2654
      %v2670 = vpack.c.b16 %v2657, %v2656
      %v2671 = vpack.c.b16 %v2659, %v2658
      %v2672 = vpack.c.b16 %v2661, %v2660
      %v2673 = vpack.c.b16 %v2663, %v2662
      %v2674 = vpack.c.b16 %v2665, %v2664
      %v2675 = vpack.c.b16 %v2667, %v2666
      %2684 = vmatprep.subr.bf16.mxu0 0
      %2685 = vmatpush1.bf16.msra.mxu0 %v2675
      %2686 = vmatprep.subr.bf16.mxu0 0
      %2687 = vmatpush1.bf16.msra.mxu0 %v2674
      %2688 = vmatprep.subr.bf16.mxu0 0
      %2689 = vmatpush1.bf16.msra.mxu0 %v2673
      %2690 = vmatprep.subr.bf16.mxu0 0
      %2691 = vmatpush1.bf16.msra.mxu0 %v2672
      %2692 = vmatprep.subr.bf16.mxu0 0
      %2693 = vmatpush1.bf16.msra.mxu0 %v2671
      %2694 = vmatprep.subr.bf16.mxu0 0
      %2695 = vmatpush1.bf16.msra.mxu0 %v2670
      %2696 = vmatprep.subr.bf16.mxu0 0
      %2697 = vmatpush1.bf16.msra.mxu0 %v2669
      %2698 = vmatprep.subr.bf16.mxu0 0
      %2699 = vmatpush1.bf16.msra.mxu0 %v2668
      %2700 = vmatprep.subr.bf16.mxu0 0
      %2701 = vmatpush2.bf16.msra.mxu0 0
      %2702 = vmatprep.subr.bf16.mxu0 0
      %2703 = vmatpush2.bf16.msra.mxu0 0
      %2704 = vmatprep.subr.bf16.mxu0 0
      %2705 = vmatpush2.bf16.msra.mxu0 0
      %2706 = vmatprep.subr.bf16.mxu0 0
      %2707 = vmatpush2.bf16.msra.mxu0 0
      %2708 = vmatprep.subr.bf16.mxu0 0
      %2709 = vmatpush2.bf16.msra.mxu0 0
      %2710 = vmatprep.subr.bf16.mxu0 0
      %2711 = vmatpush2.bf16.msra.mxu0 0
      %2712 = vmatprep.subr.bf16.mxu0 0
      %2713 = vmatpush2.bf16.msra.mxu0 0
      %2714 = vmatprep.subr.bf16.mxu0 0
      %2715 = vmatpush2.bf16.msra.mxu0 0
      %2716 = vmatprep.mubr.bf16.mxu0 0
      %2717 = vmatmul.mubr.bf16.gmra.mxu0 %v2490
      %v2718 = vpop.f32.mrf.mxu0
      %v2719 = vadd.f32 0.0, %v2718
      %v2720 = vpop.f32.mrf.mxu0
      %v2721 = vpop.f32.mrf.mxu0
      %v2722 = vadd.f32 0.0, %v2721
      %v2723 = vpop.f32.mrf.mxu0
      %2724 = vmatprep.mubr.bf16.mxu0 0
      %2725 = vmatmul.mubr.bf16.gmra.mxu0 %v2491
      %v2726 = vpop.f32.mrf.mxu0
      %v2727 = vadd.f32 0.0, %v2726
      %v2728 = vpop.f32.mrf.mxu0
      %v2729 = vpop.f32.mrf.mxu0
      %v2730 = vadd.f32 0.0, %v2729
      %v2731 = vpop.f32.mrf.mxu0
      %2732 = vmatprep.mubr.bf16.mxu0 0
      %2733 = vmatmul.mubr.bf16.gmra.mxu0 %v2492
      %v2734 = vpop.f32.mrf.mxu0
      %v2735 = vadd.f32 0.0, %v2734
      %v2736 = vpop.f32.mrf.mxu0
      %v2737 = vpop.f32.mrf.mxu0
      %v2738 = vadd.f32 0.0, %v2737
      %v2739 = vpop.f32.mrf.mxu0
      %2740 = vmatprep.mubr.bf16.mxu0 0
      %2741 = vmatmul.mubr.bf16.gmra.mxu0 %v2493
      %v2742 = vpop.f32.mrf.mxu0
      %v2743 = vadd.f32 0.0, %v2742
      %v2744 = vpop.f32.mrf.mxu0
      %v2745 = vpop.f32.mrf.mxu0
      %v2746 = vadd.f32 0.0, %v2745
      %v2747 = vpop.f32.mrf.mxu0
      %2748 = vdwg.mxu0
      %v2749 = vadd.f32 %v2437, %v2719
      %v2750 = vadd.f32 %v2438, %v2722
      %v2751 = vadd.f32 %v2439, %v2727
      %v2752 = vadd.f32 %v2440, %v2730
      %v2753 = vadd.f32 %v2441, %v2735
      %v2754 = vadd.f32 %v2442, %v2738
      %v2755 = vadd.f32 %v2443, %v2743
      %v2756 = vadd.f32 %v2444, %v2746
      %v2757 = vld [vmem:[%s2448] sm:$0xf]
      %v2758 = vld [vmem:[%s2448 + $0x4] sm:$0xf]
      %v2759 = vld [vmem:[%s2448 + $0x8] sm:$0x1]
      %v2760 = vld [vmem:[%s2448 + $0xc] sm:$0xf]
      %v2761 = vld [vmem:[%s2448 + $0x10] sm:$0xf]
      %v2762 = vld [vmem:[%s2448 + $0x14] sm:$0x1]
      %v2763 = vld [vmem:[%s2448 + $0x18] sm:$0xf]
      %v2764 = vld [vmem:[%s2448 + $0x1c] sm:$0xf]
      %v2765 = vld [vmem:[%s2448 + $0x20] sm:$0x1]
      %v2766 = vld [vmem:[%s2448 + $0x24] sm:$0xf]
      %v2767 = vld [vmem:[%s2448 + $0x28] sm:$0xf]
      %v2768 = vld [vmem:[%s2448 + $0x2c] sm:$0x1]
      %v2770 = vshrl.u32 %v2757, 16
      %v2772 = vrot.slane %v2770, 4
      %v2773 = vshll.u32 %v2757, 16
      %v2775 = vrot.slane %v2773, 5
      %v2776 = vor.u32 %v2772, %v2775
      %v2777 = vrot.slane %v2776, 4
      %v2779 = vshll.u32 %v2758, 16
      %v2781 = vrot.slane %v2779, 5
      %v2782 = vsel %vm439, %v2777, %v2781
      %v2783 = vshrl.u32 %v2758, 16
      %v2785 = vrot.slane %v2783, 4
      %v2786 = vor.u32 %v2785, %v2781
      %v2787 = vrot.slane %v2786, 4
      %v2789 = vshll.u32 %v2759, 16
      %v2791 = vrot.slane %v2789, 5
      %v2792 = vsel %vm439, %v2787, %v2791
      %v2794 = vshrl.u32 %v2760, 16
      %v2796 = vrot.slane %v2794, 4
      %v2797 = vshll.u32 %v2760, 16
      %v2799 = vrot.slane %v2797, 5
      %v2800 = vor.u32 %v2796, %v2799
      %v2801 = vrot.slane %v2800, 4
      %v2803 = vshll.u32 %v2761, 16
      %v2805 = vrot.slane %v2803, 5
      %v2806 = vsel %vm439, %v2801, %v2805
      %v2807 = vshrl.u32 %v2761, 16
      %v2809 = vrot.slane %v2807, 4
      %v2810 = vor.u32 %v2809, %v2805
      %v2811 = vrot.slane %v2810, 4
      %v2813 = vshll.u32 %v2762, 16
      %v2815 = vrot.slane %v2813, 5
      %v2816 = vsel %vm439, %v2811, %v2815
      %v2818 = vshrl.u32 %v2763, 16
      %v2820 = vrot.slane %v2818, 4
      %v2821 = vshll.u32 %v2763, 16
      %v2823 = vrot.slane %v2821, 5
      %v2824 = vor.u32 %v2820, %v2823
      %v2825 = vrot.slane %v2824, 4
      %v2827 = vshll.u32 %v2764, 16
      %v2829 = vrot.slane %v2827, 5
      %v2830 = vsel %vm439, %v2825, %v2829
      %v2831 = vshrl.u32 %v2764, 16
      %v2833 = vrot.slane %v2831, 4
      %v2834 = vor.u32 %v2833, %v2829
      %v2835 = vrot.slane %v2834, 4
      %v2837 = vshll.u32 %v2765, 16
      %v2839 = vrot.slane %v2837, 5
      %v2840 = vsel %vm439, %v2835, %v2839
      %v2842 = vshrl.u32 %v2766, 16
      %v2844 = vrot.slane %v2842, 4
      %v2845 = vshll.u32 %v2766, 16
      %v2847 = vrot.slane %v2845, 5
      %v2848 = vor.u32 %v2844, %v2847
      %v2849 = vrot.slane %v2848, 4
      %v2851 = vshll.u32 %v2767, 16
      %v2853 = vrot.slane %v2851, 5
      %v2854 = vsel %vm439, %v2849, %v2853
      %v2855 = vshrl.u32 %v2767, 16
      %v2857 = vrot.slane %v2855, 4
      %v2858 = vor.u32 %v2857, %v2853
      %v2859 = vrot.slane %v2858, 4
      %v2861 = vshll.u32 %v2768, 16
      %v2863 = vrot.slane %v2861, 5
      %v2864 = vsel %vm439, %v2859, %v2863
      %s2865 = scalar_lea.vmem %s349, 448
      %v2866 = vld [vmem:[%s2865] sm:$0xf]
      %v2867 = vld [vmem:[%s2865 + $0x4] sm:$0xf]
      %v2868 = vld [vmem:[%s2865 + $0x8] sm:$0xf]
      %v2869 = vld [vmem:[%s2865 + $0xc] sm:$0xf]
      %v2870 = vld [vmem:[%s2865 + $0x10] sm:$0xf]
      %v2871 = vld [vmem:[%s2865 + $0x14] sm:$0xf]
      %v2872 = vld [vmem:[%s2865 + $0x18] sm:$0xf]
      %v2873 = vld [vmem:[%s2865 + $0x1c] sm:$0xf]
      %v2874 = vld [vmem:[%s2865 + $0x20] sm:$0xf]
      %v2875 = vld [vmem:[%s2865 + $0x24] sm:$0xf]
      %v2876 = vld [vmem:[%s2865 + $0x28] sm:$0xf]
      %v2877 = vld [vmem:[%s2865 + $0x2c] sm:$0xf]
      %v2878 = vld [vmem:[%s2865 + $0x30] sm:$0xf]
      %v2879 = vld [vmem:[%s2865 + $0x34] sm:$0xf]
      %v2880 = vld [vmem:[%s2865 + $0x38] sm:$0xf]
      %v2881 = vld [vmem:[%s2865 + $0x3c] sm:$0xf]
      %v2882 = vunpack.c.l.b16 %v2782
      %v2883 = vunpack.c.l.b16 %v2792
      %v2884 = vunpack.c.l.b16 %v2806
      %v2885 = vunpack.c.l.b16 %v2816
      %v2886 = vunpack.c.l.b16 %v2830
      %v2887 = vunpack.c.l.b16 %v2840
      %v2888 = vunpack.c.l.b16 %v2854
      %v2889 = vunpack.c.l.b16 %v2864
      %v2890 = vpack.c.b16 %v2883, %v2882
      %v2891 = vpack.c.b16 %v2885, %v2884
      %v2892 = vpack.c.b16 %v2887, %v2886
      %v2893 = vpack.c.b16 %v2889, %v2888
      %v2914 = vunpack.c.l.b16 %v2866
      %v2915 = vunpack.c.l.b16 %v2867
      %v2916 = vunpack.c.l.b16 %v2868
      %v2917 = vunpack.c.l.b16 %v2869
      %v2918 = vunpack.c.l.b16 %v2870
      %v2919 = vunpack.c.l.b16 %v2871
      %v2920 = vunpack.c.l.b16 %v2872
      %v2921 = vunpack.c.l.b16 %v2873
      %v2922 = vunpack.c.l.b16 %v2874
      %v2923 = vunpack.c.l.b16 %v2875
      %v2924 = vunpack.c.l.b16 %v2876
      %v2925 = vunpack.c.l.b16 %v2877
      %v2926 = vunpack.c.l.b16 %v2878
      %v2927 = vunpack.c.l.b16 %v2879
      %v2928 = vunpack.c.l.b16 %v2880
      %v2929 = vunpack.c.l.b16 %v2881
      %v2930 = vpack.c.b16 %v2915, %v2914
      %v2931 = vpack.c.b16 %v2917, %v2916
      %v2932 = vpack.c.b16 %v2919, %v2918
      %v2933 = vpack.c.b16 %v2921, %v2920
      %v2934 = vpack.c.b16 %v2923, %v2922
      %v2935 = vpack.c.b16 %v2925, %v2924
      %v2936 = vpack.c.b16 %v2927, %v2926
      %v2937 = vpack.c.b16 %v2929, %v2928
      %2946 = vmatprep.subr.bf16.mxu0 0
      %2947 = vmatpush1.bf16.msra.mxu0 %v2937
      %2948 = vmatprep.subr.bf16.mxu0 0
      %2949 = vmatpush1.bf16.msra.mxu0 %v2936
      %2950 = vmatprep.subr.bf16.mxu0 0
      %2951 = vmatpush1.bf16.msra.mxu0 %v2935
      %2952 = vmatprep.subr.bf16.mxu0 0
      %2953 = vmatpush1.bf16.msra.mxu0 %v2934
      %2954 = vmatprep.subr.bf16.mxu0 0
      %2955 = vmatpush1.bf16.msra.mxu0 %v2933
      %2956 = vmatprep.subr.bf16.mxu0 0
      %2957 = vmatpush1.bf16.msra.mxu0 %v2932
      %2958 = vmatprep.subr.bf16.mxu0 0
      %2959 = vmatpush1.bf16.msra.mxu0 %v2931
      %2960 = vmatprep.subr.bf16.mxu0 0
      %2961 = vmatpush1.bf16.msra.mxu0 %v2930
      %2962 = vmatprep.subr.bf16.mxu0 0
      %2963 = vmatpush2.bf16.msra.mxu0 0
      %2964 = vmatprep.subr.bf16.mxu0 0
      %2965 = vmatpush2.bf16.msra.mxu0 0
      %2966 = vmatprep.subr.bf16.mxu0 0
      %2967 = vmatpush2.bf16.msra.mxu0 0
      %2968 = vmatprep.subr.bf16.mxu0 0
      %2969 = vmatpush2.bf16.msra.mxu0 0
      %2970 = vmatprep.subr.bf16.mxu0 0
      %2971 = vmatpush2.bf16.msra.mxu0 0
      %2972 = vmatprep.subr.bf16.mxu0 0
      %2973 = vmatpush2.bf16.msra.mxu0 0
      %2974 = vmatprep.subr.bf16.mxu0 0
      %2975 = vmatpush2.bf16.msra.mxu0 0
      %2976 = vmatprep.subr.bf16.mxu0 0
      %2977 = vmatpush2.bf16.msra.mxu0 0
      %2978 = vmatprep.mubr.bf16.mxu0 0
      %2979 = vmatmul.mubr.bf16.gmra.mxu0 %v2890
      %v2980 = vpop.f32.mrf.mxu0
      %v2981 = vadd.f32 0.0, %v2980
      %v2982 = vpop.f32.mrf.mxu0
      %v2983 = vpop.f32.mrf.mxu0
      %v2984 = vadd.f32 0.0, %v2983
      %v2985 = vpop.f32.mrf.mxu0
      %2986 = vmatprep.mubr.bf16.mxu0 0
      %2987 = vmatmul.mubr.bf16.gmra.mxu0 %v2891
      %v2988 = vpop.f32.mrf.mxu0
      %v2989 = vadd.f32 0.0, %v2988
      %v2990 = vpop.f32.mrf.mxu0
      %v2991 = vpop.f32.mrf.mxu0
      %v2992 = vadd.f32 0.0, %v2991
      %v2993 = vpop.f32.mrf.mxu0
      %2994 = vmatprep.mubr.bf16.mxu0 0
      %2995 = vmatmul.mubr.bf16.gmra.mxu0 %v2892
      %v2996 = vpop.f32.mrf.mxu0
      %v2997 = vadd.f32 0.0, %v2996
      %v2998 = vpop.f32.mrf.mxu0
      %v2999 = vpop.f32.mrf.mxu0
      %v3000 = vadd.f32 0.0, %v2999
      %v3001 = vpop.f32.mrf.mxu0
      %3002 = vmatprep.mubr.bf16.mxu0 0
      %3003 = vmatmul.mubr.bf16.gmra.mxu0 %v2893
      %v3004 = vpop.f32.mrf.mxu0
      %v3005 = vadd.f32 0.0, %v3004
      %v3006 = vpop.f32.mrf.mxu0
      %v3007 = vpop.f32.mrf.mxu0
      %v3008 = vadd.f32 0.0, %v3007
      %v3009 = vpop.f32.mrf.mxu0
      %3010 = vdwg.mxu0
      %v3011 = vadd.f32 %v2611, %v2981
      %v3012 = vadd.f32 %v2612, %v2984
      %v3013 = vadd.f32 %v2613, %v2989
      %v3014 = vadd.f32 %v2614, %v2992
      %v3015 = vadd.f32 %v2615, %v2997
      %v3016 = vadd.f32 %v2616, %v3000
      %v3017 = vadd.f32 %v2617, %v3005
      %v3018 = vadd.f32 %v2618, %v3008
      %s3019 = scalar_lea.vmem %s353, 448
      %v3020 = vld [vmem:[%s3019] sm:$0xf]
      %v3021 = vld [vmem:[%s3019 + $0x4] sm:$0xf]
      %v3022 = vld [vmem:[%s3019 + $0x8] sm:$0xf]
      %v3023 = vld [vmem:[%s3019 + $0xc] sm:$0xf]
      %v3024 = vld [vmem:[%s3019 + $0x10] sm:$0xf]
      %v3025 = vld [vmem:[%s3019 + $0x14] sm:$0xf]
      %v3026 = vld [vmem:[%s3019 + $0x18] sm:$0xf]
      %v3027 = vld [vmem:[%s3019 + $0x1c] sm:$0xf]
      %v3028 = vld [vmem:[%s3019 + $0x20] sm:$0xf]
      %v3029 = vld [vmem:[%s3019 + $0x24] sm:$0xf]
      %v3030 = vld [vmem:[%s3019 + $0x28] sm:$0xf]
      %v3031 = vld [vmem:[%s3019 + $0x2c] sm:$0xf]
      %v3032 = vld [vmem:[%s3019 + $0x30] sm:$0xf]
      %v3033 = vld [vmem:[%s3019 + $0x34] sm:$0xf]
      %v3034 = vld [vmem:[%s3019 + $0x38] sm:$0xf]
      %v3035 = vld [vmem:[%s3019 + $0x3c] sm:$0xf]
      %v3052 = vunpack.c.l.b16 %v3020
      %v3053 = vunpack.c.l.b16 %v3021
      %v3054 = vunpack.c.l.b16 %v3022
      %v3055 = vunpack.c.l.b16 %v3023
      %v3056 = vunpack.c.l.b16 %v3024
      %v3057 = vunpack.c.l.b16 %v3025
      %v3058 = vunpack.c.l.b16 %v3026
      %v3059 = vunpack.c.l.b16 %v3027
      %v3060 = vunpack.c.l.b16 %v3028
      %v3061 = vunpack.c.l.b16 %v3029
      %v3062 = vunpack.c.l.b16 %v3030
      %v3063 = vunpack.c.l.b16 %v3031
      %v3064 = vunpack.c.l.b16 %v3032
      %v3065 = vunpack.c.l.b16 %v3033
      %v3066 = vunpack.c.l.b16 %v3034
      %v3067 = vunpack.c.l.b16 %v3035
      %v3068 = vpack.c.b16 %v3053, %v3052
      %v3069 = vpack.c.b16 %v3055, %v3054
      %v3070 = vpack.c.b16 %v3057, %v3056
      %v3071 = vpack.c.b16 %v3059, %v3058
      %v3072 = vpack.c.b16 %v3061, %v3060
      %v3073 = vpack.c.b16 %v3063, %v3062
      %v3074 = vpack.c.b16 %v3065, %v3064
      %v3075 = vpack.c.b16 %v3067, %v3066
      %3084 = vmatprep.subr.bf16.mxu0 0
      %3085 = vmatpush1.bf16.msra.mxu0 %v3075
      %3086 = vmatprep.subr.bf16.mxu0 0
      %3087 = vmatpush1.bf16.msra.mxu0 %v3074
      %3088 = vmatprep.subr.bf16.mxu0 0
      %3089 = vmatpush1.bf16.msra.mxu0 %v3073
      %3090 = vmatprep.subr.bf16.mxu0 0
      %3091 = vmatpush1.bf16.msra.mxu0 %v3072
      %3092 = vmatprep.subr.bf16.mxu0 0
      %3093 = vmatpush1.bf16.msra.mxu0 %v3071
      %3094 = vmatprep.subr.bf16.mxu0 0
      %3095 = vmatpush1.bf16.msra.mxu0 %v3070
      %3096 = vmatprep.subr.bf16.mxu0 0
      %3097 = vmatpush1.bf16.msra.mxu0 %v3069
      %3098 = vmatprep.subr.bf16.mxu0 0
      %3099 = vmatpush1.bf16.msra.mxu0 %v3068
      %3100 = vmatprep.subr.bf16.mxu0 0
      %3101 = vmatpush2.bf16.msra.mxu0 0
      %3102 = vmatprep.subr.bf16.mxu0 0
      %3103 = vmatpush2.bf16.msra.mxu0 0
      %3104 = vmatprep.subr.bf16.mxu0 0
      %3105 = vmatpush2.bf16.msra.mxu0 0
      %3106 = vmatprep.subr.bf16.mxu0 0
      %3107 = vmatpush2.bf16.msra.mxu0 0
      %3108 = vmatprep.subr.bf16.mxu0 0
      %3109 = vmatpush2.bf16.msra.mxu0 0
      %3110 = vmatprep.subr.bf16.mxu0 0
      %3111 = vmatpush2.bf16.msra.mxu0 0
      %3112 = vmatprep.subr.bf16.mxu0 0
      %3113 = vmatpush2.bf16.msra.mxu0 0
      %3114 = vmatprep.subr.bf16.mxu0 0
      %3115 = vmatpush2.bf16.msra.mxu0 0
      %3116 = vmatprep.mubr.bf16.mxu0 0
      %3117 = vmatmul.mubr.bf16.gmra.mxu0 %v2890
      %v3118 = vpop.f32.mrf.mxu0
      %v3119 = vadd.f32 0.0, %v3118
      %v3120 = vpop.f32.mrf.mxu0
      %v3121 = vpop.f32.mrf.mxu0
      %v3122 = vadd.f32 0.0, %v3121
      %v3123 = vpop.f32.mrf.mxu0
      %3124 = vmatprep.mubr.bf16.mxu0 0
      %3125 = vmatmul.mubr.bf16.gmra.mxu0 %v2891
      %v3126 = vpop.f32.mrf.mxu0
      %v3127 = vadd.f32 0.0, %v3126
      %v3128 = vpop.f32.mrf.mxu0
      %v3129 = vpop.f32.mrf.mxu0
      %v3130 = vadd.f32 0.0, %v3129
      %v3131 = vpop.f32.mrf.mxu0
      %3132 = vmatprep.mubr.bf16.mxu0 0
      %3133 = vmatmul.mubr.bf16.gmra.mxu0 %v2892
      %v3134 = vpop.f32.mrf.mxu0
      %v3135 = vadd.f32 0.0, %v3134
      %v3136 = vpop.f32.mrf.mxu0
      %v3137 = vpop.f32.mrf.mxu0
      %v3138 = vadd.f32 0.0, %v3137
      %v3139 = vpop.f32.mrf.mxu0
      %3140 = vmatprep.mubr.bf16.mxu0 0
      %3141 = vmatmul.mubr.bf16.gmra.mxu0 %v2893
      %v3142 = vpop.f32.mrf.mxu0
      %v3143 = vadd.f32 0.0, %v3142
      %v3144 = vpop.f32.mrf.mxu0
      %v3145 = vpop.f32.mrf.mxu0
      %v3146 = vadd.f32 0.0, %v3145
      %v3147 = vpop.f32.mrf.mxu0
      %3148 = vdwg.mxu0
      %v3149 = vadd.f32 %v2749, %v3119
      %v3150 = vadd.f32 %v2750, %v3122
      %v3151 = vadd.f32 %v2751, %v3127
      %v3152 = vadd.f32 %v2752, %v3130
      %v3153 = vadd.f32 %v2753, %v3135
      %v3154 = vadd.f32 %v2754, %v3138
      %v3155 = vadd.f32 %v2755, %v3143
      %v3156 = vadd.f32 %v2756, %v3146
      %v3157 = vld [vmem:[%s2448] sm:$0xe]
      %v3158 = vld [vmem:[%s2448 + $0xc] sm:$0xe]
      %v3159 = vld [vmem:[%s2448 + $0x18] sm:$0xe]
      %v3160 = vld [vmem:[%s2448 + $0x24] sm:$0xe]
      %v3173 = vrot.slane %v3157, 5
      %v3174 = vrot.slane %v3173, 4
      %v3175 = vrot.slane %v2758, 5
      %v3176 = vsel %vm1076, %v3174, %v3175
      %v3177 = vrot.slane %v3175, 4
      %v3178 = vrot.slane %v2759, 5
      %v3179 = vsel %vm1076, %v3177, %v3178
      %v3180 = vrot.slane %v3158, 5
      %v3181 = vrot.slane %v3180, 4
      %v3182 = vrot.slane %v2761, 5
      %v3183 = vsel %vm1076, %v3181, %v3182
      %v3184 = vrot.slane %v3182, 4
      %v3185 = vrot.slane %v2762, 5
      %v3186 = vsel %vm1076, %v3184, %v3185
      %v3187 = vrot.slane %v3159, 5
      %v3188 = vrot.slane %v3187, 4
      %v3189 = vrot.slane %v2764, 5
      %v3190 = vsel %vm1076, %v3188, %v3189
      %v3191 = vrot.slane %v3189, 4
      %v3192 = vrot.slane %v2765, 5
      %v3193 = vsel %vm1076, %v3191, %v3192
      %v3194 = vrot.slane %v3160, 5
      %v3195 = vrot.slane %v3194, 4
      %v3196 = vrot.slane %v2767, 5
      %v3197 = vsel %vm1076, %v3195, %v3196
      %v3198 = vrot.slane %v3196, 4
      %v3199 = vrot.slane %v2768, 5
      %v3200 = vsel %vm1076, %v3198, %v3199
      %s3201 = scalar_lea.vmem %s349, 512
      %v3202 = vld [vmem:[%s3201] sm:$0xf]
      %v3203 = vld [vmem:[%s3201 + $0x4] sm:$0xf]
      %v3204 = vld [vmem:[%s3201 + $0x8] sm:$0xf]
      %v3205 = vld [vmem:[%s3201 + $0xc] sm:$0xf]
      %v3206 = vld [vmem:[%s3201 + $0x10] sm:$0xf]
      %v3207 = vld [vmem:[%s3201 + $0x14] sm:$0xf]
      %v3208 = vld [vmem:[%s3201 + $0x18] sm:$0xf]
      %v3209 = vld [vmem:[%s3201 + $0x1c] sm:$0xf]
      %v3210 = vld [vmem:[%s3201 + $0x20] sm:$0xf]
      %v3211 = vld [vmem:[%s3201 + $0x24] sm:$0xf]
      %v3212 = vld [vmem:[%s3201 + $0x28] sm:$0xf]
      %v3213 = vld [vmem:[%s3201 + $0x2c] sm:$0xf]
      %v3214 = vld [vmem:[%s3201 + $0x30] sm:$0xf]
      %v3215 = vld [vmem:[%s3201 + $0x34] sm:$0xf]
      %v3216 = vld [vmem:[%s3201 + $0x38] sm:$0xf]
      %v3217 = vld [vmem:[%s3201 + $0x3c] sm:$0xf]
      %v3218 = vunpack.c.l.b16 %v3176
      %v3219 = vunpack.c.l.b16 %v3179
      %v3220 = vunpack.c.l.b16 %v3183
      %v3221 = vunpack.c.l.b16 %v3186
      %v3222 = vunpack.c.l.b16 %v3190
      %v3223 = vunpack.c.l.b16 %v3193
      %v3224 = vunpack.c.l.b16 %v3197
      %v3225 = vunpack.c.l.b16 %v3200
      %v3226 = vpack.c.b16 %v3219, %v3218
      %v3227 = vpack.c.b16 %v3221, %v3220
      %v3228 = vpack.c.b16 %v3223, %v3222
      %v3229 = vpack.c.b16 %v3225, %v3224
      %v3250 = vunpack.c.l.b16 %v3202
      %v3251 = vunpack.c.l.b16 %v3203
      %v3252 = vunpack.c.l.b16 %v3204
      %v3253 = vunpack.c.l.b16 %v3205
      %v3254 = vunpack.c.l.b16 %v3206
      %v3255 = vunpack.c.l.b16 %v3207
      %v3256 = vunpack.c.l.b16 %v3208
      %v3257 = vunpack.c.l.b16 %v3209
      %v3258 = vunpack.c.l.b16 %v3210
      %v3259 = vunpack.c.l.b16 %v3211
      %v3260 = vunpack.c.l.b16 %v3212
      %v3261 = vunpack.c.l.b16 %v3213
      %v3262 = vunpack.c.l.b16 %v3214
      %v3263 = vunpack.c.l.b16 %v3215
      %v3264 = vunpack.c.l.b16 %v3216
      %v3265 = vunpack.c.l.b16 %v3217
      %v3266 = vpack.c.b16 %v3251, %v3250
      %v3267 = vpack.c.b16 %v3253, %v3252
      %v3268 = vpack.c.b16 %v3255, %v3254
      %v3269 = vpack.c.b16 %v3257, %v3256
      %v3270 = vpack.c.b16 %v3259, %v3258
      %v3271 = vpack.c.b16 %v3261, %v3260
      %v3272 = vpack.c.b16 %v3263, %v3262
      %v3273 = vpack.c.b16 %v3265, %v3264
      %3282 = vmatprep.subr.bf16.mxu0 0
      %3283 = vmatpush1.bf16.msra.mxu0 %v3273
      %3284 = vmatprep.subr.bf16.mxu0 0
      %3285 = vmatpush1.bf16.msra.mxu0 %v3272
      %3286 = vmatprep.subr.bf16.mxu0 0
      %3287 = vmatpush1.bf16.msra.mxu0 %v3271
      %3288 = vmatprep.subr.bf16.mxu0 0
      %3289 = vmatpush1.bf16.msra.mxu0 %v3270
      %3290 = vmatprep.subr.bf16.mxu0 0
      %3291 = vmatpush1.bf16.msra.mxu0 %v3269
      %3292 = vmatprep.subr.bf16.mxu0 0
      %3293 = vmatpush1.bf16.msra.mxu0 %v3268
      %3294 = vmatprep.subr.bf16.mxu0 0
      %3295 = vmatpush1.bf16.msra.mxu0 %v3267
      %3296 = vmatprep.subr.bf16.mxu0 0
      %3297 = vmatpush1.bf16.msra.mxu0 %v3266
      %3298 = vmatprep.subr.bf16.mxu0 0
      %3299 = vmatpush2.bf16.msra.mxu0 0
      %3300 = vmatprep.subr.bf16.mxu0 0
      %3301 = vmatpush2.bf16.msra.mxu0 0
      %3302 = vmatprep.subr.bf16.mxu0 0
      %3303 = vmatpush2.bf16.msra.mxu0 0
      %3304 = vmatprep.subr.bf16.mxu0 0
      %3305 = vmatpush2.bf16.msra.mxu0 0
      %3306 = vmatprep.subr.bf16.mxu0 0
      %3307 = vmatpush2.bf16.msra.mxu0 0
      %3308 = vmatprep.subr.bf16.mxu0 0
      %3309 = vmatpush2.bf16.msra.mxu0 0
      %3310 = vmatprep.subr.bf16.mxu0 0
      %3311 = vmatpush2.bf16.msra.mxu0 0
      %3312 = vmatprep.subr.bf16.mxu0 0
      %3313 = vmatpush2.bf16.msra.mxu0 0
      %3314 = vmatprep.mubr.bf16.mxu0 0
      %3315 = vmatmul.mubr.bf16.gmra.mxu0 %v3226
      %v3316 = vpop.f32.mrf.mxu0
      %v3317 = vadd.f32 0.0, %v3316
      %v3318 = vpop.f32.mrf.mxu0
      %v3319 = vpop.f32.mrf.mxu0
      %v3320 = vadd.f32 0.0, %v3319
      %v3321 = vpop.f32.mrf.mxu0
      %3322 = vmatprep.mubr.bf16.mxu0 0
      %3323 = vmatmul.mubr.bf16.gmra.mxu0 %v3227
      %v3324 = vpop.f32.mrf.mxu0
      %v3325 = vadd.f32 0.0, %v3324
      %v3326 = vpop.f32.mrf.mxu0
      %v3327 = vpop.f32.mrf.mxu0
      %v3328 = vadd.f32 0.0, %v3327
      %v3329 = vpop.f32.mrf.mxu0
      %3330 = vmatprep.mubr.bf16.mxu0 0
      %3331 = vmatmul.mubr.bf16.gmra.mxu0 %v3228
      %v3332 = vpop.f32.mrf.mxu0
      %v3333 = vadd.f32 0.0, %v3332
      %v3334 = vpop.f32.mrf.mxu0
      %v3335 = vpop.f32.mrf.mxu0
      %v3336 = vadd.f32 0.0, %v3335
      %v3337 = vpop.f32.mrf.mxu0
      %3338 = vmatprep.mubr.bf16.mxu0 0
      %3339 = vmatmul.mubr.bf16.gmra.mxu0 %v3229
      %v3340 = vpop.f32.mrf.mxu0
      %v3341 = vadd.f32 0.0, %v3340
      %v3342 = vpop.f32.mrf.mxu0
      %v3343 = vpop.f32.mrf.mxu0
      %v3344 = vadd.f32 0.0, %v3343
      %v3345 = vpop.f32.mrf.mxu0
      %3346 = vdwg.mxu0
      %v3347 = vadd.f32 %v3011, %v3317
      %v3348 = vadd.f32 %v3012, %v3320
      %v3349 = vadd.f32 %v3013, %v3325
      %v3350 = vadd.f32 %v3014, %v3328
      %v3351 = vadd.f32 %v3015, %v3333
      %v3352 = vadd.f32 %v3016, %v3336
      %v3353 = vadd.f32 %v3017, %v3341
      %v3354 = vadd.f32 %v3018, %v3344
      %s3355 = scalar_lea.vmem %s353, 512
      %v3356 = vld [vmem:[%s3355] sm:$0xf]
      %v3357 = vld [vmem:[%s3355 + $0x4] sm:$0xf]
      %v3358 = vld [vmem:[%s3355 + $0x8] sm:$0xf]
      %v3359 = vld [vmem:[%s3355 + $0xc] sm:$0xf]
      %v3360 = vld [vmem:[%s3355 + $0x10] sm:$0xf]
      %v3361 = vld [vmem:[%s3355 + $0x14] sm:$0xf]
      %v3362 = vld [vmem:[%s3355 + $0x18] sm:$0xf]
      %v3363 = vld [vmem:[%s3355 + $0x1c] sm:$0xf]
      %v3364 = vld [vmem:[%s3355 + $0x20] sm:$0xf]
      %v3365 = vld [vmem:[%s3355 + $0x24] sm:$0xf]
      %v3366 = vld [vmem:[%s3355 + $0x28] sm:$0xf]
      %v3367 = vld [vmem:[%s3355 + $0x2c] sm:$0xf]
      %v3368 = vld [vmem:[%s3355 + $0x30] sm:$0xf]
      %v3369 = vld [vmem:[%s3355 + $0x34] sm:$0xf]
      %v3370 = vld [vmem:[%s3355 + $0x38] sm:$0xf]
      %v3371 = vld [vmem:[%s3355 + $0x3c] sm:$0xf]
      %v3388 = vunpack.c.l.b16 %v3356
      %v3389 = vunpack.c.l.b16 %v3357
      %v3390 = vunpack.c.l.b16 %v3358
      %v3391 = vunpack.c.l.b16 %v3359
      %v3392 = vunpack.c.l.b16 %v3360
      %v3393 = vunpack.c.l.b16 %v3361
      %v3394 = vunpack.c.l.b16 %v3362
      %v3395 = vunpack.c.l.b16 %v3363
      %v3396 = vunpack.c.l.b16 %v3364
      %v3397 = vunpack.c.l.b16 %v3365
      %v3398 = vunpack.c.l.b16 %v3366
      %v3399 = vunpack.c.l.b16 %v3367
      %v3400 = vunpack.c.l.b16 %v3368
      %v3401 = vunpack.c.l.b16 %v3369
      %v3402 = vunpack.c.l.b16 %v3370
      %v3403 = vunpack.c.l.b16 %v3371
      %v3404 = vpack.c.b16 %v3389, %v3388
      %v3405 = vpack.c.b16 %v3391, %v3390
      %v3406 = vpack.c.b16 %v3393, %v3392
      %v3407 = vpack.c.b16 %v3395, %v3394
      %v3408 = vpack.c.b16 %v3397, %v3396
      %v3409 = vpack.c.b16 %v3399, %v3398
      %v3410 = vpack.c.b16 %v3401, %v3400
      %v3411 = vpack.c.b16 %v3403, %v3402
      %3420 = vmatprep.subr.bf16.mxu0 0
      %3421 = vmatpush1.bf16.msra.mxu0 %v3411
      %3422 = vmatprep.subr.bf16.mxu0 0
      %3423 = vmatpush1.bf16.msra.mxu0 %v3410
      %3424 = vmatprep.subr.bf16.mxu0 0
      %3425 = vmatpush1.bf16.msra.mxu0 %v3409
      %3426 = vmatprep.subr.bf16.mxu0 0
      %3427 = vmatpush1.bf16.msra.mxu0 %v3408
      %3428 = vmatprep.subr.bf16.mxu0 0
      %3429 = vmatpush1.bf16.msra.mxu0 %v3407
      %3430 = vmatprep.subr.bf16.mxu0 0
      %3431 = vmatpush1.bf16.msra.mxu0 %v3406
      %3432 = vmatprep.subr.bf16.mxu0 0
      %3433 = vmatpush1.bf16.msra.mxu0 %v3405
      %3434 = vmatprep.subr.bf16.mxu0 0
      %3435 = vmatpush1.bf16.msra.mxu0 %v3404
      %3436 = vmatprep.subr.bf16.mxu0 0
      %3437 = vmatpush2.bf16.msra.mxu0 0
      %3438 = vmatprep.subr.bf16.mxu0 0
      %3439 = vmatpush2.bf16.msra.mxu0 0
      %3440 = vmatprep.subr.bf16.mxu0 0
      %3441 = vmatpush2.bf16.msra.mxu0 0
      %3442 = vmatprep.subr.bf16.mxu0 0
      %3443 = vmatpush2.bf16.msra.mxu0 0
      %3444 = vmatprep.subr.bf16.mxu0 0
      %3445 = vmatpush2.bf16.msra.mxu0 0
      %3446 = vmatprep.subr.bf16.mxu0 0
      %3447 = vmatpush2.bf16.msra.mxu0 0
      %3448 = vmatprep.subr.bf16.mxu0 0
      %3449 = vmatpush2.bf16.msra.mxu0 0
      %3450 = vmatprep.subr.bf16.mxu0 0
      %3451 = vmatpush2.bf16.msra.mxu0 0
      %3452 = vmatprep.mubr.bf16.mxu0 0
      %3453 = vmatmul.mubr.bf16.gmra.mxu0 %v3226
      %v3454 = vpop.f32.mrf.mxu0
      %v3455 = vadd.f32 0.0, %v3454
      %v3456 = vpop.f32.mrf.mxu0
      %v3457 = vpop.f32.mrf.mxu0
      %v3458 = vadd.f32 0.0, %v3457
      %v3459 = vpop.f32.mrf.mxu0
      %3460 = vmatprep.mubr.bf16.mxu0 0
      %3461 = vmatmul.mubr.bf16.gmra.mxu0 %v3227
      %v3462 = vpop.f32.mrf.mxu0
      %v3463 = vadd.f32 0.0, %v3462
      %v3464 = vpop.f32.mrf.mxu0
      %v3465 = vpop.f32.mrf.mxu0
      %v3466 = vadd.f32 0.0, %v3465
      %v3467 = vpop.f32.mrf.mxu0
      %3468 = vmatprep.mubr.bf16.mxu0 0
      %3469 = vmatmul.mubr.bf16.gmra.mxu0 %v3228
      %v3470 = vpop.f32.mrf.mxu0
      %v3471 = vadd.f32 0.0, %v3470
      %v3472 = vpop.f32.mrf.mxu0
      %v3473 = vpop.f32.mrf.mxu0
      %v3474 = vadd.f32 0.0, %v3473
      %v3475 = vpop.f32.mrf.mxu0
      %3476 = vmatprep.mubr.bf16.mxu0 0
      %3477 = vmatmul.mubr.bf16.gmra.mxu0 %v3229
      %v3478 = vpop.f32.mrf.mxu0
      %v3479 = vadd.f32 0.0, %v3478
      %v3480 = vpop.f32.mrf.mxu0
      %v3481 = vpop.f32.mrf.mxu0
      %v3482 = vadd.f32 0.0, %v3481
      %v3483 = vpop.f32.mrf.mxu0
      %3484 = vdwg.mxu0
      %v3485 = vadd.f32 %v3149, %v3455
      %v3486 = vadd.f32 %v3150, %v3458
      %v3487 = vadd.f32 %v3151, %v3463
      %v3488 = vadd.f32 %v3152, %v3466
      %v3489 = vadd.f32 %v3153, %v3471
      %v3490 = vadd.f32 %v3154, %v3474
      %v3491 = vadd.f32 %v3155, %v3479
      %v3492 = vadd.f32 %v3156, %v3482
      %v3493 = vld [vmem:[%s356] sm:$0x1]
      %v3495 = vlaneseq
      %v3496 = vshrl.u32 %v3495, 7
      %v3497 = vsub.s32 0, %v3496
      %v3498 = vrot.slane %v3493, %v3497
      %v3500 = vadd.f32 %v3347, %v3498
      %v3501 = vadd.f32 %v3348, %v3498
      %v3502 = vadd.f32 %v3349, %v3498
      %v3503 = vadd.f32 %v3350, %v3498
      %v3504 = vadd.f32 %v3351, %v3498
      %v3505 = vadd.f32 %v3352, %v3498
      %v3506 = vadd.f32 %v3353, %v3498
      %v3507 = vadd.f32 %v3354, %v3498
      %v3508 = vmax.f32 %v3500, 0.0
      %v3509 = vmax.f32 %v3501, 0.0
      %v3510 = vmax.f32 %v3502, 0.0
      %v3511 = vmax.f32 %v3503, 0.0
      %v3512 = vmax.f32 %v3504, 0.0
      %v3513 = vmax.f32 %v3505, 0.0
      %v3514 = vmax.f32 %v3506, 0.0
      %v3515 = vmax.f32 %v3507, 0.0
      %v3516 = vld [vmem:[%s359] sm:$0x1]
      %v3518 = vlaneseq
      %v3519 = vshrl.u32 %v3518, 7
      %v3520 = vsub.s32 0, %v3519
      %v3521 = vrot.slane %v3516, %v3520
      %v3523 = vadd.f32 %v3485, %v3521
      %v3524 = vadd.f32 %v3486, %v3521
      %v3525 = vadd.f32 %v3487, %v3521
      %v3526 = vadd.f32 %v3488, %v3521
      %v3527 = vadd.f32 %v3489, %v3521
      %v3528 = vadd.f32 %v3490, %v3521
      %v3529 = vadd.f32 %v3491, %v3521
      %v3530 = vadd.f32 %v3492, %v3521
      %v3531 = vpack.c.bf16 %v3509, %v3508
      %v3532 = vpack.c.bf16 %v3511, %v3510
      %v3533 = vpack.c.bf16 %v3513, %v3512
      %v3534 = vpack.c.bf16 %v3515, %v3514
      %v3539 = vunpack.c.l.b16 %v3531
      %v3540 = vunpack.c.h.b16 %v3531
      %v3541 = vunpack.c.l.b16 %v3532
      %v3542 = vunpack.c.h.b16 %v3532
      %v3543 = vunpack.c.l.b16 %v3533
      %v3544 = vunpack.c.h.b16 %v3533
      %v3545 = vunpack.c.l.b16 %v3534
      %v3546 = vunpack.c.h.b16 %v3534
      %v3547 = vpack.c.b16 %v3539, %v3539
      %v3548 = vpack.c.b16 %v3540, %v3540
      %v3549 = vpack.c.b16 %v3541, %v3541
      %v3550 = vpack.c.b16 %v3542, %v3542
      %v3551 = vpack.c.b16 %v3543, %v3543
      %v3552 = vpack.c.b16 %v3544, %v3544
      %v3553 = vpack.c.b16 %v3545, %v3545
      %v3554 = vpack.c.b16 %v3546, %v3546
      %3563 = vst [vmem:[%s372] sm:$0xf] %v3547
      %3564 = vst [vmem:[%s372 + $0x4] sm:$0xf] %v3548
      %3565 = vst [vmem:[%s372 + $0x8] sm:$0xf] %v3549
      %3566 = vst [vmem:[%s372 + $0xc] sm:$0xf] %v3550
      %3567 = vst [vmem:[%s372 + $0x10] sm:$0xf] %v3551
      %3568 = vst [vmem:[%s372 + $0x14] sm:$0xf] %v3552
      %3569 = vst [vmem:[%s372 + $0x18] sm:$0xf] %v3553
      %3570 = vst [vmem:[%s372 + $0x1c] sm:$0xf] %v3554
      %v3571 = vpack.c.bf16 %v3524, %v3523
      %v3572 = vpack.c.bf16 %v3526, %v3525
      %v3573 = vpack.c.bf16 %v3528, %v3527
      %v3574 = vpack.c.bf16 %v3530, %v3529
      %v3579 = vunpack.c.l.b16 %v3571
      %v3580 = vunpack.c.h.b16 %v3571
      %v3581 = vunpack.c.l.b16 %v3572
      %v3582 = vunpack.c.h.b16 %v3572
      %v3583 = vunpack.c.l.b16 %v3573
      %v3584 = vunpack.c.h.b16 %v3573
      %v3585 = vunpack.c.l.b16 %v3574
      %v3586 = vunpack.c.h.b16 %v3574
      %v3587 = vpack.c.b16 %v3579, %v3579
      %v3588 = vpack.c.b16 %v3580, %v3580
      %v3589 = vpack.c.b16 %v3581, %v3581
      %v3590 = vpack.c.b16 %v3582, %v3582
      %v3591 = vpack.c.b16 %v3583, %v3583
      %v3592 = vpack.c.b16 %v3584, %v3584
      %v3593 = vpack.c.b16 %v3585, %v3585
      %v3594 = vpack.c.b16 %v3586, %v3586
      %3603 = vst [vmem:[%s386] sm:$0xf] %v3587
      %3604 = vst [vmem:[%s386 + $0x4] sm:$0xf] %v3588
      %3605 = vst [vmem:[%s386 + $0x8] sm:$0xf] %v3589
      %3606 = vst [vmem:[%s386 + $0xc] sm:$0xf] %v3590
      %3607 = vst [vmem:[%s386 + $0x10] sm:$0xf] %v3591
      %3608 = vst [vmem:[%s386 + $0x14] sm:$0xf] %v3592
      %3609 = vst [vmem:[%s386 + $0x18] sm:$0xf] %v3593
      %3610 = vst [vmem:[%s386 + $0x1c] sm:$0xf] %v3594
      %s3611 = smul.u32 4, %s25
      %p3612 = scmp.lt.s32.totalorder %s23, 1
      %s3613 = scalar_select %p3612, %s23, 1
      %p3614 = scmp.lt.s32.totalorder %s3611, 15
      %s3615 = scalar_select %p3614, %s3611, 15
      %p3616 = scmp.lt.s32.totalorder %s24, 0
      %s3617 = scalar_select %p3616, %s24, 0
      %s3618 = smul.addr %s3615, 2
      %s3619 = sadd.s32 %s3617, %s3618
      %s3620 = smul.addr %s3613, 32
      %s3621 = sadd.s32 %s3619, %s3620
      %s3622 = smul.addr %s3621, 4
      %s3623 = scalar_lea.vmem %s5, %s3622
      %s3624 = smul.u32 4, %s25
      %p3625 = scmp.lt.s32.totalorder %s23, 1
      %s3626 = scalar_select %p3625, %s23, 1
      %p3627 = scmp.lt.s32.totalorder %s3624, 15
      %s3628 = scalar_select %p3627, %s3624, 15
      %p3629 = scmp.lt.s32.totalorder %s24, 0
      %s3630 = scalar_select %p3629, %s24, 0
      %s3631 = smul.addr %s3628, 2
      %s3632 = sadd.s32 %s3630, %s3631
      %s3633 = smul.addr %s3626, 32
      %s3634 = sadd.s32 %s3632, %s3633
      %s3635 = smul.addr %s3634, 4
      %s3636 = scalar_lea.vmem %s6, %s3635
      // Predicated region
      $region41: #{up_proj_module.2} parent=39 // pred_check
        %p3637 = pneg %p189
      $region42: #{up_proj_module.2} parent=39 // pred_check_branch
        %3639 = sbr.rel (%p3637) target = $region44
      $region43: #{up_proj_module.2} parent=39 // pred_region
        %s3640 = smul.u32 4, %s25
      $region44: #{up_proj_module.2} parent=39 // pred_fallthru
        _
      // Predicated region
      $region45: #{up_proj_module.2} parent=39 // pred_check
        %p3641 = pneg %p219
      $region46: #{up_proj_module.2} parent=39 // pred_check_branch
        %3643 = sbr.rel (%p3641) target = $region48
      $region47: #{up_proj_module.2} parent=39 // pred_region
        %s3644 = smul.u32 4, %s25
      $region48: #{up_proj_module.2} parent=39 // pred_fallthru
        _
    $region40: #{up_proj_module.2} parent=5 // pred_fallthru
      _
    %p3645 = scmp.le.s32.totalorder 2, %s13
    // Predicated region
    $region49: #{up_proj_module.2} parent=5 // pred_check
      %p3646 = pneg %p3645
    $region50: #{up_proj_module.2} parent=5 // pred_check_branch
      %3648 = sbr.rel (%p3646) target = $region52
    $region51: #{up_proj_module.2} parent=5 // pred_region
      %s3649 = ssub.s32 %s13, 2
      // Predicated region
      $region53: #{up_proj_module.2} parent=51 // pred_check
        %p3650 = pneg %p195
      $region54: #{up_proj_module.2} parent=51 // pred_check_branch
        %3652 = sbr.rel (%p3650) target = $region56
      $region55: #{up_proj_module.2} parent=51 // pred_region
        %s3653 = smul.u32 4, %s28
        %p3654 = scmp.lt.s32.totalorder %s26, 1
        %s3655 = scalar_select %p3654, %s26, 1
        %p3656 = scmp.lt.s32.totalorder %s3653, 15
        %s3657 = scalar_select %p3656, %s3653, 15
        %p3658 = scmp.lt.s32.totalorder %s27, 0
        %s3659 = scalar_select %p3658, %s27, 0
        %s3660 = smul.addr %s3657, 2
        %s3661 = sadd.s32 %s3659, %s3660
        %s3662 = smul.addr %s3655, 32
        %s3663 = sadd.s32 %s3661, %s3662
        %s3664 = smul.addr %s3663, 4
        %s3665 = scalar_lea.vmem %s5, %s3664
      $region56: #{up_proj_module.2} parent=51 // pred_fallthru
        _
      // Predicated region
      $region57: #{up_proj_module.2} parent=51 // pred_check
        %p3666 = pneg %p225
      $region58: #{up_proj_module.2} parent=51 // pred_check_branch
        %3668 = sbr.rel (%p3666) target = $region60
      $region59: #{up_proj_module.2} parent=51 // pred_region
        %s3669 = smul.u32 4, %s28
        %p3670 = scmp.lt.s32.totalorder %s26, 1
        %s3671 = scalar_select %p3670, %s26, 1
        %p3672 = scmp.lt.s32.totalorder %s3669, 15
        %s3673 = scalar_select %p3672, %s3669, 15
        %p3674 = scmp.lt.s32.totalorder %s27, 0
        %s3675 = scalar_select %p3674, %s27, 0
        %s3676 = smul.addr %s3673, 2
        %s3677 = sadd.s32 %s3675, %s3676
        %s3678 = smul.addr %s3671, 32
        %s3679 = sadd.s32 %s3677, %s3678
        %s3680 = smul.addr %s3679, 4
        %s3681 = scalar_lea.vmem %s6, %s3680
      $region60: #{up_proj_module.2} parent=51 // pred_fallthru
        _
    $region52: #{up_proj_module.2} parent=5 // pred_fallthru
      _
  $region6: #{up_proj_module.2} parent=0 // loop_footer
    %s17 = sadd.s32 1, %s13
  $region7: #{up_proj_module.2} parent=0 // loop_footer_branch
    %12 = sbr.rel target = $region3
  $region8: #{up_proj_module.2} parent=0 // loop_exit
    _

// kernel: up_proj_module.3
$region0: #{up_proj_module.3}
  #allocation0 [shape = 'u32[]', space=smem, size = 0x4, offset = 0x4, fixed_abs, tag = 'smem constant byte address 0x4 - core index']
  #allocation1 [shape = 'u32[144,128]{1,0:T(1,128)}', space=vmem, size = 0x12000, scoped, tag = 'internal scratch']
  %s0 = inlined_call_operand.vmem [shape: bf16[2,18,24,128], index: 0, kind: input, shape index: {}]
  %s1 = inlined_call_operand.vmem [shape: bf16[3,3,128,128], index: 1, kind: input, shape index: {}]
  %s2 = inlined_call_operand.vmem [shape: f32[1,128], index: 2, kind: input, shape index: {}]
  %s3 = inlined_call_operand.vmem [shape: bf16[2,16,16,128], index: 3, kind: input, shape index: {}]
  %s4 = inlined_call_operand.vmem [shape: f32[2,16,16,128], index: 4, kind: output, shape index: {}]
  %s5 = sld [smem:[#allocation0]]
  $region49: #{up_proj_module.3} parent=0
    _
  %s7 = ssub.s32 1, %s5
  %s8 = scalar_select 0, %s7, %s5
  loop: start=0, step=1, limit=6
  $region2: #{up_proj_module.3} parent=0 // loop_pre_header
    _
  $region3: #{up_proj_module.3} parent=0 // loop_header
    %s10 = sphi 0, %s14
    %p11 = scmp.ge.s32.totalorder %s10, 6
    %s17 = sphi 0, %s36
    %s18 = sphi 0, %s32
    %s19 = sphi 0, %s28
    %s20 = sphi 0, %s17
    %s21 = sphi 0, %s18
    %s22 = sphi 0, %s19
    %s23 = sphi 0, %s20
    %s24 = sphi 0, %s21
    %s25 = sphi 0, %s22
    %s39 = sphi 0, %s41
    %s42 = sphi 0, %s39
    %s43 = sphi 0, %s42
    %s59 = sphi 0, %s43
    %s65 = sphi 0, %s67
    %s68 = sphi 0, %s65
    %s69 = sphi 0, %s68
    %s85 = sphi 0, %s69
    %s91 = sphi 0, %s93
    %s94 = sphi 0, %s91
    %s95 = sphi 0, %s94
    %s111 = sphi 0, %s95
    %s121 = sphi 0, %s123
    %s124 = sphi 0, %s121
    %s125 = sphi 0, %s124
    %s141 = sphi 0, %s125
    %s151 = sphi 0, %s153
    %s154 = sphi 0, %s151
    %s155 = sphi 0, %s154
    %s171 = sphi 0, %s155
  $region4: #{up_proj_module.3} parent=0 // loop_header_branch
    %13 = sbr.rel (%p11) target = $region8
  $region5: #{up_proj_module.3} parent=0 // loop_body
    %s15 = ssub.s32 %s10, 1
    %s16 = ssub.s32 %s10, 2
    %s26 = sadd.s32 1, %s19
    %p27 = scmp.ge.s32.totalorder %s26, 2
    %s28 = scalar_select %p27, 0, %s26
    %s29 = sadd.s32 1, %s18
    %s30 = scalar_select %p27, %s29, %s18
    %p31 = scmp.ge.s32.totalorder %s30, 1
    %s32 = scalar_select %p31, 0, %s30
    %s33 = sadd.s32 1, %s17
    %s34 = scalar_select %p31, %s33, %s17
    %p35 = scmp.ge.s32.totalorder %s34, 2
    %s36 = scalar_select %p35, 0, %s34
    %s37 = ssub.s32 %s17, %s36
    %p38 = scmp.eq.s32.totalorder %s37, 0
    %s40 = sadd.s32 %s39, 1
    %s41 = scalar_select %p38, %s39, %s40
    %p44 = pneg %p38
    %p45 = scmp.eq.s32.totalorder %s10, 3
    %p46 = por %p44, %p45
    %p47 = scmp.ne.s32.totalorder %s39, %s42
    %p48 = scmp.eq.s32.totalorder %s10, 0
    %p49 = por %p47, %p48
    %p50 = scmp.ne.s32.totalorder %s39, %s42
    %p51 = scmp.eq.s32.totalorder %s15, 3
    %p52 = por %p50, %p51
    %p53 = scmp.ne.s32.totalorder %s42, %s43
    %p54 = scmp.eq.s32.totalorder %s15, 0
    %p55 = por %p53, %p54
    %p56 = scmp.ne.s32.totalorder %s42, %s43
    %p57 = scmp.eq.s32.totalorder %s16, 3
    %p58 = por %p56, %p57
    %p60 = scmp.ne.s32.totalorder %s43, %s59
    %p61 = scmp.eq.s32.totalorder %s16, 0
    %p62 = por %p60, %p61
    %s63 = ssub.s32 %s18, %s32
    %p64 = scmp.eq.s32.totalorder %s63, 0
    %s66 = sadd.s32 %s65, 1
    %s67 = scalar_select %p64, %s65, %s66
    %p70 = pneg %p64
    %p71 = scmp.eq.s32.totalorder %s10, 3
    %p72 = por %p70, %p71
    %p73 = scmp.ne.s32.totalorder %s65, %s68
    %p74 = scmp.eq.s32.totalorder %s10, 0
    %p75 = por %p73, %p74
    %p76 = scmp.ne.s32.totalorder %s65, %s68
    %p77 = scmp.eq.s32.totalorder %s15, 3
    %p78 = por %p76, %p77
    %p79 = scmp.ne.s32.totalorder %s68, %s69
    %p80 = scmp.eq.s32.totalorder %s15, 0
    %p81 = por %p79, %p80
    %p82 = scmp.ne.s32.totalorder %s68, %s69
    %p83 = scmp.eq.s32.totalorder %s16, 3
    %p84 = por %p82, %p83
    %p86 = scmp.ne.s32.totalorder %s69, %s85
    %p87 = scmp.eq.s32.totalorder %s16, 0
    %p88 = por %p86, %p87
    %s89 = ssub.s32 %s18, %s32
    %p90 = scmp.eq.s32.totalorder %s89, 0
    %s92 = sadd.s32 %s91, 1
    %s93 = scalar_select %p90, %s91, %s92
    %p96 = pneg %p90
    %p97 = scmp.eq.s32.totalorder %s10, 3
    %p98 = por %p96, %p97
    %p99 = scmp.ne.s32.totalorder %s91, %s94
    %p100 = scmp.eq.s32.totalorder %s10, 0
    %p101 = por %p99, %p100
    %p102 = scmp.ne.s32.totalorder %s91, %s94
    %p103 = scmp.eq.s32.totalorder %s15, 3
    %p104 = por %p102, %p103
    %p105 = scmp.ne.s32.totalorder %s94, %s95
    %p106 = scmp.eq.s32.totalorder %s15, 0
    %p107 = por %p105, %p106
    %p108 = scmp.ne.s32.totalorder %s94, %s95
    %p109 = scmp.eq.s32.totalorder %s16, 3
    %p110 = por %p108, %p109
    %p112 = scmp.ne.s32.totalorder %s95, %s111
    %p113 = scmp.eq.s32.totalorder %s16, 0
    %p114 = por %p112, %p113
    %s115 = ssub.s32 %s17, %s36
    %s116 = ssub.s32 %s19, %s28
    %s117 = sor.u32 %s115, %s116
    %s118 = ssub.s32 %s18, %s32
    %s119 = sor.u32 %s117, %s118
    %p120 = scmp.eq.s32.totalorder %s119, 0
    %s122 = sadd.s32 %s121, 1
    %s123 = scalar_select %p120, %s121, %s122
    %p126 = pneg %p120
    %p127 = scmp.eq.s32.totalorder %s10, 3
    %p128 = por %p126, %p127
    %p129 = scmp.ne.s32.totalorder %s121, %s124
    %p130 = scmp.eq.s32.totalorder %s10, 0
    %p131 = por %p129, %p130
    %p132 = scmp.ne.s32.totalorder %s121, %s124
    %p133 = scmp.eq.s32.totalorder %s15, 3
    %p134 = por %p132, %p133
    %p135 = scmp.ne.s32.totalorder %s124, %s125
    %p136 = scmp.eq.s32.totalorder %s15, 0
    %p137 = por %p135, %p136
    %p138 = scmp.ne.s32.totalorder %s124, %s125
    %p139 = scmp.eq.s32.totalorder %s16, 3
    %p140 = por %p138, %p139
    %p142 = scmp.ne.s32.totalorder %s125, %s141
    %p143 = scmp.eq.s32.totalorder %s16, 0
    %p144 = por %p142, %p143
    %s145 = ssub.s32 %s17, %s36
    %s146 = ssub.s32 %s19, %s28
    %s147 = sor.u32 %s145, %s146
    %s148 = ssub.s32 %s18, %s32
    %s149 = sor.u32 %s147, %s148
    %p150 = scmp.eq.s32.totalorder %s149, 0
    %s152 = sadd.s32 %s151, 1
    %s153 = scalar_select %p150, %s151, %s152
    %p156 = pneg %p150
    %p157 = scmp.eq.s32.totalorder %s10, 3
    %p158 = por %p156, %p157
    %p159 = scmp.ne.s32.totalorder %s151, %s154
    %p160 = scmp.eq.s32.totalorder %s10, 0
    %p161 = por %p159, %p160
    %p162 = scmp.ne.s32.totalorder %s151, %s154
    %p163 = scmp.eq.s32.totalorder %s15, 3
    %p164 = por %p162, %p163
    %p165 = scmp.ne.s32.totalorder %s154, %s155
    %p166 = scmp.eq.s32.totalorder %s15, 0
    %p167 = por %p165, %p166
    %p168 = scmp.ne.s32.totalorder %s154, %s155
    %p169 = scmp.eq.s32.totalorder %s16, 3
    %p170 = por %p168, %p169
    %p172 = scmp.ne.s32.totalorder %s155, %s171
    %p173 = scmp.eq.s32.totalorder %s16, 0
    %p174 = por %p172, %p173
    %p175 = scmp.le.s32.totalorder 1, %s10
    %p176 = scmp.lt.s32.totalorder %s10, 5
    %p177 = pnand %p175, %p176
    %p178 = pneg %p177
    // Predicated region
    $region9: #{up_proj_module.3} parent=5 // pred_check
      _
    $region10: #{up_proj_module.3} parent=5 // pred_check_branch
      %180 = sbr.rel (%p177) target = $region12
    $region11: #{up_proj_module.3} parent=5 // pred_region
      %s181 = ssub.s32 %s10, 1
      // Predicated region
      $region13: #{up_proj_module.3} parent=11 // pred_check
        %p182 = pneg %p55
      $region14: #{up_proj_module.3} parent=11 // pred_check_branch
        %184 = sbr.rel (%p182) target = $region16
      $region15: #{up_proj_module.3} parent=11 // pred_region
        %p185 = scmp.lt.s32.totalorder %s20, 1
        %s186 = scalar_select %p185, %s20, 1
        %s187 = smul.addr %s186, 54
        %s188 = smul.addr %s187, 4
        %s189 = scalar_lea.vmem %s0, %s188
      $region16: #{up_proj_module.3} parent=11 // pred_fallthru
        _
      // Predicated region
      $region17: #{up_proj_module.3} parent=11 // pred_check
        %p190 = pneg %p81
      $region18: #{up_proj_module.3} parent=11 // pred_check_branch
        %192 = sbr.rel (%p190) target = $region20
      $region19: #{up_proj_module.3} parent=11 // pred_region
        %p193 = scmp.lt.s32.totalorder %s21, 0
        %s194 = scalar_select %p193, %s21, 0
        %s195 = smul.addr %s194, 4
        %s196 = scalar_lea.vmem %s1, %s195
      $region20: #{up_proj_module.3} parent=11 // pred_fallthru
        _
      // Predicated region
      $region21: #{up_proj_module.3} parent=11 // pred_check
        %p197 = pneg %p107
      $region22: #{up_proj_module.3} parent=11 // pred_check_branch
        %199 = sbr.rel (%p197) target = $region24
      $region23: #{up_proj_module.3} parent=11 // pred_region
        %p200 = scmp.lt.s32.totalorder %s21, 0
        %s201 = scalar_select %p200, %s21, 0
        %s202 = scalar_lea.vmem %s2, %s201
      $region24: #{up_proj_module.3} parent=11 // pred_fallthru
        _
    $region12: #{up_proj_module.3} parent=5 // pred_fallthru
      _
    %p203 = scmp.lt.s32.totalorder %s10, 4
    // Predicated region
    $region25: #{up_proj_module.3} parent=5 // pred_check
      %p204 = pneg %p203
    $region26: #{up_proj_module.3} parent=5 // pred_check_branch
      %206 = sbr.rel (%p204) target = $region28
    $region27: #{up_proj_module.3} parent=5 // pred_region
      // Predicated region
      $region29: #{up_proj_module.3} parent=27 // pred_check
        %p207 = pneg %p131
      $region30: #{up_proj_module.3} parent=27 // pred_check_branch
        %209 = sbr.rel (%p207) target = $region32
      $region31: #{up_proj_module.3} parent=27 // pred_region
        %s210 = smul.u32 8, %s19
        %p211 = scmp.lt.s32.totalorder %s17, 1
        %s212 = scalar_select %p211, %s17, 1
        %p213 = scmp.lt.s32.totalorder %s210, 15
        %s214 = scalar_select %p213, %s210, 15
        %p215 = scmp.lt.s32.totalorder %s18, 0
        %s216 = scalar_select %p215, %s18, 0
        %s217 = smul.addr %s214, 2
        %s218 = sadd.s32 %s216, %s217
        %s219 = smul.addr %s212, 32
        %s220 = sadd.s32 %s218, %s219
        %s221 = smul.addr %s220, 4
        %s222 = scalar_lea.vmem %s3, %s221
        %s223 = smul.u32 8, %s19
      $region32: #{up_proj_module.3} parent=27 // pred_fallthru
        _
    $region28: #{up_proj_module.3} parent=5 // pred_fallthru
      _
    %p224 = scmp.le.s32.totalorder 1, %s10
    %p225 = scmp.lt.s32.totalorder %s10, 5
    %p226 = pnand %p224, %p225
    %p227 = pneg %p226
    // Predicated region
    $region33: #{up_proj_module.3} parent=5 // pred_check
      _
    $region34: #{up_proj_module.3} parent=5 // pred_check_branch
      %229 = sbr.rel (%p226) target = $region36
    $region35: #{up_proj_module.3} parent=5 // pred_region
      %s230 = ssub.s32 %s10, 1
      %p231 = scmp.lt.s32.totalorder %s20, 1
      %s232 = scalar_select %p231, %s20, 1
      %s233 = smul.addr %s232, 54
      %s234 = smul.addr %s233, 4
      %s235 = scalar_lea.vmem %s0, %s234
      %p236 = pneg %p55
      %p237 = pneg %p52
      %p238 = scmp.lt.s32.totalorder %s21, 0
      %s239 = scalar_select %p238, %s21, 0
      %s240 = smul.addr %s239, 4
      %s241 = scalar_lea.vmem %s1, %s240
      %p242 = pneg %p81
      %p243 = pneg %p78
      %p244 = scmp.lt.s32.totalorder %s21, 0
      %s245 = scalar_select %p244, %s21, 0
      %s246 = scalar_lea.vmem %s2, %s245
      %p247 = pneg %p107
      %p248 = pneg %p104
      %s249 = smul.u32 8, %s22
      %p250 = scmp.lt.s32.totalorder %s20, 1
      %s251 = scalar_select %p250, %s20, 1
      %p252 = scmp.lt.s32.totalorder %s249, 15
      %s253 = scalar_select %p252, %s249, 15
      %p254 = scmp.lt.s32.totalorder %s21, 0
      %s255 = scalar_select %p254, %s21, 0
      %s256 = smul.addr %s253, 2
      %s257 = sadd.s32 %s255, %s256
      %s258 = smul.addr %s251, 32
      %s259 = sadd.s32 %s257, %s258
      %s260 = smul.addr %s259, 4
      %s261 = scalar_lea.vmem %s3, %s260
      %p262 = pneg %p137
      %p263 = pneg %p134
      %p264 = pneg %p167
      %p265 = pneg %p164
      %s266 = smul.u32 8, %s22
      %p267 = scmp.lt.s32.totalorder %s20, 1
      %s268 = scalar_select %p267, %s20, 1
      %p269 = scmp.lt.s32.totalorder %s266, 15
      %s270 = scalar_select %p269, %s266, 15
      %p271 = scmp.lt.s32.totalorder %s21, 0
      %s272 = scalar_select %p271, %s21, 0
      %s273 = smul.addr %s270, 2
      %s274 = sadd.s32 %s272, %s273
      %s275 = smul.addr %s268, 32
      %s276 = sadd.s32 %s274, %s275
      %s277 = smul.addr %s276, 8
      %s278 = scalar_lea.vmem %s4, %s277
      %p279 = scmp.lt.s32.totalorder %s20, 1
      %s280 = scalar_select %p279, %s20, 1
      %s281 = smul.addr %s280, 54
      %s282 = smul.addr %s281, 4
      %s283 = scalar_lea.vmem %s0, %s282
      %p284 = scmp.lt.s32.totalorder %s21, 0
      %s285 = scalar_select %p284, %s21, 0
      %s286 = smul.addr %s285, 4
      %s287 = scalar_lea.vmem %s1, %s286
      %p288 = scmp.lt.s32.totalorder %s21, 0
      %s289 = scalar_select %p288, %s21, 0
      %s290 = scalar_lea.vmem %s2, %s289
      %s291 = smul.u32 8, %s22
      %p292 = scmp.lt.s32.totalorder %s20, 1
      %s293 = scalar_select %p292, %s20, 1
      %p294 = scmp.lt.s32.totalorder %s291, 15
      %s295 = scalar_select %p294, %s291, 15
      %p296 = scmp.lt.s32.totalorder %s21, 0
      %s297 = scalar_select %p296, %s21, 0
      %s298 = smul.addr %s295, 2
      %s299 = sadd.s32 %s297, %s298
      %s300 = smul.addr %s293, 32
      %s301 = sadd.s32 %s299, %s300
      %s302 = smul.addr %s301, 4
      %s303 = scalar_lea.vmem %s3, %s302
      %s304 = smul.u32 8, %s22
      %s305 = smul.u32 8, %s22
      %p306 = scmp.lt.s32.totalorder %s20, 1
      %s307 = scalar_select %p306, %s20, 1
      %p308 = scmp.lt.s32.totalorder %s305, 15
      %s309 = scalar_select %p308, %s305, 15
      %p310 = scmp.lt.s32.totalorder %s21, 0
      %s311 = scalar_select %p310, %s21, 0
      %s312 = smul.addr %s309, 2
      %s313 = sadd.s32 %s311, %s312
      %s314 = smul.addr %s307, 32
      %s315 = sadd.s32 %s313, %s314
      %s316 = smul.addr %s315, 8
      %s317 = scalar_lea.vmem %s4, %s316
      %s318 = smul.u32 8, %s22
      %s320 = smul.u32 %s22, 8
      %s321 = smul.u32 %s320, 3
      %s322 = smul.addr %s321, 4
      %s323 = scalar_lea.vmem %s283, %s322
      %v324 = vld [vmem:[%s323] sm:$0xf]
      %v325 = vld [vmem:[%s323 + $0x4] sm:$0xf]
      %v326 = vld [vmem:[%s323 + $0xc] sm:$0xf]
      %v327 = vld [vmem:[%s323 + $0x10] sm:$0xf]
      %v328 = vld [vmem:[%s323 + $0x18] sm:$0xf]
      %v329 = vld [vmem:[%s323 + $0x1c] sm:$0xf]
      %v330 = vld [vmem:[%s323 + $0x24] sm:$0xf]
      %v331 = vld [vmem:[%s323 + $0x28] sm:$0xf]
      %v332 = vld [vmem:[%s323 + $0x30] sm:$0xf]
      %v333 = vld [vmem:[%s323 + $0x34] sm:$0xf]
      %v334 = vld [vmem:[%s323 + $0x3c] sm:$0xf]
      %v335 = vld [vmem:[%s323 + $0x40] sm:$0xf]
      %v336 = vld [vmem:[%s323 + $0x48] sm:$0xf]
      %v337 = vld [vmem:[%s323 + $0x4c] sm:$0xf]
      %v338 = vld [vmem:[%s323 + $0x54] sm:$0xf]
      %v339 = vld [vmem:[%s323 + $0x58] sm:$0xf]
      %v340 = vld [vmem:[%s287] sm:$0xf]
      %v341 = vld [vmem:[%s287 + $0x4] sm:$0xf]
      %v342 = vld [vmem:[%s287 + $0x8] sm:$0xf]
      %v343 = vld [vmem:[%s287 + $0xc] sm:$0xf]
      %v344 = vld [vmem:[%s287 + $0x10] sm:$0xf]
      %v345 = vld [vmem:[%s287 + $0x14] sm:$0xf]
      %v346 = vld [vmem:[%s287 + $0x18] sm:$0xf]
      %v347 = vld [vmem:[%s287 + $0x1c] sm:$0xf]
      %v348 = vld [vmem:[%s287 + $0x20] sm:$0xf]
      %v349 = vld [vmem:[%s287 + $0x24] sm:$0xf]
      %v350 = vld [vmem:[%s287 + $0x28] sm:$0xf]
      %v351 = vld [vmem:[%s287 + $0x2c] sm:$0xf]
      %v352 = vld [vmem:[%s287 + $0x30] sm:$0xf]
      %v353 = vld [vmem:[%s287 + $0x34] sm:$0xf]
      %v354 = vld [vmem:[%s287 + $0x38] sm:$0xf]
      %v355 = vld [vmem:[%s287 + $0x3c] sm:$0xf]
      %v356 = vld [vmem:[%s323 + $0x8] sm:$0x1]
      %v357 = vld [vmem:[%s323 + $0x14] sm:$0x1]
      %v358 = vld [vmem:[%s323 + $0x20] sm:$0x1]
      %v359 = vld [vmem:[%s323 + $0x2c] sm:$0x1]
      %v360 = vld [vmem:[%s323 + $0x38] sm:$0x1]
      %v361 = vld [vmem:[%s323 + $0x44] sm:$0x1]
      %v362 = vld [vmem:[%s323 + $0x50] sm:$0x1]
      %v363 = vld [vmem:[%s323 + $0x5c] sm:$0x1]
      %vm364 = vsmask.f32 3328
      %vm365 = vsmask.f32 7440
      %vm366 = vmor %vm364, %vm365
      %v368 = vshrl.u32 %v324, 16
      %v370 = vrot.slane %v368, 4
      %v371 = vshll.u32 %v324, 16
      %v373 = vrot.slane %v371, 5
      %v374 = vor.u32 %v370, %v373
      %v375 = vrot.slane %v374, 4
      %v377 = vshll.u32 %v325, 16
      %v379 = vrot.slane %v377, 5
      %v380 = vsel %vm366, %v375, %v379
      %v381 = vshrl.u32 %v325, 16
      %v383 = vrot.slane %v381, 4
      %v384 = vor.u32 %v383, %v379
      %v385 = vrot.slane %v384, 4
      %v387 = vshll.u32 %v356, 16
      %v389 = vrot.slane %v387, 5
      %v390 = vsel %vm366, %v385, %v389
      %v392 = vshrl.u32 %v326, 16
      %v394 = vrot.slane %v392, 4
      %v395 = vshll.u32 %v326, 16
      %v397 = vrot.slane %v395, 5
      %v398 = vor.u32 %v394, %v397
      %v399 = vrot.slane %v398, 4
      %v401 = vshll.u32 %v327, 16
      %v403 = vrot.slane %v401, 5
      %v404 = vsel %vm366, %v399, %v403
      %v405 = vshrl.u32 %v327, 16
      %v407 = vrot.slane %v405, 4
      %v408 = vor.u32 %v407, %v403
      %v409 = vrot.slane %v408, 4
      %v411 = vshll.u32 %v357, 16
      %v413 = vrot.slane %v411, 5
      %v414 = vsel %vm366, %v409, %v413
      %v416 = vshrl.u32 %v328, 16
      %v418 = vrot.slane %v416, 4
      %v419 = vshll.u32 %v328, 16
      %v421 = vrot.slane %v419, 5
      %v422 = vor.u32 %v418, %v421
      %v423 = vrot.slane %v422, 4
      %v425 = vshll.u32 %v329, 16
      %v427 = vrot.slane %v425, 5
      %v428 = vsel %vm366, %v423, %v427
      %v429 = vshrl.u32 %v329, 16
      %v431 = vrot.slane %v429, 4
      %v432 = vor.u32 %v431, %v427
      %v433 = vrot.slane %v432, 4
      %v435 = vshll.u32 %v358, 16
      %v437 = vrot.slane %v435, 5
      %v438 = vsel %vm366, %v433, %v437
      %v440 = vshrl.u32 %v330, 16
      %v442 = vrot.slane %v440, 4
      %v443 = vshll.u32 %v330, 16
      %v445 = vrot.slane %v443, 5
      %v446 = vor.u32 %v442, %v445
      %v447 = vrot.slane %v446, 4
      %v449 = vshll.u32 %v331, 16
      %v451 = vrot.slane %v449, 5
      %v452 = vsel %vm366, %v447, %v451
      %v453 = vshrl.u32 %v331, 16
      %v455 = vrot.slane %v453, 4
      %v456 = vor.u32 %v455, %v451
      %v457 = vrot.slane %v456, 4
      %v459 = vshll.u32 %v359, 16
      %v461 = vrot.slane %v459, 5
      %v462 = vsel %vm366, %v457, %v461
      %v464 = vshrl.u32 %v332, 16
      %v466 = vrot.slane %v464, 4
      %v467 = vshll.u32 %v332, 16
      %v469 = vrot.slane %v467, 5
      %v470 = vor.u32 %v466, %v469
      %v471 = vrot.slane %v470, 4
      %v473 = vshll.u32 %v333, 16
      %v475 = vrot.slane %v473, 5
      %v476 = vsel %vm366, %v471, %v475
      %v477 = vshrl.u32 %v333, 16
      %v479 = vrot.slane %v477, 4
      %v480 = vor.u32 %v479, %v475
      %v481 = vrot.slane %v480, 4
      %v483 = vshll.u32 %v360, 16
      %v485 = vrot.slane %v483, 5
      %v486 = vsel %vm366, %v481, %v485
      %v488 = vshrl.u32 %v334, 16
      %v490 = vrot.slane %v488, 4
      %v491 = vshll.u32 %v334, 16
      %v493 = vrot.slane %v491, 5
      %v494 = vor.u32 %v490, %v493
      %v495 = vrot.slane %v494, 4
      %v497 = vshll.u32 %v335, 16
      %v499 = vrot.slane %v497, 5
      %v500 = vsel %vm366, %v495, %v499
      %v501 = vshrl.u32 %v335, 16
      %v503 = vrot.slane %v501, 4
      %v504 = vor.u32 %v503, %v499
      %v505 = vrot.slane %v504, 4
      %v507 = vshll.u32 %v361, 16
      %v509 = vrot.slane %v507, 5
      %v510 = vsel %vm366, %v505, %v509
      %v512 = vshrl.u32 %v336, 16
      %v514 = vrot.slane %v512, 4
      %v515 = vshll.u32 %v336, 16
      %v517 = vrot.slane %v515, 5
      %v518 = vor.u32 %v514, %v517
      %v519 = vrot.slane %v518, 4
      %v521 = vshll.u32 %v337, 16
      %v523 = vrot.slane %v521, 5
      %v524 = vsel %vm366, %v519, %v523
      %v525 = vshrl.u32 %v337, 16
      %v527 = vrot.slane %v525, 4
      %v528 = vor.u32 %v527, %v523
      %v529 = vrot.slane %v528, 4
      %v531 = vshll.u32 %v362, 16
      %v533 = vrot.slane %v531, 5
      %v534 = vsel %vm366, %v529, %v533
      %v536 = vshrl.u32 %v338, 16
      %v538 = vrot.slane %v536, 4
      %v539 = vshll.u32 %v338, 16
      %v541 = vrot.slane %v539, 5
      %v542 = vor.u32 %v538, %v541
      %v543 = vrot.slane %v542, 4
      %v545 = vshll.u32 %v339, 16
      %v547 = vrot.slane %v545, 5
      %v548 = vsel %vm366, %v543, %v547
      %v549 = vshrl.u32 %v339, 16
      %v551 = vrot.slane %v549, 4
      %v552 = vor.u32 %v551, %v547
      %v553 = vrot.slane %v552, 4
      %v555 = vshll.u32 %v363, 16
      %v557 = vrot.slane %v555, 5
      %v558 = vsel %vm366, %v553, %v557
      %s559 = scalar_lea.vmem %s287, 64
      %v560 = vld [vmem:[%s559] sm:$0xf]
      %v561 = vld [vmem:[%s559 + $0x4] sm:$0xf]
      %v562 = vld [vmem:[%s559 + $0x8] sm:$0xf]
      %v563 = vld [vmem:[%s559 + $0xc] sm:$0xf]
      %v564 = vld [vmem:[%s559 + $0x10] sm:$0xf]
      %v565 = vld [vmem:[%s559 + $0x14] sm:$0xf]
      %v566 = vld [vmem:[%s559 + $0x18] sm:$0xf]
      %v567 = vld [vmem:[%s559 + $0x1c] sm:$0xf]
      %v568 = vld [vmem:[%s559 + $0x20] sm:$0xf]
      %v569 = vld [vmem:[%s559 + $0x24] sm:$0xf]
      %v570 = vld [vmem:[%s559 + $0x28] sm:$0xf]
      %v571 = vld [vmem:[%s559 + $0x2c] sm:$0xf]
      %v572 = vld [vmem:[%s559 + $0x30] sm:$0xf]
      %v573 = vld [vmem:[%s559 + $0x34] sm:$0xf]
      %v574 = vld [vmem:[%s559 + $0x38] sm:$0xf]
      %v575 = vld [vmem:[%s559 + $0x3c] sm:$0xf]
      %v576 = vunpack.c.l.b16 %v380
      %v577 = vunpack.c.l.b16 %v390
      %v578 = vunpack.c.l.b16 %v404
      %v579 = vunpack.c.l.b16 %v414
      %v580 = vunpack.c.l.b16 %v428
      %v581 = vunpack.c.l.b16 %v438
      %v582 = vunpack.c.l.b16 %v452
      %v583 = vunpack.c.l.b16 %v462
      %v584 = vunpack.c.l.b16 %v476
      %v585 = vunpack.c.l.b16 %v486
      %v586 = vunpack.c.l.b16 %v500
      %v587 = vunpack.c.l.b16 %v510
      %v588 = vunpack.c.l.b16 %v524
      %v589 = vunpack.c.l.b16 %v534
      %v590 = vunpack.c.l.b16 %v548
      %v591 = vunpack.c.l.b16 %v558
      %v592 = vpack.c.b16 %v577, %v576
      %v593 = vpack.c.b16 %v579, %v578
      %v594 = vpack.c.b16 %v581, %v580
      %v595 = vpack.c.b16 %v583, %v582
      %v596 = vpack.c.b16 %v585, %v584
      %v597 = vpack.c.b16 %v587, %v586
      %v598 = vpack.c.b16 %v589, %v588
      %v599 = vpack.c.b16 %v591, %v590
      %v624 = vunpack.c.l.b16 %v560
      %v625 = vunpack.c.l.b16 %v561
      %v626 = vunpack.c.l.b16 %v562
      %v627 = vunpack.c.l.b16 %v563
      %v628 = vunpack.c.l.b16 %v564
      %v629 = vunpack.c.l.b16 %v565
      %v630 = vunpack.c.l.b16 %v566
      %v631 = vunpack.c.l.b16 %v567
      %v632 = vunpack.c.l.b16 %v568
      %v633 = vunpack.c.l.b16 %v569
      %v634 = vunpack.c.l.b16 %v570
      %v635 = vunpack.c.l.b16 %v571
      %v636 = vunpack.c.l.b16 %v572
      %v637 = vunpack.c.l.b16 %v573
      %v638 = vunpack.c.l.b16 %v574
      %v639 = vunpack.c.l.b16 %v575
      %v640 = vpack.c.b16 %v625, %v624
      %v641 = vpack.c.b16 %v627, %v626
      %v642 = vpack.c.b16 %v629, %v628
      %v643 = vpack.c.b16 %v631, %v630
      %v644 = vpack.c.b16 %v633, %v632
      %v645 = vpack.c.b16 %v635, %v634
      %v646 = vpack.c.b16 %v637, %v636
      %v647 = vpack.c.b16 %v639, %v638
      %656 = vmatprep.subr.bf16.mxu0 0
      %657 = vmatpush1.bf16.msra.mxu0 %v647
      %658 = vmatprep.subr.bf16.mxu0 0
      %659 = vmatpush1.bf16.msra.mxu0 %v646
      %660 = vmatprep.subr.bf16.mxu0 0
      %661 = vmatpush1.bf16.msra.mxu0 %v645
      %662 = vmatprep.subr.bf16.mxu0 0
      %663 = vmatpush1.bf16.msra.mxu0 %v644
      %664 = vmatprep.subr.bf16.mxu0 0
      %665 = vmatpush1.bf16.msra.mxu0 %v643
      %666 = vmatprep.subr.bf16.mxu0 0
      %667 = vmatpush1.bf16.msra.mxu0 %v642
      %668 = vmatprep.subr.bf16.mxu0 0
      %669 = vmatpush1.bf16.msra.mxu0 %v641
      %670 = vmatprep.subr.bf16.mxu0 0
      %671 = vmatpush1.bf16.msra.mxu0 %v640
      %672 = vmatprep.subr.bf16.mxu0 0
      %673 = vmatpush2.bf16.msra.mxu0 0
      %674 = vmatprep.subr.bf16.mxu0 0
      %675 = vmatpush2.bf16.msra.mxu0 0
      %676 = vmatprep.subr.bf16.mxu0 0
      %677 = vmatpush2.bf16.msra.mxu0 0
      %678 = vmatprep.subr.bf16.mxu0 0
      %679 = vmatpush2.bf16.msra.mxu0 0
      %680 = vmatprep.subr.bf16.mxu0 0
      %681 = vmatpush2.bf16.msra.mxu0 0
      %682 = vmatprep.subr.bf16.mxu0 0
      %683 = vmatpush2.bf16.msra.mxu0 0
      %684 = vmatprep.subr.bf16.mxu0 0
      %685 = vmatpush2.bf16.msra.mxu0 0
      %686 = vmatprep.subr.bf16.mxu0 0
      %687 = vmatpush2.bf16.msra.mxu0 0
      %688 = vmatprep.mubr.bf16.mxu0 0
      %689 = vmatmul.mubr.bf16.gmra.mxu0 %v592
      %v690 = vpop.f32.mrf.mxu0
      %v691 = vadd.f32 0.0, %v690
      %v692 = vpop.f32.mrf.mxu0
      %v693 = vpop.f32.mrf.mxu0
      %v694 = vadd.f32 0.0, %v693
      %v695 = vpop.f32.mrf.mxu0
      %696 = vmatprep.mubr.bf16.mxu0 0
      %697 = vmatmul.mubr.bf16.gmra.mxu0 %v593
      %v698 = vpop.f32.mrf.mxu0
      %v699 = vadd.f32 0.0, %v698
      %v700 = vpop.f32.mrf.mxu0
      %v701 = vpop.f32.mrf.mxu0
      %v702 = vadd.f32 0.0, %v701
      %v703 = vpop.f32.mrf.mxu0
      %704 = vmatprep.mubr.bf16.mxu0 0
      %705 = vmatmul.mubr.bf16.gmra.mxu0 %v594
      %v706 = vpop.f32.mrf.mxu0
      %v707 = vadd.f32 0.0, %v706
      %v708 = vpop.f32.mrf.mxu0
      %v709 = vpop.f32.mrf.mxu0
      %v710 = vadd.f32 0.0, %v709
      %v711 = vpop.f32.mrf.mxu0
      %712 = vmatprep.mubr.bf16.mxu0 0
      %713 = vmatmul.mubr.bf16.gmra.mxu0 %v595
      %v714 = vpop.f32.mrf.mxu0
      %v715 = vadd.f32 0.0, %v714
      %v716 = vpop.f32.mrf.mxu0
      %v717 = vpop.f32.mrf.mxu0
      %v718 = vadd.f32 0.0, %v717
      %v719 = vpop.f32.mrf.mxu0
      %720 = vmatprep.mubr.bf16.mxu0 0
      %721 = vmatmul.mubr.bf16.gmra.mxu0 %v596
      %v722 = vpop.f32.mrf.mxu0
      %v723 = vadd.f32 0.0, %v722
      %v724 = vpop.f32.mrf.mxu0
      %v725 = vpop.f32.mrf.mxu0
      %v726 = vadd.f32 0.0, %v725
      %v727 = vpop.f32.mrf.mxu0
      %728 = vmatprep.mubr.bf16.mxu0 0
      %729 = vmatmul.mubr.bf16.gmra.mxu0 %v597
      %v730 = vpop.f32.mrf.mxu0
      %v731 = vadd.f32 0.0, %v730
      %v732 = vpop.f32.mrf.mxu0
      %v733 = vpop.f32.mrf.mxu0
      %v734 = vadd.f32 0.0, %v733
      %v735 = vpop.f32.mrf.mxu0
      %736 = vmatprep.mubr.bf16.mxu0 0
      %737 = vmatmul.mubr.bf16.gmra.mxu0 %v598
      %v738 = vpop.f32.mrf.mxu0
      %v739 = vadd.f32 0.0, %v738
      %v740 = vpop.f32.mrf.mxu0
      %v741 = vpop.f32.mrf.mxu0
      %v742 = vadd.f32 0.0, %v741
      %v743 = vpop.f32.mrf.mxu0
      %744 = vmatprep.mubr.bf16.mxu0 0
      %745 = vmatmul.mubr.bf16.gmra.mxu0 %v599
      %v746 = vpop.f32.mrf.mxu0
      %v747 = vadd.f32 0.0, %v746
      %v748 = vpop.f32.mrf.mxu0
      %v749 = vpop.f32.mrf.mxu0
      %v750 = vadd.f32 0.0, %v749
      %v751 = vpop.f32.mrf.mxu0
      %752 = vdwg.mxu0
      %v769 = vunpack.c.l.b16 %v324
      %v770 = vunpack.c.l.b16 %v325
      %v771 = vunpack.c.l.b16 %v326
      %v772 = vunpack.c.l.b16 %v327
      %v773 = vunpack.c.l.b16 %v328
      %v774 = vunpack.c.l.b16 %v329
      %v775 = vunpack.c.l.b16 %v330
      %v776 = vunpack.c.l.b16 %v331
      %v777 = vunpack.c.l.b16 %v332
      %v778 = vunpack.c.l.b16 %v333
      %v779 = vunpack.c.l.b16 %v334
      %v780 = vunpack.c.l.b16 %v335
      %v781 = vunpack.c.l.b16 %v336
      %v782 = vunpack.c.l.b16 %v337
      %v783 = vunpack.c.l.b16 %v338
      %v784 = vunpack.c.l.b16 %v339
      %v785 = vpack.c.b16 %v770, %v769
      %v786 = vpack.c.b16 %v772, %v771
      %v787 = vpack.c.b16 %v774, %v773
      %v788 = vpack.c.b16 %v776, %v775
      %v789 = vpack.c.b16 %v778, %v777
      %v790 = vpack.c.b16 %v780, %v779
      %v791 = vpack.c.b16 %v782, %v781
      %v792 = vpack.c.b16 %v784, %v783
      %v817 = vunpack.c.l.b16 %v340
      %v818 = vunpack.c.l.b16 %v341
      %v819 = vunpack.c.l.b16 %v342
      %v820 = vunpack.c.l.b16 %v343
      %v821 = vunpack.c.l.b16 %v344
      %v822 = vunpack.c.l.b16 %v345
      %v823 = vunpack.c.l.b16 %v346
      %v824 = vunpack.c.l.b16 %v347
      %v825 = vunpack.c.l.b16 %v348
      %v826 = vunpack.c.l.b16 %v349
      %v827 = vunpack.c.l.b16 %v350
      %v828 = vunpack.c.l.b16 %v351
      %v829 = vunpack.c.l.b16 %v352
      %v830 = vunpack.c.l.b16 %v353
      %v831 = vunpack.c.l.b16 %v354
      %v832 = vunpack.c.l.b16 %v355
      %v833 = vpack.c.b16 %v818, %v817
      %v834 = vpack.c.b16 %v820, %v819
      %v835 = vpack.c.b16 %v822, %v821
      %v836 = vpack.c.b16 %v824, %v823
      %v837 = vpack.c.b16 %v826, %v825
      %v838 = vpack.c.b16 %v828, %v827
      %v839 = vpack.c.b16 %v830, %v829
      %v840 = vpack.c.b16 %v832, %v831
      %849 = vmatprep.subr.bf16.mxu0 0
      %850 = vmatpush1.bf16.msra.mxu0 %v840
      %851 = vmatprep.subr.bf16.mxu0 0
      %852 = vmatpush1.bf16.msra.mxu0 %v839
      %853 = vmatprep.subr.bf16.mxu0 0
      %854 = vmatpush1.bf16.msra.mxu0 %v838
      %855 = vmatprep.subr.bf16.mxu0 0
      %856 = vmatpush1.bf16.msra.mxu0 %v837
      %857 = vmatprep.subr.bf16.mxu0 0
      %858 = vmatpush1.bf16.msra.mxu0 %v836
      %859 = vmatprep.subr.bf16.mxu0 0
      %860 = vmatpush1.bf16.msra.mxu0 %v835
      %861 = vmatprep.subr.bf16.mxu0 0
      %862 = vmatpush1.bf16.msra.mxu0 %v834
      %863 = vmatprep.subr.bf16.mxu0 0
      %864 = vmatpush1.bf16.msra.mxu0 %v833
      %865 = vmatprep.subr.bf16.mxu0 0
      %866 = vmatpush2.bf16.msra.mxu0 0
      %867 = vmatprep.subr.bf16.mxu0 0
      %868 = vmatpush2.bf16.msra.mxu0 0
      %869 = vmatprep.subr.bf16.mxu0 0
      %870 = vmatpush2.bf16.msra.mxu0 0
      %871 = vmatprep.subr.bf16.mxu0 0
      %872 = vmatpush2.bf16.msra.mxu0 0
      %873 = vmatprep.subr.bf16.mxu0 0
      %874 = vmatpush2.bf16.msra.mxu0 0
      %875 = vmatprep.subr.bf16.mxu0 0
      %876 = vmatpush2.bf16.msra.mxu0 0
      %877 = vmatprep.subr.bf16.mxu0 0
      %878 = vmatpush2.bf16.msra.mxu0 0
      %879 = vmatprep.subr.bf16.mxu0 0
      %880 = vmatpush2.bf16.msra.mxu0 0
      %881 = vmatprep.mubr.bf16.mxu0 0
      %882 = vmatmul.mubr.bf16.gmra.mxu0 %v785
      %v883 = vpop.f32.mrf.mxu0
      %v884 = vadd.f32 %v691, %v883
      %v885 = vpop.f32.mrf.mxu0
      %v886 = vpop.f32.mrf.mxu0
      %v887 = vadd.f32 %v694, %v886
      %v888 = vpop.f32.mrf.mxu0
      %889 = vmatprep.mubr.bf16.mxu0 0
      %890 = vmatmul.mubr.bf16.gmra.mxu0 %v786
      %v891 = vpop.f32.mrf.mxu0
      %v892 = vadd.f32 %v699, %v891
      %v893 = vpop.f32.mrf.mxu0
      %v894 = vpop.f32.mrf.mxu0
      %v895 = vadd.f32 %v702, %v894
      %v896 = vpop.f32.mrf.mxu0
      %897 = vmatprep.mubr.bf16.mxu0 0
      %898 = vmatmul.mubr.bf16.gmra.mxu0 %v787
      %v899 = vpop.f32.mrf.mxu0
      %v900 = vadd.f32 %v707, %v899
      %v901 = vpop.f32.mrf.mxu0
      %v902 = vpop.f32.mrf.mxu0
      %v903 = vadd.f32 %v710, %v902
      %v904 = vpop.f32.mrf.mxu0
      %905 = vmatprep.mubr.bf16.mxu0 0
      %906 = vmatmul.mubr.bf16.gmra.mxu0 %v788
      %v907 = vpop.f32.mrf.mxu0
      %v908 = vadd.f32 %v715, %v907
      %v909 = vpop.f32.mrf.mxu0
      %v910 = vpop.f32.mrf.mxu0
      %v911 = vadd.f32 %v718, %v910
      %v912 = vpop.f32.mrf.mxu0
      %913 = vmatprep.mubr.bf16.mxu0 0
      %914 = vmatmul.mubr.bf16.gmra.mxu0 %v789
      %v915 = vpop.f32.mrf.mxu0
      %v916 = vadd.f32 %v723, %v915
      %v917 = vpop.f32.mrf.mxu0
      %v918 = vpop.f32.mrf.mxu0
      %v919 = vadd.f32 %v726, %v918
      %v920 = vpop.f32.mrf.mxu0
      %921 = vmatprep.mubr.bf16.mxu0 0
      %922 = vmatmul.mubr.bf16.gmra.mxu0 %v790
      %v923 = vpop.f32.mrf.mxu0
      %v924 = vadd.f32 %v731, %v923
      %v925 = vpop.f32.mrf.mxu0
      %v926 = vpop.f32.mrf.mxu0
      %v927 = vadd.f32 %v734, %v926
      %v928 = vpop.f32.mrf.mxu0
      %929 = vmatprep.mubr.bf16.mxu0 0
      %930 = vmatmul.mubr.bf16.gmra.mxu0 %v791
      %v931 = vpop.f32.mrf.mxu0
      %v932 = vadd.f32 %v739, %v931
      %v933 = vpop.f32.mrf.mxu0
      %v934 = vpop.f32.mrf.mxu0
      %v935 = vadd.f32 %v742, %v934
      %v936 = vpop.f32.mrf.mxu0
      %937 = vmatprep.mubr.bf16.mxu0 0
      %938 = vmatmul.mubr.bf16.gmra.mxu0 %v792
      %v939 = vpop.f32.mrf.mxu0
      %v940 = vadd.f32 %v747, %v939
      %v941 = vpop.f32.mrf.mxu0
      %v942 = vpop.f32.mrf.mxu0
      %v943 = vadd.f32 %v750, %v942
      %v944 = vpop.f32.mrf.mxu0
      %945 = vdwg.mxu0
      %v946 = vld [vmem:[%s323] sm:$0xe]
      %v947 = vld [vmem:[%s323 + $0xc] sm:$0xe]
      %v948 = vld [vmem:[%s323 + $0x18] sm:$0xe]
      %v949 = vld [vmem:[%s323 + $0x24] sm:$0xe]
      %v950 = vld [vmem:[%s323 + $0x30] sm:$0xe]
      %v951 = vld [vmem:[%s323 + $0x3c] sm:$0xe]
      %v952 = vld [vmem:[%s323 + $0x48] sm:$0xe]
      %v953 = vld [vmem:[%s323 + $0x54] sm:$0xe]
      %vm970 = vcmask 1042432
      %vm971 = vcmask 1046532
      %vm972 = vmor %vm970, %vm971
      %v973 = vrot.slane %v946, 5
      %v974 = vrot.slane %v973, 4
      %v975 = vrot.slane %v325, 5
      %v976 = vsel %vm972, %v974, %v975
      %v977 = vrot.slane %v975, 4
      %v978 = vrot.slane %v356, 5
      %v979 = vsel %vm972, %v977, %v978
      %v980 = vrot.slane %v947, 5
      %v981 = vrot.slane %v980, 4
      %v982 = vrot.slane %v327, 5
      %v983 = vsel %vm972, %v981, %v982
      %v984 = vrot.slane %v982, 4
      %v985 = vrot.slane %v357, 5
      %v986 = vsel %vm972, %v984, %v985
      %v987 = vrot.slane %v948, 5
      %v988 = vrot.slane %v987, 4
      %v989 = vrot.slane %v329, 5
      %v990 = vsel %vm972, %v988, %v989
      %v991 = vrot.slane %v989, 4
      %v992 = vrot.slane %v358, 5
      %v993 = vsel %vm972, %v991, %v992
      %v994 = vrot.slane %v949, 5
      %v995 = vrot.slane %v994, 4
      %v996 = vrot.slane %v331, 5
      %v997 = vsel %vm972, %v995, %v996
      %v998 = vrot.slane %v996, 4
      %v999 = vrot.slane %v359, 5
      %v1000 = vsel %vm972, %v998, %v999
      %v1001 = vrot.slane %v950, 5
      %v1002 = vrot.slane %v1001, 4
      %v1003 = vrot.slane %v333, 5
      %v1004 = vsel %vm972, %v1002, %v1003
      %v1005 = vrot.slane %v1003, 4
      %v1006 = vrot.slane %v360, 5
      %v1007 = vsel %vm972, %v1005, %v1006
      %v1008 = vrot.slane %v951, 5
      %v1009 = vrot.slane %v1008, 4
      %v1010 = vrot.slane %v335, 5
      %v1011 = vsel %vm972, %v1009, %v1010
      %v1012 = vrot.slane %v1010, 4
      %v1013 = vrot.slane %v361, 5
      %v1014 = vsel %vm972, %v1012, %v1013
      %v1015 = vrot.slane %v952, 5
      %v1016 = vrot.slane %v1015, 4
      %v1017 = vrot.slane %v337, 5
      %v1018 = vsel %vm972, %v1016, %v1017
      %v1019 = vrot.slane %v1017, 4
      %v1020 = vrot.slane %v362, 5
      %v1021 = vsel %vm972, %v1019, %v1020
      %v1022 = vrot.slane %v953, 5
      %v1023 = vrot.slane %v1022, 4
      %v1024 = vrot.slane %v339, 5
      %v1025 = vsel %vm972, %v1023, %v1024
      %v1026 = vrot.slane %v1024, 4
      %v1027 = vrot.slane %v363, 5
      %v1028 = vsel %vm972, %v1026, %v1027
      %s1029 = scalar_lea.vmem %s287, 128
      %v1030 = vld [vmem:[%s1029] sm:$0xf]
      %v1031 = vld [vmem:[%s1029 + $0x4] sm:$0xf]
      %v1032 = vld [vmem:[%s1029 + $0x8] sm:$0xf]
      %v1033 = vld [vmem:[%s1029 + $0xc] sm:$0xf]
      %v1034 = vld [vmem:[%s1029 + $0x10] sm:$0xf]
      %v1035 = vld [vmem:[%s1029 + $0x14] sm:$0xf]
      %v1036 = vld [vmem:[%s1029 + $0x18] sm:$0xf]
      %v1037 = vld [vmem:[%s1029 + $0x1c] sm:$0xf]
      %v1038 = vld [vmem:[%s1029 + $0x20] sm:$0xf]
      %v1039 = vld [vmem:[%s1029 + $0x24] sm:$0xf]
      %v1040 = vld [vmem:[%s1029 + $0x28] sm:$0xf]
      %v1041 = vld [vmem:[%s1029 + $0x2c] sm:$0xf]
      %v1042 = vld [vmem:[%s1029 + $0x30] sm:$0xf]
      %v1043 = vld [vmem:[%s1029 + $0x34] sm:$0xf]
      %v1044 = vld [vmem:[%s1029 + $0x38] sm:$0xf]
      %v1045 = vld [vmem:[%s1029 + $0x3c] sm:$0xf]
      %v1046 = vunpack.c.l.b16 %v976
      %v1047 = vunpack.c.l.b16 %v979
      %v1048 = vunpack.c.l.b16 %v983
      %v1049 = vunpack.c.l.b16 %v986
      %v1050 = vunpack.c.l.b16 %v990
      %v1051 = vunpack.c.l.b16 %v993
      %v1052 = vunpack.c.l.b16 %v997
      %v1053 = vunpack.c.l.b16 %v1000
      %v1054 = vunpack.c.l.b16 %v1004
      %v1055 = vunpack.c.l.b16 %v1007
      %v1056 = vunpack.c.l.b16 %v1011
      %v1057 = vunpack.c.l.b16 %v1014
      %v1058 = vunpack.c.l.b16 %v1018
      %v1059 = vunpack.c.l.b16 %v1021
      %v1060 = vunpack.c.l.b16 %v1025
      %v1061 = vunpack.c.l.b16 %v1028
      %v1062 = vpack.c.b16 %v1047, %v1046
      %v1063 = vpack.c.b16 %v1049, %v1048
      %v1064 = vpack.c.b16 %v1051, %v1050
      %v1065 = vpack.c.b16 %v1053, %v1052
      %v1066 = vpack.c.b16 %v1055, %v1054
      %v1067 = vpack.c.b16 %v1057, %v1056
      %v1068 = vpack.c.b16 %v1059, %v1058
      %v1069 = vpack.c.b16 %v1061, %v1060
      %v1094 = vunpack.c.l.b16 %v1030
      %v1095 = vunpack.c.l.b16 %v1031
      %v1096 = vunpack.c.l.b16 %v1032
      %v1097 = vunpack.c.l.b16 %v1033
      %v1098 = vunpack.c.l.b16 %v1034
      %v1099 = vunpack.c.l.b16 %v1035
      %v1100 = vunpack.c.l.b16 %v1036
      %v1101 = vunpack.c.l.b16 %v1037
      %v1102 = vunpack.c.l.b16 %v1038
      %v1103 = vunpack.c.l.b16 %v1039
      %v1104 = vunpack.c.l.b16 %v1040
      %v1105 = vunpack.c.l.b16 %v1041
      %v1106 = vunpack.c.l.b16 %v1042
      %v1107 = vunpack.c.l.b16 %v1043
      %v1108 = vunpack.c.l.b16 %v1044
      %v1109 = vunpack.c.l.b16 %v1045
      %v1110 = vpack.c.b16 %v1095, %v1094
      %v1111 = vpack.c.b16 %v1097, %v1096
      %v1112 = vpack.c.b16 %v1099, %v1098
      %v1113 = vpack.c.b16 %v1101, %v1100
      %v1114 = vpack.c.b16 %v1103, %v1102
      %v1115 = vpack.c.b16 %v1105, %v1104
      %v1116 = vpack.c.b16 %v1107, %v1106
      %v1117 = vpack.c.b16 %v1109, %v1108
      %1126 = vmatprep.subr.bf16.mxu0 0
      %1127 = vmatpush1.bf16.msra.mxu0 %v1117
      %1128 = vmatprep.subr.bf16.mxu0 0
      %1129 = vmatpush1.bf16.msra.mxu0 %v1116
      %1130 = vmatprep.subr.bf16.mxu0 0
      %1131 = vmatpush1.bf16.msra.mxu0 %v1115
      %1132 = vmatprep.subr.bf16.mxu0 0
      %1133 = vmatpush1.bf16.msra.mxu0 %v1114
      %1134 = vmatprep.subr.bf16.mxu0 0
      %1135 = vmatpush1.bf16.msra.mxu0 %v1113
      %1136 = vmatprep.subr.bf16.mxu0 0
      %1137 = vmatpush1.bf16.msra.mxu0 %v1112
      %1138 = vmatprep.subr.bf16.mxu0 0
      %1139 = vmatpush1.bf16.msra.mxu0 %v1111
      %1140 = vmatprep.subr.bf16.mxu0 0
      %1141 = vmatpush1.bf16.msra.mxu0 %v1110
      %1142 = vmatprep.subr.bf16.mxu0 0
      %1143 = vmatpush2.bf16.msra.mxu0 0
      %1144 = vmatprep.subr.bf16.mxu0 0
      %1145 = vmatpush2.bf16.msra.mxu0 0
      %1146 = vmatprep.subr.bf16.mxu0 0
      %1147 = vmatpush2.bf16.msra.mxu0 0
      %1148 = vmatprep.subr.bf16.mxu0 0
      %1149 = vmatpush2.bf16.msra.mxu0 0
      %1150 = vmatprep.subr.bf16.mxu0 0
      %1151 = vmatpush2.bf16.msra.mxu0 0
      %1152 = vmatprep.subr.bf16.mxu0 0
      %1153 = vmatpush2.bf16.msra.mxu0 0
      %1154 = vmatprep.subr.bf16.mxu0 0
      %1155 = vmatpush2.bf16.msra.mxu0 0
      %1156 = vmatprep.subr.bf16.mxu0 0
      %1157 = vmatpush2.bf16.msra.mxu0 0
      %1158 = vmatprep.mubr.bf16.mxu0 0
      %1159 = vmatmul.mubr.bf16.gmra.mxu0 %v1062
      %v1160 = vpop.f32.mrf.mxu0
      %v1161 = vadd.f32 0.0, %v1160
      %v1162 = vpop.f32.mrf.mxu0
      %v1163 = vpop.f32.mrf.mxu0
      %v1164 = vadd.f32 0.0, %v1163
      %v1165 = vpop.f32.mrf.mxu0
      %1166 = vmatprep.mubr.bf16.mxu0 0
      %1167 = vmatmul.mubr.bf16.gmra.mxu0 %v1063
      %v1168 = vpop.f32.mrf.mxu0
      %v1169 = vadd.f32 0.0, %v1168
      %v1170 = vpop.f32.mrf.mxu0
      %v1171 = vpop.f32.mrf.mxu0
      %v1172 = vadd.f32 0.0, %v1171
      %v1173 = vpop.f32.mrf.mxu0
      %1174 = vmatprep.mubr.bf16.mxu0 0
      %1175 = vmatmul.mubr.bf16.gmra.mxu0 %v1064
      %v1176 = vpop.f32.mrf.mxu0
      %v1177 = vadd.f32 0.0, %v1176
      %v1178 = vpop.f32.mrf.mxu0
      %v1179 = vpop.f32.mrf.mxu0
      %v1180 = vadd.f32 0.0, %v1179
      %v1181 = vpop.f32.mrf.mxu0
      %1182 = vmatprep.mubr.bf16.mxu0 0
      %1183 = vmatmul.mubr.bf16.gmra.mxu0 %v1065
      %v1184 = vpop.f32.mrf.mxu0
      %v1185 = vadd.f32 0.0, %v1184
      %v1186 = vpop.f32.mrf.mxu0
      %v1187 = vpop.f32.mrf.mxu0
      %v1188 = vadd.f32 0.0, %v1187
      %v1189 = vpop.f32.mrf.mxu0
      %1190 = vmatprep.mubr.bf16.mxu0 0
      %1191 = vmatmul.mubr.bf16.gmra.mxu0 %v1066
      %v1192 = vpop.f32.mrf.mxu0
      %v1193 = vadd.f32 0.0, %v1192
      %v1194 = vpop.f32.mrf.mxu0
      %v1195 = vpop.f32.mrf.mxu0
      %v1196 = vadd.f32 0.0, %v1195
      %v1197 = vpop.f32.mrf.mxu0
      %1198 = vmatprep.mubr.bf16.mxu0 0
      %1199 = vmatmul.mubr.bf16.gmra.mxu0 %v1067
      %v1200 = vpop.f32.mrf.mxu0
      %v1201 = vadd.f32 0.0, %v1200
      %v1202 = vpop.f32.mrf.mxu0
      %v1203 = vpop.f32.mrf.mxu0
      %v1204 = vadd.f32 0.0, %v1203
      %v1205 = vpop.f32.mrf.mxu0
      %1206 = vmatprep.mubr.bf16.mxu0 0
      %1207 = vmatmul.mubr.bf16.gmra.mxu0 %v1068
      %v1208 = vpop.f32.mrf.mxu0
      %v1209 = vadd.f32 0.0, %v1208
      %v1210 = vpop.f32.mrf.mxu0
      %v1211 = vpop.f32.mrf.mxu0
      %v1212 = vadd.f32 0.0, %v1211
      %v1213 = vpop.f32.mrf.mxu0
      %1214 = vmatprep.mubr.bf16.mxu0 0
      %1215 = vmatmul.mubr.bf16.gmra.mxu0 %v1069
      %v1216 = vpop.f32.mrf.mxu0
      %v1217 = vadd.f32 0.0, %v1216
      %v1218 = vpop.f32.mrf.mxu0
      %v1219 = vpop.f32.mrf.mxu0
      %v1220 = vadd.f32 0.0, %v1219
      %v1221 = vpop.f32.mrf.mxu0
      %1222 = vdwg.mxu0
      %v1223 = vadd.f32 %v884, %v1161
      %v1224 = vadd.f32 %v887, %v1164
      %v1225 = vadd.f32 %v892, %v1169
      %v1226 = vadd.f32 %v895, %v1172
      %v1227 = vadd.f32 %v900, %v1177
      %v1228 = vadd.f32 %v903, %v1180
      %v1229 = vadd.f32 %v908, %v1185
      %v1230 = vadd.f32 %v911, %v1188
      %v1231 = vadd.f32 %v916, %v1193
      %v1232 = vadd.f32 %v919, %v1196
      %v1233 = vadd.f32 %v924, %v1201
      %v1234 = vadd.f32 %v927, %v1204
      %v1235 = vadd.f32 %v932, %v1209
      %v1236 = vadd.f32 %v935, %v1212
      %v1237 = vadd.f32 %v940, %v1217
      %v1238 = vadd.f32 %v943, %v1220
      %s1239 = sadd.s32 %s320, 1
      %s1240 = smul.u32 %s1239, 3
      %s1241 = smul.addr %s1240, 4
      %s1242 = scalar_lea.vmem %s283, %s1241
      %v1243 = vld [vmem:[%s1242] sm:$0xf]
      %v1244 = vld [vmem:[%s1242 + $0x4] sm:$0xf]
      %v1245 = vld [vmem:[%s1242 + $0xc] sm:$0xf]
      %v1246 = vld [vmem:[%s1242 + $0x10] sm:$0xf]
      %v1247 = vld [vmem:[%s1242 + $0x18] sm:$0xf]
      %v1248 = vld [vmem:[%s1242 + $0x1c] sm:$0xf]
      %v1249 = vld [vmem:[%s1242 + $0x24] sm:$0xf]
      %v1250 = vld [vmem:[%s1242 + $0x28] sm:$0xf]
      %v1251 = vld [vmem:[%s1242 + $0x30] sm:$0xf]
      %v1252 = vld [vmem:[%s1242 + $0x34] sm:$0xf]
      %v1253 = vld [vmem:[%s1242 + $0x3c] sm:$0xf]
      %v1254 = vld [vmem:[%s1242 + $0x40] sm:$0xf]
      %v1255 = vld [vmem:[%s1242 + $0x48] sm:$0xf]
      %v1256 = vld [vmem:[%s1242 + $0x4c] sm:$0xf]
      %v1257 = vld [vmem:[%s1242 + $0x54] sm:$0xf]
      %v1258 = vld [vmem:[%s1242 + $0x58] sm:$0xf]
      %s1259 = scalar_lea.vmem %s287, 192
      %v1260 = vld [vmem:[%s1259] sm:$0xf]
      %v1261 = vld [vmem:[%s1259 + $0x4] sm:$0xf]
      %v1262 = vld [vmem:[%s1259 + $0x8] sm:$0xf]
      %v1263 = vld [vmem:[%s1259 + $0xc] sm:$0xf]
      %v1264 = vld [vmem:[%s1259 + $0x10] sm:$0xf]
      %v1265 = vld [vmem:[%s1259 + $0x14] sm:$0xf]
      %v1266 = vld [vmem:[%s1259 + $0x18] sm:$0xf]
      %v1267 = vld [vmem:[%s1259 + $0x1c] sm:$0xf]
      %v1268 = vld [vmem:[%s1259 + $0x20] sm:$0xf]
      %v1269 = vld [vmem:[%s1259 + $0x24] sm:$0xf]
      %v1270 = vld [vmem:[%s1259 + $0x28] sm:$0xf]
      %v1271 = vld [vmem:[%s1259 + $0x2c] sm:$0xf]
      %v1272 = vld [vmem:[%s1259 + $0x30] sm:$0xf]
      %v1273 = vld [vmem:[%s1259 + $0x34] sm:$0xf]
      %v1274 = vld [vmem:[%s1259 + $0x38] sm:$0xf]
      %v1275 = vld [vmem:[%s1259 + $0x3c] sm:$0xf]
      %v1292 = vunpack.c.l.b16 %v1243
      %v1293 = vunpack.c.l.b16 %v1244
      %v1294 = vunpack.c.l.b16 %v1245
      %v1295 = vunpack.c.l.b16 %v1246
      %v1296 = vunpack.c.l.b16 %v1247
      %v1297 = vunpack.c.l.b16 %v1248
      %v1298 = vunpack.c.l.b16 %v1249
      %v1299 = vunpack.c.l.b16 %v1250
      %v1300 = vunpack.c.l.b16 %v1251
      %v1301 = vunpack.c.l.b16 %v1252
      %v1302 = vunpack.c.l.b16 %v1253
      %v1303 = vunpack.c.l.b16 %v1254
      %v1304 = vunpack.c.l.b16 %v1255
      %v1305 = vunpack.c.l.b16 %v1256
      %v1306 = vunpack.c.l.b16 %v1257
      %v1307 = vunpack.c.l.b16 %v1258
      %v1308 = vpack.c.b16 %v1293, %v1292
      %v1309 = vpack.c.b16 %v1295, %v1294
      %v1310 = vpack.c.b16 %v1297, %v1296
      %v1311 = vpack.c.b16 %v1299, %v1298
      %v1312 = vpack.c.b16 %v1301, %v1300
      %v1313 = vpack.c.b16 %v1303, %v1302
      %v1314 = vpack.c.b16 %v1305, %v1304
      %v1315 = vpack.c.b16 %v1307, %v1306
      %v1340 = vunpack.c.l.b16 %v1260
      %v1341 = vunpack.c.l.b16 %v1261
      %v1342 = vunpack.c.l.b16 %v1262
      %v1343 = vunpack.c.l.b16 %v1263
      %v1344 = vunpack.c.l.b16 %v1264
      %v1345 = vunpack.c.l.b16 %v1265
      %v1346 = vunpack.c.l.b16 %v1266
      %v1347 = vunpack.c.l.b16 %v1267
      %v1348 = vunpack.c.l.b16 %v1268
      %v1349 = vunpack.c.l.b16 %v1269
      %v1350 = vunpack.c.l.b16 %v1270
      %v1351 = vunpack.c.l.b16 %v1271
      %v1352 = vunpack.c.l.b16 %v1272
      %v1353 = vunpack.c.l.b16 %v1273
      %v1354 = vunpack.c.l.b16 %v1274
      %v1355 = vunpack.c.l.b16 %v1275
      %v1356 = vpack.c.b16 %v1341, %v1340
      %v1357 = vpack.c.b16 %v1343, %v1342
      %v1358 = vpack.c.b16 %v1345, %v1344
      %v1359 = vpack.c.b16 %v1347, %v1346
      %v1360 = vpack.c.b16 %v1349, %v1348
      %v1361 = vpack.c.b16 %v1351, %v1350
      %v1362 = vpack.c.b16 %v1353, %v1352
      %v1363 = vpack.c.b16 %v1355, %v1354
      %1372 = vmatprep.subr.bf16.mxu0 0
      %1373 = vmatpush1.bf16.msra.mxu0 %v1363
      %1374 = vmatprep.subr.bf16.mxu0 0
      %1375 = vmatpush1.bf16.msra.mxu0 %v1362
      %1376 = vmatprep.subr.bf16.mxu0 0
      %1377 = vmatpush1.bf16.msra.mxu0 %v1361
      %1378 = vmatprep.subr.bf16.mxu0 0
      %1379 = vmatpush1.bf16.msra.mxu0 %v1360
      %1380 = vmatprep.subr.bf16.mxu0 0
      %1381 = vmatpush1.bf16.msra.mxu0 %v1359
      %1382 = vmatprep.subr.bf16.mxu0 0
      %1383 = vmatpush1.bf16.msra.mxu0 %v1358
      %1384 = vmatprep.subr.bf16.mxu0 0
      %1385 = vmatpush1.bf16.msra.mxu0 %v1357
      %1386 = vmatprep.subr.bf16.mxu0 0
      %1387 = vmatpush1.bf16.msra.mxu0 %v1356
      %1388 = vmatprep.subr.bf16.mxu0 0
      %1389 = vmatpush2.bf16.msra.mxu0 0
      %1390 = vmatprep.subr.bf16.mxu0 0
      %1391 = vmatpush2.bf16.msra.mxu0 0
      %1392 = vmatprep.subr.bf16.mxu0 0
      %1393 = vmatpush2.bf16.msra.mxu0 0
      %1394 = vmatprep.subr.bf16.mxu0 0
      %1395 = vmatpush2.bf16.msra.mxu0 0
      %1396 = vmatprep.subr.bf16.mxu0 0
      %1397 = vmatpush2.bf16.msra.mxu0 0
      %1398 = vmatprep.subr.bf16.mxu0 0
      %1399 = vmatpush2.bf16.msra.mxu0 0
      %1400 = vmatprep.subr.bf16.mxu0 0
      %1401 = vmatpush2.bf16.msra.mxu0 0
      %1402 = vmatprep.subr.bf16.mxu0 0
      %1403 = vmatpush2.bf16.msra.mxu0 0
      %1404 = vmatprep.mubr.bf16.mxu0 0
      %1405 = vmatmul.mubr.bf16.gmra.mxu0 %v1308
      %v1406 = vpop.f32.mrf.mxu0
      %v1407 = vadd.f32 0.0, %v1406
      %v1408 = vpop.f32.mrf.mxu0
      %v1409 = vpop.f32.mrf.mxu0
      %v1410 = vadd.f32 0.0, %v1409
      %v1411 = vpop.f32.mrf.mxu0
      %1412 = vmatprep.mubr.bf16.mxu0 0
      %1413 = vmatmul.mubr.bf16.gmra.mxu0 %v1309
      %v1414 = vpop.f32.mrf.mxu0
      %v1415 = vadd.f32 0.0, %v1414
      %v1416 = vpop.f32.mrf.mxu0
      %v1417 = vpop.f32.mrf.mxu0
      %v1418 = vadd.f32 0.0, %v1417
      %v1419 = vpop.f32.mrf.mxu0
      %1420 = vmatprep.mubr.bf16.mxu0 0
      %1421 = vmatmul.mubr.bf16.gmra.mxu0 %v1310
      %v1422 = vpop.f32.mrf.mxu0
      %v1423 = vadd.f32 0.0, %v1422
      %v1424 = vpop.f32.mrf.mxu0
      %v1425 = vpop.f32.mrf.mxu0
      %v1426 = vadd.f32 0.0, %v1425
      %v1427 = vpop.f32.mrf.mxu0
      %1428 = vmatprep.mubr.bf16.mxu0 0
      %1429 = vmatmul.mubr.bf16.gmra.mxu0 %v1311
      %v1430 = vpop.f32.mrf.mxu0
      %v1431 = vadd.f32 0.0, %v1430
      %v1432 = vpop.f32.mrf.mxu0
      %v1433 = vpop.f32.mrf.mxu0
      %v1434 = vadd.f32 0.0, %v1433
      %v1435 = vpop.f32.mrf.mxu0
      %1436 = vmatprep.mubr.bf16.mxu0 0
      %1437 = vmatmul.mubr.bf16.gmra.mxu0 %v1312
      %v1438 = vpop.f32.mrf.mxu0
      %v1439 = vadd.f32 0.0, %v1438
      %v1440 = vpop.f32.mrf.mxu0
      %v1441 = vpop.f32.mrf.mxu0
      %v1442 = vadd.f32 0.0, %v1441
      %v1443 = vpop.f32.mrf.mxu0
      %1444 = vmatprep.mubr.bf16.mxu0 0
      %1445 = vmatmul.mubr.bf16.gmra.mxu0 %v1313
      %v1446 = vpop.f32.mrf.mxu0
      %v1447 = vadd.f32 0.0, %v1446
      %v1448 = vpop.f32.mrf.mxu0
      %v1449 = vpop.f32.mrf.mxu0
      %v1450 = vadd.f32 0.0, %v1449
      %v1451 = vpop.f32.mrf.mxu0
      %1452 = vmatprep.mubr.bf16.mxu0 0
      %1453 = vmatmul.mubr.bf16.gmra.mxu0 %v1314
      %v1454 = vpop.f32.mrf.mxu0
      %v1455 = vadd.f32 0.0, %v1454
      %v1456 = vpop.f32.mrf.mxu0
      %v1457 = vpop.f32.mrf.mxu0
      %v1458 = vadd.f32 0.0, %v1457
      %v1459 = vpop.f32.mrf.mxu0
      %1460 = vmatprep.mubr.bf16.mxu0 0
      %1461 = vmatmul.mubr.bf16.gmra.mxu0 %v1315
      %v1462 = vpop.f32.mrf.mxu0
      %v1463 = vadd.f32 0.0, %v1462
      %v1464 = vpop.f32.mrf.mxu0
      %v1465 = vpop.f32.mrf.mxu0
      %v1466 = vadd.f32 0.0, %v1465
      %v1467 = vpop.f32.mrf.mxu0
      %1468 = vdwg.mxu0
      %v1469 = vadd.f32 %v1223, %v1407
      %v1470 = vadd.f32 %v1224, %v1410
      %v1471 = vadd.f32 %v1225, %v1415
      %v1472 = vadd.f32 %v1226, %v1418
      %v1473 = vadd.f32 %v1227, %v1423
      %v1474 = vadd.f32 %v1228, %v1426
      %v1475 = vadd.f32 %v1229, %v1431
      %v1476 = vadd.f32 %v1230, %v1434
      %v1477 = vadd.f32 %v1231, %v1439
      %v1478 = vadd.f32 %v1232, %v1442
      %v1479 = vadd.f32 %v1233, %v1447
      %v1480 = vadd.f32 %v1234, %v1450
      %v1481 = vadd.f32 %v1235, %v1455
      %v1482 = vadd.f32 %v1236, %v1458
      %v1483 = vadd.f32 %v1237, %v1463
      %v1484 = vadd.f32 %v1238, %v1466
      %v1485 = vld [vmem:[%s1242] sm:$0xf]
      %v1486 = vld [vmem:[%s1242 + $0x4] sm:$0xf]
      %v1487 = vld [vmem:[%s1242 + $0x8] sm:$0x1]
      %v1488 = vld [vmem:[%s1242 + $0xc] sm:$0xf]
      %v1489 = vld [vmem:[%s1242 + $0x10] sm:$0xf]
      %v1490 = vld [vmem:[%s1242 + $0x14] sm:$0x1]
      %v1491 = vld [vmem:[%s1242 + $0x18] sm:$0xf]
      %v1492 = vld [vmem:[%s1242 + $0x1c] sm:$0xf]
      %v1493 = vld [vmem:[%s1242 + $0x20] sm:$0x1]
      %v1494 = vld [vmem:[%s1242 + $0x24] sm:$0xf]
      %v1495 = vld [vmem:[%s1242 + $0x28] sm:$0xf]
      %v1496 = vld [vmem:[%s1242 + $0x2c] sm:$0x1]
      %v1497 = vld [vmem:[%s1242 + $0x30] sm:$0xf]
      %v1498 = vld [vmem:[%s1242 + $0x34] sm:$0xf]
      %v1499 = vld [vmem:[%s1242 + $0x38] sm:$0x1]
      %v1500 = vld [vmem:[%s1242 + $0x3c] sm:$0xf]
      %v1501 = vld [vmem:[%s1242 + $0x40] sm:$0xf]
      %v1502 = vld [vmem:[%s1242 + $0x44] sm:$0x1]
      %v1503 = vld [vmem:[%s1242 + $0x48] sm:$0xf]
      %v1504 = vld [vmem:[%s1242 + $0x4c] sm:$0xf]
      %v1505 = vld [vmem:[%s1242 + $0x50] sm:$0x1]
      %v1506 = vld [vmem:[%s1242 + $0x54] sm:$0xf]
      %v1507 = vld [vmem:[%s1242 + $0x58] sm:$0xf]
      %v1508 = vld [vmem:[%s1242 + $0x5c] sm:$0x1]
      %v1510 = vshrl.u32 %v1485, 16
      %v1512 = vrot.slane %v1510, 4
      %v1513 = vshll.u32 %v1485, 16
      %v1515 = vrot.slane %v1513, 5
      %v1516 = vor.u32 %v1512, %v1515
      %v1517 = vrot.slane %v1516, 4
      %v1519 = vshll.u32 %v1486, 16
      %v1521 = vrot.slane %v1519, 5
      %v1522 = vsel %vm366, %v1517, %v1521
      %v1523 = vshrl.u32 %v1486, 16
      %v1525 = vrot.slane %v1523, 4
      %v1526 = vor.u32 %v1525, %v1521
      %v1527 = vrot.slane %v1526, 4
      %v1529 = vshll.u32 %v1487, 16
      %v1531 = vrot.slane %v1529, 5
      %v1532 = vsel %vm366, %v1527, %v1531
      %v1534 = vshrl.u32 %v1488, 16
      %v1536 = vrot.slane %v1534, 4
      %v1537 = vshll.u32 %v1488, 16
      %v1539 = vrot.slane %v1537, 5
      %v1540 = vor.u32 %v1536, %v1539
      %v1541 = vrot.slane %v1540, 4
      %v1543 = vshll.u32 %v1489, 16
      %v1545 = vrot.slane %v1543, 5
      %v1546 = vsel %vm366, %v1541, %v1545
      %v1547 = vshrl.u32 %v1489, 16
      %v1549 = vrot.slane %v1547, 4
      %v1550 = vor.u32 %v1549, %v1545
      %v1551 = vrot.slane %v1550, 4
      %v1553 = vshll.u32 %v1490, 16
      %v1555 = vrot.slane %v1553, 5
      %v1556 = vsel %vm366, %v1551, %v1555
      %v1558 = vshrl.u32 %v1491, 16
      %v1560 = vrot.slane %v1558, 4
      %v1561 = vshll.u32 %v1491, 16
      %v1563 = vrot.slane %v1561, 5
      %v1564 = vor.u32 %v1560, %v1563
      %v1565 = vrot.slane %v1564, 4
      %v1567 = vshll.u32 %v1492, 16
      %v1569 = vrot.slane %v1567, 5
      %v1570 = vsel %vm366, %v1565, %v1569
      %v1571 = vshrl.u32 %v1492, 16
      %v1573 = vrot.slane %v1571, 4
      %v1574 = vor.u32 %v1573, %v1569
      %v1575 = vrot.slane %v1574, 4
      %v1577 = vshll.u32 %v1493, 16
      %v1579 = vrot.slane %v1577, 5
      %v1580 = vsel %vm366, %v1575, %v1579
      %v1582 = vshrl.u32 %v1494, 16
      %v1584 = vrot.slane %v1582, 4
      %v1585 = vshll.u32 %v1494, 16
      %v1587 = vrot.slane %v1585, 5
      %v1588 = vor.u32 %v1584, %v1587
      %v1589 = vrot.slane %v1588, 4
      %v1591 = vshll.u32 %v1495, 16
      %v1593 = vrot.slane %v1591, 5
      %v1594 = vsel %vm366, %v1589, %v1593
      %v1595 = vshrl.u32 %v1495, 16
      %v1597 = vrot.slane %v1595, 4
      %v1598 = vor.u32 %v1597, %v1593
      %v1599 = vrot.slane %v1598, 4
      %v1601 = vshll.u32 %v1496, 16
      %v1603 = vrot.slane %v1601, 5
      %v1604 = vsel %vm366, %v1599, %v1603
      %v1606 = vshrl.u32 %v1497, 16
      %v1608 = vrot.slane %v1606, 4
      %v1609 = vshll.u32 %v1497, 16
      %v1611 = vrot.slane %v1609, 5
      %v1612 = vor.u32 %v1608, %v1611
      %v1613 = vrot.slane %v1612, 4
      %v1615 = vshll.u32 %v1498, 16
      %v1617 = vrot.slane %v1615, 5
      %v1618 = vsel %vm366, %v1613, %v1617
      %v1619 = vshrl.u32 %v1498, 16
      %v1621 = vrot.slane %v1619, 4
      %v1622 = vor.u32 %v1621, %v1617
      %v1623 = vrot.slane %v1622, 4
      %v1625 = vshll.u32 %v1499, 16
      %v1627 = vrot.slane %v1625, 5
      %v1628 = vsel %vm366, %v1623, %v1627
      %v1630 = vshrl.u32 %v1500, 16
      %v1632 = vrot.slane %v1630, 4
      %v1633 = vshll.u32 %v1500, 16
      %v1635 = vrot.slane %v1633, 5
      %v1636 = vor.u32 %v1632, %v1635
      %v1637 = vrot.slane %v1636, 4
      %v1639 = vshll.u32 %v1501, 16
      %v1641 = vrot.slane %v1639, 5
      %v1642 = vsel %vm366, %v1637, %v1641
      %v1643 = vshrl.u32 %v1501, 16
      %v1645 = vrot.slane %v1643, 4
      %v1646 = vor.u32 %v1645, %v1641
      %v1647 = vrot.slane %v1646, 4
      %v1649 = vshll.u32 %v1502, 16
      %v1651 = vrot.slane %v1649, 5
      %v1652 = vsel %vm366, %v1647, %v1651
      %v1654 = vshrl.u32 %v1503, 16
      %v1656 = vrot.slane %v1654, 4
      %v1657 = vshll.u32 %v1503, 16
      %v1659 = vrot.slane %v1657, 5
      %v1660 = vor.u32 %v1656, %v1659
      %v1661 = vrot.slane %v1660, 4
      %v1663 = vshll.u32 %v1504, 16
      %v1665 = vrot.slane %v1663, 5
      %v1666 = vsel %vm366, %v1661, %v1665
      %v1667 = vshrl.u32 %v1504, 16
      %v1669 = vrot.slane %v1667, 4
      %v1670 = vor.u32 %v1669, %v1665
      %v1671 = vrot.slane %v1670, 4
      %v1673 = vshll.u32 %v1505, 16
      %v1675 = vrot.slane %v1673, 5
      %v1676 = vsel %vm366, %v1671, %v1675
      %v1678 = vshrl.u32 %v1506, 16
      %v1680 = vrot.slane %v1678, 4
      %v1681 = vshll.u32 %v1506, 16
      %v1683 = vrot.slane %v1681, 5
      %v1684 = vor.u32 %v1680, %v1683
      %v1685 = vrot.slane %v1684, 4
      %v1687 = vshll.u32 %v1507, 16
      %v1689 = vrot.slane %v1687, 5
      %v1690 = vsel %vm366, %v1685, %v1689
      %v1691 = vshrl.u32 %v1507, 16
      %v1693 = vrot.slane %v1691, 4
      %v1694 = vor.u32 %v1693, %v1689
      %v1695 = vrot.slane %v1694, 4
      %v1697 = vshll.u32 %v1508, 16
      %v1699 = vrot.slane %v1697, 5
      %v1700 = vsel %vm366, %v1695, %v1699
      %s1701 = scalar_lea.vmem %s287, 256
      %v1702 = vld [vmem:[%s1701] sm:$0xf]
      %v1703 = vld [vmem:[%s1701 + $0x4] sm:$0xf]
      %v1704 = vld [vmem:[%s1701 + $0x8] sm:$0xf]
      %v1705 = vld [vmem:[%s1701 + $0xc] sm:$0xf]
      %v1706 = vld [vmem:[%s1701 + $0x10] sm:$0xf]
      %v1707 = vld [vmem:[%s1701 + $0x14] sm:$0xf]
      %v1708 = vld [vmem:[%s1701 + $0x18] sm:$0xf]
      %v1709 = vld [vmem:[%s1701 + $0x1c] sm:$0xf]
      %v1710 = vld [vmem:[%s1701 + $0x20] sm:$0xf]
      %v1711 = vld [vmem:[%s1701 + $0x24] sm:$0xf]
      %v1712 = vld [vmem:[%s1701 + $0x28] sm:$0xf]
      %v1713 = vld [vmem:[%s1701 + $0x2c] sm:$0xf]
      %v1714 = vld [vmem:[%s1701 + $0x30] sm:$0xf]
      %v1715 = vld [vmem:[%s1701 + $0x34] sm:$0xf]
      %v1716 = vld [vmem:[%s1701 + $0x38] sm:$0xf]
      %v1717 = vld [vmem:[%s1701 + $0x3c] sm:$0xf]
      %v1718 = vunpack.c.l.b16 %v1522
      %v1719 = vunpack.c.l.b16 %v1532
      %v1720 = vunpack.c.l.b16 %v1546
      %v1721 = vunpack.c.l.b16 %v1556
      %v1722 = vunpack.c.l.b16 %v1570
      %v1723 = vunpack.c.l.b16 %v1580
      %v1724 = vunpack.c.l.b16 %v1594
      %v1725 = vunpack.c.l.b16 %v1604
      %v1726 = vunpack.c.l.b16 %v1618
      %v1727 = vunpack.c.l.b16 %v1628
      %v1728 = vunpack.c.l.b16 %v1642
      %v1729 = vunpack.c.l.b16 %v1652
      %v1730 = vunpack.c.l.b16 %v1666
      %v1731 = vunpack.c.l.b16 %v1676
      %v1732 = vunpack.c.l.b16 %v1690
      %v1733 = vunpack.c.l.b16 %v1700
      %v1734 = vpack.c.b16 %v1719, %v1718
      %v1735 = vpack.c.b16 %v1721, %v1720
      %v1736 = vpack.c.b16 %v1723, %v1722
      %v1737 = vpack.c.b16 %v1725, %v1724
      %v1738 = vpack.c.b16 %v1727, %v1726
      %v1739 = vpack.c.b16 %v1729, %v1728
      %v1740 = vpack.c.b16 %v1731, %v1730
      %v1741 = vpack.c.b16 %v1733, %v1732
      %v1766 = vunpack.c.l.b16 %v1702
      %v1767 = vunpack.c.l.b16 %v1703
      %v1768 = vunpack.c.l.b16 %v1704
      %v1769 = vunpack.c.l.b16 %v1705
      %v1770 = vunpack.c.l.b16 %v1706
      %v1771 = vunpack.c.l.b16 %v1707
      %v1772 = vunpack.c.l.b16 %v1708
      %v1773 = vunpack.c.l.b16 %v1709
      %v1774 = vunpack.c.l.b16 %v1710
      %v1775 = vunpack.c.l.b16 %v1711
      %v1776 = vunpack.c.l.b16 %v1712
      %v1777 = vunpack.c.l.b16 %v1713
      %v1778 = vunpack.c.l.b16 %v1714
      %v1779 = vunpack.c.l.b16 %v1715
      %v1780 = vunpack.c.l.b16 %v1716
      %v1781 = vunpack.c.l.b16 %v1717
      %v1782 = vpack.c.b16 %v1767, %v1766
      %v1783 = vpack.c.b16 %v1769, %v1768
      %v1784 = vpack.c.b16 %v1771, %v1770
      %v1785 = vpack.c.b16 %v1773, %v1772
      %v1786 = vpack.c.b16 %v1775, %v1774
      %v1787 = vpack.c.b16 %v1777, %v1776
      %v1788 = vpack.c.b16 %v1779, %v1778
      %v1789 = vpack.c.b16 %v1781, %v1780
      %1798 = vmatprep.subr.bf16.mxu0 0
      %1799 = vmatpush1.bf16.msra.mxu0 %v1789
      %1800 = vmatprep.subr.bf16.mxu0 0
      %1801 = vmatpush1.bf16.msra.mxu0 %v1788
      %1802 = vmatprep.subr.bf16.mxu0 0
      %1803 = vmatpush1.bf16.msra.mxu0 %v1787
      %1804 = vmatprep.subr.bf16.mxu0 0
      %1805 = vmatpush1.bf16.msra.mxu0 %v1786
      %1806 = vmatprep.subr.bf16.mxu0 0
      %1807 = vmatpush1.bf16.msra.mxu0 %v1785
      %1808 = vmatprep.subr.bf16.mxu0 0
      %1809 = vmatpush1.bf16.msra.mxu0 %v1784
      %1810 = vmatprep.subr.bf16.mxu0 0
      %1811 = vmatpush1.bf16.msra.mxu0 %v1783
      %1812 = vmatprep.subr.bf16.mxu0 0
      %1813 = vmatpush1.bf16.msra.mxu0 %v1782
      %1814 = vmatprep.subr.bf16.mxu0 0
      %1815 = vmatpush2.bf16.msra.mxu0 0
      %1816 = vmatprep.subr.bf16.mxu0 0
      %1817 = vmatpush2.bf16.msra.mxu0 0
      %1818 = vmatprep.subr.bf16.mxu0 0
      %1819 = vmatpush2.bf16.msra.mxu0 0
      %1820 = vmatprep.subr.bf16.mxu0 0
      %1821 = vmatpush2.bf16.msra.mxu0 0
      %1822 = vmatprep.subr.bf16.mxu0 0
      %1823 = vmatpush2.bf16.msra.mxu0 0
      %1824 = vmatprep.subr.bf16.mxu0 0
      %1825 = vmatpush2.bf16.msra.mxu0 0
      %1826 = vmatprep.subr.bf16.mxu0 0
      %1827 = vmatpush2.bf16.msra.mxu0 0
      %1828 = vmatprep.subr.bf16.mxu0 0
      %1829 = vmatpush2.bf16.msra.mxu0 0
      %1830 = vmatprep.mubr.bf16.mxu0 0
      %1831 = vmatmul.mubr.bf16.gmra.mxu0 %v1734
      %v1832 = vpop.f32.mrf.mxu0
      %v1833 = vadd.f32 0.0, %v1832
      %v1834 = vpop.f32.mrf.mxu0
      %v1835 = vpop.f32.mrf.mxu0
      %v1836 = vadd.f32 0.0, %v1835
      %v1837 = vpop.f32.mrf.mxu0
      %1838 = vmatprep.mubr.bf16.mxu0 0
      %1839 = vmatmul.mubr.bf16.gmra.mxu0 %v1735
      %v1840 = vpop.f32.mrf.mxu0
      %v1841 = vadd.f32 0.0, %v1840
      %v1842 = vpop.f32.mrf.mxu0
      %v1843 = vpop.f32.mrf.mxu0
      %v1844 = vadd.f32 0.0, %v1843
      %v1845 = vpop.f32.mrf.mxu0
      %1846 = vmatprep.mubr.bf16.mxu0 0
      %1847 = vmatmul.mubr.bf16.gmra.mxu0 %v1736
      %v1848 = vpop.f32.mrf.mxu0
      %v1849 = vadd.f32 0.0, %v1848
      %v1850 = vpop.f32.mrf.mxu0
      %v1851 = vpop.f32.mrf.mxu0
      %v1852 = vadd.f32 0.0, %v1851
      %v1853 = vpop.f32.mrf.mxu0
      %1854 = vmatprep.mubr.bf16.mxu0 0
      %1855 = vmatmul.mubr.bf16.gmra.mxu0 %v1737
      %v1856 = vpop.f32.mrf.mxu0
      %v1857 = vadd.f32 0.0, %v1856
      %v1858 = vpop.f32.mrf.mxu0
      %v1859 = vpop.f32.mrf.mxu0
      %v1860 = vadd.f32 0.0, %v1859
      %v1861 = vpop.f32.mrf.mxu0
      %1862 = vmatprep.mubr.bf16.mxu0 0
      %1863 = vmatmul.mubr.bf16.gmra.mxu0 %v1738
      %v1864 = vpop.f32.mrf.mxu0
      %v1865 = vadd.f32 0.0, %v1864
      %v1866 = vpop.f32.mrf.mxu0
      %v1867 = vpop.f32.mrf.mxu0
      %v1868 = vadd.f32 0.0, %v1867
      %v1869 = vpop.f32.mrf.mxu0
      %1870 = vmatprep.mubr.bf16.mxu0 0
      %1871 = vmatmul.mubr.bf16.gmra.mxu0 %v1739
      %v1872 = vpop.f32.mrf.mxu0
      %v1873 = vadd.f32 0.0, %v1872
      %v1874 = vpop.f32.mrf.mxu0
      %v1875 = vpop.f32.mrf.mxu0
      %v1876 = vadd.f32 0.0, %v1875
      %v1877 = vpop.f32.mrf.mxu0
      %1878 = vmatprep.mubr.bf16.mxu0 0
      %1879 = vmatmul.mubr.bf16.gmra.mxu0 %v1740
      %v1880 = vpop.f32.mrf.mxu0
      %v1881 = vadd.f32 0.0, %v1880
      %v1882 = vpop.f32.mrf.mxu0
      %v1883 = vpop.f32.mrf.mxu0
      %v1884 = vadd.f32 0.0, %v1883
      %v1885 = vpop.f32.mrf.mxu0
      %1886 = vmatprep.mubr.bf16.mxu0 0
      %1887 = vmatmul.mubr.bf16.gmra.mxu0 %v1741
      %v1888 = vpop.f32.mrf.mxu0
      %v1889 = vadd.f32 0.0, %v1888
      %v1890 = vpop.f32.mrf.mxu0
      %v1891 = vpop.f32.mrf.mxu0
      %v1892 = vadd.f32 0.0, %v1891
      %v1893 = vpop.f32.mrf.mxu0
      %1894 = vdwg.mxu0
      %v1895 = vadd.f32 %v1469, %v1833
      %v1896 = vadd.f32 %v1470, %v1836
      %v1897 = vadd.f32 %v1471, %v1841
      %v1898 = vadd.f32 %v1472, %v1844
      %v1899 = vadd.f32 %v1473, %v1849
      %v1900 = vadd.f32 %v1474, %v1852
      %v1901 = vadd.f32 %v1475, %v1857
      %v1902 = vadd.f32 %v1476, %v1860
      %v1903 = vadd.f32 %v1477, %v1865
      %v1904 = vadd.f32 %v1478, %v1868
      %v1905 = vadd.f32 %v1479, %v1873
      %v1906 = vadd.f32 %v1480, %v1876
      %v1907 = vadd.f32 %v1481, %v1881
      %v1908 = vadd.f32 %v1482, %v1884
      %v1909 = vadd.f32 %v1483, %v1889
      %v1910 = vadd.f32 %v1484, %v1892
      %v1911 = vld [vmem:[%s1242] sm:$0xe]
      %v1912 = vld [vmem:[%s1242 + $0xc] sm:$0xe]
      %v1913 = vld [vmem:[%s1242 + $0x18] sm:$0xe]
      %v1914 = vld [vmem:[%s1242 + $0x24] sm:$0xe]
      %v1915 = vld [vmem:[%s1242 + $0x30] sm:$0xe]
      %v1916 = vld [vmem:[%s1242 + $0x3c] sm:$0xe]
      %v1917 = vld [vmem:[%s1242 + $0x48] sm:$0xe]
      %v1918 = vld [vmem:[%s1242 + $0x54] sm:$0xe]
      %v1943 = vrot.slane %v1911, 5
      %v1944 = vrot.slane %v1943, 4
      %v1945 = vrot.slane %v1486, 5
      %v1946 = vsel %vm972, %v1944, %v1945
      %v1947 = vrot.slane %v1945, 4
      %v1948 = vrot.slane %v1487, 5
      %v1949 = vsel %vm972, %v1947, %v1948
      %v1950 = vrot.slane %v1912, 5
      %v1951 = vrot.slane %v1950, 4
      %v1952 = vrot.slane %v1489, 5
      %v1953 = vsel %vm972, %v1951, %v1952
      %v1954 = vrot.slane %v1952, 4
      %v1955 = vrot.slane %v1490, 5
      %v1956 = vsel %vm972, %v1954, %v1955
      %v1957 = vrot.slane %v1913, 5
      %v1958 = vrot.slane %v1957, 4
      %v1959 = vrot.slane %v1492, 5
      %v1960 = vsel %vm972, %v1958, %v1959
      %v1961 = vrot.slane %v1959, 4
      %v1962 = vrot.slane %v1493, 5
      %v1963 = vsel %vm972, %v1961, %v1962
      %v1964 = vrot.slane %v1914, 5
      %v1965 = vrot.slane %v1964, 4
      %v1966 = vrot.slane %v1495, 5
      %v1967 = vsel %vm972, %v1965, %v1966
      %v1968 = vrot.slane %v1966, 4
      %v1969 = vrot.slane %v1496, 5
      %v1970 = vsel %vm972, %v1968, %v1969
      %v1971 = vrot.slane %v1915, 5
      %v1972 = vrot.slane %v1971, 4
      %v1973 = vrot.slane %v1498, 5
      %v1974 = vsel %vm972, %v1972, %v1973
      %v1975 = vrot.slane %v1973, 4
      %v1976 = vrot.slane %v1499, 5
      %v1977 = vsel %vm972, %v1975, %v1976
      %v1978 = vrot.slane %v1916, 5
      %v1979 = vrot.slane %v1978, 4
      %v1980 = vrot.slane %v1501, 5
      %v1981 = vsel %vm972, %v1979, %v1980
      %v1982 = vrot.slane %v1980, 4
      %v1983 = vrot.slane %v1502, 5
      %v1984 = vsel %vm972, %v1982, %v1983
      %v1985 = vrot.slane %v1917, 5
      %v1986 = vrot.slane %v1985, 4
      %v1987 = vrot.slane %v1504, 5
      %v1988 = vsel %vm972, %v1986, %v1987
      %v1989 = vrot.slane %v1987, 4
      %v1990 = vrot.slane %v1505, 5
      %v1991 = vsel %vm972, %v1989, %v1990
      %v1992 = vrot.slane %v1918, 5
      %v1993 = vrot.slane %v1992, 4
      %v1994 = vrot.slane %v1507, 5
      %v1995 = vsel %vm972, %v1993, %v1994
      %v1996 = vrot.slane %v1994, 4
      %v1997 = vrot.slane %v1508, 5
      %v1998 = vsel %vm972, %v1996, %v1997
      %s1999 = scalar_lea.vmem %s287, 320
      %v2000 = vld [vmem:[%s1999] sm:$0xf]
      %v2001 = vld [vmem:[%s1999 + $0x4] sm:$0xf]
      %v2002 = vld [vmem:[%s1999 + $0x8] sm:$0xf]
      %v2003 = vld [vmem:[%s1999 + $0xc] sm:$0xf]
      %v2004 = vld [vmem:[%s1999 + $0x10] sm:$0xf]
      %v2005 = vld [vmem:[%s1999 + $0x14] sm:$0xf]
      %v2006 = vld [vmem:[%s1999 + $0x18] sm:$0xf]
      %v2007 = vld [vmem:[%s1999 + $0x1c] sm:$0xf]
      %v2008 = vld [vmem:[%s1999 + $0x20] sm:$0xf]
      %v2009 = vld [vmem:[%s1999 + $0x24] sm:$0xf]
      %v2010 = vld [vmem:[%s1999 + $0x28] sm:$0xf]
      %v2011 = vld [vmem:[%s1999 + $0x2c] sm:$0xf]
      %v2012 = vld [vmem:[%s1999 + $0x30] sm:$0xf]
      %v2013 = vld [vmem:[%s1999 + $0x34] sm:$0xf]
      %v2014 = vld [vmem:[%s1999 + $0x38] sm:$0xf]
      %v2015 = vld [vmem:[%s1999 + $0x3c] sm:$0xf]
      %v2016 = vunpack.c.l.b16 %v1946
      %v2017 = vunpack.c.l.b16 %v1949
      %v2018 = vunpack.c.l.b16 %v1953
      %v2019 = vunpack.c.l.b16 %v1956
      %v2020 = vunpack.c.l.b16 %v1960
      %v2021 = vunpack.c.l.b16 %v1963
      %v2022 = vunpack.c.l.b16 %v1967
      %v2023 = vunpack.c.l.b16 %v1970
      %v2024 = vunpack.c.l.b16 %v1974
      %v2025 = vunpack.c.l.b16 %v1977
      %v2026 = vunpack.c.l.b16 %v1981
      %v2027 = vunpack.c.l.b16 %v1984
      %v2028 = vunpack.c.l.b16 %v1988
      %v2029 = vunpack.c.l.b16 %v1991
      %v2030 = vunpack.c.l.b16 %v1995
      %v2031 = vunpack.c.l.b16 %v1998
      %v2032 = vpack.c.b16 %v2017, %v2016
      %v2033 = vpack.c.b16 %v2019, %v2018
      %v2034 = vpack.c.b16 %v2021, %v2020
      %v2035 = vpack.c.b16 %v2023, %v2022
      %v2036 = vpack.c.b16 %v2025, %v2024
      %v2037 = vpack.c.b16 %v2027, %v2026
      %v2038 = vpack.c.b16 %v2029, %v2028
      %v2039 = vpack.c.b16 %v2031, %v2030
      %v2064 = vunpack.c.l.b16 %v2000
      %v2065 = vunpack.c.l.b16 %v2001
      %v2066 = vunpack.c.l.b16 %v2002
      %v2067 = vunpack.c.l.b16 %v2003
      %v2068 = vunpack.c.l.b16 %v2004
      %v2069 = vunpack.c.l.b16 %v2005
      %v2070 = vunpack.c.l.b16 %v2006
      %v2071 = vunpack.c.l.b16 %v2007
      %v2072 = vunpack.c.l.b16 %v2008
      %v2073 = vunpack.c.l.b16 %v2009
      %v2074 = vunpack.c.l.b16 %v2010
      %v2075 = vunpack.c.l.b16 %v2011
      %v2076 = vunpack.c.l.b16 %v2012
      %v2077 = vunpack.c.l.b16 %v2013
      %v2078 = vunpack.c.l.b16 %v2014
      %v2079 = vunpack.c.l.b16 %v2015
      %v2080 = vpack.c.b16 %v2065, %v2064
      %v2081 = vpack.c.b16 %v2067, %v2066
      %v2082 = vpack.c.b16 %v2069, %v2068
      %v2083 = vpack.c.b16 %v2071, %v2070
      %v2084 = vpack.c.b16 %v2073, %v2072
      %v2085 = vpack.c.b16 %v2075, %v2074
      %v2086 = vpack.c.b16 %v2077, %v2076
      %v2087 = vpack.c.b16 %v2079, %v2078
      %2096 = vmatprep.subr.bf16.mxu0 0
      %2097 = vmatpush1.bf16.msra.mxu0 %v2087
      %2098 = vmatprep.subr.bf16.mxu0 0
      %2099 = vmatpush1.bf16.msra.mxu0 %v2086
      %2100 = vmatprep.subr.bf16.mxu0 0
      %2101 = vmatpush1.bf16.msra.mxu0 %v2085
      %2102 = vmatprep.subr.bf16.mxu0 0
      %2103 = vmatpush1.bf16.msra.mxu0 %v2084
      %2104 = vmatprep.subr.bf16.mxu0 0
      %2105 = vmatpush1.bf16.msra.mxu0 %v2083
      %2106 = vmatprep.subr.bf16.mxu0 0
      %2107 = vmatpush1.bf16.msra.mxu0 %v2082
      %2108 = vmatprep.subr.bf16.mxu0 0
      %2109 = vmatpush1.bf16.msra.mxu0 %v2081
      %2110 = vmatprep.subr.bf16.mxu0 0
      %2111 = vmatpush1.bf16.msra.mxu0 %v2080
      %2112 = vmatprep.subr.bf16.mxu0 0
      %2113 = vmatpush2.bf16.msra.mxu0 0
      %2114 = vmatprep.subr.bf16.mxu0 0
      %2115 = vmatpush2.bf16.msra.mxu0 0
      %2116 = vmatprep.subr.bf16.mxu0 0
      %2117 = vmatpush2.bf16.msra.mxu0 0
      %2118 = vmatprep.subr.bf16.mxu0 0
      %2119 = vmatpush2.bf16.msra.mxu0 0
      %2120 = vmatprep.subr.bf16.mxu0 0
      %2121 = vmatpush2.bf16.msra.mxu0 0
      %2122 = vmatprep.subr.bf16.mxu0 0
      %2123 = vmatpush2.bf16.msra.mxu0 0
      %2124 = vmatprep.subr.bf16.mxu0 0
      %2125 = vmatpush2.bf16.msra.mxu0 0
      %2126 = vmatprep.subr.bf16.mxu0 0
      %2127 = vmatpush2.bf16.msra.mxu0 0
      %2128 = vmatprep.mubr.bf16.mxu0 0
      %2129 = vmatmul.mubr.bf16.gmra.mxu0 %v2032
      %v2130 = vpop.f32.mrf.mxu0
      %v2131 = vadd.f32 0.0, %v2130
      %v2132 = vpop.f32.mrf.mxu0
      %v2133 = vpop.f32.mrf.mxu0
      %v2134 = vadd.f32 0.0, %v2133
      %v2135 = vpop.f32.mrf.mxu0
      %2136 = vmatprep.mubr.bf16.mxu0 0
      %2137 = vmatmul.mubr.bf16.gmra.mxu0 %v2033
      %v2138 = vpop.f32.mrf.mxu0
      %v2139 = vadd.f32 0.0, %v2138
      %v2140 = vpop.f32.mrf.mxu0
      %v2141 = vpop.f32.mrf.mxu0
      %v2142 = vadd.f32 0.0, %v2141
      %v2143 = vpop.f32.mrf.mxu0
      %2144 = vmatprep.mubr.bf16.mxu0 0
      %2145 = vmatmul.mubr.bf16.gmra.mxu0 %v2034
      %v2146 = vpop.f32.mrf.mxu0
      %v2147 = vadd.f32 0.0, %v2146
      %v2148 = vpop.f32.mrf.mxu0
      %v2149 = vpop.f32.mrf.mxu0
      %v2150 = vadd.f32 0.0, %v2149
      %v2151 = vpop.f32.mrf.mxu0
      %2152 = vmatprep.mubr.bf16.mxu0 0
      %2153 = vmatmul.mubr.bf16.gmra.mxu0 %v2035
      %v2154 = vpop.f32.mrf.mxu0
      %v2155 = vadd.f32 0.0, %v2154
      %v2156 = vpop.f32.mrf.mxu0
      %v2157 = vpop.f32.mrf.mxu0
      %v2158 = vadd.f32 0.0, %v2157
      %v2159 = vpop.f32.mrf.mxu0
      %2160 = vmatprep.mubr.bf16.mxu0 0
      %2161 = vmatmul.mubr.bf16.gmra.mxu0 %v2036
      %v2162 = vpop.f32.mrf.mxu0
      %v2163 = vadd.f32 0.0, %v2162
      %v2164 = vpop.f32.mrf.mxu0
      %v2165 = vpop.f32.mrf.mxu0
      %v2166 = vadd.f32 0.0, %v2165
      %v2167 = vpop.f32.mrf.mxu0
      %2168 = vmatprep.mubr.bf16.mxu0 0
      %2169 = vmatmul.mubr.bf16.gmra.mxu0 %v2037
      %v2170 = vpop.f32.mrf.mxu0
      %v2171 = vadd.f32 0.0, %v2170
      %v2172 = vpop.f32.mrf.mxu0
      %v2173 = vpop.f32.mrf.mxu0
      %v2174 = vadd.f32 0.0, %v2173
      %v2175 = vpop.f32.mrf.mxu0
      %2176 = vmatprep.mubr.bf16.mxu0 0
      %2177 = vmatmul.mubr.bf16.gmra.mxu0 %v2038
      %v2178 = vpop.f32.mrf.mxu0
      %v2179 = vadd.f32 0.0, %v2178
      %v2180 = vpop.f32.mrf.mxu0
      %v2181 = vpop.f32.mrf.mxu0
      %v2182 = vadd.f32 0.0, %v2181
      %v2183 = vpop.f32.mrf.mxu0
      %2184 = vmatprep.mubr.bf16.mxu0 0
      %2185 = vmatmul.mubr.bf16.gmra.mxu0 %v2039
      %v2186 = vpop.f32.mrf.mxu0
      %v2187 = vadd.f32 0.0, %v2186
      %v2188 = vpop.f32.mrf.mxu0
      %v2189 = vpop.f32.mrf.mxu0
      %v2190 = vadd.f32 0.0, %v2189
      %v2191 = vpop.f32.mrf.mxu0
      %2192 = vdwg.mxu0
      %v2193 = vadd.f32 %v1895, %v2131
      %v2194 = vadd.f32 %v1896, %v2134
      %v2195 = vadd.f32 %v1897, %v2139
      %v2196 = vadd.f32 %v1898, %v2142
      %v2197 = vadd.f32 %v1899, %v2147
      %v2198 = vadd.f32 %v1900, %v2150
      %v2199 = vadd.f32 %v1901, %v2155
      %v2200 = vadd.f32 %v1902, %v2158
      %v2201 = vadd.f32 %v1903, %v2163
      %v2202 = vadd.f32 %v1904, %v2166
      %v2203 = vadd.f32 %v1905, %v2171
      %v2204 = vadd.f32 %v1906, %v2174
      %v2205 = vadd.f32 %v1907, %v2179
      %v2206 = vadd.f32 %v1908, %v2182
      %v2207 = vadd.f32 %v1909, %v2187
      %v2208 = vadd.f32 %v1910, %v2190
      %s2209 = sadd.s32 %s320, 2
      %s2210 = smul.u32 %s2209, 3
      %s2211 = smul.addr %s2210, 4
      %s2212 = scalar_lea.vmem %s283, %s2211
      %v2213 = vld [vmem:[%s2212] sm:$0xf]
      %v2214 = vld [vmem:[%s2212 + $0x4] sm:$0xf]
      %v2215 = vld [vmem:[%s2212 + $0xc] sm:$0xf]
      %v2216 = vld [vmem:[%s2212 + $0x10] sm:$0xf]
      %v2217 = vld [vmem:[%s2212 + $0x18] sm:$0xf]
      %v2218 = vld [vmem:[%s2212 + $0x1c] sm:$0xf]
      %v2219 = vld [vmem:[%s2212 + $0x24] sm:$0xf]
      %v2220 = vld [vmem:[%s2212 + $0x28] sm:$0xf]
      %v2221 = vld [vmem:[%s2212 + $0x30] sm:$0xf]
      %v2222 = vld [vmem:[%s2212 + $0x34] sm:$0xf]
      %v2223 = vld [vmem:[%s2212 + $0x3c] sm:$0xf]
      %v2224 = vld [vmem:[%s2212 + $0x40] sm:$0xf]
      %v2225 = vld [vmem:[%s2212 + $0x48] sm:$0xf]
      %v2226 = vld [vmem:[%s2212 + $0x4c] sm:$0xf]
      %v2227 = vld [vmem:[%s2212 + $0x54] sm:$0xf]
      %v2228 = vld [vmem:[%s2212 + $0x58] sm:$0xf]
      %s2229 = scalar_lea.vmem %s287, 384
      %v2230 = vld [vmem:[%s2229] sm:$0xf]
      %v2231 = vld [vmem:[%s2229 + $0x4] sm:$0xf]
      %v2232 = vld [vmem:[%s2229 + $0x8] sm:$0xf]
      %v2233 = vld [vmem:[%s2229 + $0xc] sm:$0xf]
      %v2234 = vld [vmem:[%s2229 + $0x10] sm:$0xf]
      %v2235 = vld [vmem:[%s2229 + $0x14] sm:$0xf]
      %v2236 = vld [vmem:[%s2229 + $0x18] sm:$0xf]
      %v2237 = vld [vmem:[%s2229 + $0x1c] sm:$0xf]
      %v2238 = vld [vmem:[%s2229 + $0x20] sm:$0xf]
      %v2239 = vld [vmem:[%s2229 + $0x24] sm:$0xf]
      %v2240 = vld [vmem:[%s2229 + $0x28] sm:$0xf]
      %v2241 = vld [vmem:[%s2229 + $0x2c] sm:$0xf]
      %v2242 = vld [vmem:[%s2229 + $0x30] sm:$0xf]
      %v2243 = vld [vmem:[%s2229 + $0x34] sm:$0xf]
      %v2244 = vld [vmem:[%s2229 + $0x38] sm:$0xf]
      %v2245 = vld [vmem:[%s2229 + $0x3c] sm:$0xf]
      %v2262 = vunpack.c.l.b16 %v2213
      %v2263 = vunpack.c.l.b16 %v2214
      %v2264 = vunpack.c.l.b16 %v2215
      %v2265 = vunpack.c.l.b16 %v2216
      %v2266 = vunpack.c.l.b16 %v2217
      %v2267 = vunpack.c.l.b16 %v2218
      %v2268 = vunpack.c.l.b16 %v2219
      %v2269 = vunpack.c.l.b16 %v2220
      %v2270 = vunpack.c.l.b16 %v2221
      %v2271 = vunpack.c.l.b16 %v2222
      %v2272 = vunpack.c.l.b16 %v2223
      %v2273 = vunpack.c.l.b16 %v2224
      %v2274 = vunpack.c.l.b16 %v2225
      %v2275 = vunpack.c.l.b16 %v2226
      %v2276 = vunpack.c.l.b16 %v2227
      %v2277 = vunpack.c.l.b16 %v2228
      %v2278 = vpack.c.b16 %v2263, %v2262
      %v2279 = vpack.c.b16 %v2265, %v2264
      %v2280 = vpack.c.b16 %v2267, %v2266
      %v2281 = vpack.c.b16 %v2269, %v2268
      %v2282 = vpack.c.b16 %v2271, %v2270
      %v2283 = vpack.c.b16 %v2273, %v2272
      %v2284 = vpack.c.b16 %v2275, %v2274
      %v2285 = vpack.c.b16 %v2277, %v2276
      %v2310 = vunpack.c.l.b16 %v2230
      %v2311 = vunpack.c.l.b16 %v2231
      %v2312 = vunpack.c.l.b16 %v2232
      %v2313 = vunpack.c.l.b16 %v2233
      %v2314 = vunpack.c.l.b16 %v2234
      %v2315 = vunpack.c.l.b16 %v2235
      %v2316 = vunpack.c.l.b16 %v2236
      %v2317 = vunpack.c.l.b16 %v2237
      %v2318 = vunpack.c.l.b16 %v2238
      %v2319 = vunpack.c.l.b16 %v2239
      %v2320 = vunpack.c.l.b16 %v2240
      %v2321 = vunpack.c.l.b16 %v2241
      %v2322 = vunpack.c.l.b16 %v2242
      %v2323 = vunpack.c.l.b16 %v2243
      %v2324 = vunpack.c.l.b16 %v2244
      %v2325 = vunpack.c.l.b16 %v2245
      %v2326 = vpack.c.b16 %v2311, %v2310
      %v2327 = vpack.c.b16 %v2313, %v2312
      %v2328 = vpack.c.b16 %v2315, %v2314
      %v2329 = vpack.c.b16 %v2317, %v2316
      %v2330 = vpack.c.b16 %v2319, %v2318
      %v2331 = vpack.c.b16 %v2321, %v2320
      %v2332 = vpack.c.b16 %v2323, %v2322
      %v2333 = vpack.c.b16 %v2325, %v2324
      %2342 = vmatprep.subr.bf16.mxu0 0
      %2343 = vmatpush1.bf16.msra.mxu0 %v2333
      %2344 = vmatprep.subr.bf16.mxu0 0
      %2345 = vmatpush1.bf16.msra.mxu0 %v2332
      %2346 = vmatprep.subr.bf16.mxu0 0
      %2347 = vmatpush1.bf16.msra.mxu0 %v2331
      %2348 = vmatprep.subr.bf16.mxu0 0
      %2349 = vmatpush1.bf16.msra.mxu0 %v2330
      %2350 = vmatprep.subr.bf16.mxu0 0
      %2351 = vmatpush1.bf16.msra.mxu0 %v2329
      %2352 = vmatprep.subr.bf16.mxu0 0
      %2353 = vmatpush1.bf16.msra.mxu0 %v2328
      %2354 = vmatprep.subr.bf16.mxu0 0
      %2355 = vmatpush1.bf16.msra.mxu0 %v2327
      %2356 = vmatprep.subr.bf16.mxu0 0
      %2357 = vmatpush1.bf16.msra.mxu0 %v2326
      %2358 = vmatprep.subr.bf16.mxu0 0
      %2359 = vmatpush2.bf16.msra.mxu0 0
      %2360 = vmatprep.subr.bf16.mxu0 0
      %2361 = vmatpush2.bf16.msra.mxu0 0
      %2362 = vmatprep.subr.bf16.mxu0 0
      %2363 = vmatpush2.bf16.msra.mxu0 0
      %2364 = vmatprep.subr.bf16.mxu0 0
      %2365 = vmatpush2.bf16.msra.mxu0 0
      %2366 = vmatprep.subr.bf16.mxu0 0
      %2367 = vmatpush2.bf16.msra.mxu0 0
      %2368 = vmatprep.subr.bf16.mxu0 0
      %2369 = vmatpush2.bf16.msra.mxu0 0
      %2370 = vmatprep.subr.bf16.mxu0 0
      %2371 = vmatpush2.bf16.msra.mxu0 0
      %2372 = vmatprep.subr.bf16.mxu0 0
      %2373 = vmatpush2.bf16.msra.mxu0 0
      %2374 = vmatprep.mubr.bf16.mxu0 0
      %2375 = vmatmul.mubr.bf16.gmra.mxu0 %v2278
      %v2376 = vpop.f32.mrf.mxu0
      %v2377 = vadd.f32 0.0, %v2376
      %v2378 = vpop.f32.mrf.mxu0
      %v2379 = vpop.f32.mrf.mxu0
      %v2380 = vadd.f32 0.0, %v2379
      %v2381 = vpop.f32.mrf.mxu0
      %2382 = vmatprep.mubr.bf16.mxu0 0
      %2383 = vmatmul.mubr.bf16.gmra.mxu0 %v2279
      %v2384 = vpop.f32.mrf.mxu0
      %v2385 = vadd.f32 0.0, %v2384
      %v2386 = vpop.f32.mrf.mxu0
      %v2387 = vpop.f32.mrf.mxu0
      %v2388 = vadd.f32 0.0, %v2387
      %v2389 = vpop.f32.mrf.mxu0
      %2390 = vmatprep.mubr.bf16.mxu0 0
      %2391 = vmatmul.mubr.bf16.gmra.mxu0 %v2280
      %v2392 = vpop.f32.mrf.mxu0
      %v2393 = vadd.f32 0.0, %v2392
      %v2394 = vpop.f32.mrf.mxu0
      %v2395 = vpop.f32.mrf.mxu0
      %v2396 = vadd.f32 0.0, %v2395
      %v2397 = vpop.f32.mrf.mxu0
      %2398 = vmatprep.mubr.bf16.mxu0 0
      %2399 = vmatmul.mubr.bf16.gmra.mxu0 %v2281
      %v2400 = vpop.f32.mrf.mxu0
      %v2401 = vadd.f32 0.0, %v2400
      %v2402 = vpop.f32.mrf.mxu0
      %v2403 = vpop.f32.mrf.mxu0
      %v2404 = vadd.f32 0.0, %v2403
      %v2405 = vpop.f32.mrf.mxu0
      %2406 = vmatprep.mubr.bf16.mxu0 0
      %2407 = vmatmul.mubr.bf16.gmra.mxu0 %v2282
      %v2408 = vpop.f32.mrf.mxu0
      %v2409 = vadd.f32 0.0, %v2408
      %v2410 = vpop.f32.mrf.mxu0
      %v2411 = vpop.f32.mrf.mxu0
      %v2412 = vadd.f32 0.0, %v2411
      %v2413 = vpop.f32.mrf.mxu0
      %2414 = vmatprep.mubr.bf16.mxu0 0
      %2415 = vmatmul.mubr.bf16.gmra.mxu0 %v2283
      %v2416 = vpop.f32.mrf.mxu0
      %v2417 = vadd.f32 0.0, %v2416
      %v2418 = vpop.f32.mrf.mxu0
      %v2419 = vpop.f32.mrf.mxu0
      %v2420 = vadd.f32 0.0, %v2419
      %v2421 = vpop.f32.mrf.mxu0
      %2422 = vmatprep.mubr.bf16.mxu0 0
      %2423 = vmatmul.mubr.bf16.gmra.mxu0 %v2284
      %v2424 = vpop.f32.mrf.mxu0
      %v2425 = vadd.f32 0.0, %v2424
      %v2426 = vpop.f32.mrf.mxu0
      %v2427 = vpop.f32.mrf.mxu0
      %v2428 = vadd.f32 0.0, %v2427
      %v2429 = vpop.f32.mrf.mxu0
      %2430 = vmatprep.mubr.bf16.mxu0 0
      %2431 = vmatmul.mubr.bf16.gmra.mxu0 %v2285
      %v2432 = vpop.f32.mrf.mxu0
      %v2433 = vadd.f32 0.0, %v2432
      %v2434 = vpop.f32.mrf.mxu0
      %v2435 = vpop.f32.mrf.mxu0
      %v2436 = vadd.f32 0.0, %v2435
      %v2437 = vpop.f32.mrf.mxu0
      %2438 = vdwg.mxu0
      %v2439 = vadd.f32 %v2193, %v2377
      %v2440 = vadd.f32 %v2194, %v2380
      %v2441 = vadd.f32 %v2195, %v2385
      %v2442 = vadd.f32 %v2196, %v2388
      %v2443 = vadd.f32 %v2197, %v2393
      %v2444 = vadd.f32 %v2198, %v2396
      %v2445 = vadd.f32 %v2199, %v2401
      %v2446 = vadd.f32 %v2200, %v2404
      %v2447 = vadd.f32 %v2201, %v2409
      %v2448 = vadd.f32 %v2202, %v2412
      %v2449 = vadd.f32 %v2203, %v2417
      %v2450 = vadd.f32 %v2204, %v2420
      %v2451 = vadd.f32 %v2205, %v2425
      %v2452 = vadd.f32 %v2206, %v2428
      %v2453 = vadd.f32 %v2207, %v2433
      %v2454 = vadd.f32 %v2208, %v2436
      %v2455 = vld [vmem:[%s2212] sm:$0xf]
      %v2456 = vld [vmem:[%s2212 + $0x4] sm:$0xf]
      %v2457 = vld [vmem:[%s2212 + $0x8] sm:$0x1]
      %v2458 = vld [vmem:[%s2212 + $0xc] sm:$0xf]
      %v2459 = vld [vmem:[%s2212 + $0x10] sm:$0xf]
      %v2460 = vld [vmem:[%s2212 + $0x14] sm:$0x1]
      %v2461 = vld [vmem:[%s2212 + $0x18] sm:$0xf]
      %v2462 = vld [vmem:[%s2212 + $0x1c] sm:$0xf]
      %v2463 = vld [vmem:[%s2212 + $0x20] sm:$0x1]
      %v2464 = vld [vmem:[%s2212 + $0x24] sm:$0xf]
      %v2465 = vld [vmem:[%s2212 + $0x28] sm:$0xf]
      %v2466 = vld [vmem:[%s2212 + $0x2c] sm:$0x1]
      %v2467 = vld [vmem:[%s2212 + $0x30] sm:$0xf]
      %v2468 = vld [vmem:[%s2212 + $0x34] sm:$0xf]
      %v2469 = vld [vmem:[%s2212 + $0x38] sm:$0x1]
      %v2470 = vld [vmem:[%s2212 + $0x3c] sm:$0xf]
      %v2471 = vld [vmem:[%s2212 + $0x40] sm:$0xf]
      %v2472 = vld [vmem:[%s2212 + $0x44] sm:$0x1]
      %v2473 = vld [vmem:[%s2212 + $0x48] sm:$0xf]
      %v2474 = vld [vmem:[%s2212 + $0x4c] sm:$0xf]
      %v2475 = vld [vmem:[%s2212 + $0x50] sm:$0x1]
      %v2476 = vld [vmem:[%s2212 + $0x54] sm:$0xf]
      %v2477 = vld [vmem:[%s2212 + $0x58] sm:$0xf]
      %v2478 = vld [vmem:[%s2212 + $0x5c] sm:$0x1]
      %v2480 = vshrl.u32 %v2455, 16
      %v2482 = vrot.slane %v2480, 4
      %v2483 = vshll.u32 %v2455, 16
      %v2485 = vrot.slane %v2483, 5
      %v2486 = vor.u32 %v2482, %v2485
      %v2487 = vrot.slane %v2486, 4
      %v2489 = vshll.u32 %v2456, 16
      %v2491 = vrot.slane %v2489, 5
      %v2492 = vsel %vm366, %v2487, %v2491
      %v2493 = vshrl.u32 %v2456, 16
      %v2495 = vrot.slane %v2493, 4
      %v2496 = vor.u32 %v2495, %v2491
      %v2497 = vrot.slane %v2496, 4
      %v2499 = vshll.u32 %v2457, 16
      %v2501 = vrot.slane %v2499, 5
      %v2502 = vsel %vm366, %v2497, %v2501
      %v2504 = vshrl.u32 %v2458, 16
      %v2506 = vrot.slane %v2504, 4
      %v2507 = vshll.u32 %v2458, 16
      %v2509 = vrot.slane %v2507, 5
      %v2510 = vor.u32 %v2506, %v2509
      %v2511 = vrot.slane %v2510, 4
      %v2513 = vshll.u32 %v2459, 16
      %v2515 = vrot.slane %v2513, 5
      %v2516 = vsel %vm366, %v2511, %v2515
      %v2517 = vshrl.u32 %v2459, 16
      %v2519 = vrot.slane %v2517, 4
      %v2520 = vor.u32 %v2519, %v2515
      %v2521 = vrot.slane %v2520, 4
      %v2523 = vshll.u32 %v2460, 16
      %v2525 = vrot.slane %v2523, 5
      %v2526 = vsel %vm366, %v2521, %v2525
      %v2528 = vshrl.u32 %v2461, 16
      %v2530 = vrot.slane %v2528, 4
      %v2531 = vshll.u32 %v2461, 16
      %v2533 = vrot.slane %v2531, 5
      %v2534 = vor.u32 %v2530, %v2533
      %v2535 = vrot.slane %v2534, 4
      %v2537 = vshll.u32 %v2462, 16
      %v2539 = vrot.slane %v2537, 5
      %v2540 = vsel %vm366, %v2535, %v2539
      %v2541 = vshrl.u32 %v2462, 16
      %v2543 = vrot.slane %v2541, 4
      %v2544 = vor.u32 %v2543, %v2539
      %v2545 = vrot.slane %v2544, 4
      %v2547 = vshll.u32 %v2463, 16
      %v2549 = vrot.slane %v2547, 5
      %v2550 = vsel %vm366, %v2545, %v2549
      %v2552 = vshrl.u32 %v2464, 16
      %v2554 = vrot.slane %v2552, 4
      %v2555 = vshll.u32 %v2464, 16
      %v2557 = vrot.slane %v2555, 5
      %v2558 = vor.u32 %v2554, %v2557
      %v2559 = vrot.slane %v2558, 4
      %v2561 = vshll.u32 %v2465, 16
      %v2563 = vrot.slane %v2561, 5
      %v2564 = vsel %vm366, %v2559, %v2563
      %v2565 = vshrl.u32 %v2465, 16
      %v2567 = vrot.slane %v2565, 4
      %v2568 = vor.u32 %v2567, %v2563
      %v2569 = vrot.slane %v2568, 4
      %v2571 = vshll.u32 %v2466, 16
      %v2573 = vrot.slane %v2571, 5
      %v2574 = vsel %vm366, %v2569, %v2573
      %v2576 = vshrl.u32 %v2467, 16
      %v2578 = vrot.slane %v2576, 4
      %v2579 = vshll.u32 %v2467, 16
      %v2581 = vrot.slane %v2579, 5
      %v2582 = vor.u32 %v2578, %v2581
      %v2583 = vrot.slane %v2582, 4
      %v2585 = vshll.u32 %v2468, 16
      %v2587 = vrot.slane %v2585, 5
      %v2588 = vsel %vm366, %v2583, %v2587
      %v2589 = vshrl.u32 %v2468, 16
      %v2591 = vrot.slane %v2589, 4
      %v2592 = vor.u32 %v2591, %v2587
      %v2593 = vrot.slane %v2592, 4
      %v2595 = vshll.u32 %v2469, 16
      %v2597 = vrot.slane %v2595, 5
      %v2598 = vsel %vm366, %v2593, %v2597
      %v2600 = vshrl.u32 %v2470, 16
      %v2602 = vrot.slane %v2600, 4
      %v2603 = vshll.u32 %v2470, 16
      %v2605 = vrot.slane %v2603, 5
      %v2606 = vor.u32 %v2602, %v2605
      %v2607 = vrot.slane %v2606, 4
      %v2609 = vshll.u32 %v2471, 16
      %v2611 = vrot.slane %v2609, 5
      %v2612 = vsel %vm366, %v2607, %v2611
      %v2613 = vshrl.u32 %v2471, 16
      %v2615 = vrot.slane %v2613, 4
      %v2616 = vor.u32 %v2615, %v2611
      %v2617 = vrot.slane %v2616, 4
      %v2619 = vshll.u32 %v2472, 16
      %v2621 = vrot.slane %v2619, 5
      %v2622 = vsel %vm366, %v2617, %v2621
      %v2624 = vshrl.u32 %v2473, 16
      %v2626 = vrot.slane %v2624, 4
      %v2627 = vshll.u32 %v2473, 16
      %v2629 = vrot.slane %v2627, 5
      %v2630 = vor.u32 %v2626, %v2629
      %v2631 = vrot.slane %v2630, 4
      %v2633 = vshll.u32 %v2474, 16
      %v2635 = vrot.slane %v2633, 5
      %v2636 = vsel %vm366, %v2631, %v2635
      %v2637 = vshrl.u32 %v2474, 16
      %v2639 = vrot.slane %v2637, 4
      %v2640 = vor.u32 %v2639, %v2635
      %v2641 = vrot.slane %v2640, 4
      %v2643 = vshll.u32 %v2475, 16
      %v2645 = vrot.slane %v2643, 5
      %v2646 = vsel %vm366, %v2641, %v2645
      %v2648 = vshrl.u32 %v2476, 16
      %v2650 = vrot.slane %v2648, 4
      %v2651 = vshll.u32 %v2476, 16
      %v2653 = vrot.slane %v2651, 5
      %v2654 = vor.u32 %v2650, %v2653
      %v2655 = vrot.slane %v2654, 4
      %v2657 = vshll.u32 %v2477, 16
      %v2659 = vrot.slane %v2657, 5
      %v2660 = vsel %vm366, %v2655, %v2659
      %v2661 = vshrl.u32 %v2477, 16
      %v2663 = vrot.slane %v2661, 4
      %v2664 = vor.u32 %v2663, %v2659
      %v2665 = vrot.slane %v2664, 4
      %v2667 = vshll.u32 %v2478, 16
      %v2669 = vrot.slane %v2667, 5
      %v2670 = vsel %vm366, %v2665, %v2669
      %s2671 = scalar_lea.vmem %s287, 448
      %v2672 = vld [vmem:[%s2671] sm:$0xf]
      %v2673 = vld [vmem:[%s2671 + $0x4] sm:$0xf]
      %v2674 = vld [vmem:[%s2671 + $0x8] sm:$0xf]
      %v2675 = vld [vmem:[%s2671 + $0xc] sm:$0xf]
      %v2676 = vld [vmem:[%s2671 + $0x10] sm:$0xf]
      %v2677 = vld [vmem:[%s2671 + $0x14] sm:$0xf]
      %v2678 = vld [vmem:[%s2671 + $0x18] sm:$0xf]
      %v2679 = vld [vmem:[%s2671 + $0x1c] sm:$0xf]
      %v2680 = vld [vmem:[%s2671 + $0x20] sm:$0xf]
      %v2681 = vld [vmem:[%s2671 + $0x24] sm:$0xf]
      %v2682 = vld [vmem:[%s2671 + $0x28] sm:$0xf]
      %v2683 = vld [vmem:[%s2671 + $0x2c] sm:$0xf]
      %v2684 = vld [vmem:[%s2671 + $0x30] sm:$0xf]
      %v2685 = vld [vmem:[%s2671 + $0x34] sm:$0xf]
      %v2686 = vld [vmem:[%s2671 + $0x38] sm:$0xf]
      %v2687 = vld [vmem:[%s2671 + $0x3c] sm:$0xf]
      %v2688 = vunpack.c.l.b16 %v2492
      %v2689 = vunpack.c.l.b16 %v2502
      %v2690 = vunpack.c.l.b16 %v2516
      %v2691 = vunpack.c.l.b16 %v2526
      %v2692 = vunpack.c.l.b16 %v2540
      %v2693 = vunpack.c.l.b16 %v2550
      %v2694 = vunpack.c.l.b16 %v2564
      %v2695 = vunpack.c.l.b16 %v2574
      %v2696 = vunpack.c.l.b16 %v2588
      %v2697 = vunpack.c.l.b16 %v2598
      %v2698 = vunpack.c.l.b16 %v2612
      %v2699 = vunpack.c.l.b16 %v2622
      %v2700 = vunpack.c.l.b16 %v2636
      %v2701 = vunpack.c.l.b16 %v2646
      %v2702 = vunpack.c.l.b16 %v2660
      %v2703 = vunpack.c.l.b16 %v2670
      %v2704 = vpack.c.b16 %v2689, %v2688
      %v2705 = vpack.c.b16 %v2691, %v2690
      %v2706 = vpack.c.b16 %v2693, %v2692
      %v2707 = vpack.c.b16 %v2695, %v2694
      %v2708 = vpack.c.b16 %v2697, %v2696
      %v2709 = vpack.c.b16 %v2699, %v2698
      %v2710 = vpack.c.b16 %v2701, %v2700
      %v2711 = vpack.c.b16 %v2703, %v2702
      %v2736 = vunpack.c.l.b16 %v2672
      %v2737 = vunpack.c.l.b16 %v2673
      %v2738 = vunpack.c.l.b16 %v2674
      %v2739 = vunpack.c.l.b16 %v2675
      %v2740 = vunpack.c.l.b16 %v2676
      %v2741 = vunpack.c.l.b16 %v2677
      %v2742 = vunpack.c.l.b16 %v2678
      %v2743 = vunpack.c.l.b16 %v2679
      %v2744 = vunpack.c.l.b16 %v2680
      %v2745 = vunpack.c.l.b16 %v2681
      %v2746 = vunpack.c.l.b16 %v2682
      %v2747 = vunpack.c.l.b16 %v2683
      %v2748 = vunpack.c.l.b16 %v2684
      %v2749 = vunpack.c.l.b16 %v2685
      %v2750 = vunpack.c.l.b16 %v2686
      %v2751 = vunpack.c.l.b16 %v2687
      %v2752 = vpack.c.b16 %v2737, %v2736
      %v2753 = vpack.c.b16 %v2739, %v2738
      %v2754 = vpack.c.b16 %v2741, %v2740
      %v2755 = vpack.c.b16 %v2743, %v2742
      %v2756 = vpack.c.b16 %v2745, %v2744
      %v2757 = vpack.c.b16 %v2747, %v2746
      %v2758 = vpack.c.b16 %v2749, %v2748
      %v2759 = vpack.c.b16 %v2751, %v2750
      %2768 = vmatprep.subr.bf16.mxu0 0
      %2769 = vmatpush1.bf16.msra.mxu0 %v2759
      %2770 = vmatprep.subr.bf16.mxu0 0
      %2771 = vmatpush1.bf16.msra.mxu0 %v2758
      %2772 = vmatprep.subr.bf16.mxu0 0
      %2773 = vmatpush1.bf16.msra.mxu0 %v2757
      %2774 = vmatprep.subr.bf16.mxu0 0
      %2775 = vmatpush1.bf16.msra.mxu0 %v2756
      %2776 = vmatprep.subr.bf16.mxu0 0
      %2777 = vmatpush1.bf16.msra.mxu0 %v2755
      %2778 = vmatprep.subr.bf16.mxu0 0
      %2779 = vmatpush1.bf16.msra.mxu0 %v2754
      %2780 = vmatprep.subr.bf16.mxu0 0
      %2781 = vmatpush1.bf16.msra.mxu0 %v2753
      %2782 = vmatprep.subr.bf16.mxu0 0
      %2783 = vmatpush1.bf16.msra.mxu0 %v2752
      %2784 = vmatprep.subr.bf16.mxu0 0
      %2785 = vmatpush2.bf16.msra.mxu0 0
      %2786 = vmatprep.subr.bf16.mxu0 0
      %2787 = vmatpush2.bf16.msra.mxu0 0
      %2788 = vmatprep.subr.bf16.mxu0 0
      %2789 = vmatpush2.bf16.msra.mxu0 0
      %2790 = vmatprep.subr.bf16.mxu0 0
      %2791 = vmatpush2.bf16.msra.mxu0 0
      %2792 = vmatprep.subr.bf16.mxu0 0
      %2793 = vmatpush2.bf16.msra.mxu0 0
      %2794 = vmatprep.subr.bf16.mxu0 0
      %2795 = vmatpush2.bf16.msra.mxu0 0
      %2796 = vmatprep.subr.bf16.mxu0 0
      %2797 = vmatpush2.bf16.msra.mxu0 0
      %2798 = vmatprep.subr.bf16.mxu0 0
      %2799 = vmatpush2.bf16.msra.mxu0 0
      %2800 = vmatprep.mubr.bf16.mxu0 0
      %2801 = vmatmul.mubr.bf16.gmra.mxu0 %v2704
      %v2802 = vpop.f32.mrf.mxu0
      %v2803 = vadd.f32 0.0, %v2802
      %v2804 = vpop.f32.mrf.mxu0
      %v2805 = vpop.f32.mrf.mxu0
      %v2806 = vadd.f32 0.0, %v2805
      %v2807 = vpop.f32.mrf.mxu0
      %2808 = vmatprep.mubr.bf16.mxu0 0
      %2809 = vmatmul.mubr.bf16.gmra.mxu0 %v2705
      %v2810 = vpop.f32.mrf.mxu0
      %v2811 = vadd.f32 0.0, %v2810
      %v2812 = vpop.f32.mrf.mxu0
      %v2813 = vpop.f32.mrf.mxu0
      %v2814 = vadd.f32 0.0, %v2813
      %v2815 = vpop.f32.mrf.mxu0
      %2816 = vmatprep.mubr.bf16.mxu0 0
      %2817 = vmatmul.mubr.bf16.gmra.mxu0 %v2706
      %v2818 = vpop.f32.mrf.mxu0
      %v2819 = vadd.f32 0.0, %v2818
      %v2820 = vpop.f32.mrf.mxu0
      %v2821 = vpop.f32.mrf.mxu0
      %v2822 = vadd.f32 0.0, %v2821
      %v2823 = vpop.f32.mrf.mxu0
      %2824 = vmatprep.mubr.bf16.mxu0 0
      %2825 = vmatmul.mubr.bf16.gmra.mxu0 %v2707
      %v2826 = vpop.f32.mrf.mxu0
      %v2827 = vadd.f32 0.0, %v2826
      %v2828 = vpop.f32.mrf.mxu0
      %v2829 = vpop.f32.mrf.mxu0
      %v2830 = vadd.f32 0.0, %v2829
      %v2831 = vpop.f32.mrf.mxu0
      %2832 = vmatprep.mubr.bf16.mxu0 0
      %2833 = vmatmul.mubr.bf16.gmra.mxu0 %v2708
      %v2834 = vpop.f32.mrf.mxu0
      %v2835 = vadd.f32 0.0, %v2834
      %v2836 = vpop.f32.mrf.mxu0
      %v2837 = vpop.f32.mrf.mxu0
      %v2838 = vadd.f32 0.0, %v2837
      %v2839 = vpop.f32.mrf.mxu0
      %2840 = vmatprep.mubr.bf16.mxu0 0
      %2841 = vmatmul.mubr.bf16.gmra.mxu0 %v2709
      %v2842 = vpop.f32.mrf.mxu0
      %v2843 = vadd.f32 0.0, %v2842
      %v2844 = vpop.f32.mrf.mxu0
      %v2845 = vpop.f32.mrf.mxu0
      %v2846 = vadd.f32 0.0, %v2845
      %v2847 = vpop.f32.mrf.mxu0
      %2848 = vmatprep.mubr.bf16.mxu0 0
      %2849 = vmatmul.mubr.bf16.gmra.mxu0 %v2710
      %v2850 = vpop.f32.mrf.mxu0
      %v2851 = vadd.f32 0.0, %v2850
      %v2852 = vpop.f32.mrf.mxu0
      %v2853 = vpop.f32.mrf.mxu0
      %v2854 = vadd.f32 0.0, %v2853
      %v2855 = vpop.f32.mrf.mxu0
      %2856 = vmatprep.mubr.bf16.mxu0 0
      %2857 = vmatmul.mubr.bf16.gmra.mxu0 %v2711
      %v2858 = vpop.f32.mrf.mxu0
      %v2859 = vadd.f32 0.0, %v2858
      %v2860 = vpop.f32.mrf.mxu0
      %v2861 = vpop.f32.mrf.mxu0
      %v2862 = vadd.f32 0.0, %v2861
      %v2863 = vpop.f32.mrf.mxu0
      %2864 = vdwg.mxu0
      %v2865 = vadd.f32 %v2439, %v2803
      %v2866 = vadd.f32 %v2440, %v2806
      %v2867 = vadd.f32 %v2441, %v2811
      %v2868 = vadd.f32 %v2442, %v2814
      %v2869 = vadd.f32 %v2443, %v2819
      %v2870 = vadd.f32 %v2444, %v2822
      %v2871 = vadd.f32 %v2445, %v2827
      %v2872 = vadd.f32 %v2446, %v2830
      %v2873 = vadd.f32 %v2447, %v2835
      %v2874 = vadd.f32 %v2448, %v2838
      %v2875 = vadd.f32 %v2449, %v2843
      %v2876 = vadd.f32 %v2450, %v2846
      %v2877 = vadd.f32 %v2451, %v2851
      %v2878 = vadd.f32 %v2452, %v2854
      %v2879 = vadd.f32 %v2453, %v2859
      %v2880 = vadd.f32 %v2454, %v2862
      %v2881 = vld [vmem:[%s2212] sm:$0xe]
      %v2882 = vld [vmem:[%s2212 + $0xc] sm:$0xe]
      %v2883 = vld [vmem:[%s2212 + $0x18] sm:$0xe]
      %v2884 = vld [vmem:[%s2212 + $0x24] sm:$0xe]
      %v2885 = vld [vmem:[%s2212 + $0x30] sm:$0xe]
      %v2886 = vld [vmem:[%s2212 + $0x3c] sm:$0xe]
      %v2887 = vld [vmem:[%s2212 + $0x48] sm:$0xe]
      %v2888 = vld [vmem:[%s2212 + $0x54] sm:$0xe]
      %v2913 = vrot.slane %v2881, 5
      %v2914 = vrot.slane %v2913, 4
      %v2915 = vrot.slane %v2456, 5
      %v2916 = vsel %vm972, %v2914, %v2915
      %v2917 = vrot.slane %v2915, 4
      %v2918 = vrot.slane %v2457, 5
      %v2919 = vsel %vm972, %v2917, %v2918
      %v2920 = vrot.slane %v2882, 5
      %v2921 = vrot.slane %v2920, 4
      %v2922 = vrot.slane %v2459, 5
      %v2923 = vsel %vm972, %v2921, %v2922
      %v2924 = vrot.slane %v2922, 4
      %v2925 = vrot.slane %v2460, 5
      %v2926 = vsel %vm972, %v2924, %v2925
      %v2927 = vrot.slane %v2883, 5
      %v2928 = vrot.slane %v2927, 4
      %v2929 = vrot.slane %v2462, 5
      %v2930 = vsel %vm972, %v2928, %v2929
      %v2931 = vrot.slane %v2929, 4
      %v2932 = vrot.slane %v2463, 5
      %v2933 = vsel %vm972, %v2931, %v2932
      %v2934 = vrot.slane %v2884, 5
      %v2935 = vrot.slane %v2934, 4
      %v2936 = vrot.slane %v2465, 5
      %v2937 = vsel %vm972, %v2935, %v2936
      %v2938 = vrot.slane %v2936, 4
      %v2939 = vrot.slane %v2466, 5
      %v2940 = vsel %vm972, %v2938, %v2939
      %v2941 = vrot.slane %v2885, 5
      %v2942 = vrot.slane %v2941, 4
      %v2943 = vrot.slane %v2468, 5
      %v2944 = vsel %vm972, %v2942, %v2943
      %v2945 = vrot.slane %v2943, 4
      %v2946 = vrot.slane %v2469, 5
      %v2947 = vsel %vm972, %v2945, %v2946
      %v2948 = vrot.slane %v2886, 5
      %v2949 = vrot.slane %v2948, 4
      %v2950 = vrot.slane %v2471, 5
      %v2951 = vsel %vm972, %v2949, %v2950
      %v2952 = vrot.slane %v2950, 4
      %v2953 = vrot.slane %v2472, 5
      %v2954 = vsel %vm972, %v2952, %v2953
      %v2955 = vrot.slane %v2887, 5
      %v2956 = vrot.slane %v2955, 4
      %v2957 = vrot.slane %v2474, 5
      %v2958 = vsel %vm972, %v2956, %v2957
      %v2959 = vrot.slane %v2957, 4
      %v2960 = vrot.slane %v2475, 5
      %v2961 = vsel %vm972, %v2959, %v2960
      %v2962 = vrot.slane %v2888, 5
      %v2963 = vrot.slane %v2962, 4
      %v2964 = vrot.slane %v2477, 5
      %v2965 = vsel %vm972, %v2963, %v2964
      %v2966 = vrot.slane %v2964, 4
      %v2967 = vrot.slane %v2478, 5
      %v2968 = vsel %vm972, %v2966, %v2967
      %s2969 = scalar_lea.vmem %s287, 512
      %v2970 = vld [vmem:[%s2969] sm:$0xf]
      %v2971 = vld [vmem:[%s2969 + $0x4] sm:$0xf]
      %v2972 = vld [vmem:[%s2969 + $0x8] sm:$0xf]
      %v2973 = vld [vmem:[%s2969 + $0xc] sm:$0xf]
      %v2974 = vld [vmem:[%s2969 + $0x10] sm:$0xf]
      %v2975 = vld [vmem:[%s2969 + $0x14] sm:$0xf]
      %v2976 = vld [vmem:[%s2969 + $0x18] sm:$0xf]
      %v2977 = vld [vmem:[%s2969 + $0x1c] sm:$0xf]
      %v2978 = vld [vmem:[%s2969 + $0x20] sm:$0xf]
      %v2979 = vld [vmem:[%s2969 + $0x24] sm:$0xf]
      %v2980 = vld [vmem:[%s2969 + $0x28] sm:$0xf]
      %v2981 = vld [vmem:[%s2969 + $0x2c] sm:$0xf]
      %v2982 = vld [vmem:[%s2969 + $0x30] sm:$0xf]
      %v2983 = vld [vmem:[%s2969 + $0x34] sm:$0xf]
      %v2984 = vld [vmem:[%s2969 + $0x38] sm:$0xf]
      %v2985 = vld [vmem:[%s2969 + $0x3c] sm:$0xf]
      %v2986 = vunpack.c.l.b16 %v2916
      %v2987 = vunpack.c.l.b16 %v2919
      %v2988 = vunpack.c.l.b16 %v2923
      %v2989 = vunpack.c.l.b16 %v2926
      %v2990 = vunpack.c.l.b16 %v2930
      %v2991 = vunpack.c.l.b16 %v2933
      %v2992 = vunpack.c.l.b16 %v2937
      %v2993 = vunpack.c.l.b16 %v2940
      %v2994 = vunpack.c.l.b16 %v2944
      %v2995 = vunpack.c.l.b16 %v2947
      %v2996 = vunpack.c.l.b16 %v2951
      %v2997 = vunpack.c.l.b16 %v2954
      %v2998 = vunpack.c.l.b16 %v2958
      %v2999 = vunpack.c.l.b16 %v2961
      %v3000 = vunpack.c.l.b16 %v2965
      %v3001 = vunpack.c.l.b16 %v2968
      %v3002 = vpack.c.b16 %v2987, %v2986
      %v3003 = vpack.c.b16 %v2989, %v2988
      %v3004 = vpack.c.b16 %v2991, %v2990
      %v3005 = vpack.c.b16 %v2993, %v2992
      %v3006 = vpack.c.b16 %v2995, %v2994
      %v3007 = vpack.c.b16 %v2997, %v2996
      %v3008 = vpack.c.b16 %v2999, %v2998
      %v3009 = vpack.c.b16 %v3001, %v3000
      %v3034 = vunpack.c.l.b16 %v2970
      %v3035 = vunpack.c.l.b16 %v2971
      %v3036 = vunpack.c.l.b16 %v2972
      %v3037 = vunpack.c.l.b16 %v2973
      %v3038 = vunpack.c.l.b16 %v2974
      %v3039 = vunpack.c.l.b16 %v2975
      %v3040 = vunpack.c.l.b16 %v2976
      %v3041 = vunpack.c.l.b16 %v2977
      %v3042 = vunpack.c.l.b16 %v2978
      %v3043 = vunpack.c.l.b16 %v2979
      %v3044 = vunpack.c.l.b16 %v2980
      %v3045 = vunpack.c.l.b16 %v2981
      %v3046 = vunpack.c.l.b16 %v2982
      %v3047 = vunpack.c.l.b16 %v2983
      %v3048 = vunpack.c.l.b16 %v2984
      %v3049 = vunpack.c.l.b16 %v2985
      %v3050 = vpack.c.b16 %v3035, %v3034
      %v3051 = vpack.c.b16 %v3037, %v3036
      %v3052 = vpack.c.b16 %v3039, %v3038
      %v3053 = vpack.c.b16 %v3041, %v3040
      %v3054 = vpack.c.b16 %v3043, %v3042
      %v3055 = vpack.c.b16 %v3045, %v3044
      %v3056 = vpack.c.b16 %v3047, %v3046
      %v3057 = vpack.c.b16 %v3049, %v3048
      %3066 = vmatprep.subr.bf16.mxu0 0
      %3067 = vmatpush1.bf16.msra.mxu0 %v3057
      %3068 = vmatprep.subr.bf16.mxu0 0
      %3069 = vmatpush1.bf16.msra.mxu0 %v3056
      %3070 = vmatprep.subr.bf16.mxu0 0
      %3071 = vmatpush1.bf16.msra.mxu0 %v3055
      %3072 = vmatprep.subr.bf16.mxu0 0
      %3073 = vmatpush1.bf16.msra.mxu0 %v3054
      %3074 = vmatprep.subr.bf16.mxu0 0
      %3075 = vmatpush1.bf16.msra.mxu0 %v3053
      %3076 = vmatprep.subr.bf16.mxu0 0
      %3077 = vmatpush1.bf16.msra.mxu0 %v3052
      %3078 = vmatprep.subr.bf16.mxu0 0
      %3079 = vmatpush1.bf16.msra.mxu0 %v3051
      %3080 = vmatprep.subr.bf16.mxu0 0
      %3081 = vmatpush1.bf16.msra.mxu0 %v3050
      %3082 = vmatprep.subr.bf16.mxu0 0
      %3083 = vmatpush2.bf16.msra.mxu0 0
      %3084 = vmatprep.subr.bf16.mxu0 0
      %3085 = vmatpush2.bf16.msra.mxu0 0
      %3086 = vmatprep.subr.bf16.mxu0 0
      %3087 = vmatpush2.bf16.msra.mxu0 0
      %3088 = vmatprep.subr.bf16.mxu0 0
      %3089 = vmatpush2.bf16.msra.mxu0 0
      %3090 = vmatprep.subr.bf16.mxu0 0
      %3091 = vmatpush2.bf16.msra.mxu0 0
      %3092 = vmatprep.subr.bf16.mxu0 0
      %3093 = vmatpush2.bf16.msra.mxu0 0
      %3094 = vmatprep.subr.bf16.mxu0 0
      %3095 = vmatpush2.bf16.msra.mxu0 0
      %3096 = vmatprep.subr.bf16.mxu0 0
      %3097 = vmatpush2.bf16.msra.mxu0 0
      %3098 = vmatprep.mubr.bf16.mxu0 0
      %3099 = vmatmul.mubr.bf16.gmra.mxu0 %v3002
      %v3100 = vpop.f32.mrf.mxu0
      %v3101 = vadd.f32 0.0, %v3100
      %v3102 = vpop.f32.mrf.mxu0
      %v3103 = vpop.f32.mrf.mxu0
      %v3104 = vadd.f32 0.0, %v3103
      %v3105 = vpop.f32.mrf.mxu0
      %3106 = vmatprep.mubr.bf16.mxu0 0
      %3107 = vmatmul.mubr.bf16.gmra.mxu0 %v3003
      %v3108 = vpop.f32.mrf.mxu0
      %v3109 = vadd.f32 0.0, %v3108
      %v3110 = vpop.f32.mrf.mxu0
      %v3111 = vpop.f32.mrf.mxu0
      %v3112 = vadd.f32 0.0, %v3111
      %v3113 = vpop.f32.mrf.mxu0
      %3114 = vmatprep.mubr.bf16.mxu0 0
      %3115 = vmatmul.mubr.bf16.gmra.mxu0 %v3004
      %v3116 = vpop.f32.mrf.mxu0
      %v3117 = vadd.f32 0.0, %v3116
      %v3118 = vpop.f32.mrf.mxu0
      %v3119 = vpop.f32.mrf.mxu0
      %v3120 = vadd.f32 0.0, %v3119
      %v3121 = vpop.f32.mrf.mxu0
      %3122 = vmatprep.mubr.bf16.mxu0 0
      %3123 = vmatmul.mubr.bf16.gmra.mxu0 %v3005
      %v3124 = vpop.f32.mrf.mxu0
      %v3125 = vadd.f32 0.0, %v3124
      %v3126 = vpop.f32.mrf.mxu0
      %v3127 = vpop.f32.mrf.mxu0
      %v3128 = vadd.f32 0.0, %v3127
      %v3129 = vpop.f32.mrf.mxu0
      %3130 = vmatprep.mubr.bf16.mxu0 0
      %3131 = vmatmul.mubr.bf16.gmra.mxu0 %v3006
      %v3132 = vpop.f32.mrf.mxu0
      %v3133 = vadd.f32 0.0, %v3132
      %v3134 = vpop.f32.mrf.mxu0
      %v3135 = vpop.f32.mrf.mxu0
      %v3136 = vadd.f32 0.0, %v3135
      %v3137 = vpop.f32.mrf.mxu0
      %3138 = vmatprep.mubr.bf16.mxu0 0
      %3139 = vmatmul.mubr.bf16.gmra.mxu0 %v3007
      %v3140 = vpop.f32.mrf.mxu0
      %v3141 = vadd.f32 0.0, %v3140
      %v3142 = vpop.f32.mrf.mxu0
      %v3143 = vpop.f32.mrf.mxu0
      %v3144 = vadd.f32 0.0, %v3143
      %v3145 = vpop.f32.mrf.mxu0
      %3146 = vmatprep.mubr.bf16.mxu0 0
      %3147 = vmatmul.mubr.bf16.gmra.mxu0 %v3008
      %v3148 = vpop.f32.mrf.mxu0
      %v3149 = vadd.f32 0.0, %v3148
      %v3150 = vpop.f32.mrf.mxu0
      %v3151 = vpop.f32.mrf.mxu0
      %v3152 = vadd.f32 0.0, %v3151
      %v3153 = vpop.f32.mrf.mxu0
      %3154 = vmatprep.mubr.bf16.mxu0 0
      %3155 = vmatmul.mubr.bf16.gmra.mxu0 %v3009
      %v3156 = vpop.f32.mrf.mxu0
      %v3157 = vadd.f32 0.0, %v3156
      %v3158 = vpop.f32.mrf.mxu0
      %v3159 = vpop.f32.mrf.mxu0
      %v3160 = vadd.f32 0.0, %v3159
      %v3161 = vpop.f32.mrf.mxu0
      %3162 = vdwg.mxu0
      %v3163 = vadd.f32 %v2865, %v3101
      %v3164 = vadd.f32 %v2866, %v3104
      %v3165 = vadd.f32 %v2867, %v3109
      %v3166 = vadd.f32 %v2868, %v3112
      %v3167 = vadd.f32 %v2869, %v3117
      %v3168 = vadd.f32 %v2870, %v3120
      %v3169 = vadd.f32 %v2871, %v3125
      %v3170 = vadd.f32 %v2872, %v3128
      %v3171 = vadd.f32 %v2873, %v3133
      %v3172 = vadd.f32 %v2874, %v3136
      %v3173 = vadd.f32 %v2875, %v3141
      %v3174 = vadd.f32 %v2876, %v3144
      %v3175 = vadd.f32 %v2877, %v3149
      %v3176 = vadd.f32 %v2878, %v3152
      %v3177 = vadd.f32 %v2879, %v3157
      %v3178 = vadd.f32 %v2880, %v3160
      %v3179 = vld [vmem:[%s290] sm:$0x1]
      %v3181 = vlaneseq
      %v3182 = vshrl.u32 %v3181, 7
      %v3183 = vsub.s32 0, %v3182
      %v3184 = vrot.slane %v3179, %v3183
      %v3186 = vadd.f32 %v3163, %v3184
      %v3187 = vadd.f32 %v3164, %v3184
      %v3188 = vadd.f32 %v3165, %v3184
      %v3189 = vadd.f32 %v3166, %v3184
      %v3190 = vadd.f32 %v3167, %v3184
      %v3191 = vadd.f32 %v3168, %v3184
      %v3192 = vadd.f32 %v3169, %v3184
      %v3193 = vadd.f32 %v3170, %v3184
      %v3194 = vadd.f32 %v3171, %v3184
      %v3195 = vadd.f32 %v3172, %v3184
      %v3196 = vadd.f32 %v3173, %v3184
      %v3197 = vadd.f32 %v3174, %v3184
      %v3198 = vadd.f32 %v3175, %v3184
      %v3199 = vadd.f32 %v3176, %v3184
      %v3200 = vadd.f32 %v3177, %v3184
      %v3201 = vadd.f32 %v3178, %v3184
      %v3202 = vld [vmem:[%s303] sm:$0xf]
      %v3203 = vld [vmem:[%s303 + $0x4] sm:$0xf]
      %v3204 = vld [vmem:[%s303 + $0x8] sm:$0xf]
      %v3205 = vld [vmem:[%s303 + $0xc] sm:$0xf]
      %v3206 = vld [vmem:[%s303 + $0x10] sm:$0xf]
      %v3207 = vld [vmem:[%s303 + $0x14] sm:$0xf]
      %v3208 = vld [vmem:[%s303 + $0x18] sm:$0xf]
      %v3209 = vld [vmem:[%s303 + $0x1c] sm:$0xf]
      %v3210 = vld [vmem:[%s303 + $0x20] sm:$0xf]
      %v3211 = vld [vmem:[%s303 + $0x24] sm:$0xf]
      %v3212 = vld [vmem:[%s303 + $0x28] sm:$0xf]
      %v3213 = vld [vmem:[%s303 + $0x2c] sm:$0xf]
      %v3214 = vld [vmem:[%s303 + $0x30] sm:$0xf]
      %v3215 = vld [vmem:[%s303 + $0x34] sm:$0xf]
      %v3216 = vld [vmem:[%s303 + $0x38] sm:$0xf]
      %v3217 = vld [vmem:[%s303 + $0x3c] sm:$0xf]
      %v3218 = vunpack.c.l.bf16 %v3202
      %v3219 = vunpack.c.l.bf16 %v3203
      %v3220 = vunpack.c.l.bf16 %v3204
      %v3221 = vunpack.c.l.bf16 %v3205
      %v3222 = vunpack.c.l.bf16 %v3206
      %v3223 = vunpack.c.l.bf16 %v3207
      %v3224 = vunpack.c.l.bf16 %v3208
      %v3225 = vunpack.c.l.bf16 %v3209
      %v3226 = vunpack.c.l.bf16 %v3210
      %v3227 = vunpack.c.l.bf16 %v3211
      %v3228 = vunpack.c.l.bf16 %v3212
      %v3229 = vunpack.c.l.bf16 %v3213
      %v3230 = vunpack.c.l.bf16 %v3214
      %v3231 = vunpack.c.l.bf16 %v3215
      %v3232 = vunpack.c.l.bf16 %v3216
      %v3233 = vunpack.c.l.bf16 %v3217
      %v3234 = vadd.f32 %v3186, %v3218
      %v3235 = vadd.f32 %v3187, %v3219
      %v3236 = vadd.f32 %v3188, %v3220
      %v3237 = vadd.f32 %v3189, %v3221
      %v3238 = vadd.f32 %v3190, %v3222
      %v3239 = vadd.f32 %v3191, %v3223
      %v3240 = vadd.f32 %v3192, %v3224
      %v3241 = vadd.f32 %v3193, %v3225
      %v3242 = vadd.f32 %v3194, %v3226
      %v3243 = vadd.f32 %v3195, %v3227
      %v3244 = vadd.f32 %v3196, %v3228
      %v3245 = vadd.f32 %v3197, %v3229
      %v3246 = vadd.f32 %v3198, %v3230
      %v3247 = vadd.f32 %v3199, %v3231
      %v3248 = vadd.f32 %v3200, %v3232
      %v3249 = vadd.f32 %v3201, %v3233
      %v3250 = vmax.f32 %v3234, 0.0
      %v3251 = vmax.f32 %v3235, 0.0
      %v3252 = vmax.f32 %v3236, 0.0
      %v3253 = vmax.f32 %v3237, 0.0
      %v3254 = vmax.f32 %v3238, 0.0
      %v3255 = vmax.f32 %v3239, 0.0
      %v3256 = vmax.f32 %v3240, 0.0
      %v3257 = vmax.f32 %v3241, 0.0
      %v3258 = vmax.f32 %v3242, 0.0
      %v3259 = vmax.f32 %v3243, 0.0
      %v3260 = vmax.f32 %v3244, 0.0
      %v3261 = vmax.f32 %v3245, 0.0
      %v3262 = vmax.f32 %v3246, 0.0
      %v3263 = vmax.f32 %v3247, 0.0
      %v3264 = vmax.f32 %v3248, 0.0
      %v3265 = vmax.f32 %v3249, 0.0
      %3266 = vst [vmem:[%s317] sm:$0xff] %v3250
      %3267 = vst [vmem:[%s317 + $0x8] sm:$0xff] %v3251
      %3268 = vst [vmem:[%s317 + $0x10] sm:$0xff] %v3252
      %3269 = vst [vmem:[%s317 + $0x18] sm:$0xff] %v3253
      %3270 = vst [vmem:[%s317 + $0x20] sm:$0xff] %v3254
      %3271 = vst [vmem:[%s317 + $0x28] sm:$0xff] %v3255
      %3272 = vst [vmem:[%s317 + $0x30] sm:$0xff] %v3256
      %3273 = vst [vmem:[%s317 + $0x38] sm:$0xff] %v3257
      %3274 = vst [vmem:[%s317 + $0x40] sm:$0xff] %v3258
      %3275 = vst [vmem:[%s317 + $0x48] sm:$0xff] %v3259
      %3276 = vst [vmem:[%s317 + $0x50] sm:$0xff] %v3260
      %3277 = vst [vmem:[%s317 + $0x58] sm:$0xff] %v3261
      %3278 = vst [vmem:[%s317 + $0x60] sm:$0xff] %v3262
      %3279 = vst [vmem:[%s317 + $0x68] sm:$0xff] %v3263
      %3280 = vst [vmem:[%s317 + $0x70] sm:$0xff] %v3264
      %3281 = vst [vmem:[%s317 + $0x78] sm:$0xff] %v3265
      %s3282 = smul.u32 8, %s22
      %p3283 = scmp.lt.s32.totalorder %s20, 1
      %s3284 = scalar_select %p3283, %s20, 1
      %p3285 = scmp.lt.s32.totalorder %s3282, 15
      %s3286 = scalar_select %p3285, %s3282, 15
      %p3287 = scmp.lt.s32.totalorder %s21, 0
      %s3288 = scalar_select %p3287, %s21, 0
      %s3289 = smul.addr %s3286, 2
      %s3290 = sadd.s32 %s3288, %s3289
      %s3291 = smul.addr %s3284, 32
      %s3292 = sadd.s32 %s3290, %s3291
      %s3293 = smul.addr %s3292, 8
      %s3294 = scalar_lea.vmem %s4, %s3293
      // Predicated region
      $region37: #{up_proj_module.3} parent=35 // pred_check
        %p3295 = pneg %p164
      $region38: #{up_proj_module.3} parent=35 // pred_check_branch
        %3297 = sbr.rel (%p3295) target = $region40
      $region39: #{up_proj_module.3} parent=35 // pred_region
        %s3298 = smul.u32 8, %s22
      $region40: #{up_proj_module.3} parent=35 // pred_fallthru
        _
    $region36: #{up_proj_module.3} parent=5 // pred_fallthru
      _
    %p3299 = scmp.le.s32.totalorder 2, %s10
    // Predicated region
    $region41: #{up_proj_module.3} parent=5 // pred_check
      %p3300 = pneg %p3299
    $region42: #{up_proj_module.3} parent=5 // pred_check_branch
      %3302 = sbr.rel (%p3300) target = $region44
    $region43: #{up_proj_module.3} parent=5 // pred_region
      %s3303 = ssub.s32 %s10, 2
      // Predicated region
      $region45: #{up_proj_module.3} parent=43 // pred_check
        %p3304 = pneg %p170
      $region46: #{up_proj_module.3} parent=43 // pred_check_branch
        %3306 = sbr.rel (%p3304) target = $region48
      $region47: #{up_proj_module.3} parent=43 // pred_region
        %s3307 = smul.u32 8, %s25
        %p3308 = scmp.lt.s32.totalorder %s23, 1
        %s3309 = scalar_select %p3308, %s23, 1
        %p3310 = scmp.lt.s32.totalorder %s3307, 15
        %s3311 = scalar_select %p3310, %s3307, 15
        %p3312 = scmp.lt.s32.totalorder %s24, 0
        %s3313 = scalar_select %p3312, %s24, 0
        %s3314 = smul.addr %s3311, 2
        %s3315 = sadd.s32 %s3313, %s3314
        %s3316 = smul.addr %s3309, 32
        %s3317 = sadd.s32 %s3315, %s3316
        %s3318 = smul.addr %s3317, 8
        %s3319 = scalar_lea.vmem %s4, %s3318
      $region48: #{up_proj_module.3} parent=43 // pred_fallthru
        _
    $region44: #{up_proj_module.3} parent=5 // pred_fallthru
      _
  $region6: #{up_proj_module.3} parent=0 // loop_footer
    %s14 = sadd.s32 1, %s10
  $region7: #{up_proj_module.3} parent=0 // loop_footer_branch
    %9 = sbr.rel target = $region3
  $region8: #{up_proj_module.3} parent=0 // loop_exit
    _

</llo_original>
